<compile_context>
chip_gen: v5e
topology: v5e:2x2
jax: 0.10.0
libtpu: 0.0.40
codegen_flags: <defaults>
</compile_context>

<pallas_src>
import jax
import jax.numpy as jnp
from jax.experimental import pallas as pl
from jax.experimental.pallas import tpu as pltpu

EPS = 1e-5  # nn.GroupNorm default eps


# ---------------------------------------------------------------------------
# in-kernel math helpers (traced inside the Pallas kernel)
# ---------------------------------------------------------------------------
def _elu(x):
    # ELU(alpha=1). exp(min(x,0))-1 avoids overflow on the dead branch; the tiny
    # precision loss near 0 is far below the bf16 matmul noise floor.
    return jnp.where(x > 0, x, jnp.exp(jnp.minimum(x, 0.0)) - 1.0)


def _masked_group_norm(h, mask, gmat, gamma, beta, denom):
    """GroupNorm over the valid rows (mask == 1) of an (HWo, C) tile.

    gmat[i, j] = 1 iff channels i, j share a group, so (per_channel_sums @ gmat)
    gives per-channel *group* sums without any in-kernel reshape.  Two-pass
    statistics (mean first, then centered sum of squares) for numerical robustness.
    """
    s = jnp.sum(h * mask, axis=0, keepdims=True)                       # (1, C)
    mean = jnp.dot(s, gmat, preferred_element_type=jnp.float32) / denom
    c = h - mean
    ss = jnp.sum(mask * (c * c), axis=0, keepdims=True)                # (1, C)
    var = jnp.dot(ss, gmat, preferred_element_type=jnp.float32) / denom
    inv = jax.lax.rsqrt(var + EPS)
    return c * inv * gamma + beta


def _group_matrix(channels, num_groups):
    cpg = channels // num_groups
    gid = jnp.arange(channels) // cpg
    return (gid[:, None] == gid[None, :]).astype(jnp.float32)          # (C, C)


# ---------------------------------------------------------------------------
# fused Pallas forward
# ---------------------------------------------------------------------------
def vae_residual_block_pallas(x_nchw, params, num_groups=16):
    """Forward pass of VAE_ResidualBlock. x: (N, Cin, H, W) f32 -> (N, Cout, H, W) f32."""
    x = jnp.transpose(x_nchw, (0, 2, 3, 1)).astype(jnp.float32)        # NCHW -> NHWC
    N, H, W, Cin = x.shape
    Wp = W + 2                      # padded width
    HWo = H * Wp                    # rows of the over-width output grid
    HWi = (H + 3) * Wp              # rows of the flattened padded input (extra slack row)

    C1 = params["w1"].shape[-1]     # out_channels // 2
    C2 = params["w2"].shape[-1]     # out_channels
    has_res_conv = "wr" in params   # nn.Identity residual => no residual weights
    CT = C1 + C2 if has_res_conv else C1
    denom1 = float(H * W * (C1 // num_groups))
    denom2 = float(H * W * (C2 // num_groups))

    # ---- cheap host-side prep (1-pixel zero pad + reshapes; NO im2col) ------
    xp = jnp.pad(x, ((0, 0), (1, 2), (1, 1), (0, 0))).reshape(N, HWi, Cin)

    w1 = params["w1"].reshape(9, Cin, C1)
    if has_res_conv:
        wa = jnp.concatenate([w1, params["wr"].reshape(9, Cin, C2)], axis=-1)
        ba = jnp.concatenate([params["b1"], params["br"]]).reshape(1, CT)
    else:
        wa = w1
        ba = params["b1"].reshape(1, C1)
    wa = wa.astype(jnp.bfloat16)                                       # MXU-native
    w2 = params["w2"].reshape(9, C1, C2).astype(jnp.bfloat16)
    b2 = params["b2"].reshape(1, C2)
    g1w = params["gamma1"].reshape(1, C1)
    g1b = params["beta1"].reshape(1, C1)
    g2w = params["gamma2"].reshape(1, C2)
    g2b = params["beta2"].reshape(1, C2)
    gmat1 = _group_matrix(C1, num_groups)
    gmat2 = _group_matrix(C2, num_groups)
    # 1.0 at real pixels of the (H, Wp) over-width grid, 0.0 at the 2 wrap columns
    mask = (jnp.arange(HWo) % Wp < W).astype(jnp.float32).reshape(HWo, 1)

    def kernel(xp_ref, wa_ref, w2_ref, ba_ref, b2_ref,
               gm1_ref, g1w_ref, g1b_ref, gm2_ref, g2w_ref, g2b_ref,
               mask_ref, out_ref, h1pad_ref):
        m = mask_ref[...]                                              # (HWo, 1)

        # ---- conv1 (+ residual conv fused in the same matmul): 9 shifted matmuls
        acc = jnp.zeros((HWo, CT), jnp.float32)
        for t in range(9):
            o = (t // 3) * Wp + (t % 3)
            lhs = xp_ref[0, o:o + HWo, :].astype(jnp.bfloat16)         # (HWo, Cin)
            acc = acc + jnp.dot(lhs, wa_ref[t],
                                preferred_element_type=jnp.float32)
        acc = acc + ba_ref[...]

        h = acc[:, :C1]                                                # conv1 + b1
        if has_res_conv:
            res = acc[:, C1:]                                          # residual conv + br
        else:
            # identity residual: just re-read the unshifted input pixels (no matmul)
            res = xp_ref[0, Wp + 1:Wp + 1 + HWo, :].astype(jnp.float32)

        # ---- GroupNorm_pre + ELU; zero the pad/wrap rows so they double as
        # the zero padding of conv2's input
        a1 = _elu(_masked_group_norm(h, m, gm1_ref[...], g1w_ref[...],
                                     g1b_ref[...], denom1)) * m

        # ---- stage 2: stage-1 result -> zero-padded VMEM scratch, conv2 = 9 shifted matmuls
        h1pad_ref[...] = jnp.zeros_like(h1pad_ref)
        h1pad_ref[Wp + 1:Wp + 1 + HWo, :] = a1

        acc2 = jnp.zeros((HWo, C2), jnp.float32)
        for t in range(9):
            o = (t // 3) * Wp + (t % 3)
            lhs2 = h1pad_ref[o:o + HWo, :].astype(jnp.bfloat16)
            acc2 = acc2 + jnp.dot(lhs2, w2_ref[t],
                                  preferred_element_type=jnp.float32)
        y2 = acc2 + b2_ref[...] + res

        # ---- residual add done; GroupNorm_post + ELU, single output write
        out_ref[0] = _elu(_masked_group_norm(y2, m, gm2_ref[...], g2w_ref[...],
                                             g2b_ref[...], denom2))

    rep2 = lambda n: (0, 0)
    rep3 = lambda n: (0, 0, 0)
    y = pl.pallas_call(
        kernel,
        out_shape=jax.ShapeDtypeStruct((N, HWo, C2), jnp.float32),
        grid=(N,),
        in_specs=[
            pl.BlockSpec((1, HWi, Cin), lambda n: (n, 0, 0)),          # padded input
            pl.BlockSpec((9, Cin, CT), rep3),                          # conv1[+res] weights (bf16)
            pl.BlockSpec((9, C1, C2), rep3),                           # conv2 weights (bf16)
            pl.BlockSpec((1, CT), rep2),                               # conv1[+res] bias
            pl.BlockSpec((1, C2), rep2),                               # conv2 bias
            pl.BlockSpec((C1, C1), rep2),                              # group matrix 1
            pl.BlockSpec((1, C1), rep2),                               # gamma1
            pl.BlockSpec((1, C1), rep2),                               # beta1
            pl.BlockSpec((C2, C2), rep2),                              # group matrix 2
            pl.BlockSpec((1, C2), rep2),                               # gamma2
            pl.BlockSpec((1, C2), rep2),                               # beta2
            pl.BlockSpec((HWo, 1), rep2),                              # valid-pixel mask
        ],
        out_specs=pl.BlockSpec((1, HWo, C2), lambda n: (n, 0, 0)),
        scratch_shapes=[pltpu.VMEM((HWi, C1), jnp.float32)],           # padded conv2 input
        compiler_params=pltpu.CompilerParams(dimension_semantics=("parallel",)),
    )(xp, wa, w2, ba, b2, gmat1, g1w, g1b, gmat2, g2w, g2b, mask)

    # drop the 2 wrap columns per row, back to NCHW
    y = y.reshape(N, H, Wp, C2)[:, :, :W, :]
    return jnp.transpose(y, (0, 3, 1, 2))


# ---------------------------------------------------------------------------
# deterministic parameter init (shapes from VAE_ResidualBlock.__init__)
# ---------------------------------------------------------------------------
def init_params(key, in_channels, out_channels):
    c1 = out_channels // 2
    ks = jax.random.split(key, 10)
    s = 0.1
    p = {
        "w1": s * jax.random.normal(ks[0], (3, 3, in_channels, c1), jnp.float32),
        "b1": s * jax.random.normal(ks[1], (c1,), jnp.float32),
        "w2": s * jax.random.normal(ks[2], (3, 3, c1, out_channels), jnp.float32),
        "b2": s * jax.random.normal(ks[3], (out_channels,), jnp.float32),
        "gamma1": 1.0 + s * jax.random.normal(ks[4], (c1,), jnp.float32),
        "beta1": s * jax.random.normal(ks[5], (c1,), jnp.float32),
        "gamma2": 1.0 + s * jax.random.normal(ks[6], (out_channels,), jnp.float32),
        "beta2": s * jax.random.normal(ks[7], (out_channels,), jnp.float32),
    }
    if in_channels != out_channels:
        p["wr"] = s * jax.random.normal(ks[8], (3, 3, in_channels, out_channels), jnp.float32)
        p["br"] = s * jax.random.normal(ks[9], (out_channels,), jnp.float32)
    # in_channels == out_channels -> nn.Identity(): no residual weights / no matmul
    return p


# ---------------------------------------------------------------------------
# plain-JAX reference (mirrors the PyTorch forward) for correctness check
# ---------------------------------------------------------------------------
def ref_forward(x_nchw, params, num_groups=16):
    x = jnp.transpose(x_nchw, (0, 2, 3, 1)).astype(jnp.float32)

    def conv(h, w, b):
        y = jax.lax.conv_general_dilated(
            h, w, (1, 1), [(1, 1), (1, 1)],
            dimension_numbers=("NHWC", "HWIO", "NHWC"))
        return y + b

    def gn(h, gamma, beta):
        n, hh, ww, c = h.shape
        hr = h.reshape(n, hh, ww, num_groups, c // num_groups)
        mean = hr.mean(axis=(1, 2, 4), keepdims=True)
        var = hr.var(axis=(1, 2, 4), keepdims=True)
        hr = (hr - mean) / jnp.sqrt(var + EPS)
        return hr.reshape(n, hh, ww, c) * gamma + beta

    def elu(h):
        return jnp.where(h > 0, h, jnp.expm1(h))

    residue = conv(x, params["wr"], params["br"]) if "wr" in params else x
    h = elu(gn(conv(x, params["w1"], params["b1"]), params["gamma1"], params["beta1"]))
    h = conv(h, params["w2"], params["b2"])
    out = elu(gn(h + residue, params["gamma2"], params["beta2"]))
    return jnp.transpose(out, (0, 3, 1, 2))


if __name__ == "__main__":
    key = jax.random.PRNGKey(0)
    kx, kp, kx2, kp2 = jax.random.split(key, 4)

    # case 1: in_channels != out_channels (residual conv path, fused into conv1 matmul)
    N, Cin, Cout, H, W = 2, 16, 32, 16, 16        # num_groups=16 -> Cout//2 must be >= 16
    x = jax.random.normal(kx, (N, Cin, H, W), jnp.float32)          # NCHW, like PyTorch
    params = init_params(kp, Cin, Cout)

    out = jax.block_until_ready(vae_residual_block_pallas(x, params, num_groups=16))
    ref = jax.block_until_ready(ref_forward(x, params, num_groups=16))
    assert out.shape == (N, Cout, H, W), out.shape
    max_err = float(jnp.max(jnp.abs(out - ref)))
    mean_err = float(jnp.mean(jnp.abs(out - ref)))
    # bf16 matmul operands vs f32 reference: tolerance well above bf16 noise, well below signal
    assert max_err < 0.1 and mean_err < 0.02, (max_err, mean_err)

    # case 2: in_channels == out_channels (nn.Identity residual, residual matmul skipped)
    x2 = jax.random.normal(kx2, (N, Cout, H, W), jnp.float32)
    params2 = init_params(kp2, Cout, Cout)
    out2 = jax.block_until_ready(vae_residual_block_pallas(x2, params2, num_groups=16))
    ref2 = jax.block_until_ready(ref_forward(x2, params2, num_groups=16))
    assert out2.shape == (N, Cout, H, W), out2.shape
    max_err2 = float(jnp.max(jnp.abs(out2 - ref2)))
    mean_err2 = float(jnp.mean(jnp.abs(out2 - ref2)))
    assert max_err2 < 0.1 and mean_err2 < 0.02, (max_err2, mean_err2)

    print("KERNEL_OK")
</pallas_src>

<mosaic_0001>
module attributes {stable_mosaic.version = 11 : i64} {
  func.func @kernel(%arg0: i32, %arg1: memref<1x342x16xf32, #tpu.memory_space<vmem>>, %arg2: memref<9x16x48xbf16, #tpu.memory_space<vmem>>, %arg3: memref<9x16x32xbf16, #tpu.memory_space<vmem>>, %arg4: memref<1x48xf32, #tpu.memory_space<vmem>>, %arg5: memref<1x32xf32, #tpu.memory_space<vmem>>, %arg6: memref<16x16xf32, #tpu.memory_space<vmem>>, %arg7: memref<1x16xf32, #tpu.memory_space<vmem>>, %arg8: memref<1x16xf32, #tpu.memory_space<vmem>>, %arg9: memref<32x32xf32, #tpu.memory_space<vmem>>, %arg10: memref<1x32xf32, #tpu.memory_space<vmem>>, %arg11: memref<1x32xf32, #tpu.memory_space<vmem>>, %arg12: memref<288x1xf32, #tpu.memory_space<vmem>>, %arg13: memref<1x288x32xf32, #tpu.memory_space<vmem>>, %arg14: memref<342x16xf32, #tpu.memory_space<vmem>>) attributes {dimension_semantics = [#tpu.dimension_semantics<parallel>], iteration_bounds = array<i64: 2>, scalar_prefetch = 0 : i64, scratch_operands = 1 : i64, tpu.core_type = #tpu.core_type<tc>, window_params = [{transform_indices = @transform_0, window_bounds = array<i64: 1, 342, 16>}, {pipeline_mode = #tpu.pipeline_mode<synchronous>, transform_indices = @transform_1, window_bounds = array<i64: 9, 16, 48>}, {pipeline_mode = #tpu.pipeline_mode<synchronous>, transform_indices = @transform_2, window_bounds = array<i64: 9, 16, 32>}, {pipeline_mode = #tpu.pipeline_mode<synchronous>, transform_indices = @transform_3, window_bounds = array<i64: 1, 48>}, {pipeline_mode = #tpu.pipeline_mode<synchronous>, transform_indices = @transform_4, window_bounds = array<i64: 1, 32>}, {pipeline_mode = #tpu.pipeline_mode<synchronous>, transform_indices = @transform_5, window_bounds = array<i64: 16, 16>}, {pipeline_mode = #tpu.pipeline_mode<synchronous>, transform_indices = @transform_6, window_bounds = array<i64: 1, 16>}, {pipeline_mode = #tpu.pipeline_mode<synchronous>, transform_indices = @transform_7, window_bounds = array<i64: 1, 16>}, {pipeline_mode = #tpu.pipeline_mode<synchronous>, transform_indices = @transform_8, window_bounds = array<i64: 32, 32>}, {pipeline_mode = #tpu.pipeline_mode<synchronous>, transform_indices = @transform_9, window_bounds = array<i64: 1, 32>}, {pipeline_mode = #tpu.pipeline_mode<synchronous>, transform_indices = @transform_10, window_bounds = array<i64: 1, 32>}, {pipeline_mode = #tpu.pipeline_mode<synchronous>, transform_indices = @transform_11, window_bounds = array<i64: 288, 1>}, {transform_indices = @transform_12, window_bounds = array<i64: 1, 288, 32>}]} {
    %c0 = arith.constant 0 : index
    %c0_0 = arith.constant 0 : index
    %0 = vector.load %arg12[%c0, %c0_0] : memref<288x1xf32, #tpu.memory_space<vmem>>, vector<288x1xf32>
    %cst = arith.constant 0.000000e+00 : f32
    %1 = vector.broadcast %cst : f32 to vector<288x48xf32>
    %c0_1 = arith.constant 0 : index
    %c0_2 = arith.constant 0 : index
    %c0_3 = arith.constant 0 : index
    %2 = vector.load %arg1[%c0_1, %c0_2, %c0_3] : memref<1x342x16xf32, #tpu.memory_space<vmem>>, vector<1x288x16xf32>
    %3 = vector.shape_cast %2 : vector<1x288x16xf32> to vector<288x16xf32>
    %4 = arith.truncf %3 : vector<288x16xf32> to vector<288x16xbf16>
    %c0_4 = arith.constant 0 : index
    %c0_5 = arith.constant 0 : index
    %c0_6 = arith.constant 0 : index
    %5 = vector.load %arg2[%c0_4, %c0_5, %c0_6] : memref<9x16x48xbf16, #tpu.memory_space<vmem>>, vector<1x16x48xbf16>
    %6 = vector.shape_cast %5 : vector<1x16x48xbf16> to vector<16x48xbf16>
    %cst_7 = arith.constant dense<0.000000e+00> : vector<288x48xf32>
    %7 = tpu.matmul %4, %6, %cst_7 {dimension_numbers = #tpu.dot_dimension_numbers<[1], [0], [0], [1], [0, 0, 1, 1], [], []>} : vector<288x16xbf16>, vector<16x48xbf16>, vector<288x48xf32> -> vector<288x48xf32>
    %8 = arith.addf %1, %7 : vector<288x48xf32>
    %c0_8 = arith.constant 0 : index
    %c1 = arith.constant 1 : index
    %c0_9 = arith.constant 0 : index
    %9 = vector.load %arg1[%c0_8, %c1, %c0_9] : memref<1x342x16xf32, #tpu.memory_space<vmem>>, vector<1x288x16xf32>
    %10 = vector.shape_cast %9 : vector<1x288x16xf32> to vector<288x16xf32>
    %11 = arith.truncf %10 : vector<288x16xf32> to vector<288x16xbf16>
    %c1_10 = arith.constant 1 : index
    %c0_11 = arith.constant 0 : index
    %c0_12 = arith.constant 0 : index
    %12 = vector.load %arg2[%c1_10, %c0_11, %c0_12] : memref<9x16x48xbf16, #tpu.memory_space<vmem>>, vector<1x16x48xbf16>
    %13 = vector.shape_cast %12 : vector<1x16x48xbf16> to vector<16x48xbf16>
    %cst_13 = arith.constant dense<0.000000e+00> : vector<288x48xf32>
    %14 = tpu.matmul %11, %13, %cst_13 {dimension_numbers = #tpu.dot_dimension_numbers<[1], [0], [0], [1], [0, 0, 1, 1], [], []>} : vector<288x16xbf16>, vector<16x48xbf16>, vector<288x48xf32> -> vector<288x48xf32>
    %15 = arith.addf %8, %14 : vector<288x48xf32>
    %c0_14 = arith.constant 0 : index
    %c2 = arith.constant 2 : index
    %c0_15 = arith.constant 0 : index
    %16 = vector.load %arg1[%c0_14, %c2, %c0_15] : memref<1x342x16xf32, #tpu.memory_space<vmem>>, vector<1x288x16xf32>
    %17 = vector.shape_cast %16 : vector<1x288x16xf32> to vector<288x16xf32>
    %18 = arith.truncf %17 : vector<288x16xf32> to vector<288x16xbf16>
    %c2_16 = arith.constant 2 : index
    %c0_17 = arith.constant 0 : index
    %c0_18 = arith.constant 0 : index
    %19 = vector.load %arg2[%c2_16, %c0_17, %c0_18] : memref<9x16x48xbf16, #tpu.memory_space<vmem>>, vector<1x16x48xbf16>
    %20 = vector.shape_cast %19 : vector<1x16x48xbf16> to vector<16x48xbf16>
    %cst_19 = arith.constant dense<0.000000e+00> : vector<288x48xf32>
    %21 = tpu.matmul %18, %20, %cst_19 {dimension_numbers = #tpu.dot_dimension_numbers<[1], [0], [0], [1], [0, 0, 1, 1], [], []>} : vector<288x16xbf16>, vector<16x48xbf16>, vector<288x48xf32> -> vector<288x48xf32>
    %22 = arith.addf %15, %21 : vector<288x48xf32>
    %c0_20 = arith.constant 0 : index
    %c18 = arith.constant 18 : index
    %c0_21 = arith.constant 0 : index
    %23 = vector.load %arg1[%c0_20, %c18, %c0_21] : memref<1x342x16xf32, #tpu.memory_space<vmem>>, vector<1x288x16xf32>
    %24 = vector.shape_cast %23 : vector<1x288x16xf32> to vector<288x16xf32>
    %25 = arith.truncf %24 : vector<288x16xf32> to vector<288x16xbf16>
    %c3 = arith.constant 3 : index
    %c0_22 = arith.constant 0 : index
    %c0_23 = arith.constant 0 : index
    %26 = vector.load %arg2[%c3, %c0_22, %c0_23] : memref<9x16x48xbf16, #tpu.memory_space<vmem>>, vector<1x16x48xbf16>
    %27 = vector.shape_cast %26 : vector<1x16x48xbf16> to vector<16x48xbf16>
    %cst_24 = arith.constant dense<0.000000e+00> : vector<288x48xf32>
    %28 = tpu.matmul %25, %27, %cst_24 {dimension_numbers = #tpu.dot_dimension_numbers<[1], [0], [0], [1], [0, 0, 1, 1], [], []>} : vector<288x16xbf16>, vector<16x48xbf16>, vector<288x48xf32> -> vector<288x48xf32>
    %29 = arith.addf %22, %28 : vector<288x48xf32>
    %c0_25 = arith.constant 0 : index
    %c19 = arith.constant 19 : index
    %c0_26 = arith.constant 0 : index
    %30 = vector.load %arg1[%c0_25, %c19, %c0_26] : memref<1x342x16xf32, #tpu.memory_space<vmem>>, vector<1x288x16xf32>
    %31 = vector.shape_cast %30 : vector<1x288x16xf32> to vector<288x16xf32>
    %32 = arith.truncf %31 : vector<288x16xf32> to vector<288x16xbf16>
    %c4 = arith.constant 4 : index
    %c0_27 = arith.constant 0 : index
    %c0_28 = arith.constant 0 : index
    %33 = vector.load %arg2[%c4, %c0_27, %c0_28] : memref<9x16x48xbf16, #tpu.memory_space<vmem>>, vector<1x16x48xbf16>
    %34 = vector.shape_cast %33 : vector<1x16x48xbf16> to vector<16x48xbf16>
    %cst_29 = arith.constant dense<0.000000e+00> : vector<288x48xf32>
    %35 = tpu.matmul %32, %34, %cst_29 {dimension_numbers = #tpu.dot_dimension_numbers<[1], [0], [0], [1], [0, 0, 1, 1], [], []>} : vector<288x16xbf16>, vector<16x48xbf16>, vector<288x48xf32> -> vector<288x48xf32>
    %36 = arith.addf %29, %35 : vector<288x48xf32>
    %c0_30 = arith.constant 0 : index
    %c20 = arith.constant 20 : index
    %c0_31 = arith.constant 0 : index
    %37 = vector.load %arg1[%c0_30, %c20, %c0_31] : memref<1x342x16xf32, #tpu.memory_space<vmem>>, vector<1x288x16xf32>
    %38 = vector.shape_cast %37 : vector<1x288x16xf32> to vector<288x16xf32>
    %39 = arith.truncf %38 : vector<288x16xf32> to vector<288x16xbf16>
    %c5 = arith.constant 5 : index
    %c0_32 = arith.constant 0 : index
    %c0_33 = arith.constant 0 : index
    %40 = vector.load %arg2[%c5, %c0_32, %c0_33] : memref<9x16x48xbf16, #tpu.memory_space<vmem>>, vector<1x16x48xbf16>
    %41 = vector.shape_cast %40 : vector<1x16x48xbf16> to vector<16x48xbf16>
    %cst_34 = arith.constant dense<0.000000e+00> : vector<288x48xf32>
    %42 = tpu.matmul %39, %41, %cst_34 {dimension_numbers = #tpu.dot_dimension_numbers<[1], [0], [0], [1], [0, 0, 1, 1], [], []>} : vector<288x16xbf16>, vector<16x48xbf16>, vector<288x48xf32> -> vector<288x48xf32>
    %43 = arith.addf %36, %42 : vector<288x48xf32>
    %c0_35 = arith.constant 0 : index
    %c36 = arith.constant 36 : index
    %c0_36 = arith.constant 0 : index
    %44 = vector.load %arg1[%c0_35, %c36, %c0_36] : memref<1x342x16xf32, #tpu.memory_space<vmem>>, vector<1x288x16xf32>
    %45 = vector.shape_cast %44 : vector<1x288x16xf32> to vector<288x16xf32>
    %46 = arith.truncf %45 : vector<288x16xf32> to vector<288x16xbf16>
    %c6 = arith.constant 6 : index
    %c0_37 = arith.constant 0 : index
    %c0_38 = arith.constant 0 : index
    %47 = vector.load %arg2[%c6, %c0_37, %c0_38] : memref<9x16x48xbf16, #tpu.memory_space<vmem>>, vector<1x16x48xbf16>
    %48 = vector.shape_cast %47 : vector<1x16x48xbf16> to vector<16x48xbf16>
    %cst_39 = arith.constant dense<0.000000e+00> : vector<288x48xf32>
    %49 = tpu.matmul %46, %48, %cst_39 {dimension_numbers = #tpu.dot_dimension_numbers<[1], [0], [0], [1], [0, 0, 1, 1], [], []>} : vector<288x16xbf16>, vector<16x48xbf16>, vector<288x48xf32> -> vector<288x48xf32>
    %50 = arith.addf %43, %49 : vector<288x48xf32>
    %c0_40 = arith.constant 0 : index
    %c37 = arith.constant 37 : index
    %c0_41 = arith.constant 0 : index
    %51 = vector.load %arg1[%c0_40, %c37, %c0_41] : memref<1x342x16xf32, #tpu.memory_space<vmem>>, vector<1x288x16xf32>
    %52 = vector.shape_cast %51 : vector<1x288x16xf32> to vector<288x16xf32>
    %53 = arith.truncf %52 : vector<288x16xf32> to vector<288x16xbf16>
    %c7 = arith.constant 7 : index
    %c0_42 = arith.constant 0 : index
    %c0_43 = arith.constant 0 : index
    %54 = vector.load %arg2[%c7, %c0_42, %c0_43] : memref<9x16x48xbf16, #tpu.memory_space<vmem>>, vector<1x16x48xbf16>
    %55 = vector.shape_cast %54 : vector<1x16x48xbf16> to vector<16x48xbf16>
    %cst_44 = arith.constant dense<0.000000e+00> : vector<288x48xf32>
    %56 = tpu.matmul %53, %55, %cst_44 {dimension_numbers = #tpu.dot_dimension_numbers<[1], [0], [0], [1], [0, 0, 1, 1], [], []>} : vector<288x16xbf16>, vector<16x48xbf16>, vector<288x48xf32> -> vector<288x48xf32>
    %57 = arith.addf %50, %56 : vector<288x48xf32>
    %c0_45 = arith.constant 0 : index
    %c38 = arith.constant 38 : index
    %c0_46 = arith.constant 0 : index
    %58 = vector.load %arg1[%c0_45, %c38, %c0_46] : memref<1x342x16xf32, #tpu.memory_space<vmem>>, vector<1x288x16xf32>
    %59 = vector.shape_cast %58 : vector<1x288x16xf32> to vector<288x16xf32>
    %60 = arith.truncf %59 : vector<288x16xf32> to vector<288x16xbf16>
    %c8 = arith.constant 8 : index
    %c0_47 = arith.constant 0 : index
    %c0_48 = arith.constant 0 : index
    %61 = vector.load %arg2[%c8, %c0_47, %c0_48] : memref<9x16x48xbf16, #tpu.memory_space<vmem>>, vector<1x16x48xbf16>
    %62 = vector.shape_cast %61 : vector<1x16x48xbf16> to vector<16x48xbf16>
    %cst_49 = arith.constant dense<0.000000e+00> : vector<288x48xf32>
    %63 = tpu.matmul %60, %62, %cst_49 {dimension_numbers = #tpu.dot_dimension_numbers<[1], [0], [0], [1], [0, 0, 1, 1], [], []>} : vector<288x16xbf16>, vector<16x48xbf16>, vector<288x48xf32> -> vector<288x48xf32>
    %64 = arith.addf %57, %63 : vector<288x48xf32>
    %c0_50 = arith.constant 0 : index
    %c0_51 = arith.constant 0 : index
    %65 = vector.load %arg4[%c0_50, %c0_51] : memref<1x48xf32, #tpu.memory_space<vmem>>, vector<1x48xf32>
    %66 = vector.broadcast %65 : vector<1x48xf32> to vector<288x48xf32>
    %67 = arith.addf %64, %66 : vector<288x48xf32>
    %68 = vector.extract_strided_slice %67 {offsets = [0, 0], sizes = [288, 16], strides = [1, 1]} : vector<288x48xf32> to vector<288x16xf32>
    %69 = vector.extract_strided_slice %67 {offsets = [0, 16], sizes = [288, 32], strides = [1, 1]} : vector<288x48xf32> to vector<288x32xf32>
    %c0_52 = arith.constant 0 : index
    %c0_53 = arith.constant 0 : index
    %70 = vector.load %arg6[%c0_52, %c0_53] : memref<16x16xf32, #tpu.memory_space<vmem>>, vector<16x16xf32>
    %c0_54 = arith.constant 0 : index
    %c0_55 = arith.constant 0 : index
    %71 = vector.load %arg7[%c0_54, %c0_55] : memref<1x16xf32, #tpu.memory_space<vmem>>, vector<1x16xf32>
    %c0_56 = arith.constant 0 : index
    %c0_57 = arith.constant 0 : index
    %72 = vector.load %arg8[%c0_56, %c0_57] : memref<1x16xf32, #tpu.memory_space<vmem>>, vector<1x16xf32>
    %73 = vector.broadcast %0 : vector<288x1xf32> to vector<288x16xf32>
    %74 = arith.mulf %68, %73 : vector<288x16xf32>
    %cst_58 = arith.constant dense<0.000000e+00> : vector<16xf32>
    %75 = vector.multi_reduction <add>, %74, %cst_58 [0] : vector<288x16xf32> to vector<16xf32>
    %76 = vector.shape_cast %75 : vector<16xf32> to vector<1x16xf32>
    %cst_59 = arith.constant dense<0.000000e+00> : vector<1x16xf32>
    %77 = tpu.matmul %76, %70, %cst_59 {dimension_numbers = #tpu.dot_dimension_numbers<[1], [0], [0], [1], [0, 0, 1, 1], [], []>} : vector<1x16xf32>, vector<16x16xf32>, vector<1x16xf32> -> vector<1x16xf32>
    %cst_60 = arith.constant 2.560000e+02 : f32
    %78 = vector.broadcast %cst_60 : f32 to vector<1x16xf32>
    %79 = arith.divf %77, %78 : vector<1x16xf32>
    %80 = vector.broadcast %79 : vector<1x16xf32> to vector<288x16xf32>
    %81 = arith.subf %68, %80 : vector<288x16xf32>
    %82 = arith.mulf %81, %81 : vector<288x16xf32>
    %83 = vector.broadcast %0 : vector<288x1xf32> to vector<288x16xf32>
    %84 = arith.mulf %83, %82 : vector<288x16xf32>
    %cst_61 = arith.constant dense<0.000000e+00> : vector<16xf32>
    %85 = vector.multi_reduction <add>, %84, %cst_61 [0] : vector<288x16xf32> to vector<16xf32>
    %86 = vector.shape_cast %85 : vector<16xf32> to vector<1x16xf32>
    %cst_62 = arith.constant dense<0.000000e+00> : vector<1x16xf32>
    %87 = tpu.matmul %86, %70, %cst_62 {dimension_numbers = #tpu.dot_dimension_numbers<[1], [0], [0], [1], [0, 0, 1, 1], [], []>} : vector<1x16xf32>, vector<16x16xf32>, vector<1x16xf32> -> vector<1x16xf32>
    %cst_63 = arith.constant 2.560000e+02 : f32
    %88 = vector.broadcast %cst_63 : f32 to vector<1x16xf32>
    %89 = arith.divf %87, %88 : vector<1x16xf32>
    %cst_64 = arith.constant 9.99999974E-6 : f32
    %90 = vector.broadcast %cst_64 : f32 to vector<1x16xf32>
    %91 = arith.addf %89, %90 : vector<1x16xf32>
    %92 = math.rsqrt %91 : vector<1x16xf32>
    %93 = vector.broadcast %92 : vector<1x16xf32> to vector<288x16xf32>
    %94 = arith.mulf %81, %93 : vector<288x16xf32>
    %95 = vector.broadcast %71 : vector<1x16xf32> to vector<288x16xf32>
    %96 = arith.mulf %94, %95 : vector<288x16xf32>
    %97 = vector.broadcast %72 : vector<1x16xf32> to vector<288x16xf32>
    %98 = arith.addf %96, %97 : vector<288x16xf32>
    %cst_65 = arith.constant 0.000000e+00 : f32
    %99 = vector.broadcast %cst_65 : f32 to vector<288x16xf32>
    %100 = arith.cmpf ogt, %98, %99 : vector<288x16xf32>
    %cst_66 = arith.constant 0.000000e+00 : f32
    %101 = vector.broadcast %cst_66 : f32 to vector<288x16xf32>
    %102 = arith.minimumf %98, %101 : vector<288x16xf32>
    %103 = math.exp %102 : vector<288x16xf32>
    %cst_67 = arith.constant 1.000000e+00 : f32
    %104 = vector.broadcast %cst_67 : f32 to vector<288x16xf32>
    %105 = arith.subf %103, %104 : vector<288x16xf32>
    %106 = arith.select %100, %98, %105 : vector<288x16xi1>, vector<288x16xf32>
    %107 = vector.broadcast %0 : vector<288x1xf32> to vector<288x16xf32>
    %108 = arith.mulf %106, %107 : vector<288x16xf32>
    %cst_68 = arith.constant 0.000000e+00 : f32
    %109 = vector.broadcast %cst_68 : f32 to vector<342x16xf32>
    %c0_69 = arith.constant 0 : index
    %c0_70 = arith.constant 0 : index
    %110 = vector.load %arg14[%c0_69, %c0_70] : memref<342x16xf32, #tpu.memory_space<vmem>>, vector<342x16xf32>
    tpu.vector_store %arg14[%c0_69, %c0_70], %109 {strides = array<i32>} : memref<342x16xf32, #tpu.memory_space<vmem>>, vector<342x16xf32>,
    %c19_71 = arith.constant 19 : index
    %c0_72 = arith.constant 0 : index
    %111 = vector.load %arg14[%c19_71, %c0_72] : memref<342x16xf32, #tpu.memory_space<vmem>>, vector<288x16xf32>
    tpu.vector_store %arg14[%c19_71, %c0_72], %108 {strides = array<i32>} : memref<342x16xf32, #tpu.memory_space<vmem>>, vector<288x16xf32>,
    %cst_73 = arith.constant 0.000000e+00 : f32
    %112 = vector.broadcast %cst_73 : f32 to vector<288x32xf32>
    %c0_74 = arith.constant 0 : index
    %c0_75 = arith.constant 0 : index
    %113 = vector.load %arg14[%c0_74, %c0_75] : memref<342x16xf32, #tpu.memory_space<vmem>>, vector<288x16xf32>
    %114 = arith.truncf %113 : vector<288x16xf32> to vector<288x16xbf16>
    %c0_76 = arith.constant 0 : index
    %c0_77 = arith.constant 0 : index
    %c0_78 = arith.constant 0 : index
    %115 = vector.load %arg3[%c0_76, %c0_77, %c0_78] : memref<9x16x32xbf16, #tpu.memory_space<vmem>>, vector<1x16x32xbf16>
    %116 = vector.shape_cast %115 : vector<1x16x32xbf16> to vector<16x32xbf16>
    %cst_79 = arith.constant dense<0.000000e+00> : vector<288x32xf32>
    %117 = tpu.matmul %114, %116, %cst_79 {dimension_numbers = #tpu.dot_dimension_numbers<[1], [0], [0], [1], [0, 0, 1, 1], [], []>} : vector<288x16xbf16>, vector<16x32xbf16>, vector<288x32xf32> -> vector<288x32xf32>
    %118 = arith.addf %112, %117 : vector<288x32xf32>
    %c1_80 = arith.constant 1 : index
    %c0_81 = arith.constant 0 : index
    %119 = vector.load %arg14[%c1_80, %c0_81] : memref<342x16xf32, #tpu.memory_space<vmem>>, vector<288x16xf32>
    %120 = arith.truncf %119 : vector<288x16xf32> to vector<288x16xbf16>
    %c1_82 = arith.constant 1 : index
    %c0_83 = arith.constant 0 : index
    %c0_84 = arith.constant 0 : index
    %121 = vector.load %arg3[%c1_82, %c0_83, %c0_84] : memref<9x16x32xbf16, #tpu.memory_space<vmem>>, vector<1x16x32xbf16>
    %122 = vector.shape_cast %121 : vector<1x16x32xbf16> to vector<16x32xbf16>
    %cst_85 = arith.constant dense<0.000000e+00> : vector<288x32xf32>
    %123 = tpu.matmul %120, %122, %cst_85 {dimension_numbers = #tpu.dot_dimension_numbers<[1], [0], [0], [1], [0, 0, 1, 1], [], []>} : vector<288x16xbf16>, vector<16x32xbf16>, vector<288x32xf32> -> vector<288x32xf32>
    %124 = arith.addf %118, %123 : vector<288x32xf32>
    %c2_86 = arith.constant 2 : index
    %c0_87 = arith.constant 0 : index
    %125 = vector.load %arg14[%c2_86, %c0_87] : memref<342x16xf32, #tpu.memory_space<vmem>>, vector<288x16xf32>
    %126 = arith.truncf %125 : vector<288x16xf32> to vector<288x16xbf16>
    %c2_88 = arith.constant 2 : index
    %c0_89 = arith.constant 0 : index
    %c0_90 = arith.constant 0 : index
    %127 = vector.load %arg3[%c2_88, %c0_89, %c0_90] : memref<9x16x32xbf16, #tpu.memory_space<vmem>>, vector<1x16x32xbf16>
    %128 = vector.shape_cast %127 : vector<1x16x32xbf16> to vector<16x32xbf16>
    %cst_91 = arith.constant dense<0.000000e+00> : vector<288x32xf32>
    %129 = tpu.matmul %126, %128, %cst_91 {dimension_numbers = #tpu.dot_dimension_numbers<[1], [0], [0], [1], [0, 0, 1, 1], [], []>} : vector<288x16xbf16>, vector<16x32xbf16>, vector<288x32xf32> -> vector<288x32xf32>
    %130 = arith.addf %124, %129 : vector<288x32xf32>
    %c18_92 = arith.constant 18 : index
    %c0_93 = arith.constant 0 : index
    %131 = vector.load %arg14[%c18_92, %c0_93] : memref<342x16xf32, #tpu.memory_space<vmem>>, vector<288x16xf32>
    %132 = arith.truncf %131 : vector<288x16xf32> to vector<288x16xbf16>
    %c3_94 = arith.constant 3 : index
    %c0_95 = arith.constant 0 : index
    %c0_96 = arith.constant 0 : index
    %133 = vector.load %arg3[%c3_94, %c0_95, %c0_96] : memref<9x16x32xbf16, #tpu.memory_space<vmem>>, vector<1x16x32xbf16>
    %134 = vector.shape_cast %133 : vector<1x16x32xbf16> to vector<16x32xbf16>
    %cst_97 = arith.constant dense<0.000000e+00> : vector<288x32xf32>
    %135 = tpu.matmul %132, %134, %cst_97 {dimension_numbers = #tpu.dot_dimension_numbers<[1], [0], [0], [1], [0, 0, 1, 1], [], []>} : vector<288x16xbf16>, vector<16x32xbf16>, vector<288x32xf32> -> vector<288x32xf32>
    %136 = arith.addf %130, %135 : vector<288x32xf32>
    %c19_98 = arith.constant 19 : index
    %c0_99 = arith.constant 0 : index
    %137 = vector.load %arg14[%c19_98, %c0_99] : memref<342x16xf32, #tpu.memory_space<vmem>>, vector<288x16xf32>
    %138 = arith.truncf %137 : vector<288x16xf32> to vector<288x16xbf16>
    %c4_100 = arith.constant 4 : index
    %c0_101 = arith.constant 0 : index
    %c0_102 = arith.constant 0 : index
    %139 = vector.load %arg3[%c4_100, %c0_101, %c0_102] : memref<9x16x32xbf16, #tpu.memory_space<vmem>>, vector<1x16x32xbf16>
    %140 = vector.shape_cast %139 : vector<1x16x32xbf16> to vector<16x32xbf16>
    %cst_103 = arith.constant dense<0.000000e+00> : vector<288x32xf32>
    %141 = tpu.matmul %138, %140, %cst_103 {dimension_numbers = #tpu.dot_dimension_numbers<[1], [0], [0], [1], [0, 0, 1, 1], [], []>} : vector<288x16xbf16>, vector<16x32xbf16>, vector<288x32xf32> -> vector<288x32xf32>
    %142 = arith.addf %136, %141 : vector<288x32xf32>
    %c20_104 = arith.constant 20 : index
    %c0_105 = arith.constant 0 : index
    %143 = vector.load %arg14[%c20_104, %c0_105] : memref<342x16xf32, #tpu.memory_space<vmem>>, vector<288x16xf32>
    %144 = arith.truncf %143 : vector<288x16xf32> to vector<288x16xbf16>
    %c5_106 = arith.constant 5 : index
    %c0_107 = arith.constant 0 : index
    %c0_108 = arith.constant 0 : index
    %145 = vector.load %arg3[%c5_106, %c0_107, %c0_108] : memref<9x16x32xbf16, #tpu.memory_space<vmem>>, vector<1x16x32xbf16>
    %146 = vector.shape_cast %145 : vector<1x16x32xbf16> to vector<16x32xbf16>
    %cst_109 = arith.constant dense<0.000000e+00> : vector<288x32xf32>
    %147 = tpu.matmul %144, %146, %cst_109 {dimension_numbers = #tpu.dot_dimension_numbers<[1], [0], [0], [1], [0, 0, 1, 1], [], []>} : vector<288x16xbf16>, vector<16x32xbf16>, vector<288x32xf32> -> vector<288x32xf32>
    %148 = arith.addf %142, %147 : vector<288x32xf32>
    %c36_110 = arith.constant 36 : index
    %c0_111 = arith.constant 0 : index
    %149 = vector.load %arg14[%c36_110, %c0_111] : memref<342x16xf32, #tpu.memory_space<vmem>>, vector<288x16xf32>
    %150 = arith.truncf %149 : vector<288x16xf32> to vector<288x16xbf16>
    %c6_112 = arith.constant 6 : index
    %c0_113 = arith.constant 0 : index
    %c0_114 = arith.constant 0 : index
    %151 = vector.load %arg3[%c6_112, %c0_113, %c0_114] : memref<9x16x32xbf16, #tpu.memory_space<vmem>>, vector<1x16x32xbf16>
    %152 = vector.shape_cast %151 : vector<1x16x32xbf16> to vector<16x32xbf16>
    %cst_115 = arith.constant dense<0.000000e+00> : vector<288x32xf32>
    %153 = tpu.matmul %150, %152, %cst_115 {dimension_numbers = #tpu.dot_dimension_numbers<[1], [0], [0], [1], [0, 0, 1, 1], [], []>} : vector<288x16xbf16>, vector<16x32xbf16>, vector<288x32xf32> -> vector<288x32xf32>
    %154 = arith.addf %148, %153 : vector<288x32xf32>
    %c37_116 = arith.constant 37 : index
    %c0_117 = arith.constant 0 : index
    %155 = vector.load %arg14[%c37_116, %c0_117] : memref<342x16xf32, #tpu.memory_space<vmem>>, vector<288x16xf32>
    %156 = arith.truncf %155 : vector<288x16xf32> to vector<288x16xbf16>
    %c7_118 = arith.constant 7 : index
    %c0_119 = arith.constant 0 : index
    %c0_120 = arith.constant 0 : index
    %157 = vector.load %arg3[%c7_118, %c0_119, %c0_120] : memref<9x16x32xbf16, #tpu.memory_space<vmem>>, vector<1x16x32xbf16>
    %158 = vector.shape_cast %157 : vector<1x16x32xbf16> to vector<16x32xbf16>
    %cst_121 = arith.constant dense<0.000000e+00> : vector<288x32xf32>
    %159 = tpu.matmul %156, %158, %cst_121 {dimension_numbers = #tpu.dot_dimension_numbers<[1], [0], [0], [1], [0, 0, 1, 1], [], []>} : vector<288x16xbf16>, vector<16x32xbf16>, vector<288x32xf32> -> vector<288x32xf32>
    %160 = arith.addf %154, %159 : vector<288x32xf32>
    %c38_122 = arith.constant 38 : index
    %c0_123 = arith.constant 0 : index
    %161 = vector.load %arg14[%c38_122, %c0_123] : memref<342x16xf32, #tpu.memory_space<vmem>>, vector<288x16xf32>
    %162 = arith.truncf %161 : vector<288x16xf32> to vector<288x16xbf16>
    %c8_124 = arith.constant 8 : index
    %c0_125 = arith.constant 0 : index
    %c0_126 = arith.constant 0 : index
    %163 = vector.load %arg3[%c8_124, %c0_125, %c0_126] : memref<9x16x32xbf16, #tpu.memory_space<vmem>>, vector<1x16x32xbf16>
    %164 = vector.shape_cast %163 : vector<1x16x32xbf16> to vector<16x32xbf16>
    %cst_127 = arith.constant dense<0.000000e+00> : vector<288x32xf32>
    %165 = tpu.matmul %162, %164, %cst_127 {dimension_numbers = #tpu.dot_dimension_numbers<[1], [0], [0], [1], [0, 0, 1, 1], [], []>} : vector<288x16xbf16>, vector<16x32xbf16>, vector<288x32xf32> -> vector<288x32xf32>
    %166 = arith.addf %160, %165 : vector<288x32xf32>
    %c0_128 = arith.constant 0 : index
    %c0_129 = arith.constant 0 : index
    %167 = vector.load %arg5[%c0_128, %c0_129] : memref<1x32xf32, #tpu.memory_space<vmem>>, vector<1x32xf32>
    %168 = vector.broadcast %167 : vector<1x32xf32> to vector<288x32xf32>
    %169 = arith.addf %166, %168 : vector<288x32xf32>
    %170 = arith.addf %169, %69 : vector<288x32xf32>
    %c0_130 = arith.constant 0 : index
    %c0_131 = arith.constant 0 : index
    %171 = vector.load %arg9[%c0_130, %c0_131] : memref<32x32xf32, #tpu.memory_space<vmem>>, vector<32x32xf32>
    %c0_132 = arith.constant 0 : index
    %c0_133 = arith.constant 0 : index
    %172 = vector.load %arg10[%c0_132, %c0_133] : memref<1x32xf32, #tpu.memory_space<vmem>>, vector<1x32xf32>
    %c0_134 = arith.constant 0 : index
    %c0_135 = arith.constant 0 : index
    %173 = vector.load %arg11[%c0_134, %c0_135] : memref<1x32xf32, #tpu.memory_space<vmem>>, vector<1x32xf32>
    %174 = vector.broadcast %0 : vector<288x1xf32> to vector<288x32xf32>
    %175 = arith.mulf %170, %174 : vector<288x32xf32>
    %cst_136 = arith.constant dense<0.000000e+00> : vector<32xf32>
    %176 = vector.multi_reduction <add>, %175, %cst_136 [0] : vector<288x32xf32> to vector<32xf32>
    %177 = vector.shape_cast %176 : vector<32xf32> to vector<1x32xf32>
    %cst_137 = arith.constant dense<0.000000e+00> : vector<1x32xf32>
    %178 = tpu.matmul %177, %171, %cst_137 {dimension_numbers = #tpu.dot_dimension_numbers<[1], [0], [0], [1], [0, 0, 1, 1], [], []>} : vector<1x32xf32>, vector<32x32xf32>, vector<1x32xf32> -> vector<1x32xf32>
    %cst_138 = arith.constant 5.120000e+02 : f32
    %179 = vector.broadcast %cst_138 : f32 to vector<1x32xf32>
    %180 = arith.divf %178, %179 : vector<1x32xf32>
    %181 = vector.broadcast %180 : vector<1x32xf32> to vector<288x32xf32>
    %182 = arith.subf %170, %181 : vector<288x32xf32>
    %183 = arith.mulf %182, %182 : vector<288x32xf32>
    %184 = vector.broadcast %0 : vector<288x1xf32> to vector<288x32xf32>
    %185 = arith.mulf %184, %183 : vector<288x32xf32>
    %cst_139 = arith.constant dense<0.000000e+00> : vector<32xf32>
    %186 = vector.multi_reduction <add>, %185, %cst_139 [0] : vector<288x32xf32> to vector<32xf32>
    %187 = vector.shape_cast %186 : vector<32xf32> to vector<1x32xf32>
    %cst_140 = arith.constant dense<0.000000e+00> : vector<1x32xf32>
    %188 = tpu.matmul %187, %171, %cst_140 {dimension_numbers = #tpu.dot_dimension_numbers<[1], [0], [0], [1], [0, 0, 1, 1], [], []>} : vector<1x32xf32>, vector<32x32xf32>, vector<1x32xf32> -> vector<1x32xf32>
    %cst_141 = arith.constant 5.120000e+02 : f32
    %189 = vector.broadcast %cst_141 : f32 to vector<1x32xf32>
    %190 = arith.divf %188, %189 : vector<1x32xf32>
    %cst_142 = arith.constant 9.99999974E-6 : f32
    %191 = vector.broadcast %cst_142 : f32 to vector<1x32xf32>
    %192 = arith.addf %190, %191 : vector<1x32xf32>
    %193 = math.rsqrt %192 : vector<1x32xf32>
    %194 = vector.broadcast %193 : vector<1x32xf32> to vector<288x32xf32>
    %195 = arith.mulf %182, %194 : vector<288x32xf32>
    %196 = vector.broadcast %172 : vector<1x32xf32> to vector<288x32xf32>
    %197 = arith.mulf %195, %196 : vector<288x32xf32>
    %198 = vector.broadcast %173 : vector<1x32xf32> to vector<288x32xf32>
    %199 = arith.addf %197, %198 : vector<288x32xf32>
    %cst_143 = arith.constant 0.000000e+00 : f32
    %200 = vector.broadcast %cst_143 : f32 to vector<288x32xf32>
    %201 = arith.cmpf ogt, %199, %200 : vector<288x32xf32>
    %cst_144 = arith.constant 0.000000e+00 : f32
    %202 = vector.broadcast %cst_144 : f32 to vector<288x32xf32>
    %203 = arith.minimumf %199, %202 : vector<288x32xf32>
    %204 = math.exp %203 : vector<288x32xf32>
    %cst_145 = arith.constant 1.000000e+00 : f32
    %205 = vector.broadcast %cst_145 : f32 to vector<288x32xf32>
    %206 = arith.subf %204, %205 : vector<288x32xf32>
    %207 = arith.select %201, %199, %206 : vector<288x32xi1>, vector<288x32xf32>
    %c0_146 = arith.constant 0 : index
    %c0_147 = arith.constant 0 : index
    %c0_148 = arith.constant 0 : index
    %208 = vector.load %arg13[%c0_146, %c0_147, %c0_148] : memref<1x288x32xf32, #tpu.memory_space<vmem>>, vector<1x288x32xf32>
    %209 = vector.shape_cast %208 : vector<1x288x32xf32> to vector<288x32xf32>
    %210 = vector.shape_cast %207 : vector<288x32xf32> to vector<1x288x32xf32>
    tpu.vector_store %arg13[%c0_146, %c0_147, %c0_148], %210 {strides = array<i32>} : memref<1x288x32xf32, #tpu.memory_space<vmem>>, vector<1x288x32xf32>,
    return
  }
  func.func @transform_0(%arg0: i32) -> (i32, i32, i32) {
    %c0_i32 = arith.constant 0 : i32
    %c0_i32_0 = arith.constant 0 : i32
    %c0_i32_1 = arith.constant 0 : i32
    return %arg0, %c0_i32, %c0_i32_0 : i32, i32, i32
  }
  func.func @transform_1(%arg0: i32) -> (i32, i32, i32) {
    %c0_i32 = arith.constant 0 : i32
    %c0_i32_0 = arith.constant 0 : i32
    %c0_i32_1 = arith.constant 0 : i32
    %c0_i32_2 = arith.constant 0 : i32
    return %c0_i32, %c0_i32_0, %c0_i32_1 : i32, i32, i32
  }
  func.func @transform_2(%arg0: i32) -> (i32, i32, i32) {
    %c0_i32 = arith.constant 0 : i32
    %c0_i32_0 = arith.constant 0 : i32
    %c0_i32_1 = arith.constant 0 : i32
    %c0_i32_2 = arith.constant 0 : i32
    return %c0_i32, %c0_i32_0, %c0_i32_1 : i32, i32, i32
  }
  func.func @transform_3(%arg0: i32) -> (i32, i32) {
    %c0_i32 = arith.constant 0 : i32
    %c0_i32_0 = arith.constant 0 : i32
    %c0_i32_1 = arith.constant 0 : i32
    return %c0_i32, %c0_i32_0 : i32, i32
  }
  func.func @transform_4(%arg0: i32) -> (i32, i32) {
    %c0_i32 = arith.constant 0 : i32
    %c0_i32_0 = arith.constant 0 : i32
    %c0_i32_1 = arith.constant 0 : i32
    return %c0_i32, %c0_i32_0 : i32, i32
  }
  func.func @transform_5(%arg0: i32) -> (i32, i32) {
    %c0_i32 = arith.constant 0 : i32
    %c0_i32_0 = arith.constant 0 : i32
    %c0_i32_1 = arith.constant 0 : i32
    return %c0_i32, %c0_i32_0 : i32, i32
  }
  func.func @transform_6(%arg0: i32) -> (i32, i32) {
    %c0_i32 = arith.constant 0 : i32
    %c0_i32_0 = arith.constant 0 : i32
    %c0_i32_1 = arith.constant 0 : i32
    return %c0_i32, %c0_i32_0 : i32, i32
  }
  func.func @transform_7(%arg0: i32) -> (i32, i32) {
    %c0_i32 = arith.constant 0 : i32
    %c0_i32_0 = arith.constant 0 : i32
    %c0_i32_1 = arith.constant 0 : i32
    return %c0_i32, %c0_i32_0 : i32, i32
  }
  func.func @transform_8(%arg0: i32) -> (i32, i32) {
    %c0_i32 = arith.constant 0 : i32
    %c0_i32_0 = arith.constant 0 : i32
    %c0_i32_1 = arith.constant 0 : i32
    return %c0_i32, %c0_i32_0 : i32, i32
  }
  func.func @transform_9(%arg0: i32) -> (i32, i32) {
    %c0_i32 = arith.constant 0 : i32
    %c0_i32_0 = arith.constant 0 : i32
    %c0_i32_1 = arith.constant 0 : i32
    return %c0_i32, %c0_i32_0 : i32, i32
  }
  func.func @transform_10(%arg0: i32) -> (i32, i32) {
    %c0_i32 = arith.constant 0 : i32
    %c0_i32_0 = arith.constant 0 : i32
    %c0_i32_1 = arith.constant 0 : i32
    return %c0_i32, %c0_i32_0 : i32, i32
  }
  func.func @transform_11(%arg0: i32) -> (i32, i32) {
    %c0_i32 = arith.constant 0 : i32
    %c0_i32_0 = arith.constant 0 : i32
    %c0_i32_1 = arith.constant 0 : i32
    return %c0_i32, %c0_i32_0 : i32, i32
  }
  func.func @transform_12(%arg0: i32) -> (i32, i32, i32) {
    %c0_i32 = arith.constant 0 : i32
    %c0_i32_0 = arith.constant 0 : i32
    %c0_i32_1 = arith.constant 0 : i32
    return %arg0, %c0_i32, %c0_i32_0 : i32, i32, i32
  }
}

</mosaic_0001>

<llo_original>
// kernel: tpu_custom_call.1
$region0: #{tpu_custom_call.1}
  #allocation0 [shape = 'u32[]', space=smem, size = 0x4, offset = 0x4, fixed_abs, tag = 'smem constant byte address 0x4 - core index']
  #allocation1 [shape = 'u32[72,128]{1,0:T(1,128)}', space=vmem, size = 0x9000, scoped, tag = 'internal scratch']
  #allocation2 [shape = 'f32[342,16]{1,0:T(8,128)}', space=vmem, size = 0x2b000, scoped, tag = 'scratch operand']
  %s0 = inlined_call_operand.vmem [shape: f32[2,342,16], index: 0, kind: input, shape index: {}]
  %s1 = inlined_call_operand.vmem [shape: bf16[9,16,48], index: 1, kind: input, shape index: {}]
  %s2 = inlined_call_operand.vmem [shape: bf16[9,16,32], index: 2, kind: input, shape index: {}]
  %s3 = inlined_call_operand.vmem [shape: f32[1,48], index: 3, kind: input, shape index: {}]
  %s4 = inlined_call_operand.vmem [shape: f32[1,32], index: 4, kind: input, shape index: {}]
  %s5 = inlined_call_operand.vmem [shape: f32[16,16], index: 5, kind: input, shape index: {}]
  %s6 = inlined_call_operand.vmem [shape: f32[1,16], index: 6, kind: input, shape index: {}]
  %s7 = inlined_call_operand.vmem [shape: f32[1,16], index: 7, kind: input, shape index: {}]
  %s8 = inlined_call_operand.vmem [shape: f32[32,32], index: 8, kind: input, shape index: {}]
  %s9 = inlined_call_operand.vmem [shape: f32[1,32], index: 9, kind: input, shape index: {}]
  %s10 = inlined_call_operand.vmem [shape: f32[1,32], index: 10, kind: input, shape index: {}]
  %s11 = inlined_call_operand.vmem [shape: f32[288,1], index: 11, kind: input, shape index: {}]
  %s12 = inlined_call_operand.vmem [shape: f32[2,288,32], index: 12, kind: output, shape index: {}]
  %s13 = sld [smem:[#allocation0]]
  $region81: #{tpu_custom_call.1} parent=0
    _
  %s15 = ssub.s32 1, %s13
  %s16 = scalar_select 0, %s15, %s13
  loop: start=0, step=1, limit=4
  $region2: #{tpu_custom_call.1} parent=0 // loop_pre_header
    _
  $region3: #{tpu_custom_call.1} parent=0 // loop_header
    %s18 = sphi 0, %s22
    %p19 = scmp.ge.s32.totalorder %s18, 4
    %s28 = sphi 0, %s30
    %s31 = sphi 0, %s28
    %s32 = sphi 0, %s31
    %s48 = sphi 0, %s32
    %s52 = sphi 0, %s52
    %s54 = sphi 0, %s52
    %s55 = sphi 0, %s54
    %s69 = sphi 0, %s55
    %s73 = sphi 0, %s73
    %s75 = sphi 0, %s73
    %s76 = sphi 0, %s75
    %s90 = sphi 0, %s76
    %s94 = sphi 0, %s94
    %s96 = sphi 0, %s94
    %s97 = sphi 0, %s96
    %s111 = sphi 0, %s97
    %s115 = sphi 0, %s115
    %s117 = sphi 0, %s115
    %s118 = sphi 0, %s117
    %s132 = sphi 0, %s118
    %s136 = sphi 0, %s136
    %s138 = sphi 0, %s136
    %s139 = sphi 0, %s138
    %s153 = sphi 0, %s139
    %s157 = sphi 0, %s157
    %s159 = sphi 0, %s157
    %s160 = sphi 0, %s159
    %s174 = sphi 0, %s160
    %s178 = sphi 0, %s178
    %s180 = sphi 0, %s178
    %s181 = sphi 0, %s180
    %s195 = sphi 0, %s181
    %s199 = sphi 0, %s199
    %s201 = sphi 0, %s199
    %s202 = sphi 0, %s201
    %s216 = sphi 0, %s202
    %s220 = sphi 0, %s220
    %s222 = sphi 0, %s220
    %s223 = sphi 0, %s222
    %s237 = sphi 0, %s223
    %s241 = sphi 0, %s241
    %s243 = sphi 0, %s241
    %s244 = sphi 0, %s243
    %s258 = sphi 0, %s244
    %s262 = sphi 0, %s262
    %s264 = sphi 0, %s262
    %s265 = sphi 0, %s264
    %s279 = sphi 0, %s265
    %s285 = sphi 0, %s287
    %s288 = sphi 0, %s285
    %s289 = sphi 0, %s288
    %s305 = sphi 0, %s289
  $region4: #{tpu_custom_call.1} parent=0 // loop_header_branch
    %21 = sbr.rel (%p19) target = $region8
  $region5: #{tpu_custom_call.1} parent=0 // loop_body
    %s23 = ssub.s32 %s18, 1
    %s24 = ssub.s32 %s18, 2
    %s25 = sadd.s32 %s18, 1
    %s26 = ssub.s32 %s18, %s25
    %p27 = scmp.eq.s32.totalorder %s26, 0
    %s29 = sadd.s32 %s28, 1
    %s30 = scalar_select %p27, %s28, %s29
    %p33 = pneg %p27
    %p34 = scmp.eq.s32.totalorder %s18, 1
    %p35 = por %p33, %p34
    %p36 = scmp.ne.s32.totalorder %s28, %s31
    %p37 = scmp.eq.s32.totalorder %s18, 0
    %p38 = por %p36, %p37
    %p39 = scmp.ne.s32.totalorder %s28, %s31
    %p40 = scmp.eq.s32.totalorder %s23, 1
    %p41 = por %p39, %p40
    %p42 = scmp.ne.s32.totalorder %s31, %s32
    %p43 = scmp.eq.s32.totalorder %s23, 0
    %p44 = por %p42, %p43
    %p45 = scmp.ne.s32.totalorder %s31, %s32
    %p46 = scmp.eq.s32.totalorder %s24, 1
    %p47 = por %p45, %p46
    %p49 = scmp.ne.s32.totalorder %s32, %s48
    %p50 = scmp.eq.s32.totalorder %s24, 0
    %p51 = por %p49, %p50
    %s53 = sadd.s32 %s52, 1
    %p56 = scmp.eq.s32.totalorder %s18, 1
    %p57 = scmp.ne.s32.totalorder %s52, %s54
    %p58 = scmp.eq.s32.totalorder %s18, 0
    %p59 = por %p57, %p58
    %p60 = scmp.ne.s32.totalorder %s52, %s54
    %p61 = scmp.eq.s32.totalorder %s23, 1
    %p62 = por %p60, %p61
    %p63 = scmp.ne.s32.totalorder %s54, %s55
    %p64 = scmp.eq.s32.totalorder %s23, 0
    %p65 = por %p63, %p64
    %p66 = scmp.ne.s32.totalorder %s54, %s55
    %p67 = scmp.eq.s32.totalorder %s24, 1
    %p68 = por %p66, %p67
    %p70 = scmp.ne.s32.totalorder %s55, %s69
    %p71 = scmp.eq.s32.totalorder %s24, 0
    %p72 = por %p70, %p71
    %s74 = sadd.s32 %s73, 1
    %p77 = scmp.eq.s32.totalorder %s18, 1
    %p78 = scmp.ne.s32.totalorder %s73, %s75
    %p79 = scmp.eq.s32.totalorder %s18, 0
    %p80 = por %p78, %p79
    %p81 = scmp.ne.s32.totalorder %s73, %s75
    %p82 = scmp.eq.s32.totalorder %s23, 1
    %p83 = por %p81, %p82
    %p84 = scmp.ne.s32.totalorder %s75, %s76
    %p85 = scmp.eq.s32.totalorder %s23, 0
    %p86 = por %p84, %p85
    %p87 = scmp.ne.s32.totalorder %s75, %s76
    %p88 = scmp.eq.s32.totalorder %s24, 1
    %p89 = por %p87, %p88
    %p91 = scmp.ne.s32.totalorder %s76, %s90
    %p92 = scmp.eq.s32.totalorder %s24, 0
    %p93 = por %p91, %p92
    %s95 = sadd.s32 %s94, 1
    %p98 = scmp.eq.s32.totalorder %s18, 1
    %p99 = scmp.ne.s32.totalorder %s94, %s96
    %p100 = scmp.eq.s32.totalorder %s18, 0
    %p101 = por %p99, %p100
    %p102 = scmp.ne.s32.totalorder %s94, %s96
    %p103 = scmp.eq.s32.totalorder %s23, 1
    %p104 = por %p102, %p103
    %p105 = scmp.ne.s32.totalorder %s96, %s97
    %p106 = scmp.eq.s32.totalorder %s23, 0
    %p107 = por %p105, %p106
    %p108 = scmp.ne.s32.totalorder %s96, %s97
    %p109 = scmp.eq.s32.totalorder %s24, 1
    %p110 = por %p108, %p109
    %p112 = scmp.ne.s32.totalorder %s97, %s111
    %p113 = scmp.eq.s32.totalorder %s24, 0
    %p114 = por %p112, %p113
    %s116 = sadd.s32 %s115, 1
    %p119 = scmp.eq.s32.totalorder %s18, 1
    %p120 = scmp.ne.s32.totalorder %s115, %s117
    %p121 = scmp.eq.s32.totalorder %s18, 0
    %p122 = por %p120, %p121
    %p123 = scmp.ne.s32.totalorder %s115, %s117
    %p124 = scmp.eq.s32.totalorder %s23, 1
    %p125 = por %p123, %p124
    %p126 = scmp.ne.s32.totalorder %s117, %s118
    %p127 = scmp.eq.s32.totalorder %s23, 0
    %p128 = por %p126, %p127
    %p129 = scmp.ne.s32.totalorder %s117, %s118
    %p130 = scmp.eq.s32.totalorder %s24, 1
    %p131 = por %p129, %p130
    %p133 = scmp.ne.s32.totalorder %s118, %s132
    %p134 = scmp.eq.s32.totalorder %s24, 0
    %p135 = por %p133, %p134
    %s137 = sadd.s32 %s136, 1
    %p140 = scmp.eq.s32.totalorder %s18, 1
    %p141 = scmp.ne.s32.totalorder %s136, %s138
    %p142 = scmp.eq.s32.totalorder %s18, 0
    %p143 = por %p141, %p142
    %p144 = scmp.ne.s32.totalorder %s136, %s138
    %p145 = scmp.eq.s32.totalorder %s23, 1
    %p146 = por %p144, %p145
    %p147 = scmp.ne.s32.totalorder %s138, %s139
    %p148 = scmp.eq.s32.totalorder %s23, 0
    %p149 = por %p147, %p148
    %p150 = scmp.ne.s32.totalorder %s138, %s139
    %p151 = scmp.eq.s32.totalorder %s24, 1
    %p152 = por %p150, %p151
    %p154 = scmp.ne.s32.totalorder %s139, %s153
    %p155 = scmp.eq.s32.totalorder %s24, 0
    %p156 = por %p154, %p155
    %s158 = sadd.s32 %s157, 1
    %p161 = scmp.eq.s32.totalorder %s18, 1
    %p162 = scmp.ne.s32.totalorder %s157, %s159
    %p163 = scmp.eq.s32.totalorder %s18, 0
    %p164 = por %p162, %p163
    %p165 = scmp.ne.s32.totalorder %s157, %s159
    %p166 = scmp.eq.s32.totalorder %s23, 1
    %p167 = por %p165, %p166
    %p168 = scmp.ne.s32.totalorder %s159, %s160
    %p169 = scmp.eq.s32.totalorder %s23, 0
    %p170 = por %p168, %p169
    %p171 = scmp.ne.s32.totalorder %s159, %s160
    %p172 = scmp.eq.s32.totalorder %s24, 1
    %p173 = por %p171, %p172
    %p175 = scmp.ne.s32.totalorder %s160, %s174
    %p176 = scmp.eq.s32.totalorder %s24, 0
    %p177 = por %p175, %p176
    %s179 = sadd.s32 %s178, 1
    %p182 = scmp.eq.s32.totalorder %s18, 1
    %p183 = scmp.ne.s32.totalorder %s178, %s180
    %p184 = scmp.eq.s32.totalorder %s18, 0
    %p185 = por %p183, %p184
    %p186 = scmp.ne.s32.totalorder %s178, %s180
    %p187 = scmp.eq.s32.totalorder %s23, 1
    %p188 = por %p186, %p187
    %p189 = scmp.ne.s32.totalorder %s180, %s181
    %p190 = scmp.eq.s32.totalorder %s23, 0
    %p191 = por %p189, %p190
    %p192 = scmp.ne.s32.totalorder %s180, %s181
    %p193 = scmp.eq.s32.totalorder %s24, 1
    %p194 = por %p192, %p193
    %p196 = scmp.ne.s32.totalorder %s181, %s195
    %p197 = scmp.eq.s32.totalorder %s24, 0
    %p198 = por %p196, %p197
    %s200 = sadd.s32 %s199, 1
    %p203 = scmp.eq.s32.totalorder %s18, 1
    %p204 = scmp.ne.s32.totalorder %s199, %s201
    %p205 = scmp.eq.s32.totalorder %s18, 0
    %p206 = por %p204, %p205
    %p207 = scmp.ne.s32.totalorder %s199, %s201
    %p208 = scmp.eq.s32.totalorder %s23, 1
    %p209 = por %p207, %p208
    %p210 = scmp.ne.s32.totalorder %s201, %s202
    %p211 = scmp.eq.s32.totalorder %s23, 0
    %p212 = por %p210, %p211
    %p213 = scmp.ne.s32.totalorder %s201, %s202
    %p214 = scmp.eq.s32.totalorder %s24, 1
    %p215 = por %p213, %p214
    %p217 = scmp.ne.s32.totalorder %s202, %s216
    %p218 = scmp.eq.s32.totalorder %s24, 0
    %p219 = por %p217, %p218
    %s221 = sadd.s32 %s220, 1
    %p224 = scmp.eq.s32.totalorder %s18, 1
    %p225 = scmp.ne.s32.totalorder %s220, %s222
    %p226 = scmp.eq.s32.totalorder %s18, 0
    %p227 = por %p225, %p226
    %p228 = scmp.ne.s32.totalorder %s220, %s222
    %p229 = scmp.eq.s32.totalorder %s23, 1
    %p230 = por %p228, %p229
    %p231 = scmp.ne.s32.totalorder %s222, %s223
    %p232 = scmp.eq.s32.totalorder %s23, 0
    %p233 = por %p231, %p232
    %p234 = scmp.ne.s32.totalorder %s222, %s223
    %p235 = scmp.eq.s32.totalorder %s24, 1
    %p236 = por %p234, %p235
    %p238 = scmp.ne.s32.totalorder %s223, %s237
    %p239 = scmp.eq.s32.totalorder %s24, 0
    %p240 = por %p238, %p239
    %s242 = sadd.s32 %s241, 1
    %p245 = scmp.eq.s32.totalorder %s18, 1
    %p246 = scmp.ne.s32.totalorder %s241, %s243
    %p247 = scmp.eq.s32.totalorder %s18, 0
    %p248 = por %p246, %p247
    %p249 = scmp.ne.s32.totalorder %s241, %s243
    %p250 = scmp.eq.s32.totalorder %s23, 1
    %p251 = por %p249, %p250
    %p252 = scmp.ne.s32.totalorder %s243, %s244
    %p253 = scmp.eq.s32.totalorder %s23, 0
    %p254 = por %p252, %p253
    %p255 = scmp.ne.s32.totalorder %s243, %s244
    %p256 = scmp.eq.s32.totalorder %s24, 1
    %p257 = por %p255, %p256
    %p259 = scmp.ne.s32.totalorder %s244, %s258
    %p260 = scmp.eq.s32.totalorder %s24, 0
    %p261 = por %p259, %p260
    %s263 = sadd.s32 %s262, 1
    %p266 = scmp.eq.s32.totalorder %s18, 1
    %p267 = scmp.ne.s32.totalorder %s262, %s264
    %p268 = scmp.eq.s32.totalorder %s18, 0
    %p269 = por %p267, %p268
    %p270 = scmp.ne.s32.totalorder %s262, %s264
    %p271 = scmp.eq.s32.totalorder %s23, 1
    %p272 = por %p270, %p271
    %p273 = scmp.ne.s32.totalorder %s264, %s265
    %p274 = scmp.eq.s32.totalorder %s23, 0
    %p275 = por %p273, %p274
    %p276 = scmp.ne.s32.totalorder %s264, %s265
    %p277 = scmp.eq.s32.totalorder %s24, 1
    %p278 = por %p276, %p277
    %p280 = scmp.ne.s32.totalorder %s265, %s279
    %p281 = scmp.eq.s32.totalorder %s24, 0
    %p282 = por %p280, %p281
    %s283 = ssub.s32 %s18, %s25
    %p284 = scmp.eq.s32.totalorder %s283, 0
    %s286 = sadd.s32 %s285, 1
    %s287 = scalar_select %p284, %s285, %s286
    %p290 = pneg %p284
    %p291 = scmp.eq.s32.totalorder %s18, 1
    %p292 = por %p290, %p291
    %p293 = scmp.ne.s32.totalorder %s285, %s288
    %p294 = scmp.eq.s32.totalorder %s18, 0
    %p295 = por %p293, %p294
    %p296 = scmp.ne.s32.totalorder %s285, %s288
    %p297 = scmp.eq.s32.totalorder %s23, 1
    %p298 = por %p296, %p297
    %p299 = scmp.ne.s32.totalorder %s288, %s289
    %p300 = scmp.eq.s32.totalorder %s23, 0
    %p301 = por %p299, %p300
    %p302 = scmp.ne.s32.totalorder %s288, %s289
    %p303 = scmp.eq.s32.totalorder %s24, 1
    %p304 = por %p302, %p303
    %p306 = scmp.ne.s32.totalorder %s289, %s305
    %p307 = scmp.eq.s32.totalorder %s24, 0
    %p308 = por %p306, %p307
    %p309 = scmp.le.s32.totalorder 1, %s18
    %p310 = scmp.lt.s32.totalorder %s18, 3
    %p311 = pnand %p309, %p310
    %p312 = pneg %p311
    // Predicated region
    $region9: #{tpu_custom_call.1} parent=5 // pred_check
      _
    $region10: #{tpu_custom_call.1} parent=5 // pred_check_branch
      %314 = sbr.rel (%p311) target = $region12
    $region11: #{tpu_custom_call.1} parent=5 // pred_region
      %s315 = ssub.s32 %s18, 1
      // Predicated region
      $region13: #{tpu_custom_call.1} parent=11 // pred_check
        %p316 = pneg %p65
      $region14: #{tpu_custom_call.1} parent=11 // pred_check_branch
        %318 = sbr.rel (%p316) target = $region16
      $region15: #{tpu_custom_call.1} parent=11 // pred_region
        _
      $region16: #{tpu_custom_call.1} parent=11 // pred_fallthru
        _
      // Predicated region
      $region17: #{tpu_custom_call.1} parent=11 // pred_check
        %p319 = pneg %p86
      $region18: #{tpu_custom_call.1} parent=11 // pred_check_branch
        %321 = sbr.rel (%p319) target = $region20
      $region19: #{tpu_custom_call.1} parent=11 // pred_region
        _
      $region20: #{tpu_custom_call.1} parent=11 // pred_fallthru
        _
      // Predicated region
      $region21: #{tpu_custom_call.1} parent=11 // pred_check
        %p322 = pneg %p107
      $region22: #{tpu_custom_call.1} parent=11 // pred_check_branch
        %324 = sbr.rel (%p322) target = $region24
      $region23: #{tpu_custom_call.1} parent=11 // pred_region
        _
      $region24: #{tpu_custom_call.1} parent=11 // pred_fallthru
        _
      // Predicated region
      $region25: #{tpu_custom_call.1} parent=11 // pred_check
        %p325 = pneg %p128
      $region26: #{tpu_custom_call.1} parent=11 // pred_check_branch
        %327 = sbr.rel (%p325) target = $region28
      $region27: #{tpu_custom_call.1} parent=11 // pred_region
        _
      $region28: #{tpu_custom_call.1} parent=11 // pred_fallthru
        _
      // Predicated region
      $region29: #{tpu_custom_call.1} parent=11 // pred_check
        %p328 = pneg %p149
      $region30: #{tpu_custom_call.1} parent=11 // pred_check_branch
        %330 = sbr.rel (%p328) target = $region32
      $region31: #{tpu_custom_call.1} parent=11 // pred_region
        _
      $region32: #{tpu_custom_call.1} parent=11 // pred_fallthru
        _
      // Predicated region
      $region33: #{tpu_custom_call.1} parent=11 // pred_check
        %p331 = pneg %p170
      $region34: #{tpu_custom_call.1} parent=11 // pred_check_branch
        %333 = sbr.rel (%p331) target = $region36
      $region35: #{tpu_custom_call.1} parent=11 // pred_region
        _
      $region36: #{tpu_custom_call.1} parent=11 // pred_fallthru
        _
      // Predicated region
      $region37: #{tpu_custom_call.1} parent=11 // pred_check
        %p334 = pneg %p191
      $region38: #{tpu_custom_call.1} parent=11 // pred_check_branch
        %336 = sbr.rel (%p334) target = $region40
      $region39: #{tpu_custom_call.1} parent=11 // pred_region
        _
      $region40: #{tpu_custom_call.1} parent=11 // pred_fallthru
        _
      // Predicated region
      $region41: #{tpu_custom_call.1} parent=11 // pred_check
        %p337 = pneg %p212
      $region42: #{tpu_custom_call.1} parent=11 // pred_check_branch
        %339 = sbr.rel (%p337) target = $region44
      $region43: #{tpu_custom_call.1} parent=11 // pred_region
        _
      $region44: #{tpu_custom_call.1} parent=11 // pred_fallthru
        _
      // Predicated region
      $region45: #{tpu_custom_call.1} parent=11 // pred_check
        %p340 = pneg %p233
      $region46: #{tpu_custom_call.1} parent=11 // pred_check_branch
        %342 = sbr.rel (%p340) target = $region48
      $region47: #{tpu_custom_call.1} parent=11 // pred_region
        _
      $region48: #{tpu_custom_call.1} parent=11 // pred_fallthru
        _
      // Predicated region
      $region49: #{tpu_custom_call.1} parent=11 // pred_check
        %p343 = pneg %p254
      $region50: #{tpu_custom_call.1} parent=11 // pred_check_branch
        %345 = sbr.rel (%p343) target = $region52
      $region51: #{tpu_custom_call.1} parent=11 // pred_region
        _
      $region52: #{tpu_custom_call.1} parent=11 // pred_fallthru
        _
      // Predicated region
      $region53: #{tpu_custom_call.1} parent=11 // pred_check
        %p346 = pneg %p275
      $region54: #{tpu_custom_call.1} parent=11 // pred_check_branch
        %348 = sbr.rel (%p346) target = $region56
      $region55: #{tpu_custom_call.1} parent=11 // pred_region
        _
      $region56: #{tpu_custom_call.1} parent=11 // pred_fallthru
        _
    $region12: #{tpu_custom_call.1} parent=5 // pred_fallthru
      _
    %p349 = scmp.lt.s32.totalorder %s18, 2
    // Predicated region
    $region57: #{tpu_custom_call.1} parent=5 // pred_check
      %p350 = pneg %p349
    $region58: #{tpu_custom_call.1} parent=5 // pred_check_branch
      %352 = sbr.rel (%p350) target = $region60
    $region59: #{tpu_custom_call.1} parent=5 // pred_region
      // Predicated region
      $region61: #{tpu_custom_call.1} parent=59 // pred_check
        %p353 = pneg %p38
      $region62: #{tpu_custom_call.1} parent=59 // pred_check_branch
        %355 = sbr.rel (%p353) target = $region64
      $region63: #{tpu_custom_call.1} parent=59 // pred_region
        %p356 = scmp.lt.s32.totalorder %s18, 1
        %s357 = scalar_select %p356, %s18, 1
        %s358 = smul.addr %s357, 43
        %s359 = smul.addr %s358, 8
        %s360 = scalar_lea.vmem %s0, %s359
      $region64: #{tpu_custom_call.1} parent=59 // pred_fallthru
        _
    $region60: #{tpu_custom_call.1} parent=5 // pred_fallthru
      _
    %p361 = scmp.le.s32.totalorder 1, %s18
    %p362 = scmp.lt.s32.totalorder %s18, 3
    %p363 = pnand %p361, %p362
    %p364 = pneg %p363
    // Predicated region
    $region65: #{tpu_custom_call.1} parent=5 // pred_check
      _
    $region66: #{tpu_custom_call.1} parent=5 // pred_check_branch
      %366 = sbr.rel (%p363) target = $region68
    $region67: #{tpu_custom_call.1} parent=5 // pred_region
      %s367 = ssub.s32 %s18, 1
      %p368 = scmp.lt.s32.totalorder %s23, 1
      %s369 = scalar_select %p368, %s23, 1
      %s370 = smul.addr %s369, 43
      %s371 = smul.addr %s370, 8
      %s372 = scalar_lea.vmem %s0, %s371
      %p373 = pneg %p44
      %p374 = pneg %p41
      %p375 = pneg %p65
      %p376 = pneg %p62
      %p377 = pneg %p86
      %p378 = pneg %p83
      %p379 = pneg %p107
      %p380 = pneg %p104
      %p381 = pneg %p128
      %p382 = pneg %p125
      %p383 = pneg %p149
      %p384 = pneg %p146
      %p385 = pneg %p170
      %p386 = pneg %p167
      %p387 = pneg %p191
      %p388 = pneg %p188
      %p389 = pneg %p212
      %p390 = pneg %p209
      %p391 = pneg %p233
      %p392 = pneg %p230
      %p393 = pneg %p254
      %p394 = pneg %p251
      %p395 = pneg %p275
      %p396 = pneg %p272
      %p397 = pneg %p301
      %p398 = pneg %p298
      %p399 = scmp.lt.s32.totalorder %s23, 1
      %s400 = scalar_select %p399, %s23, 1
      %s401 = smul.addr %s400, 36
      %s402 = smul.addr %s401, 8
      %s403 = scalar_lea.vmem %s12, %s402
      %p404 = scmp.lt.s32.totalorder %s23, 1
      %s405 = scalar_select %p404, %s23, 1
      %s406 = smul.addr %s405, 43
      %s407 = smul.addr %s406, 8
      %s408 = scalar_lea.vmem %s0, %s407
      %p409 = scmp.lt.s32.totalorder %s23, 1
      %s410 = scalar_select %p409, %s23, 1
      %s411 = smul.addr %s410, 36
      %s412 = smul.addr %s411, 8
      %s413 = scalar_lea.vmem %s12, %s412
      %v415 = vld [vmem:[%s11] sm:$0xff]
      %v416 = vld [vmem:[%s11 + $0x8] sm:$0xff]
      %v417 = vld [vmem:[%s11 + $0x10] sm:$0xff]
      %v418 = vld [vmem:[%s11 + $0x18] sm:$0xff]
      %v419 = vld [vmem:[%s11 + $0x20] sm:$0xff]
      %v420 = vld [vmem:[%s11 + $0x28] sm:$0xff]
      %v421 = vld [vmem:[%s11 + $0x30] sm:$0xff]
      %v422 = vld [vmem:[%s11 + $0x38] sm:$0xff]
      %v423 = vld [vmem:[%s11 + $0x40] sm:$0xff]
      %v424 = vld [vmem:[%s11 + $0x48] sm:$0xff]
      %v425 = vld [vmem:[%s11 + $0x50] sm:$0xff]
      %v426 = vld [vmem:[%s11 + $0x58] sm:$0xff]
      %v427 = vld [vmem:[%s11 + $0x60] sm:$0xff]
      %v428 = vld [vmem:[%s11 + $0x68] sm:$0xff]
      %v429 = vld [vmem:[%s11 + $0x70] sm:$0xff]
      %v430 = vld [vmem:[%s11 + $0x78] sm:$0xff]
      %v431 = vld [vmem:[%s11 + $0x80] sm:$0xff]
      %v432 = vld [vmem:[%s11 + $0x88] sm:$0xff]
      %v433 = vld [vmem:[%s11 + $0x90] sm:$0xff]
      %v434 = vld [vmem:[%s11 + $0x98] sm:$0xff]
      %v435 = vld [vmem:[%s11 + $0xa0] sm:$0xff]
      %v436 = vld [vmem:[%s11 + $0xa8] sm:$0xff]
      %v437 = vld [vmem:[%s11 + $0xb0] sm:$0xff]
      %v438 = vld [vmem:[%s11 + $0xb8] sm:$0xff]
      %v439 = vld [vmem:[%s11 + $0xc0] sm:$0xff]
      %v440 = vld [vmem:[%s11 + $0xc8] sm:$0xff]
      %v441 = vld [vmem:[%s11 + $0xd0] sm:$0xff]
      %v442 = vld [vmem:[%s11 + $0xd8] sm:$0xff]
      %v443 = vld [vmem:[%s11 + $0xe0] sm:$0xff]
      %v444 = vld [vmem:[%s11 + $0xe8] sm:$0xff]
      %v445 = vld [vmem:[%s11 + $0xf0] sm:$0xff]
      %v446 = vld [vmem:[%s11 + $0xf8] sm:$0xff]
      %v447 = vld [vmem:[%s11 + $0x100] sm:$0xff]
      %v448 = vld [vmem:[%s11 + $0x108] sm:$0xff]
      %v449 = vld [vmem:[%s11 + $0x110] sm:$0xff]
      %v450 = vld [vmem:[%s11 + $0x118] sm:$0xff]
      %v451 = vld [vmem:[%s408] sm:$0xff]
      %v452 = vld [vmem:[%s408 + $0x8] sm:$0xff]
      %v453 = vld [vmem:[%s408 + $0x10] sm:$0xff]
      %v454 = vld [vmem:[%s408 + $0x18] sm:$0xff]
      %v455 = vld [vmem:[%s408 + $0x20] sm:$0xff]
      %v456 = vld [vmem:[%s408 + $0x28] sm:$0xff]
      %v457 = vld [vmem:[%s408 + $0x30] sm:$0xff]
      %v458 = vld [vmem:[%s408 + $0x38] sm:$0xff]
      %v459 = vld [vmem:[%s408 + $0x40] sm:$0xff]
      %v460 = vld [vmem:[%s408 + $0x48] sm:$0xff]
      %v461 = vld [vmem:[%s408 + $0x50] sm:$0xff]
      %v462 = vld [vmem:[%s408 + $0x58] sm:$0xff]
      %v463 = vld [vmem:[%s408 + $0x60] sm:$0xff]
      %v464 = vld [vmem:[%s408 + $0x68] sm:$0xff]
      %v465 = vld [vmem:[%s408 + $0x70] sm:$0xff]
      %v466 = vld [vmem:[%s408 + $0x78] sm:$0xff]
      %v467 = vld [vmem:[%s408 + $0x80] sm:$0xff]
      %v468 = vld [vmem:[%s408 + $0x88] sm:$0xff]
      %v469 = vld [vmem:[%s408 + $0x90] sm:$0xff]
      %v470 = vld [vmem:[%s408 + $0x98] sm:$0xff]
      %v471 = vld [vmem:[%s408 + $0xa0] sm:$0xff]
      %v472 = vld [vmem:[%s408 + $0xa8] sm:$0xff]
      %v473 = vld [vmem:[%s408 + $0xb0] sm:$0xff]
      %v474 = vld [vmem:[%s408 + $0xb8] sm:$0xff]
      %v475 = vld [vmem:[%s408 + $0xc0] sm:$0xff]
      %v476 = vld [vmem:[%s408 + $0xc8] sm:$0xff]
      %v477 = vld [vmem:[%s408 + $0xd0] sm:$0xff]
      %v478 = vld [vmem:[%s408 + $0xd8] sm:$0xff]
      %v479 = vld [vmem:[%s408 + $0xe0] sm:$0xff]
      %v480 = vld [vmem:[%s408 + $0xe8] sm:$0xff]
      %v481 = vld [vmem:[%s408 + $0xf0] sm:$0xff]
      %v482 = vld [vmem:[%s408 + $0xf8] sm:$0xff]
      %v483 = vld [vmem:[%s408 + $0x100] sm:$0xff]
      %v484 = vld [vmem:[%s408 + $0x108] sm:$0xff]
      %v485 = vld [vmem:[%s408 + $0x110] sm:$0xff]
      %v486 = vld [vmem:[%s408 + $0x118] sm:$0xff]
      %v487 = vpack.c.bf16 %v452, %v451
      %v488 = vpack.c.bf16 %v454, %v453
      %v489 = vpack.c.bf16 %v456, %v455
      %v490 = vpack.c.bf16 %v458, %v457
      %v491 = vpack.c.bf16 %v460, %v459
      %v492 = vpack.c.bf16 %v462, %v461
      %v493 = vpack.c.bf16 %v464, %v463
      %v494 = vpack.c.bf16 %v466, %v465
      %v495 = vpack.c.bf16 %v468, %v467
      %v496 = vpack.c.bf16 %v470, %v469
      %v497 = vpack.c.bf16 %v472, %v471
      %v498 = vpack.c.bf16 %v474, %v473
      %v499 = vpack.c.bf16 %v476, %v475
      %v500 = vpack.c.bf16 %v478, %v477
      %v501 = vpack.c.bf16 %v480, %v479
      %v502 = vpack.c.bf16 %v482, %v481
      %v503 = vpack.c.bf16 %v484, %v483
      %v504 = vpack.c.bf16 %v486, %v485
      %v505 = vld [vmem:[%s1] sm:$0xf]
      %v506 = vld [vmem:[%s1 + $0x4] sm:$0xf]
      %v507 = vld [vmem:[%s408 + $0x1] sm:$0xff]
      %v508 = vld [vmem:[%s408 + $0x9] sm:$0xff]
      %v509 = vld [vmem:[%s408 + $0x11] sm:$0xff]
      %v510 = vld [vmem:[%s408 + $0x19] sm:$0xff]
      %v511 = vld [vmem:[%s408 + $0x21] sm:$0xff]
      %v512 = vld [vmem:[%s408 + $0x29] sm:$0xff]
      %v513 = vld [vmem:[%s408 + $0x31] sm:$0xff]
      %v514 = vld [vmem:[%s408 + $0x39] sm:$0xff]
      %v515 = vld [vmem:[%s408 + $0x41] sm:$0xff]
      %v516 = vld [vmem:[%s408 + $0x49] sm:$0xff]
      %v517 = vld [vmem:[%s408 + $0x51] sm:$0xff]
      %v518 = vld [vmem:[%s408 + $0x59] sm:$0xff]
      %v519 = vld [vmem:[%s408 + $0x61] sm:$0xff]
      %v520 = vld [vmem:[%s408 + $0x69] sm:$0xff]
      %v521 = vld [vmem:[%s408 + $0x71] sm:$0xff]
      %v522 = vld [vmem:[%s408 + $0x79] sm:$0xff]
      %v523 = vld [vmem:[%s408 + $0x81] sm:$0xff]
      %v524 = vld [vmem:[%s408 + $0x89] sm:$0xff]
      %v525 = vld [vmem:[%s408 + $0x91] sm:$0xff]
      %v526 = vld [vmem:[%s408 + $0x99] sm:$0xff]
      %v527 = vld [vmem:[%s408 + $0xa1] sm:$0xff]
      %v528 = vld [vmem:[%s408 + $0xa9] sm:$0xff]
      %v529 = vld [vmem:[%s408 + $0xb1] sm:$0xff]
      %v530 = vld [vmem:[%s408 + $0xb9] sm:$0xff]
      %v531 = vld [vmem:[%s408 + $0xc1] sm:$0xff]
      %v532 = vld [vmem:[%s408 + $0xc9] sm:$0xff]
      %v533 = vld [vmem:[%s408 + $0xd1] sm:$0xff]
      %v534 = vld [vmem:[%s408 + $0xd9] sm:$0xff]
      %v535 = vld [vmem:[%s408 + $0xe1] sm:$0xff]
      %v536 = vld [vmem:[%s408 + $0xe9] sm:$0xff]
      %v537 = vld [vmem:[%s408 + $0xf1] sm:$0xff]
      %v538 = vld [vmem:[%s408 + $0xf9] sm:$0xff]
      %v539 = vld [vmem:[%s408 + $0x101] sm:$0xff]
      %v540 = vld [vmem:[%s408 + $0x109] sm:$0xff]
      %v541 = vld [vmem:[%s408 + $0x111] sm:$0xff]
      %v542 = vld [vmem:[%s408 + $0x119] sm:$0xff]
      %v543 = vpack.c.bf16 %v508, %v507
      %v544 = vpack.c.bf16 %v510, %v509
      %v545 = vpack.c.bf16 %v512, %v511
      %v546 = vpack.c.bf16 %v514, %v513
      %v547 = vpack.c.bf16 %v516, %v515
      %v548 = vpack.c.bf16 %v518, %v517
      %v549 = vpack.c.bf16 %v520, %v519
      %v550 = vpack.c.bf16 %v522, %v521
      %v551 = vpack.c.bf16 %v524, %v523
      %v552 = vpack.c.bf16 %v526, %v525
      %v553 = vpack.c.bf16 %v528, %v527
      %v554 = vpack.c.bf16 %v530, %v529
      %v555 = vpack.c.bf16 %v532, %v531
      %v556 = vpack.c.bf16 %v534, %v533
      %v557 = vpack.c.bf16 %v536, %v535
      %v558 = vpack.c.bf16 %v538, %v537
      %v559 = vpack.c.bf16 %v540, %v539
      %v560 = vpack.c.bf16 %v542, %v541
      %s561 = scalar_lea.vmem %s1, 8
      %v562 = vld [vmem:[%s561] sm:$0xf]
      %v563 = vld [vmem:[%s561 + $0x4] sm:$0xf]
      %v566 = vunpack.c.l.b16 %v562
      %v567 = vunpack.c.l.b16 %v563
      %v568 = vpack.c.b16 %v567, %v566
      %vm570 = vcmask 130048
      %v572 = vsel %vm570, %v543, 0
      %v575 = vsel %vm570, %v544, 0
      %v578 = vsel %vm570, %v545, 0
      %v581 = vsel %vm570, %v546, 0
      %v584 = vsel %vm570, %v547, 0
      %v587 = vsel %vm570, %v548, 0
      %v590 = vsel %vm570, %v549, 0
      %v593 = vsel %vm570, %v550, 0
      %v596 = vsel %vm570, %v551, 0
      %v599 = vsel %vm570, %v552, 0
      %v602 = vsel %vm570, %v553, 0
      %v605 = vsel %vm570, %v554, 0
      %v608 = vsel %vm570, %v555, 0
      %v611 = vsel %vm570, %v556, 0
      %v614 = vsel %vm570, %v557, 0
      %v617 = vsel %vm570, %v558, 0
      %v620 = vsel %vm570, %v559, 0
      %v623 = vsel %vm570, %v560, 0
      %625 = vmatpush.bf16.msra.mxu0 0
      %626 = vmatpush.bf16.msra.mxu0 0
      %627 = vmatpush.bf16.msra.mxu0 0
      %628 = vmatpush.bf16.msra.mxu0 0
      %629 = vmatpush.bf16.msra.mxu0 0
      %630 = vmatpush.bf16.msra.mxu0 0
      %631 = vmatpush.bf16.msra.mxu0 0
      %632 = vmatpush.bf16.msra.mxu0 %v568
      %633 = vmatmul.bf16.gmra.mxu0 %v572
      %v634 = vpop.f32.mrf.mxu0
      %v635 = vadd.f32 0.0, %v634
      %v636 = vpop.f32.mrf.mxu0
      %v637 = vadd.f32 0.0, %v636
      %638 = vmatmul.bf16.gmra.mxu0 %v575
      %v639 = vpop.f32.mrf.mxu0
      %v640 = vadd.f32 0.0, %v639
      %v641 = vpop.f32.mrf.mxu0
      %v642 = vadd.f32 0.0, %v641
      %643 = vmatmul.bf16.gmra.mxu0 %v578
      %v644 = vpop.f32.mrf.mxu0
      %v645 = vadd.f32 0.0, %v644
      %v646 = vpop.f32.mrf.mxu0
      %v647 = vadd.f32 0.0, %v646
      %648 = vmatmul.bf16.gmra.mxu0 %v581
      %v649 = vpop.f32.mrf.mxu0
      %v650 = vadd.f32 0.0, %v649
      %v651 = vpop.f32.mrf.mxu0
      %v652 = vadd.f32 0.0, %v651
      %653 = vmatmul.bf16.gmra.mxu0 %v584
      %v654 = vpop.f32.mrf.mxu0
      %v655 = vadd.f32 0.0, %v654
      %v656 = vpop.f32.mrf.mxu0
      %v657 = vadd.f32 0.0, %v656
      %658 = vmatmul.bf16.gmra.mxu0 %v587
      %v659 = vpop.f32.mrf.mxu0
      %v660 = vadd.f32 0.0, %v659
      %v661 = vpop.f32.mrf.mxu0
      %v662 = vadd.f32 0.0, %v661
      %663 = vmatmul.bf16.gmra.mxu0 %v590
      %v664 = vpop.f32.mrf.mxu0
      %v665 = vadd.f32 0.0, %v664
      %v666 = vpop.f32.mrf.mxu0
      %v667 = vadd.f32 0.0, %v666
      %668 = vmatmul.bf16.gmra.mxu0 %v593
      %v669 = vpop.f32.mrf.mxu0
      %v670 = vadd.f32 0.0, %v669
      %v671 = vpop.f32.mrf.mxu0
      %v672 = vadd.f32 0.0, %v671
      %673 = vmatmul.bf16.gmra.mxu0 %v596
      %v674 = vpop.f32.mrf.mxu0
      %v675 = vadd.f32 0.0, %v674
      %v676 = vpop.f32.mrf.mxu0
      %v677 = vadd.f32 0.0, %v676
      %678 = vmatmul.bf16.gmra.mxu0 %v599
      %v679 = vpop.f32.mrf.mxu0
      %v680 = vadd.f32 0.0, %v679
      %v681 = vpop.f32.mrf.mxu0
      %v682 = vadd.f32 0.0, %v681
      %683 = vmatmul.bf16.gmra.mxu0 %v602
      %v684 = vpop.f32.mrf.mxu0
      %v685 = vadd.f32 0.0, %v684
      %v686 = vpop.f32.mrf.mxu0
      %v687 = vadd.f32 0.0, %v686
      %688 = vmatmul.bf16.gmra.mxu0 %v605
      %v689 = vpop.f32.mrf.mxu0
      %v690 = vadd.f32 0.0, %v689
      %v691 = vpop.f32.mrf.mxu0
      %v692 = vadd.f32 0.0, %v691
      %693 = vmatmul.bf16.gmra.mxu0 %v608
      %v694 = vpop.f32.mrf.mxu0
      %v695 = vadd.f32 0.0, %v694
      %v696 = vpop.f32.mrf.mxu0
      %v697 = vadd.f32 0.0, %v696
      %698 = vmatmul.bf16.gmra.mxu0 %v611
      %v699 = vpop.f32.mrf.mxu0
      %v700 = vadd.f32 0.0, %v699
      %v701 = vpop.f32.mrf.mxu0
      %v702 = vadd.f32 0.0, %v701
      %703 = vmatmul.bf16.gmra.mxu0 %v614
      %v704 = vpop.f32.mrf.mxu0
      %v705 = vadd.f32 0.0, %v704
      %v706 = vpop.f32.mrf.mxu0
      %v707 = vadd.f32 0.0, %v706
      %708 = vmatmul.bf16.gmra.mxu0 %v617
      %v709 = vpop.f32.mrf.mxu0
      %v710 = vadd.f32 0.0, %v709
      %v711 = vpop.f32.mrf.mxu0
      %v712 = vadd.f32 0.0, %v711
      %713 = vmatmul.bf16.gmra.mxu0 %v620
      %v714 = vpop.f32.mrf.mxu0
      %v715 = vadd.f32 0.0, %v714
      %v716 = vpop.f32.mrf.mxu0
      %v717 = vadd.f32 0.0, %v716
      %718 = vmatmul.bf16.gmra.mxu0 %v623
      %v719 = vpop.f32.mrf.mxu0
      %v720 = vadd.f32 0.0, %v719
      %v721 = vpop.f32.mrf.mxu0
      %v722 = vadd.f32 0.0, %v721
      %723 = vdwg.mxu0
      %v726 = vunpack.c.l.b16 %v505
      %v727 = vunpack.c.l.b16 %v506
      %v728 = vpack.c.b16 %v727, %v726
      %v731 = vsel %vm570, %v487, 0
      %v734 = vsel %vm570, %v488, 0
      %v737 = vsel %vm570, %v489, 0
      %v740 = vsel %vm570, %v490, 0
      %v743 = vsel %vm570, %v491, 0
      %v746 = vsel %vm570, %v492, 0
      %v749 = vsel %vm570, %v493, 0
      %v752 = vsel %vm570, %v494, 0
      %v755 = vsel %vm570, %v495, 0
      %v758 = vsel %vm570, %v496, 0
      %v761 = vsel %vm570, %v497, 0
      %v764 = vsel %vm570, %v498, 0
      %v767 = vsel %vm570, %v499, 0
      %v770 = vsel %vm570, %v500, 0
      %v773 = vsel %vm570, %v501, 0
      %v776 = vsel %vm570, %v502, 0
      %v779 = vsel %vm570, %v503, 0
      %v782 = vsel %vm570, %v504, 0
      %784 = vmatpush.bf16.msra.mxu0 0
      %785 = vmatpush.bf16.msra.mxu0 0
      %786 = vmatpush.bf16.msra.mxu0 0
      %787 = vmatpush.bf16.msra.mxu0 0
      %788 = vmatpush.bf16.msra.mxu0 0
      %789 = vmatpush.bf16.msra.mxu0 0
      %790 = vmatpush.bf16.msra.mxu0 0
      %791 = vmatpush.bf16.msra.mxu0 %v728
      %792 = vmatmul.bf16.gmra.mxu0 %v731
      %v793 = vpop.f32.mrf.mxu0
      %v794 = vadd.f32 %v635, %v793
      %v795 = vpop.f32.mrf.mxu0
      %v796 = vadd.f32 %v637, %v795
      %797 = vmatmul.bf16.gmra.mxu0 %v734
      %v798 = vpop.f32.mrf.mxu0
      %v799 = vadd.f32 %v640, %v798
      %v800 = vpop.f32.mrf.mxu0
      %v801 = vadd.f32 %v642, %v800
      %802 = vmatmul.bf16.gmra.mxu0 %v737
      %v803 = vpop.f32.mrf.mxu0
      %v804 = vadd.f32 %v645, %v803
      %v805 = vpop.f32.mrf.mxu0
      %v806 = vadd.f32 %v647, %v805
      %807 = vmatmul.bf16.gmra.mxu0 %v740
      %v808 = vpop.f32.mrf.mxu0
      %v809 = vadd.f32 %v650, %v808
      %v810 = vpop.f32.mrf.mxu0
      %v811 = vadd.f32 %v652, %v810
      %812 = vmatmul.bf16.gmra.mxu0 %v743
      %v813 = vpop.f32.mrf.mxu0
      %v814 = vadd.f32 %v655, %v813
      %v815 = vpop.f32.mrf.mxu0
      %v816 = vadd.f32 %v657, %v815
      %817 = vmatmul.bf16.gmra.mxu0 %v746
      %v818 = vpop.f32.mrf.mxu0
      %v819 = vadd.f32 %v660, %v818
      %v820 = vpop.f32.mrf.mxu0
      %v821 = vadd.f32 %v662, %v820
      %822 = vmatmul.bf16.gmra.mxu0 %v749
      %v823 = vpop.f32.mrf.mxu0
      %v824 = vadd.f32 %v665, %v823
      %v825 = vpop.f32.mrf.mxu0
      %v826 = vadd.f32 %v667, %v825
      %827 = vmatmul.bf16.gmra.mxu0 %v752
      %v828 = vpop.f32.mrf.mxu0
      %v829 = vadd.f32 %v670, %v828
      %v830 = vpop.f32.mrf.mxu0
      %v831 = vadd.f32 %v672, %v830
      %832 = vmatmul.bf16.gmra.mxu0 %v755
      %v833 = vpop.f32.mrf.mxu0
      %v834 = vadd.f32 %v675, %v833
      %v835 = vpop.f32.mrf.mxu0
      %v836 = vadd.f32 %v677, %v835
      %837 = vmatmul.bf16.gmra.mxu0 %v758
      %v838 = vpop.f32.mrf.mxu0
      %v839 = vadd.f32 %v680, %v838
      %v840 = vpop.f32.mrf.mxu0
      %v841 = vadd.f32 %v682, %v840
      %842 = vmatmul.bf16.gmra.mxu0 %v761
      %v843 = vpop.f32.mrf.mxu0
      %v844 = vadd.f32 %v685, %v843
      %v845 = vpop.f32.mrf.mxu0
      %v846 = vadd.f32 %v687, %v845
      %847 = vmatmul.bf16.gmra.mxu0 %v764
      %v848 = vpop.f32.mrf.mxu0
      %v849 = vadd.f32 %v690, %v848
      %v850 = vpop.f32.mrf.mxu0
      %v851 = vadd.f32 %v692, %v850
      %852 = vmatmul.bf16.gmra.mxu0 %v767
      %v853 = vpop.f32.mrf.mxu0
      %v854 = vadd.f32 %v695, %v853
      %v855 = vpop.f32.mrf.mxu0
      %v856 = vadd.f32 %v697, %v855
      %857 = vmatmul.bf16.gmra.mxu0 %v770
      %v858 = vpop.f32.mrf.mxu0
      %v859 = vadd.f32 %v700, %v858
      %v860 = vpop.f32.mrf.mxu0
      %v861 = vadd.f32 %v702, %v860
      %862 = vmatmul.bf16.gmra.mxu0 %v773
      %v863 = vpop.f32.mrf.mxu0
      %v864 = vadd.f32 %v705, %v863
      %v865 = vpop.f32.mrf.mxu0
      %v866 = vadd.f32 %v707, %v865
      %867 = vmatmul.bf16.gmra.mxu0 %v776
      %v868 = vpop.f32.mrf.mxu0
      %v869 = vadd.f32 %v710, %v868
      %v870 = vpop.f32.mrf.mxu0
      %v871 = vadd.f32 %v712, %v870
      %872 = vmatmul.bf16.gmra.mxu0 %v779
      %v873 = vpop.f32.mrf.mxu0
      %v874 = vadd.f32 %v715, %v873
      %v875 = vpop.f32.mrf.mxu0
      %v876 = vadd.f32 %v717, %v875
      %877 = vmatmul.bf16.gmra.mxu0 %v782
      %v878 = vpop.f32.mrf.mxu0
      %v879 = vadd.f32 %v720, %v878
      %v880 = vpop.f32.mrf.mxu0
      %v881 = vadd.f32 %v722, %v880
      %882 = vdwg.mxu0
      %v883 = vld [vmem:[%s408 + $0x2] sm:$0xff]
      %v884 = vld [vmem:[%s408 + $0xa] sm:$0xff]
      %v885 = vld [vmem:[%s408 + $0x12] sm:$0xff]
      %v886 = vld [vmem:[%s408 + $0x1a] sm:$0xff]
      %v887 = vld [vmem:[%s408 + $0x22] sm:$0xff]
      %v888 = vld [vmem:[%s408 + $0x2a] sm:$0xff]
      %v889 = vld [vmem:[%s408 + $0x32] sm:$0xff]
      %v890 = vld [vmem:[%s408 + $0x3a] sm:$0xff]
      %v891 = vld [vmem:[%s408 + $0x42] sm:$0xff]
      %v892 = vld [vmem:[%s408 + $0x4a] sm:$0xff]
      %v893 = vld [vmem:[%s408 + $0x52] sm:$0xff]
      %v894 = vld [vmem:[%s408 + $0x5a] sm:$0xff]
      %v895 = vld [vmem:[%s408 + $0x62] sm:$0xff]
      %v896 = vld [vmem:[%s408 + $0x6a] sm:$0xff]
      %v897 = vld [vmem:[%s408 + $0x72] sm:$0xff]
      %v898 = vld [vmem:[%s408 + $0x7a] sm:$0xff]
      %v899 = vld [vmem:[%s408 + $0x82] sm:$0xff]
      %v900 = vld [vmem:[%s408 + $0x8a] sm:$0xff]
      %v901 = vld [vmem:[%s408 + $0x92] sm:$0xff]
      %v902 = vld [vmem:[%s408 + $0x9a] sm:$0xff]
      %v903 = vld [vmem:[%s408 + $0xa2] sm:$0xff]
      %v904 = vld [vmem:[%s408 + $0xaa] sm:$0xff]
      %v905 = vld [vmem:[%s408 + $0xb2] sm:$0xff]
      %v906 = vld [vmem:[%s408 + $0xba] sm:$0xff]
      %v907 = vld [vmem:[%s408 + $0xc2] sm:$0xff]
      %v908 = vld [vmem:[%s408 + $0xca] sm:$0xff]
      %v909 = vld [vmem:[%s408 + $0xd2] sm:$0xff]
      %v910 = vld [vmem:[%s408 + $0xda] sm:$0xff]
      %v911 = vld [vmem:[%s408 + $0xe2] sm:$0xff]
      %v912 = vld [vmem:[%s408 + $0xea] sm:$0xff]
      %v913 = vld [vmem:[%s408 + $0xf2] sm:$0xff]
      %v914 = vld [vmem:[%s408 + $0xfa] sm:$0xff]
      %v915 = vld [vmem:[%s408 + $0x102] sm:$0xff]
      %v916 = vld [vmem:[%s408 + $0x10a] sm:$0xff]
      %v917 = vld [vmem:[%s408 + $0x112] sm:$0xff]
      %v918 = vld [vmem:[%s408 + $0x11a] sm:$0xff]
      %v919 = vpack.c.bf16 %v884, %v883
      %v920 = vpack.c.bf16 %v886, %v885
      %v921 = vpack.c.bf16 %v888, %v887
      %v922 = vpack.c.bf16 %v890, %v889
      %v923 = vpack.c.bf16 %v892, %v891
      %v924 = vpack.c.bf16 %v894, %v893
      %v925 = vpack.c.bf16 %v896, %v895
      %v926 = vpack.c.bf16 %v898, %v897
      %v927 = vpack.c.bf16 %v900, %v899
      %v928 = vpack.c.bf16 %v902, %v901
      %v929 = vpack.c.bf16 %v904, %v903
      %v930 = vpack.c.bf16 %v906, %v905
      %v931 = vpack.c.bf16 %v908, %v907
      %v932 = vpack.c.bf16 %v910, %v909
      %v933 = vpack.c.bf16 %v912, %v911
      %v934 = vpack.c.bf16 %v914, %v913
      %v935 = vpack.c.bf16 %v916, %v915
      %v936 = vpack.c.bf16 %v918, %v917
      %s937 = scalar_lea.vmem %s1, 16
      %v938 = vld [vmem:[%s937] sm:$0xf]
      %v939 = vld [vmem:[%s937 + $0x4] sm:$0xf]
      %v942 = vunpack.c.l.b16 %v938
      %v943 = vunpack.c.l.b16 %v939
      %v944 = vpack.c.b16 %v943, %v942
      %v947 = vsel %vm570, %v919, 0
      %v950 = vsel %vm570, %v920, 0
      %v953 = vsel %vm570, %v921, 0
      %v956 = vsel %vm570, %v922, 0
      %v959 = vsel %vm570, %v923, 0
      %v962 = vsel %vm570, %v924, 0
      %v965 = vsel %vm570, %v925, 0
      %v968 = vsel %vm570, %v926, 0
      %v971 = vsel %vm570, %v927, 0
      %v974 = vsel %vm570, %v928, 0
      %v977 = vsel %vm570, %v929, 0
      %v980 = vsel %vm570, %v930, 0
      %v983 = vsel %vm570, %v931, 0
      %v986 = vsel %vm570, %v932, 0
      %v989 = vsel %vm570, %v933, 0
      %v992 = vsel %vm570, %v934, 0
      %v995 = vsel %vm570, %v935, 0
      %v998 = vsel %vm570, %v936, 0
      %1000 = vmatpush.bf16.msra.mxu0 0
      %1001 = vmatpush.bf16.msra.mxu0 0
      %1002 = vmatpush.bf16.msra.mxu0 0
      %1003 = vmatpush.bf16.msra.mxu0 0
      %1004 = vmatpush.bf16.msra.mxu0 0
      %1005 = vmatpush.bf16.msra.mxu0 0
      %1006 = vmatpush.bf16.msra.mxu0 0
      %1007 = vmatpush.bf16.msra.mxu0 %v944
      %1008 = vmatmul.bf16.gmra.mxu0 %v947
      %v1009 = vpop.f32.mrf.mxu0
      %v1010 = vadd.f32 0.0, %v1009
      %v1011 = vpop.f32.mrf.mxu0
      %v1012 = vadd.f32 0.0, %v1011
      %1013 = vmatmul.bf16.gmra.mxu0 %v950
      %v1014 = vpop.f32.mrf.mxu0
      %v1015 = vadd.f32 0.0, %v1014
      %v1016 = vpop.f32.mrf.mxu0
      %v1017 = vadd.f32 0.0, %v1016
      %1018 = vmatmul.bf16.gmra.mxu0 %v953
      %v1019 = vpop.f32.mrf.mxu0
      %v1020 = vadd.f32 0.0, %v1019
      %v1021 = vpop.f32.mrf.mxu0
      %v1022 = vadd.f32 0.0, %v1021
      %1023 = vmatmul.bf16.gmra.mxu0 %v956
      %v1024 = vpop.f32.mrf.mxu0
      %v1025 = vadd.f32 0.0, %v1024
      %v1026 = vpop.f32.mrf.mxu0
      %v1027 = vadd.f32 0.0, %v1026
      %1028 = vmatmul.bf16.gmra.mxu0 %v959
      %v1029 = vpop.f32.mrf.mxu0
      %v1030 = vadd.f32 0.0, %v1029
      %v1031 = vpop.f32.mrf.mxu0
      %v1032 = vadd.f32 0.0, %v1031
      %1033 = vmatmul.bf16.gmra.mxu0 %v962
      %v1034 = vpop.f32.mrf.mxu0
      %v1035 = vadd.f32 0.0, %v1034
      %v1036 = vpop.f32.mrf.mxu0
      %v1037 = vadd.f32 0.0, %v1036
      %1038 = vmatmul.bf16.gmra.mxu0 %v965
      %v1039 = vpop.f32.mrf.mxu0
      %v1040 = vadd.f32 0.0, %v1039
      %v1041 = vpop.f32.mrf.mxu0
      %v1042 = vadd.f32 0.0, %v1041
      %1043 = vmatmul.bf16.gmra.mxu0 %v968
      %v1044 = vpop.f32.mrf.mxu0
      %v1045 = vadd.f32 0.0, %v1044
      %v1046 = vpop.f32.mrf.mxu0
      %v1047 = vadd.f32 0.0, %v1046
      %1048 = vmatmul.bf16.gmra.mxu0 %v971
      %v1049 = vpop.f32.mrf.mxu0
      %v1050 = vadd.f32 0.0, %v1049
      %v1051 = vpop.f32.mrf.mxu0
      %v1052 = vadd.f32 0.0, %v1051
      %1053 = vmatmul.bf16.gmra.mxu0 %v974
      %v1054 = vpop.f32.mrf.mxu0
      %v1055 = vadd.f32 0.0, %v1054
      %v1056 = vpop.f32.mrf.mxu0
      %v1057 = vadd.f32 0.0, %v1056
      %1058 = vmatmul.bf16.gmra.mxu0 %v977
      %v1059 = vpop.f32.mrf.mxu0
      %v1060 = vadd.f32 0.0, %v1059
      %v1061 = vpop.f32.mrf.mxu0
      %v1062 = vadd.f32 0.0, %v1061
      %1063 = vmatmul.bf16.gmra.mxu0 %v980
      %v1064 = vpop.f32.mrf.mxu0
      %v1065 = vadd.f32 0.0, %v1064
      %v1066 = vpop.f32.mrf.mxu0
      %v1067 = vadd.f32 0.0, %v1066
      %1068 = vmatmul.bf16.gmra.mxu0 %v983
      %v1069 = vpop.f32.mrf.mxu0
      %v1070 = vadd.f32 0.0, %v1069
      %v1071 = vpop.f32.mrf.mxu0
      %v1072 = vadd.f32 0.0, %v1071
      %1073 = vmatmul.bf16.gmra.mxu0 %v986
      %v1074 = vpop.f32.mrf.mxu0
      %v1075 = vadd.f32 0.0, %v1074
      %v1076 = vpop.f32.mrf.mxu0
      %v1077 = vadd.f32 0.0, %v1076
      %1078 = vmatmul.bf16.gmra.mxu0 %v989
      %v1079 = vpop.f32.mrf.mxu0
      %v1080 = vadd.f32 0.0, %v1079
      %v1081 = vpop.f32.mrf.mxu0
      %v1082 = vadd.f32 0.0, %v1081
      %1083 = vmatmul.bf16.gmra.mxu0 %v992
      %v1084 = vpop.f32.mrf.mxu0
      %v1085 = vadd.f32 0.0, %v1084
      %v1086 = vpop.f32.mrf.mxu0
      %v1087 = vadd.f32 0.0, %v1086
      %1088 = vmatmul.bf16.gmra.mxu0 %v995
      %v1089 = vpop.f32.mrf.mxu0
      %v1090 = vadd.f32 0.0, %v1089
      %v1091 = vpop.f32.mrf.mxu0
      %v1092 = vadd.f32 0.0, %v1091
      %1093 = vmatmul.bf16.gmra.mxu0 %v998
      %v1094 = vpop.f32.mrf.mxu0
      %v1095 = vadd.f32 0.0, %v1094
      %v1096 = vpop.f32.mrf.mxu0
      %v1097 = vadd.f32 0.0, %v1096
      %1098 = vdwg.mxu0
      %v1099 = vadd.f32 %v794, %v1010
      %v1100 = vadd.f32 %v796, %v1012
      %v1101 = vadd.f32 %v799, %v1015
      %v1102 = vadd.f32 %v801, %v1017
      %v1103 = vadd.f32 %v804, %v1020
      %v1104 = vadd.f32 %v806, %v1022
      %v1105 = vadd.f32 %v809, %v1025
      %v1106 = vadd.f32 %v811, %v1027
      %v1107 = vadd.f32 %v814, %v1030
      %v1108 = vadd.f32 %v816, %v1032
      %v1109 = vadd.f32 %v819, %v1035
      %v1110 = vadd.f32 %v821, %v1037
      %v1111 = vadd.f32 %v824, %v1040
      %v1112 = vadd.f32 %v826, %v1042
      %v1113 = vadd.f32 %v829, %v1045
      %v1114 = vadd.f32 %v831, %v1047
      %v1115 = vadd.f32 %v834, %v1050
      %v1116 = vadd.f32 %v836, %v1052
      %v1117 = vadd.f32 %v839, %v1055
      %v1118 = vadd.f32 %v841, %v1057
      %v1119 = vadd.f32 %v844, %v1060
      %v1120 = vadd.f32 %v846, %v1062
      %v1121 = vadd.f32 %v849, %v1065
      %v1122 = vadd.f32 %v851, %v1067
      %v1123 = vadd.f32 %v854, %v1070
      %v1124 = vadd.f32 %v856, %v1072
      %v1125 = vadd.f32 %v859, %v1075
      %v1126 = vadd.f32 %v861, %v1077
      %v1127 = vadd.f32 %v864, %v1080
      %v1128 = vadd.f32 %v866, %v1082
      %v1129 = vadd.f32 %v869, %v1085
      %v1130 = vadd.f32 %v871, %v1087
      %v1131 = vadd.f32 %v874, %v1090
      %v1132 = vadd.f32 %v876, %v1092
      %v1133 = vadd.f32 %v879, %v1095
      %v1134 = vadd.f32 %v881, %v1097
      %v1135 = vld [vmem:[%s408 + $0x12] sm:$0xff]
      %v1136 = vld [vmem:[%s408 + $0x1a] sm:$0xff]
      %v1137 = vld [vmem:[%s408 + $0x22] sm:$0xff]
      %v1138 = vld [vmem:[%s408 + $0x2a] sm:$0xff]
      %v1139 = vld [vmem:[%s408 + $0x32] sm:$0xff]
      %v1140 = vld [vmem:[%s408 + $0x3a] sm:$0xff]
      %v1141 = vld [vmem:[%s408 + $0x42] sm:$0xff]
      %v1142 = vld [vmem:[%s408 + $0x4a] sm:$0xff]
      %v1143 = vld [vmem:[%s408 + $0x52] sm:$0xff]
      %v1144 = vld [vmem:[%s408 + $0x5a] sm:$0xff]
      %v1145 = vld [vmem:[%s408 + $0x62] sm:$0xff]
      %v1146 = vld [vmem:[%s408 + $0x6a] sm:$0xff]
      %v1147 = vld [vmem:[%s408 + $0x72] sm:$0xff]
      %v1148 = vld [vmem:[%s408 + $0x7a] sm:$0xff]
      %v1149 = vld [vmem:[%s408 + $0x82] sm:$0xff]
      %v1150 = vld [vmem:[%s408 + $0x8a] sm:$0xff]
      %v1151 = vld [vmem:[%s408 + $0x92] sm:$0xff]
      %v1152 = vld [vmem:[%s408 + $0x9a] sm:$0xff]
      %v1153 = vld [vmem:[%s408 + $0xa2] sm:$0xff]
      %v1154 = vld [vmem:[%s408 + $0xaa] sm:$0xff]
      %v1155 = vld [vmem:[%s408 + $0xb2] sm:$0xff]
      %v1156 = vld [vmem:[%s408 + $0xba] sm:$0xff]
      %v1157 = vld [vmem:[%s408 + $0xc2] sm:$0xff]
      %v1158 = vld [vmem:[%s408 + $0xca] sm:$0xff]
      %v1159 = vld [vmem:[%s408 + $0xd2] sm:$0xff]
      %v1160 = vld [vmem:[%s408 + $0xda] sm:$0xff]
      %v1161 = vld [vmem:[%s408 + $0xe2] sm:$0xff]
      %v1162 = vld [vmem:[%s408 + $0xea] sm:$0xff]
      %v1163 = vld [vmem:[%s408 + $0xf2] sm:$0xff]
      %v1164 = vld [vmem:[%s408 + $0xfa] sm:$0xff]
      %v1165 = vld [vmem:[%s408 + $0x102] sm:$0xff]
      %v1166 = vld [vmem:[%s408 + $0x10a] sm:$0xff]
      %v1167 = vld [vmem:[%s408 + $0x112] sm:$0xff]
      %v1168 = vld [vmem:[%s408 + $0x11a] sm:$0xff]
      %v1169 = vld [vmem:[%s408 + $0x122] sm:$0xff]
      %v1170 = vld [vmem:[%s408 + $0x12a] sm:$0xff]
      %v1171 = vpack.c.bf16 %v1136, %v1135
      %v1172 = vpack.c.bf16 %v1138, %v1137
      %v1173 = vpack.c.bf16 %v1140, %v1139
      %v1174 = vpack.c.bf16 %v1142, %v1141
      %v1175 = vpack.c.bf16 %v1144, %v1143
      %v1176 = vpack.c.bf16 %v1146, %v1145
      %v1177 = vpack.c.bf16 %v1148, %v1147
      %v1178 = vpack.c.bf16 %v1150, %v1149
      %v1179 = vpack.c.bf16 %v1152, %v1151
      %v1180 = vpack.c.bf16 %v1154, %v1153
      %v1181 = vpack.c.bf16 %v1156, %v1155
      %v1182 = vpack.c.bf16 %v1158, %v1157
      %v1183 = vpack.c.bf16 %v1160, %v1159
      %v1184 = vpack.c.bf16 %v1162, %v1161
      %v1185 = vpack.c.bf16 %v1164, %v1163
      %v1186 = vpack.c.bf16 %v1166, %v1165
      %v1187 = vpack.c.bf16 %v1168, %v1167
      %v1188 = vpack.c.bf16 %v1170, %v1169
      %s1189 = scalar_lea.vmem %s1, 24
      %v1190 = vld [vmem:[%s1189] sm:$0xf]
      %v1191 = vld [vmem:[%s1189 + $0x4] sm:$0xf]
      %v1194 = vunpack.c.l.b16 %v1190
      %v1195 = vunpack.c.l.b16 %v1191
      %v1196 = vpack.c.b16 %v1195, %v1194
      %v1199 = vsel %vm570, %v1171, 0
      %v1202 = vsel %vm570, %v1172, 0
      %v1205 = vsel %vm570, %v1173, 0
      %v1208 = vsel %vm570, %v1174, 0
      %v1211 = vsel %vm570, %v1175, 0
      %v1214 = vsel %vm570, %v1176, 0
      %v1217 = vsel %vm570, %v1177, 0
      %v1220 = vsel %vm570, %v1178, 0
      %v1223 = vsel %vm570, %v1179, 0
      %v1226 = vsel %vm570, %v1180, 0
      %v1229 = vsel %vm570, %v1181, 0
      %v1232 = vsel %vm570, %v1182, 0
      %v1235 = vsel %vm570, %v1183, 0
      %v1238 = vsel %vm570, %v1184, 0
      %v1241 = vsel %vm570, %v1185, 0
      %v1244 = vsel %vm570, %v1186, 0
      %v1247 = vsel %vm570, %v1187, 0
      %v1250 = vsel %vm570, %v1188, 0
      %1252 = vmatpush.bf16.msra.mxu0 0
      %1253 = vmatpush.bf16.msra.mxu0 0
      %1254 = vmatpush.bf16.msra.mxu0 0
      %1255 = vmatpush.bf16.msra.mxu0 0
      %1256 = vmatpush.bf16.msra.mxu0 0
      %1257 = vmatpush.bf16.msra.mxu0 0
      %1258 = vmatpush.bf16.msra.mxu0 0
      %1259 = vmatpush.bf16.msra.mxu0 %v1196
      %1260 = vmatmul.bf16.gmra.mxu0 %v1199
      %v1261 = vpop.f32.mrf.mxu0
      %v1262 = vadd.f32 0.0, %v1261
      %v1263 = vpop.f32.mrf.mxu0
      %v1264 = vadd.f32 0.0, %v1263
      %1265 = vmatmul.bf16.gmra.mxu0 %v1202
      %v1266 = vpop.f32.mrf.mxu0
      %v1267 = vadd.f32 0.0, %v1266
      %v1268 = vpop.f32.mrf.mxu0
      %v1269 = vadd.f32 0.0, %v1268
      %1270 = vmatmul.bf16.gmra.mxu0 %v1205
      %v1271 = vpop.f32.mrf.mxu0
      %v1272 = vadd.f32 0.0, %v1271
      %v1273 = vpop.f32.mrf.mxu0
      %v1274 = vadd.f32 0.0, %v1273
      %1275 = vmatmul.bf16.gmra.mxu0 %v1208
      %v1276 = vpop.f32.mrf.mxu0
      %v1277 = vadd.f32 0.0, %v1276
      %v1278 = vpop.f32.mrf.mxu0
      %v1279 = vadd.f32 0.0, %v1278
      %1280 = vmatmul.bf16.gmra.mxu0 %v1211
      %v1281 = vpop.f32.mrf.mxu0
      %v1282 = vadd.f32 0.0, %v1281
      %v1283 = vpop.f32.mrf.mxu0
      %v1284 = vadd.f32 0.0, %v1283
      %1285 = vmatmul.bf16.gmra.mxu0 %v1214
      %v1286 = vpop.f32.mrf.mxu0
      %v1287 = vadd.f32 0.0, %v1286
      %v1288 = vpop.f32.mrf.mxu0
      %v1289 = vadd.f32 0.0, %v1288
      %1290 = vmatmul.bf16.gmra.mxu0 %v1217
      %v1291 = vpop.f32.mrf.mxu0
      %v1292 = vadd.f32 0.0, %v1291
      %v1293 = vpop.f32.mrf.mxu0
      %v1294 = vadd.f32 0.0, %v1293
      %1295 = vmatmul.bf16.gmra.mxu0 %v1220
      %v1296 = vpop.f32.mrf.mxu0
      %v1297 = vadd.f32 0.0, %v1296
      %v1298 = vpop.f32.mrf.mxu0
      %v1299 = vadd.f32 0.0, %v1298
      %1300 = vmatmul.bf16.gmra.mxu0 %v1223
      %v1301 = vpop.f32.mrf.mxu0
      %v1302 = vadd.f32 0.0, %v1301
      %v1303 = vpop.f32.mrf.mxu0
      %v1304 = vadd.f32 0.0, %v1303
      %1305 = vmatmul.bf16.gmra.mxu0 %v1226
      %v1306 = vpop.f32.mrf.mxu0
      %v1307 = vadd.f32 0.0, %v1306
      %v1308 = vpop.f32.mrf.mxu0
      %v1309 = vadd.f32 0.0, %v1308
      %1310 = vmatmul.bf16.gmra.mxu0 %v1229
      %v1311 = vpop.f32.mrf.mxu0
      %v1312 = vadd.f32 0.0, %v1311
      %v1313 = vpop.f32.mrf.mxu0
      %v1314 = vadd.f32 0.0, %v1313
      %1315 = vmatmul.bf16.gmra.mxu0 %v1232
      %v1316 = vpop.f32.mrf.mxu0
      %v1317 = vadd.f32 0.0, %v1316
      %v1318 = vpop.f32.mrf.mxu0
      %v1319 = vadd.f32 0.0, %v1318
      %1320 = vmatmul.bf16.gmra.mxu0 %v1235
      %v1321 = vpop.f32.mrf.mxu0
      %v1322 = vadd.f32 0.0, %v1321
      %v1323 = vpop.f32.mrf.mxu0
      %v1324 = vadd.f32 0.0, %v1323
      %1325 = vmatmul.bf16.gmra.mxu0 %v1238
      %v1326 = vpop.f32.mrf.mxu0
      %v1327 = vadd.f32 0.0, %v1326
      %v1328 = vpop.f32.mrf.mxu0
      %v1329 = vadd.f32 0.0, %v1328
      %1330 = vmatmul.bf16.gmra.mxu0 %v1241
      %v1331 = vpop.f32.mrf.mxu0
      %v1332 = vadd.f32 0.0, %v1331
      %v1333 = vpop.f32.mrf.mxu0
      %v1334 = vadd.f32 0.0, %v1333
      %1335 = vmatmul.bf16.gmra.mxu0 %v1244
      %v1336 = vpop.f32.mrf.mxu0
      %v1337 = vadd.f32 0.0, %v1336
      %v1338 = vpop.f32.mrf.mxu0
      %v1339 = vadd.f32 0.0, %v1338
      %1340 = vmatmul.bf16.gmra.mxu0 %v1247
      %v1341 = vpop.f32.mrf.mxu0
      %v1342 = vadd.f32 0.0, %v1341
      %v1343 = vpop.f32.mrf.mxu0
      %v1344 = vadd.f32 0.0, %v1343
      %1345 = vmatmul.bf16.gmra.mxu0 %v1250
      %v1346 = vpop.f32.mrf.mxu0
      %v1347 = vadd.f32 0.0, %v1346
      %v1348 = vpop.f32.mrf.mxu0
      %v1349 = vadd.f32 0.0, %v1348
      %1350 = vdwg.mxu0
      %v1351 = vadd.f32 %v1099, %v1262
      %v1352 = vadd.f32 %v1100, %v1264
      %v1353 = vadd.f32 %v1101, %v1267
      %v1354 = vadd.f32 %v1102, %v1269
      %v1355 = vadd.f32 %v1103, %v1272
      %v1356 = vadd.f32 %v1104, %v1274
      %v1357 = vadd.f32 %v1105, %v1277
      %v1358 = vadd.f32 %v1106, %v1279
      %v1359 = vadd.f32 %v1107, %v1282
      %v1360 = vadd.f32 %v1108, %v1284
      %v1361 = vadd.f32 %v1109, %v1287
      %v1362 = vadd.f32 %v1110, %v1289
      %v1363 = vadd.f32 %v1111, %v1292
      %v1364 = vadd.f32 %v1112, %v1294
      %v1365 = vadd.f32 %v1113, %v1297
      %v1366 = vadd.f32 %v1114, %v1299
      %v1367 = vadd.f32 %v1115, %v1302
      %v1368 = vadd.f32 %v1116, %v1304
      %v1369 = vadd.f32 %v1117, %v1307
      %v1370 = vadd.f32 %v1118, %v1309
      %v1371 = vadd.f32 %v1119, %v1312
      %v1372 = vadd.f32 %v1120, %v1314
      %v1373 = vadd.f32 %v1121, %v1317
      %v1374 = vadd.f32 %v1122, %v1319
      %v1375 = vadd.f32 %v1123, %v1322
      %v1376 = vadd.f32 %v1124, %v1324
      %v1377 = vadd.f32 %v1125, %v1327
      %v1378 = vadd.f32 %v1126, %v1329
      %v1379 = vadd.f32 %v1127, %v1332
      %v1380 = vadd.f32 %v1128, %v1334
      %v1381 = vadd.f32 %v1129, %v1337
      %v1382 = vadd.f32 %v1130, %v1339
      %v1383 = vadd.f32 %v1131, %v1342
      %v1384 = vadd.f32 %v1132, %v1344
      %v1385 = vadd.f32 %v1133, %v1347
      %v1386 = vadd.f32 %v1134, %v1349
      %v1387 = vld [vmem:[%s408 + $0x13] sm:$0xff]
      %v1388 = vld [vmem:[%s408 + $0x1b] sm:$0xff]
      %v1389 = vld [vmem:[%s408 + $0x23] sm:$0xff]
      %v1390 = vld [vmem:[%s408 + $0x2b] sm:$0xff]
      %v1391 = vld [vmem:[%s408 + $0x33] sm:$0xff]
      %v1392 = vld [vmem:[%s408 + $0x3b] sm:$0xff]
      %v1393 = vld [vmem:[%s408 + $0x43] sm:$0xff]
      %v1394 = vld [vmem:[%s408 + $0x4b] sm:$0xff]
      %v1395 = vld [vmem:[%s408 + $0x53] sm:$0xff]
      %v1396 = vld [vmem:[%s408 + $0x5b] sm:$0xff]
      %v1397 = vld [vmem:[%s408 + $0x63] sm:$0xff]
      %v1398 = vld [vmem:[%s408 + $0x6b] sm:$0xff]
      %v1399 = vld [vmem:[%s408 + $0x73] sm:$0xff]
      %v1400 = vld [vmem:[%s408 + $0x7b] sm:$0xff]
      %v1401 = vld [vmem:[%s408 + $0x83] sm:$0xff]
      %v1402 = vld [vmem:[%s408 + $0x8b] sm:$0xff]
      %v1403 = vld [vmem:[%s408 + $0x93] sm:$0xff]
      %v1404 = vld [vmem:[%s408 + $0x9b] sm:$0xff]
      %v1405 = vld [vmem:[%s408 + $0xa3] sm:$0xff]
      %v1406 = vld [vmem:[%s408 + $0xab] sm:$0xff]
      %v1407 = vld [vmem:[%s408 + $0xb3] sm:$0xff]
      %v1408 = vld [vmem:[%s408 + $0xbb] sm:$0xff]
      %v1409 = vld [vmem:[%s408 + $0xc3] sm:$0xff]
      %v1410 = vld [vmem:[%s408 + $0xcb] sm:$0xff]
      %v1411 = vld [vmem:[%s408 + $0xd3] sm:$0xff]
      %v1412 = vld [vmem:[%s408 + $0xdb] sm:$0xff]
      %v1413 = vld [vmem:[%s408 + $0xe3] sm:$0xff]
      %v1414 = vld [vmem:[%s408 + $0xeb] sm:$0xff]
      %v1415 = vld [vmem:[%s408 + $0xf3] sm:$0xff]
      %v1416 = vld [vmem:[%s408 + $0xfb] sm:$0xff]
      %v1417 = vld [vmem:[%s408 + $0x103] sm:$0xff]
      %v1418 = vld [vmem:[%s408 + $0x10b] sm:$0xff]
      %v1419 = vld [vmem:[%s408 + $0x113] sm:$0xff]
      %v1420 = vld [vmem:[%s408 + $0x11b] sm:$0xff]
      %v1421 = vld [vmem:[%s408 + $0x123] sm:$0xff]
      %v1422 = vld [vmem:[%s408 + $0x12b] sm:$0xff]
      %v1423 = vpack.c.bf16 %v1388, %v1387
      %v1424 = vpack.c.bf16 %v1390, %v1389
      %v1425 = vpack.c.bf16 %v1392, %v1391
      %v1426 = vpack.c.bf16 %v1394, %v1393
      %v1427 = vpack.c.bf16 %v1396, %v1395
      %v1428 = vpack.c.bf16 %v1398, %v1397
      %v1429 = vpack.c.bf16 %v1400, %v1399
      %v1430 = vpack.c.bf16 %v1402, %v1401
      %v1431 = vpack.c.bf16 %v1404, %v1403
      %v1432 = vpack.c.bf16 %v1406, %v1405
      %v1433 = vpack.c.bf16 %v1408, %v1407
      %v1434 = vpack.c.bf16 %v1410, %v1409
      %v1435 = vpack.c.bf16 %v1412, %v1411
      %v1436 = vpack.c.bf16 %v1414, %v1413
      %v1437 = vpack.c.bf16 %v1416, %v1415
      %v1438 = vpack.c.bf16 %v1418, %v1417
      %v1439 = vpack.c.bf16 %v1420, %v1419
      %v1440 = vpack.c.bf16 %v1422, %v1421
      %s1441 = scalar_lea.vmem %s1, 32
      %v1442 = vld [vmem:[%s1441] sm:$0xf]
      %v1443 = vld [vmem:[%s1441 + $0x4] sm:$0xf]
      %v1446 = vunpack.c.l.b16 %v1442
      %v1447 = vunpack.c.l.b16 %v1443
      %v1448 = vpack.c.b16 %v1447, %v1446
      %v1451 = vsel %vm570, %v1423, 0
      %v1454 = vsel %vm570, %v1424, 0
      %v1457 = vsel %vm570, %v1425, 0
      %v1460 = vsel %vm570, %v1426, 0
      %v1463 = vsel %vm570, %v1427, 0
      %v1466 = vsel %vm570, %v1428, 0
      %v1469 = vsel %vm570, %v1429, 0
      %v1472 = vsel %vm570, %v1430, 0
      %v1475 = vsel %vm570, %v1431, 0
      %v1478 = vsel %vm570, %v1432, 0
      %v1481 = vsel %vm570, %v1433, 0
      %v1484 = vsel %vm570, %v1434, 0
      %v1487 = vsel %vm570, %v1435, 0
      %v1490 = vsel %vm570, %v1436, 0
      %v1493 = vsel %vm570, %v1437, 0
      %v1496 = vsel %vm570, %v1438, 0
      %v1499 = vsel %vm570, %v1439, 0
      %v1502 = vsel %vm570, %v1440, 0
      %1504 = vmatpush.bf16.msra.mxu0 0
      %1505 = vmatpush.bf16.msra.mxu0 0
      %1506 = vmatpush.bf16.msra.mxu0 0
      %1507 = vmatpush.bf16.msra.mxu0 0
      %1508 = vmatpush.bf16.msra.mxu0 0
      %1509 = vmatpush.bf16.msra.mxu0 0
      %1510 = vmatpush.bf16.msra.mxu0 0
      %1511 = vmatpush.bf16.msra.mxu0 %v1448
      %1512 = vmatmul.bf16.gmra.mxu0 %v1451
      %v1513 = vpop.f32.mrf.mxu0
      %v1514 = vadd.f32 0.0, %v1513
      %v1515 = vpop.f32.mrf.mxu0
      %v1516 = vadd.f32 0.0, %v1515
      %1517 = vmatmul.bf16.gmra.mxu0 %v1454
      %v1518 = vpop.f32.mrf.mxu0
      %v1519 = vadd.f32 0.0, %v1518
      %v1520 = vpop.f32.mrf.mxu0
      %v1521 = vadd.f32 0.0, %v1520
      %1522 = vmatmul.bf16.gmra.mxu0 %v1457
      %v1523 = vpop.f32.mrf.mxu0
      %v1524 = vadd.f32 0.0, %v1523
      %v1525 = vpop.f32.mrf.mxu0
      %v1526 = vadd.f32 0.0, %v1525
      %1527 = vmatmul.bf16.gmra.mxu0 %v1460
      %v1528 = vpop.f32.mrf.mxu0
      %v1529 = vadd.f32 0.0, %v1528
      %v1530 = vpop.f32.mrf.mxu0
      %v1531 = vadd.f32 0.0, %v1530
      %1532 = vmatmul.bf16.gmra.mxu0 %v1463
      %v1533 = vpop.f32.mrf.mxu0
      %v1534 = vadd.f32 0.0, %v1533
      %v1535 = vpop.f32.mrf.mxu0
      %v1536 = vadd.f32 0.0, %v1535
      %1537 = vmatmul.bf16.gmra.mxu0 %v1466
      %v1538 = vpop.f32.mrf.mxu0
      %v1539 = vadd.f32 0.0, %v1538
      %v1540 = vpop.f32.mrf.mxu0
      %v1541 = vadd.f32 0.0, %v1540
      %1542 = vmatmul.bf16.gmra.mxu0 %v1469
      %v1543 = vpop.f32.mrf.mxu0
      %v1544 = vadd.f32 0.0, %v1543
      %v1545 = vpop.f32.mrf.mxu0
      %v1546 = vadd.f32 0.0, %v1545
      %1547 = vmatmul.bf16.gmra.mxu0 %v1472
      %v1548 = vpop.f32.mrf.mxu0
      %v1549 = vadd.f32 0.0, %v1548
      %v1550 = vpop.f32.mrf.mxu0
      %v1551 = vadd.f32 0.0, %v1550
      %1552 = vmatmul.bf16.gmra.mxu0 %v1475
      %v1553 = vpop.f32.mrf.mxu0
      %v1554 = vadd.f32 0.0, %v1553
      %v1555 = vpop.f32.mrf.mxu0
      %v1556 = vadd.f32 0.0, %v1555
      %1557 = vmatmul.bf16.gmra.mxu0 %v1478
      %v1558 = vpop.f32.mrf.mxu0
      %v1559 = vadd.f32 0.0, %v1558
      %v1560 = vpop.f32.mrf.mxu0
      %v1561 = vadd.f32 0.0, %v1560
      %1562 = vmatmul.bf16.gmra.mxu0 %v1481
      %v1563 = vpop.f32.mrf.mxu0
      %v1564 = vadd.f32 0.0, %v1563
      %v1565 = vpop.f32.mrf.mxu0
      %v1566 = vadd.f32 0.0, %v1565
      %1567 = vmatmul.bf16.gmra.mxu0 %v1484
      %v1568 = vpop.f32.mrf.mxu0
      %v1569 = vadd.f32 0.0, %v1568
      %v1570 = vpop.f32.mrf.mxu0
      %v1571 = vadd.f32 0.0, %v1570
      %1572 = vmatmul.bf16.gmra.mxu0 %v1487
      %v1573 = vpop.f32.mrf.mxu0
      %v1574 = vadd.f32 0.0, %v1573
      %v1575 = vpop.f32.mrf.mxu0
      %v1576 = vadd.f32 0.0, %v1575
      %1577 = vmatmul.bf16.gmra.mxu0 %v1490
      %v1578 = vpop.f32.mrf.mxu0
      %v1579 = vadd.f32 0.0, %v1578
      %v1580 = vpop.f32.mrf.mxu0
      %v1581 = vadd.f32 0.0, %v1580
      %1582 = vmatmul.bf16.gmra.mxu0 %v1493
      %v1583 = vpop.f32.mrf.mxu0
      %v1584 = vadd.f32 0.0, %v1583
      %v1585 = vpop.f32.mrf.mxu0
      %v1586 = vadd.f32 0.0, %v1585
      %1587 = vmatmul.bf16.gmra.mxu0 %v1496
      %v1588 = vpop.f32.mrf.mxu0
      %v1589 = vadd.f32 0.0, %v1588
      %v1590 = vpop.f32.mrf.mxu0
      %v1591 = vadd.f32 0.0, %v1590
      %1592 = vmatmul.bf16.gmra.mxu0 %v1499
      %v1593 = vpop.f32.mrf.mxu0
      %v1594 = vadd.f32 0.0, %v1593
      %v1595 = vpop.f32.mrf.mxu0
      %v1596 = vadd.f32 0.0, %v1595
      %1597 = vmatmul.bf16.gmra.mxu0 %v1502
      %v1598 = vpop.f32.mrf.mxu0
      %v1599 = vadd.f32 0.0, %v1598
      %v1600 = vpop.f32.mrf.mxu0
      %v1601 = vadd.f32 0.0, %v1600
      %1602 = vdwg.mxu0
      %v1603 = vadd.f32 %v1351, %v1514
      %v1604 = vadd.f32 %v1352, %v1516
      %v1605 = vadd.f32 %v1353, %v1519
      %v1606 = vadd.f32 %v1354, %v1521
      %v1607 = vadd.f32 %v1355, %v1524
      %v1608 = vadd.f32 %v1356, %v1526
      %v1609 = vadd.f32 %v1357, %v1529
      %v1610 = vadd.f32 %v1358, %v1531
      %v1611 = vadd.f32 %v1359, %v1534
      %v1612 = vadd.f32 %v1360, %v1536
      %v1613 = vadd.f32 %v1361, %v1539
      %v1614 = vadd.f32 %v1362, %v1541
      %v1615 = vadd.f32 %v1363, %v1544
      %v1616 = vadd.f32 %v1364, %v1546
      %v1617 = vadd.f32 %v1365, %v1549
      %v1618 = vadd.f32 %v1366, %v1551
      %v1619 = vadd.f32 %v1367, %v1554
      %v1620 = vadd.f32 %v1368, %v1556
      %v1621 = vadd.f32 %v1369, %v1559
      %v1622 = vadd.f32 %v1370, %v1561
      %v1623 = vadd.f32 %v1371, %v1564
      %v1624 = vadd.f32 %v1372, %v1566
      %v1625 = vadd.f32 %v1373, %v1569
      %v1626 = vadd.f32 %v1374, %v1571
      %v1627 = vadd.f32 %v1375, %v1574
      %v1628 = vadd.f32 %v1376, %v1576
      %v1629 = vadd.f32 %v1377, %v1579
      %v1630 = vadd.f32 %v1378, %v1581
      %v1631 = vadd.f32 %v1379, %v1584
      %v1632 = vadd.f32 %v1380, %v1586
      %v1633 = vadd.f32 %v1381, %v1589
      %v1634 = vadd.f32 %v1382, %v1591
      %v1635 = vadd.f32 %v1383, %v1594
      %v1636 = vadd.f32 %v1384, %v1596
      %v1637 = vadd.f32 %v1385, %v1599
      %v1638 = vadd.f32 %v1386, %v1601
      %v1639 = vld [vmem:[%s408 + $0x14] sm:$0xff]
      %v1640 = vld [vmem:[%s408 + $0x1c] sm:$0xff]
      %v1641 = vld [vmem:[%s408 + $0x24] sm:$0xff]
      %v1642 = vld [vmem:[%s408 + $0x2c] sm:$0xff]
      %v1643 = vld [vmem:[%s408 + $0x34] sm:$0xff]
      %v1644 = vld [vmem:[%s408 + $0x3c] sm:$0xff]
      %v1645 = vld [vmem:[%s408 + $0x44] sm:$0xff]
      %v1646 = vld [vmem:[%s408 + $0x4c] sm:$0xff]
      %v1647 = vld [vmem:[%s408 + $0x54] sm:$0xff]
      %v1648 = vld [vmem:[%s408 + $0x5c] sm:$0xff]
      %v1649 = vld [vmem:[%s408 + $0x64] sm:$0xff]
      %v1650 = vld [vmem:[%s408 + $0x6c] sm:$0xff]
      %v1651 = vld [vmem:[%s408 + $0x74] sm:$0xff]
      %v1652 = vld [vmem:[%s408 + $0x7c] sm:$0xff]
      %v1653 = vld [vmem:[%s408 + $0x84] sm:$0xff]
      %v1654 = vld [vmem:[%s408 + $0x8c] sm:$0xff]
      %v1655 = vld [vmem:[%s408 + $0x94] sm:$0xff]
      %v1656 = vld [vmem:[%s408 + $0x9c] sm:$0xff]
      %v1657 = vld [vmem:[%s408 + $0xa4] sm:$0xff]
      %v1658 = vld [vmem:[%s408 + $0xac] sm:$0xff]
      %v1659 = vld [vmem:[%s408 + $0xb4] sm:$0xff]
      %v1660 = vld [vmem:[%s408 + $0xbc] sm:$0xff]
      %v1661 = vld [vmem:[%s408 + $0xc4] sm:$0xff]
      %v1662 = vld [vmem:[%s408 + $0xcc] sm:$0xff]
      %v1663 = vld [vmem:[%s408 + $0xd4] sm:$0xff]
      %v1664 = vld [vmem:[%s408 + $0xdc] sm:$0xff]
      %v1665 = vld [vmem:[%s408 + $0xe4] sm:$0xff]
      %v1666 = vld [vmem:[%s408 + $0xec] sm:$0xff]
      %v1667 = vld [vmem:[%s408 + $0xf4] sm:$0xff]
      %v1668 = vld [vmem:[%s408 + $0xfc] sm:$0xff]
      %v1669 = vld [vmem:[%s408 + $0x104] sm:$0xff]
      %v1670 = vld [vmem:[%s408 + $0x10c] sm:$0xff]
      %v1671 = vld [vmem:[%s408 + $0x114] sm:$0xff]
      %v1672 = vld [vmem:[%s408 + $0x11c] sm:$0xff]
      %v1673 = vld [vmem:[%s408 + $0x124] sm:$0xff]
      %v1674 = vld [vmem:[%s408 + $0x12c] sm:$0xff]
      %v1675 = vpack.c.bf16 %v1640, %v1639
      %v1676 = vpack.c.bf16 %v1642, %v1641
      %v1677 = vpack.c.bf16 %v1644, %v1643
      %v1678 = vpack.c.bf16 %v1646, %v1645
      %v1679 = vpack.c.bf16 %v1648, %v1647
      %v1680 = vpack.c.bf16 %v1650, %v1649
      %v1681 = vpack.c.bf16 %v1652, %v1651
      %v1682 = vpack.c.bf16 %v1654, %v1653
      %v1683 = vpack.c.bf16 %v1656, %v1655
      %v1684 = vpack.c.bf16 %v1658, %v1657
      %v1685 = vpack.c.bf16 %v1660, %v1659
      %v1686 = vpack.c.bf16 %v1662, %v1661
      %v1687 = vpack.c.bf16 %v1664, %v1663
      %v1688 = vpack.c.bf16 %v1666, %v1665
      %v1689 = vpack.c.bf16 %v1668, %v1667
      %v1690 = vpack.c.bf16 %v1670, %v1669
      %v1691 = vpack.c.bf16 %v1672, %v1671
      %v1692 = vpack.c.bf16 %v1674, %v1673
      %s1693 = scalar_lea.vmem %s1, 40
      %v1694 = vld [vmem:[%s1693] sm:$0xf]
      %v1695 = vld [vmem:[%s1693 + $0x4] sm:$0xf]
      %v1698 = vunpack.c.l.b16 %v1694
      %v1699 = vunpack.c.l.b16 %v1695
      %v1700 = vpack.c.b16 %v1699, %v1698
      %v1703 = vsel %vm570, %v1675, 0
      %v1706 = vsel %vm570, %v1676, 0
      %v1709 = vsel %vm570, %v1677, 0
      %v1712 = vsel %vm570, %v1678, 0
      %v1715 = vsel %vm570, %v1679, 0
      %v1718 = vsel %vm570, %v1680, 0
      %v1721 = vsel %vm570, %v1681, 0
      %v1724 = vsel %vm570, %v1682, 0
      %v1727 = vsel %vm570, %v1683, 0
      %v1730 = vsel %vm570, %v1684, 0
      %v1733 = vsel %vm570, %v1685, 0
      %v1736 = vsel %vm570, %v1686, 0
      %v1739 = vsel %vm570, %v1687, 0
      %v1742 = vsel %vm570, %v1688, 0
      %v1745 = vsel %vm570, %v1689, 0
      %v1748 = vsel %vm570, %v1690, 0
      %v1751 = vsel %vm570, %v1691, 0
      %v1754 = vsel %vm570, %v1692, 0
      %1756 = vmatpush.bf16.msra.mxu0 0
      %1757 = vmatpush.bf16.msra.mxu0 0
      %1758 = vmatpush.bf16.msra.mxu0 0
      %1759 = vmatpush.bf16.msra.mxu0 0
      %1760 = vmatpush.bf16.msra.mxu0 0
      %1761 = vmatpush.bf16.msra.mxu0 0
      %1762 = vmatpush.bf16.msra.mxu0 0
      %1763 = vmatpush.bf16.msra.mxu0 %v1700
      %1764 = vmatmul.bf16.gmra.mxu0 %v1703
      %v1765 = vpop.f32.mrf.mxu0
      %v1766 = vadd.f32 0.0, %v1765
      %v1767 = vpop.f32.mrf.mxu0
      %v1768 = vadd.f32 0.0, %v1767
      %1769 = vmatmul.bf16.gmra.mxu0 %v1706
      %v1770 = vpop.f32.mrf.mxu0
      %v1771 = vadd.f32 0.0, %v1770
      %v1772 = vpop.f32.mrf.mxu0
      %v1773 = vadd.f32 0.0, %v1772
      %1774 = vmatmul.bf16.gmra.mxu0 %v1709
      %v1775 = vpop.f32.mrf.mxu0
      %v1776 = vadd.f32 0.0, %v1775
      %v1777 = vpop.f32.mrf.mxu0
      %v1778 = vadd.f32 0.0, %v1777
      %1779 = vmatmul.bf16.gmra.mxu0 %v1712
      %v1780 = vpop.f32.mrf.mxu0
      %v1781 = vadd.f32 0.0, %v1780
      %v1782 = vpop.f32.mrf.mxu0
      %v1783 = vadd.f32 0.0, %v1782
      %1784 = vmatmul.bf16.gmra.mxu0 %v1715
      %v1785 = vpop.f32.mrf.mxu0
      %v1786 = vadd.f32 0.0, %v1785
      %v1787 = vpop.f32.mrf.mxu0
      %v1788 = vadd.f32 0.0, %v1787
      %1789 = vmatmul.bf16.gmra.mxu0 %v1718
      %v1790 = vpop.f32.mrf.mxu0
      %v1791 = vadd.f32 0.0, %v1790
      %v1792 = vpop.f32.mrf.mxu0
      %v1793 = vadd.f32 0.0, %v1792
      %1794 = vmatmul.bf16.gmra.mxu0 %v1721
      %v1795 = vpop.f32.mrf.mxu0
      %v1796 = vadd.f32 0.0, %v1795
      %v1797 = vpop.f32.mrf.mxu0
      %v1798 = vadd.f32 0.0, %v1797
      %1799 = vmatmul.bf16.gmra.mxu0 %v1724
      %v1800 = vpop.f32.mrf.mxu0
      %v1801 = vadd.f32 0.0, %v1800
      %v1802 = vpop.f32.mrf.mxu0
      %v1803 = vadd.f32 0.0, %v1802
      %1804 = vmatmul.bf16.gmra.mxu0 %v1727
      %v1805 = vpop.f32.mrf.mxu0
      %v1806 = vadd.f32 0.0, %v1805
      %v1807 = vpop.f32.mrf.mxu0
      %v1808 = vadd.f32 0.0, %v1807
      %1809 = vmatmul.bf16.gmra.mxu0 %v1730
      %v1810 = vpop.f32.mrf.mxu0
      %v1811 = vadd.f32 0.0, %v1810
      %v1812 = vpop.f32.mrf.mxu0
      %v1813 = vadd.f32 0.0, %v1812
      %1814 = vmatmul.bf16.gmra.mxu0 %v1733
      %v1815 = vpop.f32.mrf.mxu0
      %v1816 = vadd.f32 0.0, %v1815
      %v1817 = vpop.f32.mrf.mxu0
      %v1818 = vadd.f32 0.0, %v1817
      %1819 = vmatmul.bf16.gmra.mxu0 %v1736
      %v1820 = vpop.f32.mrf.mxu0
      %v1821 = vadd.f32 0.0, %v1820
      %v1822 = vpop.f32.mrf.mxu0
      %v1823 = vadd.f32 0.0, %v1822
      %1824 = vmatmul.bf16.gmra.mxu0 %v1739
      %v1825 = vpop.f32.mrf.mxu0
      %v1826 = vadd.f32 0.0, %v1825
      %v1827 = vpop.f32.mrf.mxu0
      %v1828 = vadd.f32 0.0, %v1827
      %1829 = vmatmul.bf16.gmra.mxu0 %v1742
      %v1830 = vpop.f32.mrf.mxu0
      %v1831 = vadd.f32 0.0, %v1830
      %v1832 = vpop.f32.mrf.mxu0
      %v1833 = vadd.f32 0.0, %v1832
      %1834 = vmatmul.bf16.gmra.mxu0 %v1745
      %v1835 = vpop.f32.mrf.mxu0
      %v1836 = vadd.f32 0.0, %v1835
      %v1837 = vpop.f32.mrf.mxu0
      %v1838 = vadd.f32 0.0, %v1837
      %1839 = vmatmul.bf16.gmra.mxu0 %v1748
      %v1840 = vpop.f32.mrf.mxu0
      %v1841 = vadd.f32 0.0, %v1840
      %v1842 = vpop.f32.mrf.mxu0
      %v1843 = vadd.f32 0.0, %v1842
      %1844 = vmatmul.bf16.gmra.mxu0 %v1751
      %v1845 = vpop.f32.mrf.mxu0
      %v1846 = vadd.f32 0.0, %v1845
      %v1847 = vpop.f32.mrf.mxu0
      %v1848 = vadd.f32 0.0, %v1847
      %1849 = vmatmul.bf16.gmra.mxu0 %v1754
      %v1850 = vpop.f32.mrf.mxu0
      %v1851 = vadd.f32 0.0, %v1850
      %v1852 = vpop.f32.mrf.mxu0
      %v1853 = vadd.f32 0.0, %v1852
      %1854 = vdwg.mxu0
      %v1855 = vadd.f32 %v1603, %v1766
      %v1856 = vadd.f32 %v1604, %v1768
      %v1857 = vadd.f32 %v1605, %v1771
      %v1858 = vadd.f32 %v1606, %v1773
      %v1859 = vadd.f32 %v1607, %v1776
      %v1860 = vadd.f32 %v1608, %v1778
      %v1861 = vadd.f32 %v1609, %v1781
      %v1862 = vadd.f32 %v1610, %v1783
      %v1863 = vadd.f32 %v1611, %v1786
      %v1864 = vadd.f32 %v1612, %v1788
      %v1865 = vadd.f32 %v1613, %v1791
      %v1866 = vadd.f32 %v1614, %v1793
      %v1867 = vadd.f32 %v1615, %v1796
      %v1868 = vadd.f32 %v1616, %v1798
      %v1869 = vadd.f32 %v1617, %v1801
      %v1870 = vadd.f32 %v1618, %v1803
      %v1871 = vadd.f32 %v1619, %v1806
      %v1872 = vadd.f32 %v1620, %v1808
      %v1873 = vadd.f32 %v1621, %v1811
      %v1874 = vadd.f32 %v1622, %v1813
      %v1875 = vadd.f32 %v1623, %v1816
      %v1876 = vadd.f32 %v1624, %v1818
      %v1877 = vadd.f32 %v1625, %v1821
      %v1878 = vadd.f32 %v1626, %v1823
      %v1879 = vadd.f32 %v1627, %v1826
      %v1880 = vadd.f32 %v1628, %v1828
      %v1881 = vadd.f32 %v1629, %v1831
      %v1882 = vadd.f32 %v1630, %v1833
      %v1883 = vadd.f32 %v1631, %v1836
      %v1884 = vadd.f32 %v1632, %v1838
      %v1885 = vadd.f32 %v1633, %v1841
      %v1886 = vadd.f32 %v1634, %v1843
      %v1887 = vadd.f32 %v1635, %v1846
      %v1888 = vadd.f32 %v1636, %v1848
      %v1889 = vadd.f32 %v1637, %v1851
      %v1890 = vadd.f32 %v1638, %v1853
      %v1891 = vld [vmem:[%s408 + $0x24] sm:$0xff]
      %v1892 = vld [vmem:[%s408 + $0x2c] sm:$0xff]
      %v1893 = vld [vmem:[%s408 + $0x34] sm:$0xff]
      %v1894 = vld [vmem:[%s408 + $0x3c] sm:$0xff]
      %v1895 = vld [vmem:[%s408 + $0x44] sm:$0xff]
      %v1896 = vld [vmem:[%s408 + $0x4c] sm:$0xff]
      %v1897 = vld [vmem:[%s408 + $0x54] sm:$0xff]
      %v1898 = vld [vmem:[%s408 + $0x5c] sm:$0xff]
      %v1899 = vld [vmem:[%s408 + $0x64] sm:$0xff]
      %v1900 = vld [vmem:[%s408 + $0x6c] sm:$0xff]
      %v1901 = vld [vmem:[%s408 + $0x74] sm:$0xff]
      %v1902 = vld [vmem:[%s408 + $0x7c] sm:$0xff]
      %v1903 = vld [vmem:[%s408 + $0x84] sm:$0xff]
      %v1904 = vld [vmem:[%s408 + $0x8c] sm:$0xff]
      %v1905 = vld [vmem:[%s408 + $0x94] sm:$0xff]
      %v1906 = vld [vmem:[%s408 + $0x9c] sm:$0xff]
      %v1907 = vld [vmem:[%s408 + $0xa4] sm:$0xff]
      %v1908 = vld [vmem:[%s408 + $0xac] sm:$0xff]
      %v1909 = vld [vmem:[%s408 + $0xb4] sm:$0xff]
      %v1910 = vld [vmem:[%s408 + $0xbc] sm:$0xff]
      %v1911 = vld [vmem:[%s408 + $0xc4] sm:$0xff]
      %v1912 = vld [vmem:[%s408 + $0xcc] sm:$0xff]
      %v1913 = vld [vmem:[%s408 + $0xd4] sm:$0xff]
      %v1914 = vld [vmem:[%s408 + $0xdc] sm:$0xff]
      %v1915 = vld [vmem:[%s408 + $0xe4] sm:$0xff]
      %v1916 = vld [vmem:[%s408 + $0xec] sm:$0xff]
      %v1917 = vld [vmem:[%s408 + $0xf4] sm:$0xff]
      %v1918 = vld [vmem:[%s408 + $0xfc] sm:$0xff]
      %v1919 = vld [vmem:[%s408 + $0x104] sm:$0xff]
      %v1920 = vld [vmem:[%s408 + $0x10c] sm:$0xff]
      %v1921 = vld [vmem:[%s408 + $0x114] sm:$0xff]
      %v1922 = vld [vmem:[%s408 + $0x11c] sm:$0xff]
      %v1923 = vld [vmem:[%s408 + $0x124] sm:$0xff]
      %v1924 = vld [vmem:[%s408 + $0x12c] sm:$0xff]
      %v1925 = vld [vmem:[%s408 + $0x134] sm:$0xff]
      %v1926 = vld [vmem:[%s408 + $0x13c] sm:$0xff]
      %v1927 = vpack.c.bf16 %v1892, %v1891
      %v1928 = vpack.c.bf16 %v1894, %v1893
      %v1929 = vpack.c.bf16 %v1896, %v1895
      %v1930 = vpack.c.bf16 %v1898, %v1897
      %v1931 = vpack.c.bf16 %v1900, %v1899
      %v1932 = vpack.c.bf16 %v1902, %v1901
      %v1933 = vpack.c.bf16 %v1904, %v1903
      %v1934 = vpack.c.bf16 %v1906, %v1905
      %v1935 = vpack.c.bf16 %v1908, %v1907
      %v1936 = vpack.c.bf16 %v1910, %v1909
      %v1937 = vpack.c.bf16 %v1912, %v1911
      %v1938 = vpack.c.bf16 %v1914, %v1913
      %v1939 = vpack.c.bf16 %v1916, %v1915
      %v1940 = vpack.c.bf16 %v1918, %v1917
      %v1941 = vpack.c.bf16 %v1920, %v1919
      %v1942 = vpack.c.bf16 %v1922, %v1921
      %v1943 = vpack.c.bf16 %v1924, %v1923
      %v1944 = vpack.c.bf16 %v1926, %v1925
      %s1945 = scalar_lea.vmem %s1, 48
      %v1946 = vld [vmem:[%s1945] sm:$0xf]
      %v1947 = vld [vmem:[%s1945 + $0x4] sm:$0xf]
      %v1950 = vunpack.c.l.b16 %v1946
      %v1951 = vunpack.c.l.b16 %v1947
      %v1952 = vpack.c.b16 %v1951, %v1950
      %v1955 = vsel %vm570, %v1927, 0
      %v1958 = vsel %vm570, %v1928, 0
      %v1961 = vsel %vm570, %v1929, 0
      %v1964 = vsel %vm570, %v1930, 0
      %v1967 = vsel %vm570, %v1931, 0
      %v1970 = vsel %vm570, %v1932, 0
      %v1973 = vsel %vm570, %v1933, 0
      %v1976 = vsel %vm570, %v1934, 0
      %v1979 = vsel %vm570, %v1935, 0
      %v1982 = vsel %vm570, %v1936, 0
      %v1985 = vsel %vm570, %v1937, 0
      %v1988 = vsel %vm570, %v1938, 0
      %v1991 = vsel %vm570, %v1939, 0
      %v1994 = vsel %vm570, %v1940, 0
      %v1997 = vsel %vm570, %v1941, 0
      %v2000 = vsel %vm570, %v1942, 0
      %v2003 = vsel %vm570, %v1943, 0
      %v2006 = vsel %vm570, %v1944, 0
      %2008 = vmatpush.bf16.msra.mxu0 0
      %2009 = vmatpush.bf16.msra.mxu0 0
      %2010 = vmatpush.bf16.msra.mxu0 0
      %2011 = vmatpush.bf16.msra.mxu0 0
      %2012 = vmatpush.bf16.msra.mxu0 0
      %2013 = vmatpush.bf16.msra.mxu0 0
      %2014 = vmatpush.bf16.msra.mxu0 0
      %2015 = vmatpush.bf16.msra.mxu0 %v1952
      %2016 = vmatmul.bf16.gmra.mxu0 %v1955
      %v2017 = vpop.f32.mrf.mxu0
      %v2018 = vadd.f32 0.0, %v2017
      %v2019 = vpop.f32.mrf.mxu0
      %v2020 = vadd.f32 0.0, %v2019
      %2021 = vmatmul.bf16.gmra.mxu0 %v1958
      %v2022 = vpop.f32.mrf.mxu0
      %v2023 = vadd.f32 0.0, %v2022
      %v2024 = vpop.f32.mrf.mxu0
      %v2025 = vadd.f32 0.0, %v2024
      %2026 = vmatmul.bf16.gmra.mxu0 %v1961
      %v2027 = vpop.f32.mrf.mxu0
      %v2028 = vadd.f32 0.0, %v2027
      %v2029 = vpop.f32.mrf.mxu0
      %v2030 = vadd.f32 0.0, %v2029
      %2031 = vmatmul.bf16.gmra.mxu0 %v1964
      %v2032 = vpop.f32.mrf.mxu0
      %v2033 = vadd.f32 0.0, %v2032
      %v2034 = vpop.f32.mrf.mxu0
      %v2035 = vadd.f32 0.0, %v2034
      %2036 = vmatmul.bf16.gmra.mxu0 %v1967
      %v2037 = vpop.f32.mrf.mxu0
      %v2038 = vadd.f32 0.0, %v2037
      %v2039 = vpop.f32.mrf.mxu0
      %v2040 = vadd.f32 0.0, %v2039
      %2041 = vmatmul.bf16.gmra.mxu0 %v1970
      %v2042 = vpop.f32.mrf.mxu0
      %v2043 = vadd.f32 0.0, %v2042
      %v2044 = vpop.f32.mrf.mxu0
      %v2045 = vadd.f32 0.0, %v2044
      %2046 = vmatmul.bf16.gmra.mxu0 %v1973
      %v2047 = vpop.f32.mrf.mxu0
      %v2048 = vadd.f32 0.0, %v2047
      %v2049 = vpop.f32.mrf.mxu0
      %v2050 = vadd.f32 0.0, %v2049
      %2051 = vmatmul.bf16.gmra.mxu0 %v1976
      %v2052 = vpop.f32.mrf.mxu0
      %v2053 = vadd.f32 0.0, %v2052
      %v2054 = vpop.f32.mrf.mxu0
      %v2055 = vadd.f32 0.0, %v2054
      %2056 = vmatmul.bf16.gmra.mxu0 %v1979
      %v2057 = vpop.f32.mrf.mxu0
      %v2058 = vadd.f32 0.0, %v2057
      %v2059 = vpop.f32.mrf.mxu0
      %v2060 = vadd.f32 0.0, %v2059
      %2061 = vmatmul.bf16.gmra.mxu0 %v1982
      %v2062 = vpop.f32.mrf.mxu0
      %v2063 = vadd.f32 0.0, %v2062
      %v2064 = vpop.f32.mrf.mxu0
      %v2065 = vadd.f32 0.0, %v2064
      %2066 = vmatmul.bf16.gmra.mxu0 %v1985
      %v2067 = vpop.f32.mrf.mxu0
      %v2068 = vadd.f32 0.0, %v2067
      %v2069 = vpop.f32.mrf.mxu0
      %v2070 = vadd.f32 0.0, %v2069
      %2071 = vmatmul.bf16.gmra.mxu0 %v1988
      %v2072 = vpop.f32.mrf.mxu0
      %v2073 = vadd.f32 0.0, %v2072
      %v2074 = vpop.f32.mrf.mxu0
      %v2075 = vadd.f32 0.0, %v2074
      %2076 = vmatmul.bf16.gmra.mxu0 %v1991
      %v2077 = vpop.f32.mrf.mxu0
      %v2078 = vadd.f32 0.0, %v2077
      %v2079 = vpop.f32.mrf.mxu0
      %v2080 = vadd.f32 0.0, %v2079
      %2081 = vmatmul.bf16.gmra.mxu0 %v1994
      %v2082 = vpop.f32.mrf.mxu0
      %v2083 = vadd.f32 0.0, %v2082
      %v2084 = vpop.f32.mrf.mxu0
      %v2085 = vadd.f32 0.0, %v2084
      %2086 = vmatmul.bf16.gmra.mxu0 %v1997
      %v2087 = vpop.f32.mrf.mxu0
      %v2088 = vadd.f32 0.0, %v2087
      %v2089 = vpop.f32.mrf.mxu0
      %v2090 = vadd.f32 0.0, %v2089
      %2091 = vmatmul.bf16.gmra.mxu0 %v2000
      %v2092 = vpop.f32.mrf.mxu0
      %v2093 = vadd.f32 0.0, %v2092
      %v2094 = vpop.f32.mrf.mxu0
      %v2095 = vadd.f32 0.0, %v2094
      %2096 = vmatmul.bf16.gmra.mxu0 %v2003
      %v2097 = vpop.f32.mrf.mxu0
      %v2098 = vadd.f32 0.0, %v2097
      %v2099 = vpop.f32.mrf.mxu0
      %v2100 = vadd.f32 0.0, %v2099
      %2101 = vmatmul.bf16.gmra.mxu0 %v2006
      %v2102 = vpop.f32.mrf.mxu0
      %v2103 = vadd.f32 0.0, %v2102
      %v2104 = vpop.f32.mrf.mxu0
      %v2105 = vadd.f32 0.0, %v2104
      %2106 = vdwg.mxu0
      %v2107 = vadd.f32 %v1855, %v2018
      %v2108 = vadd.f32 %v1856, %v2020
      %v2109 = vadd.f32 %v1857, %v2023
      %v2110 = vadd.f32 %v1858, %v2025
      %v2111 = vadd.f32 %v1859, %v2028
      %v2112 = vadd.f32 %v1860, %v2030
      %v2113 = vadd.f32 %v1861, %v2033
      %v2114 = vadd.f32 %v1862, %v2035
      %v2115 = vadd.f32 %v1863, %v2038
      %v2116 = vadd.f32 %v1864, %v2040
      %v2117 = vadd.f32 %v1865, %v2043
      %v2118 = vadd.f32 %v1866, %v2045
      %v2119 = vadd.f32 %v1867, %v2048
      %v2120 = vadd.f32 %v1868, %v2050
      %v2121 = vadd.f32 %v1869, %v2053
      %v2122 = vadd.f32 %v1870, %v2055
      %v2123 = vadd.f32 %v1871, %v2058
      %v2124 = vadd.f32 %v1872, %v2060
      %v2125 = vadd.f32 %v1873, %v2063
      %v2126 = vadd.f32 %v1874, %v2065
      %v2127 = vadd.f32 %v1875, %v2068
      %v2128 = vadd.f32 %v1876, %v2070
      %v2129 = vadd.f32 %v1877, %v2073
      %v2130 = vadd.f32 %v1878, %v2075
      %v2131 = vadd.f32 %v1879, %v2078
      %v2132 = vadd.f32 %v1880, %v2080
      %v2133 = vadd.f32 %v1881, %v2083
      %v2134 = vadd.f32 %v1882, %v2085
      %v2135 = vadd.f32 %v1883, %v2088
      %v2136 = vadd.f32 %v1884, %v2090
      %v2137 = vadd.f32 %v1885, %v2093
      %v2138 = vadd.f32 %v1886, %v2095
      %v2139 = vadd.f32 %v1887, %v2098
      %v2140 = vadd.f32 %v1888, %v2100
      %v2141 = vadd.f32 %v1889, %v2103
      %v2142 = vadd.f32 %v1890, %v2105
      %v2143 = vld [vmem:[%s408 + $0x25] sm:$0xff]
      %v2144 = vld [vmem:[%s408 + $0x2d] sm:$0xff]
      %v2145 = vld [vmem:[%s408 + $0x35] sm:$0xff]
      %v2146 = vld [vmem:[%s408 + $0x3d] sm:$0xff]
      %v2147 = vld [vmem:[%s408 + $0x45] sm:$0xff]
      %v2148 = vld [vmem:[%s408 + $0x4d] sm:$0xff]
      %v2149 = vld [vmem:[%s408 + $0x55] sm:$0xff]
      %v2150 = vld [vmem:[%s408 + $0x5d] sm:$0xff]
      %v2151 = vld [vmem:[%s408 + $0x65] sm:$0xff]
      %v2152 = vld [vmem:[%s408 + $0x6d] sm:$0xff]
      %v2153 = vld [vmem:[%s408 + $0x75] sm:$0xff]
      %v2154 = vld [vmem:[%s408 + $0x7d] sm:$0xff]
      %v2155 = vld [vmem:[%s408 + $0x85] sm:$0xff]
      %v2156 = vld [vmem:[%s408 + $0x8d] sm:$0xff]
      %v2157 = vld [vmem:[%s408 + $0x95] sm:$0xff]
      %v2158 = vld [vmem:[%s408 + $0x9d] sm:$0xff]
      %v2159 = vld [vmem:[%s408 + $0xa5] sm:$0xff]
      %v2160 = vld [vmem:[%s408 + $0xad] sm:$0xff]
      %v2161 = vld [vmem:[%s408 + $0xb5] sm:$0xff]
      %v2162 = vld [vmem:[%s408 + $0xbd] sm:$0xff]
      %v2163 = vld [vmem:[%s408 + $0xc5] sm:$0xff]
      %v2164 = vld [vmem:[%s408 + $0xcd] sm:$0xff]
      %v2165 = vld [vmem:[%s408 + $0xd5] sm:$0xff]
      %v2166 = vld [vmem:[%s408 + $0xdd] sm:$0xff]
      %v2167 = vld [vmem:[%s408 + $0xe5] sm:$0xff]
      %v2168 = vld [vmem:[%s408 + $0xed] sm:$0xff]
      %v2169 = vld [vmem:[%s408 + $0xf5] sm:$0xff]
      %v2170 = vld [vmem:[%s408 + $0xfd] sm:$0xff]
      %v2171 = vld [vmem:[%s408 + $0x105] sm:$0xff]
      %v2172 = vld [vmem:[%s408 + $0x10d] sm:$0xff]
      %v2173 = vld [vmem:[%s408 + $0x115] sm:$0xff]
      %v2174 = vld [vmem:[%s408 + $0x11d] sm:$0xff]
      %v2175 = vld [vmem:[%s408 + $0x125] sm:$0xff]
      %v2176 = vld [vmem:[%s408 + $0x12d] sm:$0xff]
      %v2177 = vld [vmem:[%s408 + $0x135] sm:$0xff]
      %v2178 = vld [vmem:[%s408 + $0x13d] sm:$0xff]
      %v2179 = vpack.c.bf16 %v2144, %v2143
      %v2180 = vpack.c.bf16 %v2146, %v2145
      %v2181 = vpack.c.bf16 %v2148, %v2147
      %v2182 = vpack.c.bf16 %v2150, %v2149
      %v2183 = vpack.c.bf16 %v2152, %v2151
      %v2184 = vpack.c.bf16 %v2154, %v2153
      %v2185 = vpack.c.bf16 %v2156, %v2155
      %v2186 = vpack.c.bf16 %v2158, %v2157
      %v2187 = vpack.c.bf16 %v2160, %v2159
      %v2188 = vpack.c.bf16 %v2162, %v2161
      %v2189 = vpack.c.bf16 %v2164, %v2163
      %v2190 = vpack.c.bf16 %v2166, %v2165
      %v2191 = vpack.c.bf16 %v2168, %v2167
      %v2192 = vpack.c.bf16 %v2170, %v2169
      %v2193 = vpack.c.bf16 %v2172, %v2171
      %v2194 = vpack.c.bf16 %v2174, %v2173
      %v2195 = vpack.c.bf16 %v2176, %v2175
      %v2196 = vpack.c.bf16 %v2178, %v2177
      %s2197 = scalar_lea.vmem %s1, 56
      %v2198 = vld [vmem:[%s2197] sm:$0xf]
      %v2199 = vld [vmem:[%s2197 + $0x4] sm:$0xf]
      %v2202 = vunpack.c.l.b16 %v2198
      %v2203 = vunpack.c.l.b16 %v2199
      %v2204 = vpack.c.b16 %v2203, %v2202
      %v2207 = vsel %vm570, %v2179, 0
      %v2210 = vsel %vm570, %v2180, 0
      %v2213 = vsel %vm570, %v2181, 0
      %v2216 = vsel %vm570, %v2182, 0
      %v2219 = vsel %vm570, %v2183, 0
      %v2222 = vsel %vm570, %v2184, 0
      %v2225 = vsel %vm570, %v2185, 0
      %v2228 = vsel %vm570, %v2186, 0
      %v2231 = vsel %vm570, %v2187, 0
      %v2234 = vsel %vm570, %v2188, 0
      %v2237 = vsel %vm570, %v2189, 0
      %v2240 = vsel %vm570, %v2190, 0
      %v2243 = vsel %vm570, %v2191, 0
      %v2246 = vsel %vm570, %v2192, 0
      %v2249 = vsel %vm570, %v2193, 0
      %v2252 = vsel %vm570, %v2194, 0
      %v2255 = vsel %vm570, %v2195, 0
      %v2258 = vsel %vm570, %v2196, 0
      %2260 = vmatpush.bf16.msra.mxu0 0
      %2261 = vmatpush.bf16.msra.mxu0 0
      %2262 = vmatpush.bf16.msra.mxu0 0
      %2263 = vmatpush.bf16.msra.mxu0 0
      %2264 = vmatpush.bf16.msra.mxu0 0
      %2265 = vmatpush.bf16.msra.mxu0 0
      %2266 = vmatpush.bf16.msra.mxu0 0
      %2267 = vmatpush.bf16.msra.mxu0 %v2204
      %2268 = vmatmul.bf16.gmra.mxu0 %v2207
      %v2269 = vpop.f32.mrf.mxu0
      %v2270 = vadd.f32 0.0, %v2269
      %v2271 = vpop.f32.mrf.mxu0
      %v2272 = vadd.f32 0.0, %v2271
      %2273 = vmatmul.bf16.gmra.mxu0 %v2210
      %v2274 = vpop.f32.mrf.mxu0
      %v2275 = vadd.f32 0.0, %v2274
      %v2276 = vpop.f32.mrf.mxu0
      %v2277 = vadd.f32 0.0, %v2276
      %2278 = vmatmul.bf16.gmra.mxu0 %v2213
      %v2279 = vpop.f32.mrf.mxu0
      %v2280 = vadd.f32 0.0, %v2279
      %v2281 = vpop.f32.mrf.mxu0
      %v2282 = vadd.f32 0.0, %v2281
      %2283 = vmatmul.bf16.gmra.mxu0 %v2216
      %v2284 = vpop.f32.mrf.mxu0
      %v2285 = vadd.f32 0.0, %v2284
      %v2286 = vpop.f32.mrf.mxu0
      %v2287 = vadd.f32 0.0, %v2286
      %2288 = vmatmul.bf16.gmra.mxu0 %v2219
      %v2289 = vpop.f32.mrf.mxu0
      %v2290 = vadd.f32 0.0, %v2289
      %v2291 = vpop.f32.mrf.mxu0
      %v2292 = vadd.f32 0.0, %v2291
      %2293 = vmatmul.bf16.gmra.mxu0 %v2222
      %v2294 = vpop.f32.mrf.mxu0
      %v2295 = vadd.f32 0.0, %v2294
      %v2296 = vpop.f32.mrf.mxu0
      %v2297 = vadd.f32 0.0, %v2296
      %2298 = vmatmul.bf16.gmra.mxu0 %v2225
      %v2299 = vpop.f32.mrf.mxu0
      %v2300 = vadd.f32 0.0, %v2299
      %v2301 = vpop.f32.mrf.mxu0
      %v2302 = vadd.f32 0.0, %v2301
      %2303 = vmatmul.bf16.gmra.mxu0 %v2228
      %v2304 = vpop.f32.mrf.mxu0
      %v2305 = vadd.f32 0.0, %v2304
      %v2306 = vpop.f32.mrf.mxu0
      %v2307 = vadd.f32 0.0, %v2306
      %2308 = vmatmul.bf16.gmra.mxu0 %v2231
      %v2309 = vpop.f32.mrf.mxu0
      %v2310 = vadd.f32 0.0, %v2309
      %v2311 = vpop.f32.mrf.mxu0
      %v2312 = vadd.f32 0.0, %v2311
      %2313 = vmatmul.bf16.gmra.mxu0 %v2234
      %v2314 = vpop.f32.mrf.mxu0
      %v2315 = vadd.f32 0.0, %v2314
      %v2316 = vpop.f32.mrf.mxu0
      %v2317 = vadd.f32 0.0, %v2316
      %2318 = vmatmul.bf16.gmra.mxu0 %v2237
      %v2319 = vpop.f32.mrf.mxu0
      %v2320 = vadd.f32 0.0, %v2319
      %v2321 = vpop.f32.mrf.mxu0
      %v2322 = vadd.f32 0.0, %v2321
      %2323 = vmatmul.bf16.gmra.mxu0 %v2240
      %v2324 = vpop.f32.mrf.mxu0
      %v2325 = vadd.f32 0.0, %v2324
      %v2326 = vpop.f32.mrf.mxu0
      %v2327 = vadd.f32 0.0, %v2326
      %2328 = vmatmul.bf16.gmra.mxu0 %v2243
      %v2329 = vpop.f32.mrf.mxu0
      %v2330 = vadd.f32 0.0, %v2329
      %v2331 = vpop.f32.mrf.mxu0
      %v2332 = vadd.f32 0.0, %v2331
      %2333 = vmatmul.bf16.gmra.mxu0 %v2246
      %v2334 = vpop.f32.mrf.mxu0
      %v2335 = vadd.f32 0.0, %v2334
      %v2336 = vpop.f32.mrf.mxu0
      %v2337 = vadd.f32 0.0, %v2336
      %2338 = vmatmul.bf16.gmra.mxu0 %v2249
      %v2339 = vpop.f32.mrf.mxu0
      %v2340 = vadd.f32 0.0, %v2339
      %v2341 = vpop.f32.mrf.mxu0
      %v2342 = vadd.f32 0.0, %v2341
      %2343 = vmatmul.bf16.gmra.mxu0 %v2252
      %v2344 = vpop.f32.mrf.mxu0
      %v2345 = vadd.f32 0.0, %v2344
      %v2346 = vpop.f32.mrf.mxu0
      %v2347 = vadd.f32 0.0, %v2346
      %2348 = vmatmul.bf16.gmra.mxu0 %v2255
      %v2349 = vpop.f32.mrf.mxu0
      %v2350 = vadd.f32 0.0, %v2349
      %v2351 = vpop.f32.mrf.mxu0
      %v2352 = vadd.f32 0.0, %v2351
      %2353 = vmatmul.bf16.gmra.mxu0 %v2258
      %v2354 = vpop.f32.mrf.mxu0
      %v2355 = vadd.f32 0.0, %v2354
      %v2356 = vpop.f32.mrf.mxu0
      %v2357 = vadd.f32 0.0, %v2356
      %2358 = vdwg.mxu0
      %v2359 = vadd.f32 %v2107, %v2270
      %v2360 = vadd.f32 %v2108, %v2272
      %v2361 = vadd.f32 %v2109, %v2275
      %v2362 = vadd.f32 %v2110, %v2277
      %v2363 = vadd.f32 %v2111, %v2280
      %v2364 = vadd.f32 %v2112, %v2282
      %v2365 = vadd.f32 %v2113, %v2285
      %v2366 = vadd.f32 %v2114, %v2287
      %v2367 = vadd.f32 %v2115, %v2290
      %v2368 = vadd.f32 %v2116, %v2292
      %v2369 = vadd.f32 %v2117, %v2295
      %v2370 = vadd.f32 %v2118, %v2297
      %v2371 = vadd.f32 %v2119, %v2300
      %v2372 = vadd.f32 %v2120, %v2302
      %v2373 = vadd.f32 %v2121, %v2305
      %v2374 = vadd.f32 %v2122, %v2307
      %v2375 = vadd.f32 %v2123, %v2310
      %v2376 = vadd.f32 %v2124, %v2312
      %v2377 = vadd.f32 %v2125, %v2315
      %v2378 = vadd.f32 %v2126, %v2317
      %v2379 = vadd.f32 %v2127, %v2320
      %v2380 = vadd.f32 %v2128, %v2322
      %v2381 = vadd.f32 %v2129, %v2325
      %v2382 = vadd.f32 %v2130, %v2327
      %v2383 = vadd.f32 %v2131, %v2330
      %v2384 = vadd.f32 %v2132, %v2332
      %v2385 = vadd.f32 %v2133, %v2335
      %v2386 = vadd.f32 %v2134, %v2337
      %v2387 = vadd.f32 %v2135, %v2340
      %v2388 = vadd.f32 %v2136, %v2342
      %v2389 = vadd.f32 %v2137, %v2345
      %v2390 = vadd.f32 %v2138, %v2347
      %v2391 = vadd.f32 %v2139, %v2350
      %v2392 = vadd.f32 %v2140, %v2352
      %v2393 = vadd.f32 %v2141, %v2355
      %v2394 = vadd.f32 %v2142, %v2357
      %v2395 = vld [vmem:[%s408 + $0x26] sm:$0xff]
      %v2396 = vld [vmem:[%s408 + $0x2e] sm:$0xff]
      %v2397 = vld [vmem:[%s408 + $0x36] sm:$0xff]
      %v2398 = vld [vmem:[%s408 + $0x3e] sm:$0xff]
      %v2399 = vld [vmem:[%s408 + $0x46] sm:$0xff]
      %v2400 = vld [vmem:[%s408 + $0x4e] sm:$0xff]
      %v2401 = vld [vmem:[%s408 + $0x56] sm:$0xff]
      %v2402 = vld [vmem:[%s408 + $0x5e] sm:$0xff]
      %v2403 = vld [vmem:[%s408 + $0x66] sm:$0xff]
      %v2404 = vld [vmem:[%s408 + $0x6e] sm:$0xff]
      %v2405 = vld [vmem:[%s408 + $0x76] sm:$0xff]
      %v2406 = vld [vmem:[%s408 + $0x7e] sm:$0xff]
      %v2407 = vld [vmem:[%s408 + $0x86] sm:$0xff]
      %v2408 = vld [vmem:[%s408 + $0x8e] sm:$0xff]
      %v2409 = vld [vmem:[%s408 + $0x96] sm:$0xff]
      %v2410 = vld [vmem:[%s408 + $0x9e] sm:$0xff]
      %v2411 = vld [vmem:[%s408 + $0xa6] sm:$0xff]
      %v2412 = vld [vmem:[%s408 + $0xae] sm:$0xff]
      %v2413 = vld [vmem:[%s408 + $0xb6] sm:$0xff]
      %v2414 = vld [vmem:[%s408 + $0xbe] sm:$0xff]
      %v2415 = vld [vmem:[%s408 + $0xc6] sm:$0xff]
      %v2416 = vld [vmem:[%s408 + $0xce] sm:$0xff]
      %v2417 = vld [vmem:[%s408 + $0xd6] sm:$0xff]
      %v2418 = vld [vmem:[%s408 + $0xde] sm:$0xff]
      %v2419 = vld [vmem:[%s408 + $0xe6] sm:$0xff]
      %v2420 = vld [vmem:[%s408 + $0xee] sm:$0xff]
      %v2421 = vld [vmem:[%s408 + $0xf6] sm:$0xff]
      %v2422 = vld [vmem:[%s408 + $0xfe] sm:$0xff]
      %v2423 = vld [vmem:[%s408 + $0x106] sm:$0xff]
      %v2424 = vld [vmem:[%s408 + $0x10e] sm:$0xff]
      %v2425 = vld [vmem:[%s408 + $0x116] sm:$0xff]
      %v2426 = vld [vmem:[%s408 + $0x11e] sm:$0xff]
      %v2427 = vld [vmem:[%s408 + $0x126] sm:$0xff]
      %v2428 = vld [vmem:[%s408 + $0x12e] sm:$0xff]
      %v2429 = vld [vmem:[%s408 + $0x136] sm:$0xff]
      %v2430 = vld [vmem:[%s408 + $0x13e] sm:$0xff]
      %v2431 = vpack.c.bf16 %v2396, %v2395
      %v2432 = vpack.c.bf16 %v2398, %v2397
      %v2433 = vpack.c.bf16 %v2400, %v2399
      %v2434 = vpack.c.bf16 %v2402, %v2401
      %v2435 = vpack.c.bf16 %v2404, %v2403
      %v2436 = vpack.c.bf16 %v2406, %v2405
      %v2437 = vpack.c.bf16 %v2408, %v2407
      %v2438 = vpack.c.bf16 %v2410, %v2409
      %v2439 = vpack.c.bf16 %v2412, %v2411
      %v2440 = vpack.c.bf16 %v2414, %v2413
      %v2441 = vpack.c.bf16 %v2416, %v2415
      %v2442 = vpack.c.bf16 %v2418, %v2417
      %v2443 = vpack.c.bf16 %v2420, %v2419
      %v2444 = vpack.c.bf16 %v2422, %v2421
      %v2445 = vpack.c.bf16 %v2424, %v2423
      %v2446 = vpack.c.bf16 %v2426, %v2425
      %v2447 = vpack.c.bf16 %v2428, %v2427
      %v2448 = vpack.c.bf16 %v2430, %v2429
      %s2449 = scalar_lea.vmem %s1, 64
      %v2450 = vld [vmem:[%s2449] sm:$0xf]
      %v2451 = vld [vmem:[%s2449 + $0x4] sm:$0xf]
      %v2454 = vunpack.c.l.b16 %v2450
      %v2455 = vunpack.c.l.b16 %v2451
      %v2456 = vpack.c.b16 %v2455, %v2454
      %v2459 = vsel %vm570, %v2431, 0
      %v2462 = vsel %vm570, %v2432, 0
      %v2465 = vsel %vm570, %v2433, 0
      %v2468 = vsel %vm570, %v2434, 0
      %v2471 = vsel %vm570, %v2435, 0
      %v2474 = vsel %vm570, %v2436, 0
      %v2477 = vsel %vm570, %v2437, 0
      %v2480 = vsel %vm570, %v2438, 0
      %v2483 = vsel %vm570, %v2439, 0
      %v2486 = vsel %vm570, %v2440, 0
      %v2489 = vsel %vm570, %v2441, 0
      %v2492 = vsel %vm570, %v2442, 0
      %v2495 = vsel %vm570, %v2443, 0
      %v2498 = vsel %vm570, %v2444, 0
      %v2501 = vsel %vm570, %v2445, 0
      %v2504 = vsel %vm570, %v2446, 0
      %v2507 = vsel %vm570, %v2447, 0
      %v2510 = vsel %vm570, %v2448, 0
      %2512 = vmatpush.bf16.msra.mxu0 0
      %2513 = vmatpush.bf16.msra.mxu0 0
      %2514 = vmatpush.bf16.msra.mxu0 0
      %2515 = vmatpush.bf16.msra.mxu0 0
      %2516 = vmatpush.bf16.msra.mxu0 0
      %2517 = vmatpush.bf16.msra.mxu0 0
      %2518 = vmatpush.bf16.msra.mxu0 0
      %2519 = vmatpush.bf16.msra.mxu0 %v2456
      %2520 = vmatmul.bf16.gmra.mxu0 %v2459
      %v2521 = vpop.f32.mrf.mxu0
      %v2522 = vadd.f32 0.0, %v2521
      %v2523 = vpop.f32.mrf.mxu0
      %v2524 = vadd.f32 0.0, %v2523
      %2525 = vmatmul.bf16.gmra.mxu0 %v2462
      %v2526 = vpop.f32.mrf.mxu0
      %v2527 = vadd.f32 0.0, %v2526
      %v2528 = vpop.f32.mrf.mxu0
      %v2529 = vadd.f32 0.0, %v2528
      %2530 = vmatmul.bf16.gmra.mxu0 %v2465
      %v2531 = vpop.f32.mrf.mxu0
      %v2532 = vadd.f32 0.0, %v2531
      %v2533 = vpop.f32.mrf.mxu0
      %v2534 = vadd.f32 0.0, %v2533
      %2535 = vmatmul.bf16.gmra.mxu0 %v2468
      %v2536 = vpop.f32.mrf.mxu0
      %v2537 = vadd.f32 0.0, %v2536
      %v2538 = vpop.f32.mrf.mxu0
      %v2539 = vadd.f32 0.0, %v2538
      %2540 = vmatmul.bf16.gmra.mxu0 %v2471
      %v2541 = vpop.f32.mrf.mxu0
      %v2542 = vadd.f32 0.0, %v2541
      %v2543 = vpop.f32.mrf.mxu0
      %v2544 = vadd.f32 0.0, %v2543
      %2545 = vmatmul.bf16.gmra.mxu0 %v2474
      %v2546 = vpop.f32.mrf.mxu0
      %v2547 = vadd.f32 0.0, %v2546
      %v2548 = vpop.f32.mrf.mxu0
      %v2549 = vadd.f32 0.0, %v2548
      %2550 = vmatmul.bf16.gmra.mxu0 %v2477
      %v2551 = vpop.f32.mrf.mxu0
      %v2552 = vadd.f32 0.0, %v2551
      %v2553 = vpop.f32.mrf.mxu0
      %v2554 = vadd.f32 0.0, %v2553
      %2555 = vmatmul.bf16.gmra.mxu0 %v2480
      %v2556 = vpop.f32.mrf.mxu0
      %v2557 = vadd.f32 0.0, %v2556
      %v2558 = vpop.f32.mrf.mxu0
      %v2559 = vadd.f32 0.0, %v2558
      %2560 = vmatmul.bf16.gmra.mxu0 %v2483
      %v2561 = vpop.f32.mrf.mxu0
      %v2562 = vadd.f32 0.0, %v2561
      %v2563 = vpop.f32.mrf.mxu0
      %v2564 = vadd.f32 0.0, %v2563
      %2565 = vmatmul.bf16.gmra.mxu0 %v2486
      %v2566 = vpop.f32.mrf.mxu0
      %v2567 = vadd.f32 0.0, %v2566
      %v2568 = vpop.f32.mrf.mxu0
      %v2569 = vadd.f32 0.0, %v2568
      %2570 = vmatmul.bf16.gmra.mxu0 %v2489
      %v2571 = vpop.f32.mrf.mxu0
      %v2572 = vadd.f32 0.0, %v2571
      %v2573 = vpop.f32.mrf.mxu0
      %v2574 = vadd.f32 0.0, %v2573
      %2575 = vmatmul.bf16.gmra.mxu0 %v2492
      %v2576 = vpop.f32.mrf.mxu0
      %v2577 = vadd.f32 0.0, %v2576
      %v2578 = vpop.f32.mrf.mxu0
      %v2579 = vadd.f32 0.0, %v2578
      %2580 = vmatmul.bf16.gmra.mxu0 %v2495
      %v2581 = vpop.f32.mrf.mxu0
      %v2582 = vadd.f32 0.0, %v2581
      %v2583 = vpop.f32.mrf.mxu0
      %v2584 = vadd.f32 0.0, %v2583
      %2585 = vmatmul.bf16.gmra.mxu0 %v2498
      %v2586 = vpop.f32.mrf.mxu0
      %v2587 = vadd.f32 0.0, %v2586
      %v2588 = vpop.f32.mrf.mxu0
      %v2589 = vadd.f32 0.0, %v2588
      %2590 = vmatmul.bf16.gmra.mxu0 %v2501
      %v2591 = vpop.f32.mrf.mxu0
      %v2592 = vadd.f32 0.0, %v2591
      %v2593 = vpop.f32.mrf.mxu0
      %v2594 = vadd.f32 0.0, %v2593
      %2595 = vmatmul.bf16.gmra.mxu0 %v2504
      %v2596 = vpop.f32.mrf.mxu0
      %v2597 = vadd.f32 0.0, %v2596
      %v2598 = vpop.f32.mrf.mxu0
      %v2599 = vadd.f32 0.0, %v2598
      %2600 = vmatmul.bf16.gmra.mxu0 %v2507
      %v2601 = vpop.f32.mrf.mxu0
      %v2602 = vadd.f32 0.0, %v2601
      %v2603 = vpop.f32.mrf.mxu0
      %v2604 = vadd.f32 0.0, %v2603
      %2605 = vmatmul.bf16.gmra.mxu0 %v2510
      %v2606 = vpop.f32.mrf.mxu0
      %v2607 = vadd.f32 0.0, %v2606
      %v2608 = vpop.f32.mrf.mxu0
      %v2609 = vadd.f32 0.0, %v2608
      %2610 = vdwg.mxu0
      %v2611 = vadd.f32 %v2359, %v2522
      %v2612 = vadd.f32 %v2360, %v2524
      %v2613 = vadd.f32 %v2361, %v2527
      %v2614 = vadd.f32 %v2362, %v2529
      %v2615 = vadd.f32 %v2363, %v2532
      %v2616 = vadd.f32 %v2364, %v2534
      %v2617 = vadd.f32 %v2365, %v2537
      %v2618 = vadd.f32 %v2366, %v2539
      %v2619 = vadd.f32 %v2367, %v2542
      %v2620 = vadd.f32 %v2368, %v2544
      %v2621 = vadd.f32 %v2369, %v2547
      %v2622 = vadd.f32 %v2370, %v2549
      %v2623 = vadd.f32 %v2371, %v2552
      %v2624 = vadd.f32 %v2372, %v2554
      %v2625 = vadd.f32 %v2373, %v2557
      %v2626 = vadd.f32 %v2374, %v2559
      %v2627 = vadd.f32 %v2375, %v2562
      %v2628 = vadd.f32 %v2376, %v2564
      %v2629 = vadd.f32 %v2377, %v2567
      %v2630 = vadd.f32 %v2378, %v2569
      %v2631 = vadd.f32 %v2379, %v2572
      %v2632 = vadd.f32 %v2380, %v2574
      %v2633 = vadd.f32 %v2381, %v2577
      %v2634 = vadd.f32 %v2382, %v2579
      %v2635 = vadd.f32 %v2383, %v2582
      %v2636 = vadd.f32 %v2384, %v2584
      %v2637 = vadd.f32 %v2385, %v2587
      %v2638 = vadd.f32 %v2386, %v2589
      %v2639 = vadd.f32 %v2387, %v2592
      %v2640 = vadd.f32 %v2388, %v2594
      %v2641 = vadd.f32 %v2389, %v2597
      %v2642 = vadd.f32 %v2390, %v2599
      %v2643 = vadd.f32 %v2391, %v2602
      %v2644 = vadd.f32 %v2392, %v2604
      %v2645 = vadd.f32 %v2393, %v2607
      %v2646 = vadd.f32 %v2394, %v2609
      %v2647 = vld [vmem:[%s3] sm:$0x1]
      %v2649 = vperm.slane %v2647, 0
      %v2651 = vadd.f32 %v2611, %v2649
      %v2652 = vadd.f32 %v2612, %v2649
      %v2653 = vadd.f32 %v2613, %v2649
      %v2654 = vadd.f32 %v2614, %v2649
      %v2655 = vadd.f32 %v2615, %v2649
      %v2656 = vadd.f32 %v2616, %v2649
      %v2657 = vadd.f32 %v2617, %v2649
      %v2658 = vadd.f32 %v2618, %v2649
      %v2659 = vadd.f32 %v2619, %v2649
      %v2660 = vadd.f32 %v2620, %v2649
      %v2661 = vadd.f32 %v2621, %v2649
      %v2662 = vadd.f32 %v2622, %v2649
      %v2663 = vadd.f32 %v2623, %v2649
      %v2664 = vadd.f32 %v2624, %v2649
      %v2665 = vadd.f32 %v2625, %v2649
      %v2666 = vadd.f32 %v2626, %v2649
      %v2667 = vadd.f32 %v2627, %v2649
      %v2668 = vadd.f32 %v2628, %v2649
      %v2669 = vadd.f32 %v2629, %v2649
      %v2670 = vadd.f32 %v2630, %v2649
      %v2671 = vadd.f32 %v2631, %v2649
      %v2672 = vadd.f32 %v2632, %v2649
      %v2673 = vadd.f32 %v2633, %v2649
      %v2674 = vadd.f32 %v2634, %v2649
      %v2675 = vadd.f32 %v2635, %v2649
      %v2676 = vadd.f32 %v2636, %v2649
      %v2677 = vadd.f32 %v2637, %v2649
      %v2678 = vadd.f32 %v2638, %v2649
      %v2679 = vadd.f32 %v2639, %v2649
      %v2680 = vadd.f32 %v2640, %v2649
      %v2681 = vadd.f32 %v2641, %v2649
      %v2682 = vadd.f32 %v2642, %v2649
      %v2683 = vadd.f32 %v2643, %v2649
      %v2684 = vadd.f32 %v2644, %v2649
      %v2685 = vadd.f32 %v2645, %v2649
      %v2686 = vadd.f32 %v2646, %v2649
      %v2687 = vld [vmem:[%s5] sm:$0xff]
      %v2688 = vld [vmem:[%s5 + $0x8] sm:$0xff]
      %v2689 = vld [vmem:[%s6] sm:$0x1]
      %v2690 = vld [vmem:[%s7] sm:$0x1]
      %2692 = vset.pattern.permute.xlu0 0
      %2693 = vperm.xlu0 %2692, %v415
      %v2694 = vpop.permute.xlu0 %2693
      %2697 = vset.pattern.permute.xlu0 0
      %2698 = vperm.xlu0 %2697, %v416
      %v2699 = vpop.permute.xlu0 %2698
      %2702 = vset.pattern.permute.xlu0 0
      %2703 = vperm.xlu0 %2702, %v417
      %v2704 = vpop.permute.xlu0 %2703
      %2707 = vset.pattern.permute.xlu0 0
      %2708 = vperm.xlu0 %2707, %v418
      %v2709 = vpop.permute.xlu0 %2708
      %2712 = vset.pattern.permute.xlu0 0
      %2713 = vperm.xlu0 %2712, %v419
      %v2714 = vpop.permute.xlu0 %2713
      %2717 = vset.pattern.permute.xlu0 0
      %2718 = vperm.xlu0 %2717, %v420
      %v2719 = vpop.permute.xlu0 %2718
      %2722 = vset.pattern.permute.xlu0 0
      %2723 = vperm.xlu0 %2722, %v421
      %v2724 = vpop.permute.xlu0 %2723
      %2727 = vset.pattern.permute.xlu0 0
      %2728 = vperm.xlu0 %2727, %v422
      %v2729 = vpop.permute.xlu0 %2728
      %2732 = vset.pattern.permute.xlu0 0
      %2733 = vperm.xlu0 %2732, %v423
      %v2734 = vpop.permute.xlu0 %2733
      %2737 = vset.pattern.permute.xlu0 0
      %2738 = vperm.xlu0 %2737, %v424
      %v2739 = vpop.permute.xlu0 %2738
      %2742 = vset.pattern.permute.xlu0 0
      %2743 = vperm.xlu0 %2742, %v425
      %v2744 = vpop.permute.xlu0 %2743
      %2747 = vset.pattern.permute.xlu0 0
      %2748 = vperm.xlu0 %2747, %v426
      %v2749 = vpop.permute.xlu0 %2748
      %2752 = vset.pattern.permute.xlu0 0
      %2753 = vperm.xlu0 %2752, %v427
      %v2754 = vpop.permute.xlu0 %2753
      %2757 = vset.pattern.permute.xlu0 0
      %2758 = vperm.xlu0 %2757, %v428
      %v2759 = vpop.permute.xlu0 %2758
      %2762 = vset.pattern.permute.xlu0 0
      %2763 = vperm.xlu0 %2762, %v429
      %v2764 = vpop.permute.xlu0 %2763
      %2767 = vset.pattern.permute.xlu0 0
      %2768 = vperm.xlu0 %2767, %v430
      %v2769 = vpop.permute.xlu0 %2768
      %2772 = vset.pattern.permute.xlu0 0
      %2773 = vperm.xlu0 %2772, %v431
      %v2774 = vpop.permute.xlu0 %2773
      %2777 = vset.pattern.permute.xlu0 0
      %2778 = vperm.xlu0 %2777, %v432
      %v2779 = vpop.permute.xlu0 %2778
      %2782 = vset.pattern.permute.xlu0 0
      %2783 = vperm.xlu0 %2782, %v433
      %v2784 = vpop.permute.xlu0 %2783
      %2787 = vset.pattern.permute.xlu0 0
      %2788 = vperm.xlu0 %2787, %v434
      %v2789 = vpop.permute.xlu0 %2788
      %2792 = vset.pattern.permute.xlu0 0
      %2793 = vperm.xlu0 %2792, %v435
      %v2794 = vpop.permute.xlu0 %2793
      %2797 = vset.pattern.permute.xlu0 0
      %2798 = vperm.xlu0 %2797, %v436
      %v2799 = vpop.permute.xlu0 %2798
      %2802 = vset.pattern.permute.xlu0 0
      %2803 = vperm.xlu0 %2802, %v437
      %v2804 = vpop.permute.xlu0 %2803
      %2807 = vset.pattern.permute.xlu0 0
      %2808 = vperm.xlu0 %2807, %v438
      %v2809 = vpop.permute.xlu0 %2808
      %2812 = vset.pattern.permute.xlu0 0
      %2813 = vperm.xlu0 %2812, %v439
      %v2814 = vpop.permute.xlu0 %2813
      %2817 = vset.pattern.permute.xlu0 0
      %2818 = vperm.xlu0 %2817, %v440
      %v2819 = vpop.permute.xlu0 %2818
      %2822 = vset.pattern.permute.xlu0 0
      %2823 = vperm.xlu0 %2822, %v441
      %v2824 = vpop.permute.xlu0 %2823
      %2827 = vset.pattern.permute.xlu0 0
      %2828 = vperm.xlu0 %2827, %v442
      %v2829 = vpop.permute.xlu0 %2828
      %2832 = vset.pattern.permute.xlu0 0
      %2833 = vperm.xlu0 %2832, %v443
      %v2834 = vpop.permute.xlu0 %2833
      %2837 = vset.pattern.permute.xlu0 0
      %2838 = vperm.xlu0 %2837, %v444
      %v2839 = vpop.permute.xlu0 %2838
      %2842 = vset.pattern.permute.xlu0 0
      %2843 = vperm.xlu0 %2842, %v445
      %v2844 = vpop.permute.xlu0 %2843
      %2847 = vset.pattern.permute.xlu0 0
      %2848 = vperm.xlu0 %2847, %v446
      %v2849 = vpop.permute.xlu0 %2848
      %2852 = vset.pattern.permute.xlu0 0
      %2853 = vperm.xlu0 %2852, %v447
      %v2854 = vpop.permute.xlu0 %2853
      %2857 = vset.pattern.permute.xlu0 0
      %2858 = vperm.xlu0 %2857, %v448
      %v2859 = vpop.permute.xlu0 %2858
      %2862 = vset.pattern.permute.xlu0 0
      %2863 = vperm.xlu0 %2862, %v449
      %v2864 = vpop.permute.xlu0 %2863
      %2867 = vset.pattern.permute.xlu0 0
      %2868 = vperm.xlu0 %2867, %v450
      %v2869 = vpop.permute.xlu0 %2868
      %v2871 = vmul.f32 %v2651, %v2694
      %v2872 = vmul.f32 %v2652, %v2699
      %v2873 = vmul.f32 %v2653, %v2704
      %v2874 = vmul.f32 %v2654, %v2709
      %v2875 = vmul.f32 %v2655, %v2714
      %v2876 = vmul.f32 %v2656, %v2719
      %v2877 = vmul.f32 %v2657, %v2724
      %v2878 = vmul.f32 %v2658, %v2729
      %v2879 = vmul.f32 %v2659, %v2734
      %v2880 = vmul.f32 %v2660, %v2739
      %v2881 = vmul.f32 %v2661, %v2744
      %v2882 = vmul.f32 %v2662, %v2749
      %v2883 = vmul.f32 %v2663, %v2754
      %v2884 = vmul.f32 %v2664, %v2759
      %v2885 = vmul.f32 %v2665, %v2764
      %v2886 = vmul.f32 %v2666, %v2769
      %v2887 = vmul.f32 %v2667, %v2774
      %v2888 = vmul.f32 %v2668, %v2779
      %v2889 = vmul.f32 %v2669, %v2784
      %v2890 = vmul.f32 %v2670, %v2789
      %v2891 = vmul.f32 %v2671, %v2794
      %v2892 = vmul.f32 %v2672, %v2799
      %v2893 = vmul.f32 %v2673, %v2804
      %v2894 = vmul.f32 %v2674, %v2809
      %v2895 = vmul.f32 %v2675, %v2814
      %v2896 = vmul.f32 %v2676, %v2819
      %v2897 = vmul.f32 %v2677, %v2824
      %v2898 = vmul.f32 %v2678, %v2829
      %v2899 = vmul.f32 %v2679, %v2834
      %v2900 = vmul.f32 %v2680, %v2839
      %v2901 = vmul.f32 %v2681, %v2844
      %v2902 = vmul.f32 %v2682, %v2849
      %v2903 = vmul.f32 %v2683, %v2854
      %v2904 = vmul.f32 %v2684, %v2859
      %v2905 = vmul.f32 %v2685, %v2864
      %v2906 = vmul.f32 %v2686, %v2869
      %v2907 = vsel %vm570, %v2871, 0.0
      %v2908 = vsel %vm570, %v2872, 0.0
      %v2909 = vadd.f32 %v2907, %v2908
      %v2910 = vsel %vm570, %v2873, 0.0
      %v2911 = vadd.f32 %v2909, %v2910
      %v2912 = vsel %vm570, %v2874, 0.0
      %v2913 = vadd.f32 %v2911, %v2912
      %v2914 = vsel %vm570, %v2875, 0.0
      %v2915 = vadd.f32 %v2913, %v2914
      %v2916 = vsel %vm570, %v2876, 0.0
      %v2917 = vadd.f32 %v2915, %v2916
      %v2918 = vsel %vm570, %v2877, 0.0
      %v2919 = vadd.f32 %v2917, %v2918
      %v2920 = vsel %vm570, %v2878, 0.0
      %v2921 = vadd.f32 %v2919, %v2920
      %v2922 = vsel %vm570, %v2879, 0.0
      %v2923 = vadd.f32 %v2921, %v2922
      %v2924 = vsel %vm570, %v2880, 0.0
      %v2925 = vadd.f32 %v2923, %v2924
      %v2926 = vsel %vm570, %v2881, 0.0
      %v2927 = vadd.f32 %v2925, %v2926
      %v2928 = vsel %vm570, %v2882, 0.0
      %v2929 = vadd.f32 %v2927, %v2928
      %v2930 = vsel %vm570, %v2883, 0.0
      %v2931 = vadd.f32 %v2929, %v2930
      %v2932 = vsel %vm570, %v2884, 0.0
      %v2933 = vadd.f32 %v2931, %v2932
      %v2934 = vsel %vm570, %v2885, 0.0
      %v2935 = vadd.f32 %v2933, %v2934
      %v2936 = vsel %vm570, %v2886, 0.0
      %v2937 = vadd.f32 %v2935, %v2936
      %v2938 = vsel %vm570, %v2887, 0.0
      %v2939 = vadd.f32 %v2937, %v2938
      %v2940 = vsel %vm570, %v2888, 0.0
      %v2941 = vadd.f32 %v2939, %v2940
      %v2942 = vsel %vm570, %v2889, 0.0
      %v2943 = vadd.f32 %v2941, %v2942
      %v2944 = vsel %vm570, %v2890, 0.0
      %v2945 = vadd.f32 %v2943, %v2944
      %v2946 = vsel %vm570, %v2891, 0.0
      %v2947 = vadd.f32 %v2945, %v2946
      %v2948 = vsel %vm570, %v2892, 0.0
      %v2949 = vadd.f32 %v2947, %v2948
      %v2950 = vsel %vm570, %v2893, 0.0
      %v2951 = vadd.f32 %v2949, %v2950
      %v2952 = vsel %vm570, %v2894, 0.0
      %v2953 = vadd.f32 %v2951, %v2952
      %v2954 = vsel %vm570, %v2895, 0.0
      %v2955 = vadd.f32 %v2953, %v2954
      %v2956 = vsel %vm570, %v2896, 0.0
      %v2957 = vadd.f32 %v2955, %v2956
      %v2958 = vsel %vm570, %v2897, 0.0
      %v2959 = vadd.f32 %v2957, %v2958
      %v2960 = vsel %vm570, %v2898, 0.0
      %v2961 = vadd.f32 %v2959, %v2960
      %v2962 = vsel %vm570, %v2899, 0.0
      %v2963 = vadd.f32 %v2961, %v2962
      %v2964 = vsel %vm570, %v2900, 0.0
      %v2965 = vadd.f32 %v2963, %v2964
      %v2966 = vsel %vm570, %v2901, 0.0
      %v2967 = vadd.f32 %v2965, %v2966
      %v2968 = vsel %vm570, %v2902, 0.0
      %v2969 = vadd.f32 %v2967, %v2968
      %v2970 = vsel %vm570, %v2903, 0.0
      %v2971 = vadd.f32 %v2969, %v2970
      %v2972 = vsel %vm570, %v2904, 0.0
      %v2973 = vadd.f32 %v2971, %v2972
      %v2974 = vsel %vm570, %v2905, 0.0
      %v2975 = vadd.f32 %v2973, %v2974
      %v2976 = vsel %vm570, %v2906, 0.0
      %v2977 = vadd.f32 %v2975, %v2976
      %v2978 = vrot.slane %v2977, 4
      %v2979 = vadd.f32 %v2977, %v2978
      %v2980 = vrot.slane %v2979, 2
      %v2981 = vadd.f32 %v2979, %v2980
      %v2982 = vrot.slane %v2981, 1
      %v2983 = vadd.f32 %v2981, %v2982
      %v2985 = vsel %vm570, %v2983, 0
      %2987 = vmatpush.msra.mxu0 0.0
      %2988 = vmatpush.msra.mxu0 0.0
      %2989 = vmatpush.msra.mxu0 0.0
      %2990 = vmatpush.msra.mxu0 0.0
      %2991 = vmatpush.msra.mxu0 0.0
      %2992 = vmatpush.msra.mxu0 0.0
      %2993 = vmatpush.msra.mxu0 0.0
      %2994 = vmatpush.msra.mxu0 0.0
      %2995 = vmatpush.msra.mxu0 0.0
      %2996 = vmatpush.msra.mxu0 0.0
      %2997 = vmatpush.msra.mxu0 0.0
      %2998 = vmatpush.msra.mxu0 0.0
      %2999 = vmatpush.msra.mxu0 0.0
      %3000 = vmatpush.msra.mxu0 0.0
      %3001 = vmatpush.msra.mxu0 %v2688
      %3002 = vmatpush.msra.mxu0 %v2687
      %3003 = vmatmul.f32.gmra.mxu0 %v2985
      %v3004 = vpop.f32.mrf.mxu0
      %v3005 = vadd.f32 0.0, %v3004
      %3006 = vdwg.mxu0
      %v3007 = vrcp.pop 256.0
      %v3008 = vmul.f32 256.0, %v3007
      %v3009 = vsub.f32 1.0, %v3008
      %v3010 = vmul.f32 %v3007, %v3009
      %v3011 = vadd.f32 %v3007, %v3010
      %vm3012 = vweird.f32 %v3007
      %v3013 = vsel %vm3012, %v3007, %v3011
      %v3014 = vmul.f32 %v3005, %v3013
      %v3015 = vperm.slane %v3014, 0
      %v3016 = vsub.f32 %v2651, %v3015
      %v3017 = vsub.f32 %v2652, %v3015
      %v3018 = vsub.f32 %v2653, %v3015
      %v3019 = vsub.f32 %v2654, %v3015
      %v3020 = vsub.f32 %v2655, %v3015
      %v3021 = vsub.f32 %v2656, %v3015
      %v3022 = vsub.f32 %v2657, %v3015
      %v3023 = vsub.f32 %v2658, %v3015
      %v3024 = vsub.f32 %v2659, %v3015
      %v3025 = vsub.f32 %v2660, %v3015
      %v3026 = vsub.f32 %v2661, %v3015
      %v3027 = vsub.f32 %v2662, %v3015
      %v3028 = vsub.f32 %v2663, %v3015
      %v3029 = vsub.f32 %v2664, %v3015
      %v3030 = vsub.f32 %v2665, %v3015
      %v3031 = vsub.f32 %v2666, %v3015
      %v3032 = vsub.f32 %v2667, %v3015
      %v3033 = vsub.f32 %v2668, %v3015
      %v3034 = vsub.f32 %v2669, %v3015
      %v3035 = vsub.f32 %v2670, %v3015
      %v3036 = vsub.f32 %v2671, %v3015
      %v3037 = vsub.f32 %v2672, %v3015
      %v3038 = vsub.f32 %v2673, %v3015
      %v3039 = vsub.f32 %v2674, %v3015
      %v3040 = vsub.f32 %v2675, %v3015
      %v3041 = vsub.f32 %v2676, %v3015
      %v3042 = vsub.f32 %v2677, %v3015
      %v3043 = vsub.f32 %v2678, %v3015
      %v3044 = vsub.f32 %v2679, %v3015
      %v3045 = vsub.f32 %v2680, %v3015
      %v3046 = vsub.f32 %v2681, %v3015
      %v3047 = vsub.f32 %v2682, %v3015
      %v3048 = vsub.f32 %v2683, %v3015
      %v3049 = vsub.f32 %v2684, %v3015
      %v3050 = vsub.f32 %v2685, %v3015
      %v3051 = vsub.f32 %v2686, %v3015
      %v3052 = vmul.f32 %v3016, %v3016
      %v3053 = vmul.f32 %v3017, %v3017
      %v3054 = vmul.f32 %v3018, %v3018
      %v3055 = vmul.f32 %v3019, %v3019
      %v3056 = vmul.f32 %v3020, %v3020
      %v3057 = vmul.f32 %v3021, %v3021
      %v3058 = vmul.f32 %v3022, %v3022
      %v3059 = vmul.f32 %v3023, %v3023
      %v3060 = vmul.f32 %v3024, %v3024
      %v3061 = vmul.f32 %v3025, %v3025
      %v3062 = vmul.f32 %v3026, %v3026
      %v3063 = vmul.f32 %v3027, %v3027
      %v3064 = vmul.f32 %v3028, %v3028
      %v3065 = vmul.f32 %v3029, %v3029
      %v3066 = vmul.f32 %v3030, %v3030
      %v3067 = vmul.f32 %v3031, %v3031
      %v3068 = vmul.f32 %v3032, %v3032
      %v3069 = vmul.f32 %v3033, %v3033
      %v3070 = vmul.f32 %v3034, %v3034
      %v3071 = vmul.f32 %v3035, %v3035
      %v3072 = vmul.f32 %v3036, %v3036
      %v3073 = vmul.f32 %v3037, %v3037
      %v3074 = vmul.f32 %v3038, %v3038
      %v3075 = vmul.f32 %v3039, %v3039
      %v3076 = vmul.f32 %v3040, %v3040
      %v3077 = vmul.f32 %v3041, %v3041
      %v3078 = vmul.f32 %v3042, %v3042
      %v3079 = vmul.f32 %v3043, %v3043
      %v3080 = vmul.f32 %v3044, %v3044
      %v3081 = vmul.f32 %v3045, %v3045
      %v3082 = vmul.f32 %v3046, %v3046
      %v3083 = vmul.f32 %v3047, %v3047
      %v3084 = vmul.f32 %v3048, %v3048
      %v3085 = vmul.f32 %v3049, %v3049
      %v3086 = vmul.f32 %v3050, %v3050
      %v3087 = vmul.f32 %v3051, %v3051
      %v3088 = vmul.f32 %v2694, %v3052
      %v3089 = vmul.f32 %v2699, %v3053
      %v3090 = vmul.f32 %v2704, %v3054
      %v3091 = vmul.f32 %v2709, %v3055
      %v3092 = vmul.f32 %v2714, %v3056
      %v3093 = vmul.f32 %v2719, %v3057
      %v3094 = vmul.f32 %v2724, %v3058
      %v3095 = vmul.f32 %v2729, %v3059
      %v3096 = vmul.f32 %v2734, %v3060
      %v3097 = vmul.f32 %v2739, %v3061
      %v3098 = vmul.f32 %v2744, %v3062
      %v3099 = vmul.f32 %v2749, %v3063
      %v3100 = vmul.f32 %v2754, %v3064
      %v3101 = vmul.f32 %v2759, %v3065
      %v3102 = vmul.f32 %v2764, %v3066
      %v3103 = vmul.f32 %v2769, %v3067
      %v3104 = vmul.f32 %v2774, %v3068
      %v3105 = vmul.f32 %v2779, %v3069
      %v3106 = vmul.f32 %v2784, %v3070
      %v3107 = vmul.f32 %v2789, %v3071
      %v3108 = vmul.f32 %v2794, %v3072
      %v3109 = vmul.f32 %v2799, %v3073
      %v3110 = vmul.f32 %v2804, %v3074
      %v3111 = vmul.f32 %v2809, %v3075
      %v3112 = vmul.f32 %v2814, %v3076
      %v3113 = vmul.f32 %v2819, %v3077
      %v3114 = vmul.f32 %v2824, %v3078
      %v3115 = vmul.f32 %v2829, %v3079
      %v3116 = vmul.f32 %v2834, %v3080
      %v3117 = vmul.f32 %v2839, %v3081
      %v3118 = vmul.f32 %v2844, %v3082
      %v3119 = vmul.f32 %v2849, %v3083
      %v3120 = vmul.f32 %v2854, %v3084
      %v3121 = vmul.f32 %v2859, %v3085
      %v3122 = vmul.f32 %v2864, %v3086
      %v3123 = vmul.f32 %v2869, %v3087
      %v3124 = vsel %vm570, %v3088, 0.0
      %v3125 = vsel %vm570, %v3089, 0.0
      %v3126 = vadd.f32 %v3124, %v3125
      %v3127 = vsel %vm570, %v3090, 0.0
      %v3128 = vadd.f32 %v3126, %v3127
      %v3129 = vsel %vm570, %v3091, 0.0
      %v3130 = vadd.f32 %v3128, %v3129
      %v3131 = vsel %vm570, %v3092, 0.0
      %v3132 = vadd.f32 %v3130, %v3131
      %v3133 = vsel %vm570, %v3093, 0.0
      %v3134 = vadd.f32 %v3132, %v3133
      %v3135 = vsel %vm570, %v3094, 0.0
      %v3136 = vadd.f32 %v3134, %v3135
      %v3137 = vsel %vm570, %v3095, 0.0
      %v3138 = vadd.f32 %v3136, %v3137
      %v3139 = vsel %vm570, %v3096, 0.0
      %v3140 = vadd.f32 %v3138, %v3139
      %v3141 = vsel %vm570, %v3097, 0.0
      %v3142 = vadd.f32 %v3140, %v3141
      %v3143 = vsel %vm570, %v3098, 0.0
      %v3144 = vadd.f32 %v3142, %v3143
      %v3145 = vsel %vm570, %v3099, 0.0
      %v3146 = vadd.f32 %v3144, %v3145
      %v3147 = vsel %vm570, %v3100, 0.0
      %v3148 = vadd.f32 %v3146, %v3147
      %v3149 = vsel %vm570, %v3101, 0.0
      %v3150 = vadd.f32 %v3148, %v3149
      %v3151 = vsel %vm570, %v3102, 0.0
      %v3152 = vadd.f32 %v3150, %v3151
      %v3153 = vsel %vm570, %v3103, 0.0
      %v3154 = vadd.f32 %v3152, %v3153
      %v3155 = vsel %vm570, %v3104, 0.0
      %v3156 = vadd.f32 %v3154, %v3155
      %v3157 = vsel %vm570, %v3105, 0.0
      %v3158 = vadd.f32 %v3156, %v3157
      %v3159 = vsel %vm570, %v3106, 0.0
      %v3160 = vadd.f32 %v3158, %v3159
      %v3161 = vsel %vm570, %v3107, 0.0
      %v3162 = vadd.f32 %v3160, %v3161
      %v3163 = vsel %vm570, %v3108, 0.0
      %v3164 = vadd.f32 %v3162, %v3163
      %v3165 = vsel %vm570, %v3109, 0.0
      %v3166 = vadd.f32 %v3164, %v3165
      %v3167 = vsel %vm570, %v3110, 0.0
      %v3168 = vadd.f32 %v3166, %v3167
      %v3169 = vsel %vm570, %v3111, 0.0
      %v3170 = vadd.f32 %v3168, %v3169
      %v3171 = vsel %vm570, %v3112, 0.0
      %v3172 = vadd.f32 %v3170, %v3171
      %v3173 = vsel %vm570, %v3113, 0.0
      %v3174 = vadd.f32 %v3172, %v3173
      %v3175 = vsel %vm570, %v3114, 0.0
      %v3176 = vadd.f32 %v3174, %v3175
      %v3177 = vsel %vm570, %v3115, 0.0
      %v3178 = vadd.f32 %v3176, %v3177
      %v3179 = vsel %vm570, %v3116, 0.0
      %v3180 = vadd.f32 %v3178, %v3179
      %v3181 = vsel %vm570, %v3117, 0.0
      %v3182 = vadd.f32 %v3180, %v3181
      %v3183 = vsel %vm570, %v3118, 0.0
      %v3184 = vadd.f32 %v3182, %v3183
      %v3185 = vsel %vm570, %v3119, 0.0
      %v3186 = vadd.f32 %v3184, %v3185
      %v3187 = vsel %vm570, %v3120, 0.0
      %v3188 = vadd.f32 %v3186, %v3187
      %v3189 = vsel %vm570, %v3121, 0.0
      %v3190 = vadd.f32 %v3188, %v3189
      %v3191 = vsel %vm570, %v3122, 0.0
      %v3192 = vadd.f32 %v3190, %v3191
      %v3193 = vsel %vm570, %v3123, 0.0
      %v3194 = vadd.f32 %v3192, %v3193
      %v3195 = vrot.slane %v3194, 4
      %v3196 = vadd.f32 %v3194, %v3195
      %v3197 = vrot.slane %v3196, 2
      %v3198 = vadd.f32 %v3196, %v3197
      %v3199 = vrot.slane %v3198, 1
      %v3200 = vadd.f32 %v3198, %v3199
      %v3202 = vsel %vm570, %v3200, 0
      %3204 = vmatpush.msra.mxu0 0.0
      %3205 = vmatpush.msra.mxu0 0.0
      %3206 = vmatpush.msra.mxu0 0.0
      %3207 = vmatpush.msra.mxu0 0.0
      %3208 = vmatpush.msra.mxu0 0.0
      %3209 = vmatpush.msra.mxu0 0.0
      %3210 = vmatpush.msra.mxu0 0.0
      %3211 = vmatpush.msra.mxu0 0.0
      %3212 = vmatpush.msra.mxu0 0.0
      %3213 = vmatpush.msra.mxu0 0.0
      %3214 = vmatpush.msra.mxu0 0.0
      %3215 = vmatpush.msra.mxu0 0.0
      %3216 = vmatpush.msra.mxu0 0.0
      %3217 = vmatpush.msra.mxu0 0.0
      %3218 = vmatpush.msra.mxu0 %v2688
      %3219 = vmatpush.msra.mxu0 %v2687
      %3220 = vmatmul.f32.gmra.mxu0 %v3202
      %v3221 = vpop.f32.mrf.mxu0
      %v3222 = vadd.f32 0.0, %v3221
      %3223 = vdwg.mxu0
      %v3224 = vmul.f32 %v3222, %v3013
      %v3225 = vadd.f32 %v3224, 1e-05
      %v3226 = vrsqrt.pop %v3225
      %v3227 = vmul.f32 %v3226, %v3225
      %v3228 = vmul.f32 %v3227, %v3226
      %v3229 = vmul.f32 0.5, %v3228
      %v3230 = vsub.f32 1.5, %v3229
      %v3231 = vmul.f32 %v3226, %v3230
      %vm3232 = vweird.f32 %v3225
      %vm3233 = vweird.f32 %v3226
      %vm3234 = vmor %vm3232, %vm3233
      %v3235 = vsel %vm3234, %v3226, %v3231
      %v3236 = vperm.slane %v3235, 0
      %v3237 = vmul.f32 %v3016, %v3236
      %v3238 = vmul.f32 %v3017, %v3236
      %v3239 = vmul.f32 %v3018, %v3236
      %v3240 = vmul.f32 %v3019, %v3236
      %v3241 = vmul.f32 %v3020, %v3236
      %v3242 = vmul.f32 %v3021, %v3236
      %v3243 = vmul.f32 %v3022, %v3236
      %v3244 = vmul.f32 %v3023, %v3236
      %v3245 = vmul.f32 %v3024, %v3236
      %v3246 = vmul.f32 %v3025, %v3236
      %v3247 = vmul.f32 %v3026, %v3236
      %v3248 = vmul.f32 %v3027, %v3236
      %v3249 = vmul.f32 %v3028, %v3236
      %v3250 = vmul.f32 %v3029, %v3236
      %v3251 = vmul.f32 %v3030, %v3236
      %v3252 = vmul.f32 %v3031, %v3236
      %v3253 = vmul.f32 %v3032, %v3236
      %v3254 = vmul.f32 %v3033, %v3236
      %v3255 = vmul.f32 %v3034, %v3236
      %v3256 = vmul.f32 %v3035, %v3236
      %v3257 = vmul.f32 %v3036, %v3236
      %v3258 = vmul.f32 %v3037, %v3236
      %v3259 = vmul.f32 %v3038, %v3236
      %v3260 = vmul.f32 %v3039, %v3236
      %v3261 = vmul.f32 %v3040, %v3236
      %v3262 = vmul.f32 %v3041, %v3236
      %v3263 = vmul.f32 %v3042, %v3236
      %v3264 = vmul.f32 %v3043, %v3236
      %v3265 = vmul.f32 %v3044, %v3236
      %v3266 = vmul.f32 %v3045, %v3236
      %v3267 = vmul.f32 %v3046, %v3236
      %v3268 = vmul.f32 %v3047, %v3236
      %v3269 = vmul.f32 %v3048, %v3236
      %v3270 = vmul.f32 %v3049, %v3236
      %v3271 = vmul.f32 %v3050, %v3236
      %v3272 = vmul.f32 %v3051, %v3236
      %v3274 = vperm.slane %v2689, 0
      %v3276 = vmul.f32 %v3237, %v3274
      %v3277 = vmul.f32 %v3238, %v3274
      %v3278 = vmul.f32 %v3239, %v3274
      %v3279 = vmul.f32 %v3240, %v3274
      %v3280 = vmul.f32 %v3241, %v3274
      %v3281 = vmul.f32 %v3242, %v3274
      %v3282 = vmul.f32 %v3243, %v3274
      %v3283 = vmul.f32 %v3244, %v3274
      %v3284 = vmul.f32 %v3245, %v3274
      %v3285 = vmul.f32 %v3246, %v3274
      %v3286 = vmul.f32 %v3247, %v3274
      %v3287 = vmul.f32 %v3248, %v3274
      %v3288 = vmul.f32 %v3249, %v3274
      %v3289 = vmul.f32 %v3250, %v3274
      %v3290 = vmul.f32 %v3251, %v3274
      %v3291 = vmul.f32 %v3252, %v3274
      %v3292 = vmul.f32 %v3253, %v3274
      %v3293 = vmul.f32 %v3254, %v3274
      %v3294 = vmul.f32 %v3255, %v3274
      %v3295 = vmul.f32 %v3256, %v3274
      %v3296 = vmul.f32 %v3257, %v3274
      %v3297 = vmul.f32 %v3258, %v3274
      %v3298 = vmul.f32 %v3259, %v3274
      %v3299 = vmul.f32 %v3260, %v3274
      %v3300 = vmul.f32 %v3261, %v3274
      %v3301 = vmul.f32 %v3262, %v3274
      %v3302 = vmul.f32 %v3263, %v3274
      %v3303 = vmul.f32 %v3264, %v3274
      %v3304 = vmul.f32 %v3265, %v3274
      %v3305 = vmul.f32 %v3266, %v3274
      %v3306 = vmul.f32 %v3267, %v3274
      %v3307 = vmul.f32 %v3268, %v3274
      %v3308 = vmul.f32 %v3269, %v3274
      %v3309 = vmul.f32 %v3270, %v3274
      %v3310 = vmul.f32 %v3271, %v3274
      %v3311 = vmul.f32 %v3272, %v3274
      %v3313 = vperm.slane %v2690, 0
      %v3315 = vadd.f32 %v3276, %v3313
      %v3316 = vadd.f32 %v3277, %v3313
      %v3317 = vadd.f32 %v3278, %v3313
      %v3318 = vadd.f32 %v3279, %v3313
      %v3319 = vadd.f32 %v3280, %v3313
      %v3320 = vadd.f32 %v3281, %v3313
      %v3321 = vadd.f32 %v3282, %v3313
      %v3322 = vadd.f32 %v3283, %v3313
      %v3323 = vadd.f32 %v3284, %v3313
      %v3324 = vadd.f32 %v3285, %v3313
      %v3325 = vadd.f32 %v3286, %v3313
      %v3326 = vadd.f32 %v3287, %v3313
      %v3327 = vadd.f32 %v3288, %v3313
      %v3328 = vadd.f32 %v3289, %v3313
      %v3329 = vadd.f32 %v3290, %v3313
      %v3330 = vadd.f32 %v3291, %v3313
      %v3331 = vadd.f32 %v3292, %v3313
      %v3332 = vadd.f32 %v3293, %v3313
      %v3333 = vadd.f32 %v3294, %v3313
      %v3334 = vadd.f32 %v3295, %v3313
      %v3335 = vadd.f32 %v3296, %v3313
      %v3336 = vadd.f32 %v3297, %v3313
      %v3337 = vadd.f32 %v3298, %v3313
      %v3338 = vadd.f32 %v3299, %v3313
      %v3339 = vadd.f32 %v3300, %v3313
      %v3340 = vadd.f32 %v3301, %v3313
      %v3341 = vadd.f32 %v3302, %v3313
      %v3342 = vadd.f32 %v3303, %v3313
      %v3343 = vadd.f32 %v3304, %v3313
      %v3344 = vadd.f32 %v3305, %v3313
      %v3345 = vadd.f32 %v3306, %v3313
      %v3346 = vadd.f32 %v3307, %v3313
      %v3347 = vadd.f32 %v3308, %v3313
      %v3348 = vadd.f32 %v3309, %v3313
      %v3349 = vadd.f32 %v3310, %v3313
      %v3350 = vadd.f32 %v3311, %v3313
      %vm3351 = vcmp.gt.f32.partialorder %v3315, 0.0
      %vm3352 = vcmp.gt.f32.partialorder %v3316, 0.0
      %vm3353 = vcmp.gt.f32.partialorder %v3317, 0.0
      %vm3354 = vcmp.gt.f32.partialorder %v3318, 0.0
      %vm3355 = vcmp.gt.f32.partialorder %v3319, 0.0
      %vm3356 = vcmp.gt.f32.partialorder %v3320, 0.0
      %vm3357 = vcmp.gt.f32.partialorder %v3321, 0.0
      %vm3358 = vcmp.gt.f32.partialorder %v3322, 0.0
      %vm3359 = vcmp.gt.f32.partialorder %v3323, 0.0
      %vm3360 = vcmp.gt.f32.partialorder %v3324, 0.0
      %vm3361 = vcmp.gt.f32.partialorder %v3325, 0.0
      %vm3362 = vcmp.gt.f32.partialorder %v3326, 0.0
      %vm3363 = vcmp.gt.f32.partialorder %v3327, 0.0
      %vm3364 = vcmp.gt.f32.partialorder %v3328, 0.0
      %vm3365 = vcmp.gt.f32.partialorder %v3329, 0.0
      %vm3366 = vcmp.gt.f32.partialorder %v3330, 0.0
      %vm3367 = vcmp.gt.f32.partialorder %v3331, 0.0
      %vm3368 = vcmp.gt.f32.partialorder %v3332, 0.0
      %vm3369 = vcmp.gt.f32.partialorder %v3333, 0.0
      %vm3370 = vcmp.gt.f32.partialorder %v3334, 0.0
      %vm3371 = vcmp.gt.f32.partialorder %v3335, 0.0
      %vm3372 = vcmp.gt.f32.partialorder %v3336, 0.0
      %vm3373 = vcmp.gt.f32.partialorder %v3337, 0.0
      %vm3374 = vcmp.gt.f32.partialorder %v3338, 0.0
      %vm3375 = vcmp.gt.f32.partialorder %v3339, 0.0
      %vm3376 = vcmp.gt.f32.partialorder %v3340, 0.0
      %vm3377 = vcmp.gt.f32.partialorder %v3341, 0.0
      %vm3378 = vcmp.gt.f32.partialorder %v3342, 0.0
      %vm3379 = vcmp.gt.f32.partialorder %v3343, 0.0
      %vm3380 = vcmp.gt.f32.partialorder %v3344, 0.0
      %vm3381 = vcmp.gt.f32.partialorder %v3345, 0.0
      %vm3382 = vcmp.gt.f32.partialorder %v3346, 0.0
      %vm3383 = vcmp.gt.f32.partialorder %v3347, 0.0
      %vm3384 = vcmp.gt.f32.partialorder %v3348, 0.0
      %vm3385 = vcmp.gt.f32.partialorder %v3349, 0.0
      %vm3386 = vcmp.gt.f32.partialorder %v3350, 0.0
      %v3387 = vmin.f32 %v3315, 0.0
      %v3388 = vmin.f32 %v3316, 0.0
      %v3389 = vmin.f32 %v3317, 0.0
      %v3390 = vmin.f32 %v3318, 0.0
      %v3391 = vmin.f32 %v3319, 0.0
      %v3392 = vmin.f32 %v3320, 0.0
      %v3393 = vmin.f32 %v3321, 0.0
      %v3394 = vmin.f32 %v3322, 0.0
      %v3395 = vmin.f32 %v3323, 0.0
      %v3396 = vmin.f32 %v3324, 0.0
      %v3397 = vmin.f32 %v3325, 0.0
      %v3398 = vmin.f32 %v3326, 0.0
      %v3399 = vmin.f32 %v3327, 0.0
      %v3400 = vmin.f32 %v3328, 0.0
      %v3401 = vmin.f32 %v3329, 0.0
      %v3402 = vmin.f32 %v3330, 0.0
      %v3403 = vmin.f32 %v3331, 0.0
      %v3404 = vmin.f32 %v3332, 0.0
      %v3405 = vmin.f32 %v3333, 0.0
      %v3406 = vmin.f32 %v3334, 0.0
      %v3407 = vmin.f32 %v3335, 0.0
      %v3408 = vmin.f32 %v3336, 0.0
      %v3409 = vmin.f32 %v3337, 0.0
      %v3410 = vmin.f32 %v3338, 0.0
      %v3411 = vmin.f32 %v3339, 0.0
      %v3412 = vmin.f32 %v3340, 0.0
      %v3413 = vmin.f32 %v3341, 0.0
      %v3414 = vmin.f32 %v3342, 0.0
      %v3415 = vmin.f32 %v3343, 0.0
      %v3416 = vmin.f32 %v3344, 0.0
      %v3417 = vmin.f32 %v3345, 0.0
      %v3418 = vmin.f32 %v3346, 0.0
      %v3419 = vmin.f32 %v3347, 0.0
      %v3420 = vmin.f32 %v3348, 0.0
      %v3421 = vmin.f32 %v3349, 0.0
      %v3422 = vmin.f32 %v3350, 0.0
      %v3423 = vmul.f32 %v3387, 1.442695
      %v3424 = vpow.pop %v3423
      %v3425 = vmul.f32 %v3388, 1.442695
      %v3426 = vpow.pop %v3425
      %v3427 = vmul.f32 %v3389, 1.442695
      %v3428 = vpow.pop %v3427
      %v3429 = vmul.f32 %v3390, 1.442695
      %v3430 = vpow.pop %v3429
      %v3431 = vmul.f32 %v3391, 1.442695
      %v3432 = vpow.pop %v3431
      %v3433 = vmul.f32 %v3392, 1.442695
      %v3434 = vpow.pop %v3433
      %v3435 = vmul.f32 %v3393, 1.442695
      %v3436 = vpow.pop %v3435
      %v3437 = vmul.f32 %v3394, 1.442695
      %v3438 = vpow.pop %v3437
      %v3439 = vmul.f32 %v3395, 1.442695
      %v3440 = vpow.pop %v3439
      %v3441 = vmul.f32 %v3396, 1.442695
      %v3442 = vpow.pop %v3441
      %v3443 = vmul.f32 %v3397, 1.442695
      %v3444 = vpow.pop %v3443
      %v3445 = vmul.f32 %v3398, 1.442695
      %v3446 = vpow.pop %v3445
      %v3447 = vmul.f32 %v3399, 1.442695
      %v3448 = vpow.pop %v3447
      %v3449 = vmul.f32 %v3400, 1.442695
      %v3450 = vpow.pop %v3449
      %v3451 = vmul.f32 %v3401, 1.442695
      %v3452 = vpow.pop %v3451
      %v3453 = vmul.f32 %v3402, 1.442695
      %v3454 = vpow.pop %v3453
      %v3455 = vmul.f32 %v3403, 1.442695
      %v3456 = vpow.pop %v3455
      %v3457 = vmul.f32 %v3404, 1.442695
      %v3458 = vpow.pop %v3457
      %v3459 = vmul.f32 %v3405, 1.442695
      %v3460 = vpow.pop %v3459
      %v3461 = vmul.f32 %v3406, 1.442695
      %v3462 = vpow.pop %v3461
      %v3463 = vmul.f32 %v3407, 1.442695
      %v3464 = vpow.pop %v3463
      %v3465 = vmul.f32 %v3408, 1.442695
      %v3466 = vpow.pop %v3465
      %v3467 = vmul.f32 %v3409, 1.442695
      %v3468 = vpow.pop %v3467
      %v3469 = vmul.f32 %v3410, 1.442695
      %v3470 = vpow.pop %v3469
      %v3471 = vmul.f32 %v3411, 1.442695
      %v3472 = vpow.pop %v3471
      %v3473 = vmul.f32 %v3412, 1.442695
      %v3474 = vpow.pop %v3473
      %v3475 = vmul.f32 %v3413, 1.442695
      %v3476 = vpow.pop %v3475
      %v3477 = vmul.f32 %v3414, 1.442695
      %v3478 = vpow.pop %v3477
      %v3479 = vmul.f32 %v3415, 1.442695
      %v3480 = vpow.pop %v3479
      %v3481 = vmul.f32 %v3416, 1.442695
      %v3482 = vpow.pop %v3481
      %v3483 = vmul.f32 %v3417, 1.442695
      %v3484 = vpow.pop %v3483
      %v3485 = vmul.f32 %v3418, 1.442695
      %v3486 = vpow.pop %v3485
      %v3487 = vmul.f32 %v3419, 1.442695
      %v3488 = vpow.pop %v3487
      %v3489 = vmul.f32 %v3420, 1.442695
      %v3490 = vpow.pop %v3489
      %v3491 = vmul.f32 %v3421, 1.442695
      %v3492 = vpow.pop %v3491
      %v3493 = vmul.f32 %v3422, 1.442695
      %v3494 = vpow.pop %v3493
      %v3495 = vsub.f32 %v3424, 1.0
      %v3496 = vsub.f32 %v3426, 1.0
      %v3497 = vsub.f32 %v3428, 1.0
      %v3498 = vsub.f32 %v3430, 1.0
      %v3499 = vsub.f32 %v3432, 1.0
      %v3500 = vsub.f32 %v3434, 1.0
      %v3501 = vsub.f32 %v3436, 1.0
      %v3502 = vsub.f32 %v3438, 1.0
      %v3503 = vsub.f32 %v3440, 1.0
      %v3504 = vsub.f32 %v3442, 1.0
      %v3505 = vsub.f32 %v3444, 1.0
      %v3506 = vsub.f32 %v3446, 1.0
      %v3507 = vsub.f32 %v3448, 1.0
      %v3508 = vsub.f32 %v3450, 1.0
      %v3509 = vsub.f32 %v3452, 1.0
      %v3510 = vsub.f32 %v3454, 1.0
      %v3511 = vsub.f32 %v3456, 1.0
      %v3512 = vsub.f32 %v3458, 1.0
      %v3513 = vsub.f32 %v3460, 1.0
      %v3514 = vsub.f32 %v3462, 1.0
      %v3515 = vsub.f32 %v3464, 1.0
      %v3516 = vsub.f32 %v3466, 1.0
      %v3517 = vsub.f32 %v3468, 1.0
      %v3518 = vsub.f32 %v3470, 1.0
      %v3519 = vsub.f32 %v3472, 1.0
      %v3520 = vsub.f32 %v3474, 1.0
      %v3521 = vsub.f32 %v3476, 1.0
      %v3522 = vsub.f32 %v3478, 1.0
      %v3523 = vsub.f32 %v3480, 1.0
      %v3524 = vsub.f32 %v3482, 1.0
      %v3525 = vsub.f32 %v3484, 1.0
      %v3526 = vsub.f32 %v3486, 1.0
      %v3527 = vsub.f32 %v3488, 1.0
      %v3528 = vsub.f32 %v3490, 1.0
      %v3529 = vsub.f32 %v3492, 1.0
      %v3530 = vsub.f32 %v3494, 1.0
      %v3531 = vsel %vm3351, %v3315, %v3495
      %v3532 = vsel %vm3352, %v3316, %v3496
      %v3533 = vsel %vm3353, %v3317, %v3497
      %v3534 = vsel %vm3354, %v3318, %v3498
      %v3535 = vsel %vm3355, %v3319, %v3499
      %v3536 = vsel %vm3356, %v3320, %v3500
      %v3537 = vsel %vm3357, %v3321, %v3501
      %v3538 = vsel %vm3358, %v3322, %v3502
      %v3539 = vsel %vm3359, %v3323, %v3503
      %v3540 = vsel %vm3360, %v3324, %v3504
      %v3541 = vsel %vm3361, %v3325, %v3505
      %v3542 = vsel %vm3362, %v3326, %v3506
      %v3543 = vsel %vm3363, %v3327, %v3507
      %v3544 = vsel %vm3364, %v3328, %v3508
      %v3545 = vsel %vm3365, %v3329, %v3509
      %v3546 = vsel %vm3366, %v3330, %v3510
      %v3547 = vsel %vm3367, %v3331, %v3511
      %v3548 = vsel %vm3368, %v3332, %v3512
      %v3549 = vsel %vm3369, %v3333, %v3513
      %v3550 = vsel %vm3370, %v3334, %v3514
      %v3551 = vsel %vm3371, %v3335, %v3515
      %v3552 = vsel %vm3372, %v3336, %v3516
      %v3553 = vsel %vm3373, %v3337, %v3517
      %v3554 = vsel %vm3374, %v3338, %v3518
      %v3555 = vsel %vm3375, %v3339, %v3519
      %v3556 = vsel %vm3376, %v3340, %v3520
      %v3557 = vsel %vm3377, %v3341, %v3521
      %v3558 = vsel %vm3378, %v3342, %v3522
      %v3559 = vsel %vm3379, %v3343, %v3523
      %v3560 = vsel %vm3380, %v3344, %v3524
      %v3561 = vsel %vm3381, %v3345, %v3525
      %v3562 = vsel %vm3382, %v3346, %v3526
      %v3563 = vsel %vm3383, %v3347, %v3527
      %v3564 = vsel %vm3384, %v3348, %v3528
      %v3565 = vsel %vm3385, %v3349, %v3529
      %v3566 = vsel %vm3386, %v3350, %v3530
      %v3567 = vmul.f32 %v3531, %v2694
      %v3568 = vmul.f32 %v3532, %v2699
      %v3569 = vmul.f32 %v3533, %v2704
      %v3570 = vmul.f32 %v3534, %v2709
      %v3571 = vmul.f32 %v3535, %v2714
      %v3572 = vmul.f32 %v3536, %v2719
      %v3573 = vmul.f32 %v3537, %v2724
      %v3574 = vmul.f32 %v3538, %v2729
      %v3575 = vmul.f32 %v3539, %v2734
      %v3576 = vmul.f32 %v3540, %v2739
      %v3577 = vmul.f32 %v3541, %v2744
      %v3578 = vmul.f32 %v3542, %v2749
      %v3579 = vmul.f32 %v3543, %v2754
      %v3580 = vmul.f32 %v3544, %v2759
      %v3581 = vmul.f32 %v3545, %v2764
      %v3582 = vmul.f32 %v3546, %v2769
      %v3583 = vmul.f32 %v3547, %v2774
      %v3584 = vmul.f32 %v3548, %v2779
      %v3585 = vmul.f32 %v3549, %v2784
      %v3586 = vmul.f32 %v3550, %v2789
      %v3587 = vmul.f32 %v3551, %v2794
      %v3588 = vmul.f32 %v3552, %v2799
      %v3589 = vmul.f32 %v3553, %v2804
      %v3590 = vmul.f32 %v3554, %v2809
      %v3591 = vmul.f32 %v3555, %v2814
      %v3592 = vmul.f32 %v3556, %v2819
      %v3593 = vmul.f32 %v3557, %v2824
      %v3594 = vmul.f32 %v3558, %v2829
      %v3595 = vmul.f32 %v3559, %v2834
      %v3596 = vmul.f32 %v3560, %v2839
      %v3597 = vmul.f32 %v3561, %v2844
      %v3598 = vmul.f32 %v3562, %v2849
      %v3599 = vmul.f32 %v3563, %v2854
      %v3600 = vmul.f32 %v3564, %v2859
      %v3601 = vmul.f32 %v3565, %v2864
      %v3602 = vmul.f32 %v3566, %v2869
      %3603 = vst.msk [vmem:[#allocation2] sm:$0xff] %vm570, 0.0
      %3604 = vst.msk [vmem:[#allocation2 + $0x8] sm:$0xff] %vm570, 0.0
      %3605 = vst.msk [vmem:[#allocation2 + $0x10] sm:$0xff] %vm570, 0.0
      %3606 = vst.msk [vmem:[#allocation2 + $0x18] sm:$0xff] %vm570, 0.0
      %3607 = vst.msk [vmem:[#allocation2 + $0x20] sm:$0xff] %vm570, 0.0
      %3608 = vst.msk [vmem:[#allocation2 + $0x28] sm:$0xff] %vm570, 0.0
      %3609 = vst.msk [vmem:[#allocation2 + $0x30] sm:$0xff] %vm570, 0.0
      %3610 = vst.msk [vmem:[#allocation2 + $0x38] sm:$0xff] %vm570, 0.0
      %3611 = vst.msk [vmem:[#allocation2 + $0x40] sm:$0xff] %vm570, 0.0
      %3612 = vst.msk [vmem:[#allocation2 + $0x48] sm:$0xff] %vm570, 0.0
      %3613 = vst.msk [vmem:[#allocation2 + $0x50] sm:$0xff] %vm570, 0.0
      %3614 = vst.msk [vmem:[#allocation2 + $0x58] sm:$0xff] %vm570, 0.0
      %3615 = vst.msk [vmem:[#allocation2 + $0x60] sm:$0xff] %vm570, 0.0
      %3616 = vst.msk [vmem:[#allocation2 + $0x68] sm:$0xff] %vm570, 0.0
      %3617 = vst.msk [vmem:[#allocation2 + $0x70] sm:$0xff] %vm570, 0.0
      %3618 = vst.msk [vmem:[#allocation2 + $0x78] sm:$0xff] %vm570, 0.0
      %3619 = vst.msk [vmem:[#allocation2 + $0x80] sm:$0xff] %vm570, 0.0
      %3620 = vst.msk [vmem:[#allocation2 + $0x88] sm:$0xff] %vm570, 0.0
      %3621 = vst.msk [vmem:[#allocation2 + $0x90] sm:$0xff] %vm570, 0.0
      %3622 = vst.msk [vmem:[#allocation2 + $0x98] sm:$0xff] %vm570, 0.0
      %3623 = vst.msk [vmem:[#allocation2 + $0xa0] sm:$0xff] %vm570, 0.0
      %3624 = vst.msk [vmem:[#allocation2 + $0xa8] sm:$0xff] %vm570, 0.0
      %3625 = vst.msk [vmem:[#allocation2 + $0xb0] sm:$0xff] %vm570, 0.0
      %3626 = vst.msk [vmem:[#allocation2 + $0xb8] sm:$0xff] %vm570, 0.0
      %3627 = vst.msk [vmem:[#allocation2 + $0xc0] sm:$0xff] %vm570, 0.0
      %3628 = vst.msk [vmem:[#allocation2 + $0xc8] sm:$0xff] %vm570, 0.0
      %3629 = vst.msk [vmem:[#allocation2 + $0xd0] sm:$0xff] %vm570, 0.0
      %3630 = vst.msk [vmem:[#allocation2 + $0xd8] sm:$0xff] %vm570, 0.0
      %3631 = vst.msk [vmem:[#allocation2 + $0xe0] sm:$0xff] %vm570, 0.0
      %3632 = vst.msk [vmem:[#allocation2 + $0xe8] sm:$0xff] %vm570, 0.0
      %3633 = vst.msk [vmem:[#allocation2 + $0xf0] sm:$0xff] %vm570, 0.0
      %3634 = vst.msk [vmem:[#allocation2 + $0xf8] sm:$0xff] %vm570, 0.0
      %3635 = vst.msk [vmem:[#allocation2 + $0x100] sm:$0xff] %vm570, 0.0
      %3636 = vst.msk [vmem:[#allocation2 + $0x108] sm:$0xff] %vm570, 0.0
      %3637 = vst.msk [vmem:[#allocation2 + $0x110] sm:$0xff] %vm570, 0.0
      %3638 = vst.msk [vmem:[#allocation2 + $0x118] sm:$0xff] %vm570, 0.0
      %3639 = vst.msk [vmem:[#allocation2 + $0x120] sm:$0xff] %vm570, 0.0
      %3640 = vst.msk [vmem:[#allocation2 + $0x128] sm:$0xff] %vm570, 0.0
      %3641 = vst.msk [vmem:[#allocation2 + $0x130] sm:$0xff] %vm570, 0.0
      %3642 = vst.msk [vmem:[#allocation2 + $0x138] sm:$0xff] %vm570, 0.0
      %3643 = vst.msk [vmem:[#allocation2 + $0x140] sm:$0xff] %vm570, 0.0
      %3644 = vst.msk [vmem:[#allocation2 + $0x148] sm:$0xff] %vm570, 0.0
      %vm3645 = vcmask 128000
      %3646 = vst.msk [vmem:[#allocation2 + $0x150] sm:$0x3f] %vm3645, 0.0
      %3647 = vst.msk [vmem:[#allocation2 + $0x13] sm:$0xff] %vm570, %v3567
      %3648 = vst.msk [vmem:[#allocation2 + $0x1b] sm:$0xff] %vm570, %v3568
      %3649 = vst.msk [vmem:[#allocation2 + $0x23] sm:$0xff] %vm570, %v3569
      %3650 = vst.msk [vmem:[#allocation2 + $0x2b] sm:$0xff] %vm570, %v3570
      %3651 = vst.msk [vmem:[#allocation2 + $0x33] sm:$0xff] %vm570, %v3571
      %3652 = vst.msk [vmem:[#allocation2 + $0x3b] sm:$0xff] %vm570, %v3572
      %3653 = vst.msk [vmem:[#allocation2 + $0x43] sm:$0xff] %vm570, %v3573
      %3654 = vst.msk [vmem:[#allocation2 + $0x4b] sm:$0xff] %vm570, %v3574
      %3655 = vst.msk [vmem:[#allocation2 + $0x53] sm:$0xff] %vm570, %v3575
      %3656 = vst.msk [vmem:[#allocation2 + $0x5b] sm:$0xff] %vm570, %v3576
      %3657 = vst.msk [vmem:[#allocation2 + $0x63] sm:$0xff] %vm570, %v3577
      %3658 = vst.msk [vmem:[#allocation2 + $0x6b] sm:$0xff] %vm570, %v3578
      %3659 = vst.msk [vmem:[#allocation2 + $0x73] sm:$0xff] %vm570, %v3579
      %3660 = vst.msk [vmem:[#allocation2 + $0x7b] sm:$0xff] %vm570, %v3580
      %3661 = vst.msk [vmem:[#allocation2 + $0x83] sm:$0xff] %vm570, %v3581
      %3662 = vst.msk [vmem:[#allocation2 + $0x8b] sm:$0xff] %vm570, %v3582
      %3663 = vst.msk [vmem:[#allocation2 + $0x93] sm:$0xff] %vm570, %v3583
      %3664 = vst.msk [vmem:[#allocation2 + $0x9b] sm:$0xff] %vm570, %v3584
      %3665 = vst.msk [vmem:[#allocation2 + $0xa3] sm:$0xff] %vm570, %v3585
      %3666 = vst.msk [vmem:[#allocation2 + $0xab] sm:$0xff] %vm570, %v3586
      %3667 = vst.msk [vmem:[#allocation2 + $0xb3] sm:$0xff] %vm570, %v3587
      %3668 = vst.msk [vmem:[#allocation2 + $0xbb] sm:$0xff] %vm570, %v3588
      %3669 = vst.msk [vmem:[#allocation2 + $0xc3] sm:$0xff] %vm570, %v3589
      %3670 = vst.msk [vmem:[#allocation2 + $0xcb] sm:$0xff] %vm570, %v3590
      %3671 = vst.msk [vmem:[#allocation2 + $0xd3] sm:$0xff] %vm570, %v3591
      %3672 = vst.msk [vmem:[#allocation2 + $0xdb] sm:$0xff] %vm570, %v3592
      %3673 = vst.msk [vmem:[#allocation2 + $0xe3] sm:$0xff] %vm570, %v3593
      %3674 = vst.msk [vmem:[#allocation2 + $0xeb] sm:$0xff] %vm570, %v3594
      %3675 = vst.msk [vmem:[#allocation2 + $0xf3] sm:$0xff] %vm570, %v3595
      %3676 = vst.msk [vmem:[#allocation2 + $0xfb] sm:$0xff] %vm570, %v3596
      %3677 = vst.msk [vmem:[#allocation2 + $0x103] sm:$0xff] %vm570, %v3597
      %3678 = vst.msk [vmem:[#allocation2 + $0x10b] sm:$0xff] %vm570, %v3598
      %3679 = vst.msk [vmem:[#allocation2 + $0x113] sm:$0xff] %vm570, %v3599
      %3680 = vst.msk [vmem:[#allocation2 + $0x11b] sm:$0xff] %vm570, %v3600
      %3681 = vst.msk [vmem:[#allocation2 + $0x123] sm:$0xff] %vm570, %v3601
      %3682 = vst.msk [vmem:[#allocation2 + $0x12b] sm:$0xff] %vm570, %v3602
      %v3683 = vld [vmem:[#allocation2] sm:$0xff]
      %v3684 = vld [vmem:[#allocation2 + $0x8] sm:$0xff]
      %v3685 = vld [vmem:[#allocation2 + $0x10] sm:$0xff]
      %v3686 = vld [vmem:[#allocation2 + $0x18] sm:$0xff]
      %v3687 = vld [vmem:[#allocation2 + $0x20] sm:$0xff]
      %v3688 = vld [vmem:[#allocation2 + $0x28] sm:$0xff]
      %v3689 = vld [vmem:[#allocation2 + $0x30] sm:$0xff]
      %v3690 = vld [vmem:[#allocation2 + $0x38] sm:$0xff]
      %v3691 = vld [vmem:[#allocation2 + $0x40] sm:$0xff]
      %v3692 = vld [vmem:[#allocation2 + $0x48] sm:$0xff]
      %v3693 = vld [vmem:[#allocation2 + $0x50] sm:$0xff]
      %v3694 = vld [vmem:[#allocation2 + $0x58] sm:$0xff]
      %v3695 = vld [vmem:[#allocation2 + $0x60] sm:$0xff]
      %v3696 = vld [vmem:[#allocation2 + $0x68] sm:$0xff]
      %v3697 = vld [vmem:[#allocation2 + $0x70] sm:$0xff]
      %v3698 = vld [vmem:[#allocation2 + $0x78] sm:$0xff]
      %v3699 = vld [vmem:[#allocation2 + $0x80] sm:$0xff]
      %v3700 = vld [vmem:[#allocation2 + $0x88] sm:$0xff]
      %v3701 = vld [vmem:[#allocation2 + $0x90] sm:$0xff]
      %v3702 = vld [vmem:[#allocation2 + $0x98] sm:$0xff]
      %v3703 = vld [vmem:[#allocation2 + $0xa0] sm:$0xff]
      %v3704 = vld [vmem:[#allocation2 + $0xa8] sm:$0xff]
      %v3705 = vld [vmem:[#allocation2 + $0xb0] sm:$0xff]
      %v3706 = vld [vmem:[#allocation2 + $0xb8] sm:$0xff]
      %v3707 = vld [vmem:[#allocation2 + $0xc0] sm:$0xff]
      %v3708 = vld [vmem:[#allocation2 + $0xc8] sm:$0xff]
      %v3709 = vld [vmem:[#allocation2 + $0xd0] sm:$0xff]
      %v3710 = vld [vmem:[#allocation2 + $0xd8] sm:$0xff]
      %v3711 = vld [vmem:[#allocation2 + $0xe0] sm:$0xff]
      %v3712 = vld [vmem:[#allocation2 + $0xe8] sm:$0xff]
      %v3713 = vld [vmem:[#allocation2 + $0xf0] sm:$0xff]
      %v3714 = vld [vmem:[#allocation2 + $0xf8] sm:$0xff]
      %v3715 = vld [vmem:[#allocation2 + $0x100] sm:$0xff]
      %v3716 = vld [vmem:[#allocation2 + $0x108] sm:$0xff]
      %v3717 = vld [vmem:[#allocation2 + $0x110] sm:$0xff]
      %v3718 = vld [vmem:[#allocation2 + $0x118] sm:$0xff]
      %v3719 = vpack.c.bf16 %v3684, %v3683
      %v3720 = vpack.c.bf16 %v3686, %v3685
      %v3721 = vpack.c.bf16 %v3688, %v3687
      %v3722 = vpack.c.bf16 %v3690, %v3689
      %v3723 = vpack.c.bf16 %v3692, %v3691
      %v3724 = vpack.c.bf16 %v3694, %v3693
      %v3725 = vpack.c.bf16 %v3696, %v3695
      %v3726 = vpack.c.bf16 %v3698, %v3697
      %v3727 = vpack.c.bf16 %v3700, %v3699
      %v3728 = vpack.c.bf16 %v3702, %v3701
      %v3729 = vpack.c.bf16 %v3704, %v3703
      %v3730 = vpack.c.bf16 %v3706, %v3705
      %v3731 = vpack.c.bf16 %v3708, %v3707
      %v3732 = vpack.c.bf16 %v3710, %v3709
      %v3733 = vpack.c.bf16 %v3712, %v3711
      %v3734 = vpack.c.bf16 %v3714, %v3713
      %v3735 = vpack.c.bf16 %v3716, %v3715
      %v3736 = vpack.c.bf16 %v3718, %v3717
      %v3737 = vld [vmem:[%s2] sm:$0xf]
      %v3738 = vld [vmem:[%s2 + $0x4] sm:$0xf]
      %v3739 = vld [vmem:[#allocation2 + $0x1] sm:$0xff]
      %v3740 = vld [vmem:[#allocation2 + $0x9] sm:$0xff]
      %v3741 = vld [vmem:[#allocation2 + $0x11] sm:$0xff]
      %v3742 = vld [vmem:[#allocation2 + $0x19] sm:$0xff]
      %v3743 = vld [vmem:[#allocation2 + $0x21] sm:$0xff]
      %v3744 = vld [vmem:[#allocation2 + $0x29] sm:$0xff]
      %v3745 = vld [vmem:[#allocation2 + $0x31] sm:$0xff]
      %v3746 = vld [vmem:[#allocation2 + $0x39] sm:$0xff]
      %v3747 = vld [vmem:[#allocation2 + $0x41] sm:$0xff]
      %v3748 = vld [vmem:[#allocation2 + $0x49] sm:$0xff]
      %v3749 = vld [vmem:[#allocation2 + $0x51] sm:$0xff]
      %v3750 = vld [vmem:[#allocation2 + $0x59] sm:$0xff]
      %v3751 = vld [vmem:[#allocation2 + $0x61] sm:$0xff]
      %v3752 = vld [vmem:[#allocation2 + $0x69] sm:$0xff]
      %v3753 = vld [vmem:[#allocation2 + $0x71] sm:$0xff]
      %v3754 = vld [vmem:[#allocation2 + $0x79] sm:$0xff]
      %v3755 = vld [vmem:[#allocation2 + $0x81] sm:$0xff]
      %v3756 = vld [vmem:[#allocation2 + $0x89] sm:$0xff]
      %v3757 = vld [vmem:[#allocation2 + $0x91] sm:$0xff]
      %v3758 = vld [vmem:[#allocation2 + $0x99] sm:$0xff]
      %v3759 = vld [vmem:[#allocation2 + $0xa1] sm:$0xff]
      %v3760 = vld [vmem:[#allocation2 + $0xa9] sm:$0xff]
      %v3761 = vld [vmem:[#allocation2 + $0xb1] sm:$0xff]
      %v3762 = vld [vmem:[#allocation2 + $0xb9] sm:$0xff]
      %v3763 = vld [vmem:[#allocation2 + $0xc1] sm:$0xff]
      %v3764 = vld [vmem:[#allocation2 + $0xc9] sm:$0xff]
      %v3765 = vld [vmem:[#allocation2 + $0xd1] sm:$0xff]
      %v3766 = vld [vmem:[#allocation2 + $0xd9] sm:$0xff]
      %v3767 = vld [vmem:[#allocation2 + $0xe1] sm:$0xff]
      %v3768 = vld [vmem:[#allocation2 + $0xe9] sm:$0xff]
      %v3769 = vld [vmem:[#allocation2 + $0xf1] sm:$0xff]
      %v3770 = vld [vmem:[#allocation2 + $0xf9] sm:$0xff]
      %v3771 = vld [vmem:[#allocation2 + $0x101] sm:$0xff]
      %v3772 = vld [vmem:[#allocation2 + $0x109] sm:$0xff]
      %v3773 = vld [vmem:[#allocation2 + $0x111] sm:$0xff]
      %v3774 = vld [vmem:[#allocation2 + $0x119] sm:$0xff]
      %v3775 = vpack.c.bf16 %v3740, %v3739
      %v3776 = vpack.c.bf16 %v3742, %v3741
      %v3777 = vpack.c.bf16 %v3744, %v3743
      %v3778 = vpack.c.bf16 %v3746, %v3745
      %v3779 = vpack.c.bf16 %v3748, %v3747
      %v3780 = vpack.c.bf16 %v3750, %v3749
      %v3781 = vpack.c.bf16 %v3752, %v3751
      %v3782 = vpack.c.bf16 %v3754, %v3753
      %v3783 = vpack.c.bf16 %v3756, %v3755
      %v3784 = vpack.c.bf16 %v3758, %v3757
      %v3785 = vpack.c.bf16 %v3760, %v3759
      %v3786 = vpack.c.bf16 %v3762, %v3761
      %v3787 = vpack.c.bf16 %v3764, %v3763
      %v3788 = vpack.c.bf16 %v3766, %v3765
      %v3789 = vpack.c.bf16 %v3768, %v3767
      %v3790 = vpack.c.bf16 %v3770, %v3769
      %v3791 = vpack.c.bf16 %v3772, %v3771
      %v3792 = vpack.c.bf16 %v3774, %v3773
      %s3793 = scalar_lea.vmem %s2, 8
      %v3794 = vld [vmem:[%s3793] sm:$0xf]
      %v3795 = vld [vmem:[%s3793 + $0x4] sm:$0xf]
      %v3798 = vunpack.c.l.b16 %v3794
      %v3799 = vunpack.c.l.b16 %v3795
      %v3800 = vpack.c.b16 %v3799, %v3798
      %v3803 = vsel %vm570, %v3775, 0
      %v3806 = vsel %vm570, %v3776, 0
      %v3809 = vsel %vm570, %v3777, 0
      %v3812 = vsel %vm570, %v3778, 0
      %v3815 = vsel %vm570, %v3779, 0
      %v3818 = vsel %vm570, %v3780, 0
      %v3821 = vsel %vm570, %v3781, 0
      %v3824 = vsel %vm570, %v3782, 0
      %v3827 = vsel %vm570, %v3783, 0
      %v3830 = vsel %vm570, %v3784, 0
      %v3833 = vsel %vm570, %v3785, 0
      %v3836 = vsel %vm570, %v3786, 0
      %v3839 = vsel %vm570, %v3787, 0
      %v3842 = vsel %vm570, %v3788, 0
      %v3845 = vsel %vm570, %v3789, 0
      %v3848 = vsel %vm570, %v3790, 0
      %v3851 = vsel %vm570, %v3791, 0
      %v3854 = vsel %vm570, %v3792, 0
      %3856 = vmatpush.bf16.msra.mxu0 0
      %3857 = vmatpush.bf16.msra.mxu0 0
      %3858 = vmatpush.bf16.msra.mxu0 0
      %3859 = vmatpush.bf16.msra.mxu0 0
      %3860 = vmatpush.bf16.msra.mxu0 0
      %3861 = vmatpush.bf16.msra.mxu0 0
      %3862 = vmatpush.bf16.msra.mxu0 0
      %3863 = vmatpush.bf16.msra.mxu0 %v3800
      %3864 = vmatmul.bf16.gmra.mxu0 %v3803
      %v3865 = vpop.f32.mrf.mxu0
      %v3866 = vadd.f32 0.0, %v3865
      %v3867 = vpop.f32.mrf.mxu0
      %v3868 = vadd.f32 0.0, %v3867
      %3869 = vmatmul.bf16.gmra.mxu0 %v3806
      %v3870 = vpop.f32.mrf.mxu0
      %v3871 = vadd.f32 0.0, %v3870
      %v3872 = vpop.f32.mrf.mxu0
      %v3873 = vadd.f32 0.0, %v3872
      %3874 = vmatmul.bf16.gmra.mxu0 %v3809
      %v3875 = vpop.f32.mrf.mxu0
      %v3876 = vadd.f32 0.0, %v3875
      %v3877 = vpop.f32.mrf.mxu0
      %v3878 = vadd.f32 0.0, %v3877
      %3879 = vmatmul.bf16.gmra.mxu0 %v3812
      %v3880 = vpop.f32.mrf.mxu0
      %v3881 = vadd.f32 0.0, %v3880
      %v3882 = vpop.f32.mrf.mxu0
      %v3883 = vadd.f32 0.0, %v3882
      %3884 = vmatmul.bf16.gmra.mxu0 %v3815
      %v3885 = vpop.f32.mrf.mxu0
      %v3886 = vadd.f32 0.0, %v3885
      %v3887 = vpop.f32.mrf.mxu0
      %v3888 = vadd.f32 0.0, %v3887
      %3889 = vmatmul.bf16.gmra.mxu0 %v3818
      %v3890 = vpop.f32.mrf.mxu0
      %v3891 = vadd.f32 0.0, %v3890
      %v3892 = vpop.f32.mrf.mxu0
      %v3893 = vadd.f32 0.0, %v3892
      %3894 = vmatmul.bf16.gmra.mxu0 %v3821
      %v3895 = vpop.f32.mrf.mxu0
      %v3896 = vadd.f32 0.0, %v3895
      %v3897 = vpop.f32.mrf.mxu0
      %v3898 = vadd.f32 0.0, %v3897
      %3899 = vmatmul.bf16.gmra.mxu0 %v3824
      %v3900 = vpop.f32.mrf.mxu0
      %v3901 = vadd.f32 0.0, %v3900
      %v3902 = vpop.f32.mrf.mxu0
      %v3903 = vadd.f32 0.0, %v3902
      %3904 = vmatmul.bf16.gmra.mxu0 %v3827
      %v3905 = vpop.f32.mrf.mxu0
      %v3906 = vadd.f32 0.0, %v3905
      %v3907 = vpop.f32.mrf.mxu0
      %v3908 = vadd.f32 0.0, %v3907
      %3909 = vmatmul.bf16.gmra.mxu0 %v3830
      %v3910 = vpop.f32.mrf.mxu0
      %v3911 = vadd.f32 0.0, %v3910
      %v3912 = vpop.f32.mrf.mxu0
      %v3913 = vadd.f32 0.0, %v3912
      %3914 = vmatmul.bf16.gmra.mxu0 %v3833
      %v3915 = vpop.f32.mrf.mxu0
      %v3916 = vadd.f32 0.0, %v3915
      %v3917 = vpop.f32.mrf.mxu0
      %v3918 = vadd.f32 0.0, %v3917
      %3919 = vmatmul.bf16.gmra.mxu0 %v3836
      %v3920 = vpop.f32.mrf.mxu0
      %v3921 = vadd.f32 0.0, %v3920
      %v3922 = vpop.f32.mrf.mxu0
      %v3923 = vadd.f32 0.0, %v3922
      %3924 = vmatmul.bf16.gmra.mxu0 %v3839
      %v3925 = vpop.f32.mrf.mxu0
      %v3926 = vadd.f32 0.0, %v3925
      %v3927 = vpop.f32.mrf.mxu0
      %v3928 = vadd.f32 0.0, %v3927
      %3929 = vmatmul.bf16.gmra.mxu0 %v3842
      %v3930 = vpop.f32.mrf.mxu0
      %v3931 = vadd.f32 0.0, %v3930
      %v3932 = vpop.f32.mrf.mxu0
      %v3933 = vadd.f32 0.0, %v3932
      %3934 = vmatmul.bf16.gmra.mxu0 %v3845
      %v3935 = vpop.f32.mrf.mxu0
      %v3936 = vadd.f32 0.0, %v3935
      %v3937 = vpop.f32.mrf.mxu0
      %v3938 = vadd.f32 0.0, %v3937
      %3939 = vmatmul.bf16.gmra.mxu0 %v3848
      %v3940 = vpop.f32.mrf.mxu0
      %v3941 = vadd.f32 0.0, %v3940
      %v3942 = vpop.f32.mrf.mxu0
      %v3943 = vadd.f32 0.0, %v3942
      %3944 = vmatmul.bf16.gmra.mxu0 %v3851
      %v3945 = vpop.f32.mrf.mxu0
      %v3946 = vadd.f32 0.0, %v3945
      %v3947 = vpop.f32.mrf.mxu0
      %v3948 = vadd.f32 0.0, %v3947
      %3949 = vmatmul.bf16.gmra.mxu0 %v3854
      %v3950 = vpop.f32.mrf.mxu0
      %v3951 = vadd.f32 0.0, %v3950
      %v3952 = vpop.f32.mrf.mxu0
      %v3953 = vadd.f32 0.0, %v3952
      %3954 = vdwg.mxu0
      %v3957 = vunpack.c.l.b16 %v3737
      %v3958 = vunpack.c.l.b16 %v3738
      %v3959 = vpack.c.b16 %v3958, %v3957
      %v3962 = vsel %vm570, %v3719, 0
      %v3965 = vsel %vm570, %v3720, 0
      %v3968 = vsel %vm570, %v3721, 0
      %v3971 = vsel %vm570, %v3722, 0
      %v3974 = vsel %vm570, %v3723, 0
      %v3977 = vsel %vm570, %v3724, 0
      %v3980 = vsel %vm570, %v3725, 0
      %v3983 = vsel %vm570, %v3726, 0
      %v3986 = vsel %vm570, %v3727, 0
      %v3989 = vsel %vm570, %v3728, 0
      %v3992 = vsel %vm570, %v3729, 0
      %v3995 = vsel %vm570, %v3730, 0
      %v3998 = vsel %vm570, %v3731, 0
      %v4001 = vsel %vm570, %v3732, 0
      %v4004 = vsel %vm570, %v3733, 0
      %v4007 = vsel %vm570, %v3734, 0
      %v4010 = vsel %vm570, %v3735, 0
      %v4013 = vsel %vm570, %v3736, 0
      %4015 = vmatpush.bf16.msra.mxu0 0
      %4016 = vmatpush.bf16.msra.mxu0 0
      %4017 = vmatpush.bf16.msra.mxu0 0
      %4018 = vmatpush.bf16.msra.mxu0 0
      %4019 = vmatpush.bf16.msra.mxu0 0
      %4020 = vmatpush.bf16.msra.mxu0 0
      %4021 = vmatpush.bf16.msra.mxu0 0
      %4022 = vmatpush.bf16.msra.mxu0 %v3959
      %4023 = vmatmul.bf16.gmra.mxu0 %v3962
      %v4024 = vpop.f32.mrf.mxu0
      %v4025 = vadd.f32 %v3866, %v4024
      %v4026 = vpop.f32.mrf.mxu0
      %v4027 = vadd.f32 %v3868, %v4026
      %4028 = vmatmul.bf16.gmra.mxu0 %v3965
      %v4029 = vpop.f32.mrf.mxu0
      %v4030 = vadd.f32 %v3871, %v4029
      %v4031 = vpop.f32.mrf.mxu0
      %v4032 = vadd.f32 %v3873, %v4031
      %4033 = vmatmul.bf16.gmra.mxu0 %v3968
      %v4034 = vpop.f32.mrf.mxu0
      %v4035 = vadd.f32 %v3876, %v4034
      %v4036 = vpop.f32.mrf.mxu0
      %v4037 = vadd.f32 %v3878, %v4036
      %4038 = vmatmul.bf16.gmra.mxu0 %v3971
      %v4039 = vpop.f32.mrf.mxu0
      %v4040 = vadd.f32 %v3881, %v4039
      %v4041 = vpop.f32.mrf.mxu0
      %v4042 = vadd.f32 %v3883, %v4041
      %4043 = vmatmul.bf16.gmra.mxu0 %v3974
      %v4044 = vpop.f32.mrf.mxu0
      %v4045 = vadd.f32 %v3886, %v4044
      %v4046 = vpop.f32.mrf.mxu0
      %v4047 = vadd.f32 %v3888, %v4046
      %4048 = vmatmul.bf16.gmra.mxu0 %v3977
      %v4049 = vpop.f32.mrf.mxu0
      %v4050 = vadd.f32 %v3891, %v4049
      %v4051 = vpop.f32.mrf.mxu0
      %v4052 = vadd.f32 %v3893, %v4051
      %4053 = vmatmul.bf16.gmra.mxu0 %v3980
      %v4054 = vpop.f32.mrf.mxu0
      %v4055 = vadd.f32 %v3896, %v4054
      %v4056 = vpop.f32.mrf.mxu0
      %v4057 = vadd.f32 %v3898, %v4056
      %4058 = vmatmul.bf16.gmra.mxu0 %v3983
      %v4059 = vpop.f32.mrf.mxu0
      %v4060 = vadd.f32 %v3901, %v4059
      %v4061 = vpop.f32.mrf.mxu0
      %v4062 = vadd.f32 %v3903, %v4061
      %4063 = vmatmul.bf16.gmra.mxu0 %v3986
      %v4064 = vpop.f32.mrf.mxu0
      %v4065 = vadd.f32 %v3906, %v4064
      %v4066 = vpop.f32.mrf.mxu0
      %v4067 = vadd.f32 %v3908, %v4066
      %4068 = vmatmul.bf16.gmra.mxu0 %v3989
      %v4069 = vpop.f32.mrf.mxu0
      %v4070 = vadd.f32 %v3911, %v4069
      %v4071 = vpop.f32.mrf.mxu0
      %v4072 = vadd.f32 %v3913, %v4071
      %4073 = vmatmul.bf16.gmra.mxu0 %v3992
      %v4074 = vpop.f32.mrf.mxu0
      %v4075 = vadd.f32 %v3916, %v4074
      %v4076 = vpop.f32.mrf.mxu0
      %v4077 = vadd.f32 %v3918, %v4076
      %4078 = vmatmul.bf16.gmra.mxu0 %v3995
      %v4079 = vpop.f32.mrf.mxu0
      %v4080 = vadd.f32 %v3921, %v4079
      %v4081 = vpop.f32.mrf.mxu0
      %v4082 = vadd.f32 %v3923, %v4081
      %4083 = vmatmul.bf16.gmra.mxu0 %v3998
      %v4084 = vpop.f32.mrf.mxu0
      %v4085 = vadd.f32 %v3926, %v4084
      %v4086 = vpop.f32.mrf.mxu0
      %v4087 = vadd.f32 %v3928, %v4086
      %4088 = vmatmul.bf16.gmra.mxu0 %v4001
      %v4089 = vpop.f32.mrf.mxu0
      %v4090 = vadd.f32 %v3931, %v4089
      %v4091 = vpop.f32.mrf.mxu0
      %v4092 = vadd.f32 %v3933, %v4091
      %4093 = vmatmul.bf16.gmra.mxu0 %v4004
      %v4094 = vpop.f32.mrf.mxu0
      %v4095 = vadd.f32 %v3936, %v4094
      %v4096 = vpop.f32.mrf.mxu0
      %v4097 = vadd.f32 %v3938, %v4096
      %4098 = vmatmul.bf16.gmra.mxu0 %v4007
      %v4099 = vpop.f32.mrf.mxu0
      %v4100 = vadd.f32 %v3941, %v4099
      %v4101 = vpop.f32.mrf.mxu0
      %v4102 = vadd.f32 %v3943, %v4101
      %4103 = vmatmul.bf16.gmra.mxu0 %v4010
      %v4104 = vpop.f32.mrf.mxu0
      %v4105 = vadd.f32 %v3946, %v4104
      %v4106 = vpop.f32.mrf.mxu0
      %v4107 = vadd.f32 %v3948, %v4106
      %4108 = vmatmul.bf16.gmra.mxu0 %v4013
      %v4109 = vpop.f32.mrf.mxu0
      %v4110 = vadd.f32 %v3951, %v4109
      %v4111 = vpop.f32.mrf.mxu0
      %v4112 = vadd.f32 %v3953, %v4111
      %4113 = vdwg.mxu0
      %v4114 = vld [vmem:[#allocation2 + $0x2] sm:$0xff]
      %v4115 = vld [vmem:[#allocation2 + $0xa] sm:$0xff]
      %v4116 = vld [vmem:[#allocation2 + $0x12] sm:$0xff]
      %v4117 = vld [vmem:[#allocation2 + $0x1a] sm:$0xff]
      %v4118 = vld [vmem:[#allocation2 + $0x22] sm:$0xff]
      %v4119 = vld [vmem:[#allocation2 + $0x2a] sm:$0xff]
      %v4120 = vld [vmem:[#allocation2 + $0x32] sm:$0xff]
      %v4121 = vld [vmem:[#allocation2 + $0x3a] sm:$0xff]
      %v4122 = vld [vmem:[#allocation2 + $0x42] sm:$0xff]
      %v4123 = vld [vmem:[#allocation2 + $0x4a] sm:$0xff]
      %v4124 = vld [vmem:[#allocation2 + $0x52] sm:$0xff]
      %v4125 = vld [vmem:[#allocation2 + $0x5a] sm:$0xff]
      %v4126 = vld [vmem:[#allocation2 + $0x62] sm:$0xff]
      %v4127 = vld [vmem:[#allocation2 + $0x6a] sm:$0xff]
      %v4128 = vld [vmem:[#allocation2 + $0x72] sm:$0xff]
      %v4129 = vld [vmem:[#allocation2 + $0x7a] sm:$0xff]
      %v4130 = vld [vmem:[#allocation2 + $0x82] sm:$0xff]
      %v4131 = vld [vmem:[#allocation2 + $0x8a] sm:$0xff]
      %v4132 = vld [vmem:[#allocation2 + $0x92] sm:$0xff]
      %v4133 = vld [vmem:[#allocation2 + $0x9a] sm:$0xff]
      %v4134 = vld [vmem:[#allocation2 + $0xa2] sm:$0xff]
      %v4135 = vld [vmem:[#allocation2 + $0xaa] sm:$0xff]
      %v4136 = vld [vmem:[#allocation2 + $0xb2] sm:$0xff]
      %v4137 = vld [vmem:[#allocation2 + $0xba] sm:$0xff]
      %v4138 = vld [vmem:[#allocation2 + $0xc2] sm:$0xff]
      %v4139 = vld [vmem:[#allocation2 + $0xca] sm:$0xff]
      %v4140 = vld [vmem:[#allocation2 + $0xd2] sm:$0xff]
      %v4141 = vld [vmem:[#allocation2 + $0xda] sm:$0xff]
      %v4142 = vld [vmem:[#allocation2 + $0xe2] sm:$0xff]
      %v4143 = vld [vmem:[#allocation2 + $0xea] sm:$0xff]
      %v4144 = vld [vmem:[#allocation2 + $0xf2] sm:$0xff]
      %v4145 = vld [vmem:[#allocation2 + $0xfa] sm:$0xff]
      %v4146 = vld [vmem:[#allocation2 + $0x102] sm:$0xff]
      %v4147 = vld [vmem:[#allocation2 + $0x10a] sm:$0xff]
      %v4148 = vld [vmem:[#allocation2 + $0x112] sm:$0xff]
      %v4149 = vld [vmem:[#allocation2 + $0x11a] sm:$0xff]
      %v4150 = vpack.c.bf16 %v4115, %v4114
      %v4151 = vpack.c.bf16 %v4117, %v4116
      %v4152 = vpack.c.bf16 %v4119, %v4118
      %v4153 = vpack.c.bf16 %v4121, %v4120
      %v4154 = vpack.c.bf16 %v4123, %v4122
      %v4155 = vpack.c.bf16 %v4125, %v4124
      %v4156 = vpack.c.bf16 %v4127, %v4126
      %v4157 = vpack.c.bf16 %v4129, %v4128
      %v4158 = vpack.c.bf16 %v4131, %v4130
      %v4159 = vpack.c.bf16 %v4133, %v4132
      %v4160 = vpack.c.bf16 %v4135, %v4134
      %v4161 = vpack.c.bf16 %v4137, %v4136
      %v4162 = vpack.c.bf16 %v4139, %v4138
      %v4163 = vpack.c.bf16 %v4141, %v4140
      %v4164 = vpack.c.bf16 %v4143, %v4142
      %v4165 = vpack.c.bf16 %v4145, %v4144
      %v4166 = vpack.c.bf16 %v4147, %v4146
      %v4167 = vpack.c.bf16 %v4149, %v4148
      %s4168 = scalar_lea.vmem %s2, 16
      %v4169 = vld [vmem:[%s4168] sm:$0xf]
      %v4170 = vld [vmem:[%s4168 + $0x4] sm:$0xf]
      %v4173 = vunpack.c.l.b16 %v4169
      %v4174 = vunpack.c.l.b16 %v4170
      %v4175 = vpack.c.b16 %v4174, %v4173
      %v4178 = vsel %vm570, %v4150, 0
      %v4181 = vsel %vm570, %v4151, 0
      %v4184 = vsel %vm570, %v4152, 0
      %v4187 = vsel %vm570, %v4153, 0
      %v4190 = vsel %vm570, %v4154, 0
      %v4193 = vsel %vm570, %v4155, 0
      %v4196 = vsel %vm570, %v4156, 0
      %v4199 = vsel %vm570, %v4157, 0
      %v4202 = vsel %vm570, %v4158, 0
      %v4205 = vsel %vm570, %v4159, 0
      %v4208 = vsel %vm570, %v4160, 0
      %v4211 = vsel %vm570, %v4161, 0
      %v4214 = vsel %vm570, %v4162, 0
      %v4217 = vsel %vm570, %v4163, 0
      %v4220 = vsel %vm570, %v4164, 0
      %v4223 = vsel %vm570, %v4165, 0
      %v4226 = vsel %vm570, %v4166, 0
      %v4229 = vsel %vm570, %v4167, 0
      %4231 = vmatpush.bf16.msra.mxu0 0
      %4232 = vmatpush.bf16.msra.mxu0 0
      %4233 = vmatpush.bf16.msra.mxu0 0
      %4234 = vmatpush.bf16.msra.mxu0 0
      %4235 = vmatpush.bf16.msra.mxu0 0
      %4236 = vmatpush.bf16.msra.mxu0 0
      %4237 = vmatpush.bf16.msra.mxu0 0
      %4238 = vmatpush.bf16.msra.mxu0 %v4175
      %4239 = vmatmul.bf16.gmra.mxu0 %v4178
      %v4240 = vpop.f32.mrf.mxu0
      %v4241 = vadd.f32 0.0, %v4240
      %v4242 = vpop.f32.mrf.mxu0
      %v4243 = vadd.f32 0.0, %v4242
      %4244 = vmatmul.bf16.gmra.mxu0 %v4181
      %v4245 = vpop.f32.mrf.mxu0
      %v4246 = vadd.f32 0.0, %v4245
      %v4247 = vpop.f32.mrf.mxu0
      %v4248 = vadd.f32 0.0, %v4247
      %4249 = vmatmul.bf16.gmra.mxu0 %v4184
      %v4250 = vpop.f32.mrf.mxu0
      %v4251 = vadd.f32 0.0, %v4250
      %v4252 = vpop.f32.mrf.mxu0
      %v4253 = vadd.f32 0.0, %v4252
      %4254 = vmatmul.bf16.gmra.mxu0 %v4187
      %v4255 = vpop.f32.mrf.mxu0
      %v4256 = vadd.f32 0.0, %v4255
      %v4257 = vpop.f32.mrf.mxu0
      %v4258 = vadd.f32 0.0, %v4257
      %4259 = vmatmul.bf16.gmra.mxu0 %v4190
      %v4260 = vpop.f32.mrf.mxu0
      %v4261 = vadd.f32 0.0, %v4260
      %v4262 = vpop.f32.mrf.mxu0
      %v4263 = vadd.f32 0.0, %v4262
      %4264 = vmatmul.bf16.gmra.mxu0 %v4193
      %v4265 = vpop.f32.mrf.mxu0
      %v4266 = vadd.f32 0.0, %v4265
      %v4267 = vpop.f32.mrf.mxu0
      %v4268 = vadd.f32 0.0, %v4267
      %4269 = vmatmul.bf16.gmra.mxu0 %v4196
      %v4270 = vpop.f32.mrf.mxu0
      %v4271 = vadd.f32 0.0, %v4270
      %v4272 = vpop.f32.mrf.mxu0
      %v4273 = vadd.f32 0.0, %v4272
      %4274 = vmatmul.bf16.gmra.mxu0 %v4199
      %v4275 = vpop.f32.mrf.mxu0
      %v4276 = vadd.f32 0.0, %v4275
      %v4277 = vpop.f32.mrf.mxu0
      %v4278 = vadd.f32 0.0, %v4277
      %4279 = vmatmul.bf16.gmra.mxu0 %v4202
      %v4280 = vpop.f32.mrf.mxu0
      %v4281 = vadd.f32 0.0, %v4280
      %v4282 = vpop.f32.mrf.mxu0
      %v4283 = vadd.f32 0.0, %v4282
      %4284 = vmatmul.bf16.gmra.mxu0 %v4205
      %v4285 = vpop.f32.mrf.mxu0
      %v4286 = vadd.f32 0.0, %v4285
      %v4287 = vpop.f32.mrf.mxu0
      %v4288 = vadd.f32 0.0, %v4287
      %4289 = vmatmul.bf16.gmra.mxu0 %v4208
      %v4290 = vpop.f32.mrf.mxu0
      %v4291 = vadd.f32 0.0, %v4290
      %v4292 = vpop.f32.mrf.mxu0
      %v4293 = vadd.f32 0.0, %v4292
      %4294 = vmatmul.bf16.gmra.mxu0 %v4211
      %v4295 = vpop.f32.mrf.mxu0
      %v4296 = vadd.f32 0.0, %v4295
      %v4297 = vpop.f32.mrf.mxu0
      %v4298 = vadd.f32 0.0, %v4297
      %4299 = vmatmul.bf16.gmra.mxu0 %v4214
      %v4300 = vpop.f32.mrf.mxu0
      %v4301 = vadd.f32 0.0, %v4300
      %v4302 = vpop.f32.mrf.mxu0
      %v4303 = vadd.f32 0.0, %v4302
      %4304 = vmatmul.bf16.gmra.mxu0 %v4217
      %v4305 = vpop.f32.mrf.mxu0
      %v4306 = vadd.f32 0.0, %v4305
      %v4307 = vpop.f32.mrf.mxu0
      %v4308 = vadd.f32 0.0, %v4307
      %4309 = vmatmul.bf16.gmra.mxu0 %v4220
      %v4310 = vpop.f32.mrf.mxu0
      %v4311 = vadd.f32 0.0, %v4310
      %v4312 = vpop.f32.mrf.mxu0
      %v4313 = vadd.f32 0.0, %v4312
      %4314 = vmatmul.bf16.gmra.mxu0 %v4223
      %v4315 = vpop.f32.mrf.mxu0
      %v4316 = vadd.f32 0.0, %v4315
      %v4317 = vpop.f32.mrf.mxu0
      %v4318 = vadd.f32 0.0, %v4317
      %4319 = vmatmul.bf16.gmra.mxu0 %v4226
      %v4320 = vpop.f32.mrf.mxu0
      %v4321 = vadd.f32 0.0, %v4320
      %v4322 = vpop.f32.mrf.mxu0
      %v4323 = vadd.f32 0.0, %v4322
      %4324 = vmatmul.bf16.gmra.mxu0 %v4229
      %v4325 = vpop.f32.mrf.mxu0
      %v4326 = vadd.f32 0.0, %v4325
      %v4327 = vpop.f32.mrf.mxu0
      %v4328 = vadd.f32 0.0, %v4327
      %4329 = vdwg.mxu0
      %v4330 = vadd.f32 %v4025, %v4241
      %v4331 = vadd.f32 %v4027, %v4243
      %v4332 = vadd.f32 %v4030, %v4246
      %v4333 = vadd.f32 %v4032, %v4248
      %v4334 = vadd.f32 %v4035, %v4251
      %v4335 = vadd.f32 %v4037, %v4253
      %v4336 = vadd.f32 %v4040, %v4256
      %v4337 = vadd.f32 %v4042, %v4258
      %v4338 = vadd.f32 %v4045, %v4261
      %v4339 = vadd.f32 %v4047, %v4263
      %v4340 = vadd.f32 %v4050, %v4266
      %v4341 = vadd.f32 %v4052, %v4268
      %v4342 = vadd.f32 %v4055, %v4271
      %v4343 = vadd.f32 %v4057, %v4273
      %v4344 = vadd.f32 %v4060, %v4276
      %v4345 = vadd.f32 %v4062, %v4278
      %v4346 = vadd.f32 %v4065, %v4281
      %v4347 = vadd.f32 %v4067, %v4283
      %v4348 = vadd.f32 %v4070, %v4286
      %v4349 = vadd.f32 %v4072, %v4288
      %v4350 = vadd.f32 %v4075, %v4291
      %v4351 = vadd.f32 %v4077, %v4293
      %v4352 = vadd.f32 %v4080, %v4296
      %v4353 = vadd.f32 %v4082, %v4298
      %v4354 = vadd.f32 %v4085, %v4301
      %v4355 = vadd.f32 %v4087, %v4303
      %v4356 = vadd.f32 %v4090, %v4306
      %v4357 = vadd.f32 %v4092, %v4308
      %v4358 = vadd.f32 %v4095, %v4311
      %v4359 = vadd.f32 %v4097, %v4313
      %v4360 = vadd.f32 %v4100, %v4316
      %v4361 = vadd.f32 %v4102, %v4318
      %v4362 = vadd.f32 %v4105, %v4321
      %v4363 = vadd.f32 %v4107, %v4323
      %v4364 = vadd.f32 %v4110, %v4326
      %v4365 = vadd.f32 %v4112, %v4328
      %v4366 = vld [vmem:[#allocation2 + $0x12] sm:$0xff]
      %v4367 = vld [vmem:[#allocation2 + $0x1a] sm:$0xff]
      %v4368 = vld [vmem:[#allocation2 + $0x22] sm:$0xff]
      %v4369 = vld [vmem:[#allocation2 + $0x2a] sm:$0xff]
      %v4370 = vld [vmem:[#allocation2 + $0x32] sm:$0xff]
      %v4371 = vld [vmem:[#allocation2 + $0x3a] sm:$0xff]
      %v4372 = vld [vmem:[#allocation2 + $0x42] sm:$0xff]
      %v4373 = vld [vmem:[#allocation2 + $0x4a] sm:$0xff]
      %v4374 = vld [vmem:[#allocation2 + $0x52] sm:$0xff]
      %v4375 = vld [vmem:[#allocation2 + $0x5a] sm:$0xff]
      %v4376 = vld [vmem:[#allocation2 + $0x62] sm:$0xff]
      %v4377 = vld [vmem:[#allocation2 + $0x6a] sm:$0xff]
      %v4378 = vld [vmem:[#allocation2 + $0x72] sm:$0xff]
      %v4379 = vld [vmem:[#allocation2 + $0x7a] sm:$0xff]
      %v4380 = vld [vmem:[#allocation2 + $0x82] sm:$0xff]
      %v4381 = vld [vmem:[#allocation2 + $0x8a] sm:$0xff]
      %v4382 = vld [vmem:[#allocation2 + $0x92] sm:$0xff]
      %v4383 = vld [vmem:[#allocation2 + $0x9a] sm:$0xff]
      %v4384 = vld [vmem:[#allocation2 + $0xa2] sm:$0xff]
      %v4385 = vld [vmem:[#allocation2 + $0xaa] sm:$0xff]
      %v4386 = vld [vmem:[#allocation2 + $0xb2] sm:$0xff]
      %v4387 = vld [vmem:[#allocation2 + $0xba] sm:$0xff]
      %v4388 = vld [vmem:[#allocation2 + $0xc2] sm:$0xff]
      %v4389 = vld [vmem:[#allocation2 + $0xca] sm:$0xff]
      %v4390 = vld [vmem:[#allocation2 + $0xd2] sm:$0xff]
      %v4391 = vld [vmem:[#allocation2 + $0xda] sm:$0xff]
      %v4392 = vld [vmem:[#allocation2 + $0xe2] sm:$0xff]
      %v4393 = vld [vmem:[#allocation2 + $0xea] sm:$0xff]
      %v4394 = vld [vmem:[#allocation2 + $0xf2] sm:$0xff]
      %v4395 = vld [vmem:[#allocation2 + $0xfa] sm:$0xff]
      %v4396 = vld [vmem:[#allocation2 + $0x102] sm:$0xff]
      %v4397 = vld [vmem:[#allocation2 + $0x10a] sm:$0xff]
      %v4398 = vld [vmem:[#allocation2 + $0x112] sm:$0xff]
      %v4399 = vld [vmem:[#allocation2 + $0x11a] sm:$0xff]
      %v4400 = vld [vmem:[#allocation2 + $0x122] sm:$0xff]
      %v4401 = vld [vmem:[#allocation2 + $0x12a] sm:$0xff]
      %v4402 = vpack.c.bf16 %v4367, %v4366
      %v4403 = vpack.c.bf16 %v4369, %v4368
      %v4404 = vpack.c.bf16 %v4371, %v4370
      %v4405 = vpack.c.bf16 %v4373, %v4372
      %v4406 = vpack.c.bf16 %v4375, %v4374
      %v4407 = vpack.c.bf16 %v4377, %v4376
      %v4408 = vpack.c.bf16 %v4379, %v4378
      %v4409 = vpack.c.bf16 %v4381, %v4380
      %v4410 = vpack.c.bf16 %v4383, %v4382
      %v4411 = vpack.c.bf16 %v4385, %v4384
      %v4412 = vpack.c.bf16 %v4387, %v4386
      %v4413 = vpack.c.bf16 %v4389, %v4388
      %v4414 = vpack.c.bf16 %v4391, %v4390
      %v4415 = vpack.c.bf16 %v4393, %v4392
      %v4416 = vpack.c.bf16 %v4395, %v4394
      %v4417 = vpack.c.bf16 %v4397, %v4396
      %v4418 = vpack.c.bf16 %v4399, %v4398
      %v4419 = vpack.c.bf16 %v4401, %v4400
      %s4420 = scalar_lea.vmem %s2, 24
      %v4421 = vld [vmem:[%s4420] sm:$0xf]
      %v4422 = vld [vmem:[%s4420 + $0x4] sm:$0xf]
      %v4425 = vunpack.c.l.b16 %v4421
      %v4426 = vunpack.c.l.b16 %v4422
      %v4427 = vpack.c.b16 %v4426, %v4425
      %v4430 = vsel %vm570, %v4402, 0
      %v4433 = vsel %vm570, %v4403, 0
      %v4436 = vsel %vm570, %v4404, 0
      %v4439 = vsel %vm570, %v4405, 0
      %v4442 = vsel %vm570, %v4406, 0
      %v4445 = vsel %vm570, %v4407, 0
      %v4448 = vsel %vm570, %v4408, 0
      %v4451 = vsel %vm570, %v4409, 0
      %v4454 = vsel %vm570, %v4410, 0
      %v4457 = vsel %vm570, %v4411, 0
      %v4460 = vsel %vm570, %v4412, 0
      %v4463 = vsel %vm570, %v4413, 0
      %v4466 = vsel %vm570, %v4414, 0
      %v4469 = vsel %vm570, %v4415, 0
      %v4472 = vsel %vm570, %v4416, 0
      %v4475 = vsel %vm570, %v4417, 0
      %v4478 = vsel %vm570, %v4418, 0
      %v4481 = vsel %vm570, %v4419, 0
      %4483 = vmatpush.bf16.msra.mxu0 0
      %4484 = vmatpush.bf16.msra.mxu0 0
      %4485 = vmatpush.bf16.msra.mxu0 0
      %4486 = vmatpush.bf16.msra.mxu0 0
      %4487 = vmatpush.bf16.msra.mxu0 0
      %4488 = vmatpush.bf16.msra.mxu0 0
      %4489 = vmatpush.bf16.msra.mxu0 0
      %4490 = vmatpush.bf16.msra.mxu0 %v4427
      %4491 = vmatmul.bf16.gmra.mxu0 %v4430
      %v4492 = vpop.f32.mrf.mxu0
      %v4493 = vadd.f32 0.0, %v4492
      %v4494 = vpop.f32.mrf.mxu0
      %v4495 = vadd.f32 0.0, %v4494
      %4496 = vmatmul.bf16.gmra.mxu0 %v4433
      %v4497 = vpop.f32.mrf.mxu0
      %v4498 = vadd.f32 0.0, %v4497
      %v4499 = vpop.f32.mrf.mxu0
      %v4500 = vadd.f32 0.0, %v4499
      %4501 = vmatmul.bf16.gmra.mxu0 %v4436
      %v4502 = vpop.f32.mrf.mxu0
      %v4503 = vadd.f32 0.0, %v4502
      %v4504 = vpop.f32.mrf.mxu0
      %v4505 = vadd.f32 0.0, %v4504
      %4506 = vmatmul.bf16.gmra.mxu0 %v4439
      %v4507 = vpop.f32.mrf.mxu0
      %v4508 = vadd.f32 0.0, %v4507
      %v4509 = vpop.f32.mrf.mxu0
      %v4510 = vadd.f32 0.0, %v4509
      %4511 = vmatmul.bf16.gmra.mxu0 %v4442
      %v4512 = vpop.f32.mrf.mxu0
      %v4513 = vadd.f32 0.0, %v4512
      %v4514 = vpop.f32.mrf.mxu0
      %v4515 = vadd.f32 0.0, %v4514
      %4516 = vmatmul.bf16.gmra.mxu0 %v4445
      %v4517 = vpop.f32.mrf.mxu0
      %v4518 = vadd.f32 0.0, %v4517
      %v4519 = vpop.f32.mrf.mxu0
      %v4520 = vadd.f32 0.0, %v4519
      %4521 = vmatmul.bf16.gmra.mxu0 %v4448
      %v4522 = vpop.f32.mrf.mxu0
      %v4523 = vadd.f32 0.0, %v4522
      %v4524 = vpop.f32.mrf.mxu0
      %v4525 = vadd.f32 0.0, %v4524
      %4526 = vmatmul.bf16.gmra.mxu0 %v4451
      %v4527 = vpop.f32.mrf.mxu0
      %v4528 = vadd.f32 0.0, %v4527
      %v4529 = vpop.f32.mrf.mxu0
      %v4530 = vadd.f32 0.0, %v4529
      %4531 = vmatmul.bf16.gmra.mxu0 %v4454
      %v4532 = vpop.f32.mrf.mxu0
      %v4533 = vadd.f32 0.0, %v4532
      %v4534 = vpop.f32.mrf.mxu0
      %v4535 = vadd.f32 0.0, %v4534
      %4536 = vmatmul.bf16.gmra.mxu0 %v4457
      %v4537 = vpop.f32.mrf.mxu0
      %v4538 = vadd.f32 0.0, %v4537
      %v4539 = vpop.f32.mrf.mxu0
      %v4540 = vadd.f32 0.0, %v4539
      %4541 = vmatmul.bf16.gmra.mxu0 %v4460
      %v4542 = vpop.f32.mrf.mxu0
      %v4543 = vadd.f32 0.0, %v4542
      %v4544 = vpop.f32.mrf.mxu0
      %v4545 = vadd.f32 0.0, %v4544
      %4546 = vmatmul.bf16.gmra.mxu0 %v4463
      %v4547 = vpop.f32.mrf.mxu0
      %v4548 = vadd.f32 0.0, %v4547
      %v4549 = vpop.f32.mrf.mxu0
      %v4550 = vadd.f32 0.0, %v4549
      %4551 = vmatmul.bf16.gmra.mxu0 %v4466
      %v4552 = vpop.f32.mrf.mxu0
      %v4553 = vadd.f32 0.0, %v4552
      %v4554 = vpop.f32.mrf.mxu0
      %v4555 = vadd.f32 0.0, %v4554
      %4556 = vmatmul.bf16.gmra.mxu0 %v4469
      %v4557 = vpop.f32.mrf.mxu0
      %v4558 = vadd.f32 0.0, %v4557
      %v4559 = vpop.f32.mrf.mxu0
      %v4560 = vadd.f32 0.0, %v4559
      %4561 = vmatmul.bf16.gmra.mxu0 %v4472
      %v4562 = vpop.f32.mrf.mxu0
      %v4563 = vadd.f32 0.0, %v4562
      %v4564 = vpop.f32.mrf.mxu0
      %v4565 = vadd.f32 0.0, %v4564
      %4566 = vmatmul.bf16.gmra.mxu0 %v4475
      %v4567 = vpop.f32.mrf.mxu0
      %v4568 = vadd.f32 0.0, %v4567
      %v4569 = vpop.f32.mrf.mxu0
      %v4570 = vadd.f32 0.0, %v4569
      %4571 = vmatmul.bf16.gmra.mxu0 %v4478
      %v4572 = vpop.f32.mrf.mxu0
      %v4573 = vadd.f32 0.0, %v4572
      %v4574 = vpop.f32.mrf.mxu0
      %v4575 = vadd.f32 0.0, %v4574
      %4576 = vmatmul.bf16.gmra.mxu0 %v4481
      %v4577 = vpop.f32.mrf.mxu0
      %v4578 = vadd.f32 0.0, %v4577
      %v4579 = vpop.f32.mrf.mxu0
      %v4580 = vadd.f32 0.0, %v4579
      %4581 = vdwg.mxu0
      %v4582 = vadd.f32 %v4330, %v4493
      %v4583 = vadd.f32 %v4331, %v4495
      %v4584 = vadd.f32 %v4332, %v4498
      %v4585 = vadd.f32 %v4333, %v4500
      %v4586 = vadd.f32 %v4334, %v4503
      %v4587 = vadd.f32 %v4335, %v4505
      %v4588 = vadd.f32 %v4336, %v4508
      %v4589 = vadd.f32 %v4337, %v4510
      %v4590 = vadd.f32 %v4338, %v4513
      %v4591 = vadd.f32 %v4339, %v4515
      %v4592 = vadd.f32 %v4340, %v4518
      %v4593 = vadd.f32 %v4341, %v4520
      %v4594 = vadd.f32 %v4342, %v4523
      %v4595 = vadd.f32 %v4343, %v4525
      %v4596 = vadd.f32 %v4344, %v4528
      %v4597 = vadd.f32 %v4345, %v4530
      %v4598 = vadd.f32 %v4346, %v4533
      %v4599 = vadd.f32 %v4347, %v4535
      %v4600 = vadd.f32 %v4348, %v4538
      %v4601 = vadd.f32 %v4349, %v4540
      %v4602 = vadd.f32 %v4350, %v4543
      %v4603 = vadd.f32 %v4351, %v4545
      %v4604 = vadd.f32 %v4352, %v4548
      %v4605 = vadd.f32 %v4353, %v4550
      %v4606 = vadd.f32 %v4354, %v4553
      %v4607 = vadd.f32 %v4355, %v4555
      %v4608 = vadd.f32 %v4356, %v4558
      %v4609 = vadd.f32 %v4357, %v4560
      %v4610 = vadd.f32 %v4358, %v4563
      %v4611 = vadd.f32 %v4359, %v4565
      %v4612 = vadd.f32 %v4360, %v4568
      %v4613 = vadd.f32 %v4361, %v4570
      %v4614 = vadd.f32 %v4362, %v4573
      %v4615 = vadd.f32 %v4363, %v4575
      %v4616 = vadd.f32 %v4364, %v4578
      %v4617 = vadd.f32 %v4365, %v4580
      %v4618 = vld [vmem:[#allocation2 + $0x13] sm:$0xff]
      %v4619 = vld [vmem:[#allocation2 + $0x1b] sm:$0xff]
      %v4620 = vld [vmem:[#allocation2 + $0x23] sm:$0xff]
      %v4621 = vld [vmem:[#allocation2 + $0x2b] sm:$0xff]
      %v4622 = vld [vmem:[#allocation2 + $0x33] sm:$0xff]
      %v4623 = vld [vmem:[#allocation2 + $0x3b] sm:$0xff]
      %v4624 = vld [vmem:[#allocation2 + $0x43] sm:$0xff]
      %v4625 = vld [vmem:[#allocation2 + $0x4b] sm:$0xff]
      %v4626 = vld [vmem:[#allocation2 + $0x53] sm:$0xff]
      %v4627 = vld [vmem:[#allocation2 + $0x5b] sm:$0xff]
      %v4628 = vld [vmem:[#allocation2 + $0x63] sm:$0xff]
      %v4629 = vld [vmem:[#allocation2 + $0x6b] sm:$0xff]
      %v4630 = vld [vmem:[#allocation2 + $0x73] sm:$0xff]
      %v4631 = vld [vmem:[#allocation2 + $0x7b] sm:$0xff]
      %v4632 = vld [vmem:[#allocation2 + $0x83] sm:$0xff]
      %v4633 = vld [vmem:[#allocation2 + $0x8b] sm:$0xff]
      %v4634 = vld [vmem:[#allocation2 + $0x93] sm:$0xff]
      %v4635 = vld [vmem:[#allocation2 + $0x9b] sm:$0xff]
      %v4636 = vld [vmem:[#allocation2 + $0xa3] sm:$0xff]
      %v4637 = vld [vmem:[#allocation2 + $0xab] sm:$0xff]
      %v4638 = vld [vmem:[#allocation2 + $0xb3] sm:$0xff]
      %v4639 = vld [vmem:[#allocation2 + $0xbb] sm:$0xff]
      %v4640 = vld [vmem:[#allocation2 + $0xc3] sm:$0xff]
      %v4641 = vld [vmem:[#allocation2 + $0xcb] sm:$0xff]
      %v4642 = vld [vmem:[#allocation2 + $0xd3] sm:$0xff]
      %v4643 = vld [vmem:[#allocation2 + $0xdb] sm:$0xff]
      %v4644 = vld [vmem:[#allocation2 + $0xe3] sm:$0xff]
      %v4645 = vld [vmem:[#allocation2 + $0xeb] sm:$0xff]
      %v4646 = vld [vmem:[#allocation2 + $0xf3] sm:$0xff]
      %v4647 = vld [vmem:[#allocation2 + $0xfb] sm:$0xff]
      %v4648 = vld [vmem:[#allocation2 + $0x103] sm:$0xff]
      %v4649 = vld [vmem:[#allocation2 + $0x10b] sm:$0xff]
      %v4650 = vld [vmem:[#allocation2 + $0x113] sm:$0xff]
      %v4651 = vld [vmem:[#allocation2 + $0x11b] sm:$0xff]
      %v4652 = vld [vmem:[#allocation2 + $0x123] sm:$0xff]
      %v4653 = vld [vmem:[#allocation2 + $0x12b] sm:$0xff]
      %v4654 = vpack.c.bf16 %v4619, %v4618
      %v4655 = vpack.c.bf16 %v4621, %v4620
      %v4656 = vpack.c.bf16 %v4623, %v4622
      %v4657 = vpack.c.bf16 %v4625, %v4624
      %v4658 = vpack.c.bf16 %v4627, %v4626
      %v4659 = vpack.c.bf16 %v4629, %v4628
      %v4660 = vpack.c.bf16 %v4631, %v4630
      %v4661 = vpack.c.bf16 %v4633, %v4632
      %v4662 = vpack.c.bf16 %v4635, %v4634
      %v4663 = vpack.c.bf16 %v4637, %v4636
      %v4664 = vpack.c.bf16 %v4639, %v4638
      %v4665 = vpack.c.bf16 %v4641, %v4640
      %v4666 = vpack.c.bf16 %v4643, %v4642
      %v4667 = vpack.c.bf16 %v4645, %v4644
      %v4668 = vpack.c.bf16 %v4647, %v4646
      %v4669 = vpack.c.bf16 %v4649, %v4648
      %v4670 = vpack.c.bf16 %v4651, %v4650
      %v4671 = vpack.c.bf16 %v4653, %v4652
      %s4672 = scalar_lea.vmem %s2, 32
      %v4673 = vld [vmem:[%s4672] sm:$0xf]
      %v4674 = vld [vmem:[%s4672 + $0x4] sm:$0xf]
      %v4677 = vunpack.c.l.b16 %v4673
      %v4678 = vunpack.c.l.b16 %v4674
      %v4679 = vpack.c.b16 %v4678, %v4677
      %v4682 = vsel %vm570, %v4654, 0
      %v4685 = vsel %vm570, %v4655, 0
      %v4688 = vsel %vm570, %v4656, 0
      %v4691 = vsel %vm570, %v4657, 0
      %v4694 = vsel %vm570, %v4658, 0
      %v4697 = vsel %vm570, %v4659, 0
      %v4700 = vsel %vm570, %v4660, 0
      %v4703 = vsel %vm570, %v4661, 0
      %v4706 = vsel %vm570, %v4662, 0
      %v4709 = vsel %vm570, %v4663, 0
      %v4712 = vsel %vm570, %v4664, 0
      %v4715 = vsel %vm570, %v4665, 0
      %v4718 = vsel %vm570, %v4666, 0
      %v4721 = vsel %vm570, %v4667, 0
      %v4724 = vsel %vm570, %v4668, 0
      %v4727 = vsel %vm570, %v4669, 0
      %v4730 = vsel %vm570, %v4670, 0
      %v4733 = vsel %vm570, %v4671, 0
      %4735 = vmatpush.bf16.msra.mxu0 0
      %4736 = vmatpush.bf16.msra.mxu0 0
      %4737 = vmatpush.bf16.msra.mxu0 0
      %4738 = vmatpush.bf16.msra.mxu0 0
      %4739 = vmatpush.bf16.msra.mxu0 0
      %4740 = vmatpush.bf16.msra.mxu0 0
      %4741 = vmatpush.bf16.msra.mxu0 0
      %4742 = vmatpush.bf16.msra.mxu0 %v4679
      %4743 = vmatmul.bf16.gmra.mxu0 %v4682
      %v4744 = vpop.f32.mrf.mxu0
      %v4745 = vadd.f32 0.0, %v4744
      %v4746 = vpop.f32.mrf.mxu0
      %v4747 = vadd.f32 0.0, %v4746
      %4748 = vmatmul.bf16.gmra.mxu0 %v4685
      %v4749 = vpop.f32.mrf.mxu0
      %v4750 = vadd.f32 0.0, %v4749
      %v4751 = vpop.f32.mrf.mxu0
      %v4752 = vadd.f32 0.0, %v4751
      %4753 = vmatmul.bf16.gmra.mxu0 %v4688
      %v4754 = vpop.f32.mrf.mxu0
      %v4755 = vadd.f32 0.0, %v4754
      %v4756 = vpop.f32.mrf.mxu0
      %v4757 = vadd.f32 0.0, %v4756
      %4758 = vmatmul.bf16.gmra.mxu0 %v4691
      %v4759 = vpop.f32.mrf.mxu0
      %v4760 = vadd.f32 0.0, %v4759
      %v4761 = vpop.f32.mrf.mxu0
      %v4762 = vadd.f32 0.0, %v4761
      %4763 = vmatmul.bf16.gmra.mxu0 %v4694
      %v4764 = vpop.f32.mrf.mxu0
      %v4765 = vadd.f32 0.0, %v4764
      %v4766 = vpop.f32.mrf.mxu0
      %v4767 = vadd.f32 0.0, %v4766
      %4768 = vmatmul.bf16.gmra.mxu0 %v4697
      %v4769 = vpop.f32.mrf.mxu0
      %v4770 = vadd.f32 0.0, %v4769
      %v4771 = vpop.f32.mrf.mxu0
      %v4772 = vadd.f32 0.0, %v4771
      %4773 = vmatmul.bf16.gmra.mxu0 %v4700
      %v4774 = vpop.f32.mrf.mxu0
      %v4775 = vadd.f32 0.0, %v4774
      %v4776 = vpop.f32.mrf.mxu0
      %v4777 = vadd.f32 0.0, %v4776
      %4778 = vmatmul.bf16.gmra.mxu0 %v4703
      %v4779 = vpop.f32.mrf.mxu0
      %v4780 = vadd.f32 0.0, %v4779
      %v4781 = vpop.f32.mrf.mxu0
      %v4782 = vadd.f32 0.0, %v4781
      %4783 = vmatmul.bf16.gmra.mxu0 %v4706
      %v4784 = vpop.f32.mrf.mxu0
      %v4785 = vadd.f32 0.0, %v4784
      %v4786 = vpop.f32.mrf.mxu0
      %v4787 = vadd.f32 0.0, %v4786
      %4788 = vmatmul.bf16.gmra.mxu0 %v4709
      %v4789 = vpop.f32.mrf.mxu0
      %v4790 = vadd.f32 0.0, %v4789
      %v4791 = vpop.f32.mrf.mxu0
      %v4792 = vadd.f32 0.0, %v4791
      %4793 = vmatmul.bf16.gmra.mxu0 %v4712
      %v4794 = vpop.f32.mrf.mxu0
      %v4795 = vadd.f32 0.0, %v4794
      %v4796 = vpop.f32.mrf.mxu0
      %v4797 = vadd.f32 0.0, %v4796
      %4798 = vmatmul.bf16.gmra.mxu0 %v4715
      %v4799 = vpop.f32.mrf.mxu0
      %v4800 = vadd.f32 0.0, %v4799
      %v4801 = vpop.f32.mrf.mxu0
      %v4802 = vadd.f32 0.0, %v4801
      %4803 = vmatmul.bf16.gmra.mxu0 %v4718
      %v4804 = vpop.f32.mrf.mxu0
      %v4805 = vadd.f32 0.0, %v4804
      %v4806 = vpop.f32.mrf.mxu0
      %v4807 = vadd.f32 0.0, %v4806
      %4808 = vmatmul.bf16.gmra.mxu0 %v4721
      %v4809 = vpop.f32.mrf.mxu0
      %v4810 = vadd.f32 0.0, %v4809
      %v4811 = vpop.f32.mrf.mxu0
      %v4812 = vadd.f32 0.0, %v4811
      %4813 = vmatmul.bf16.gmra.mxu0 %v4724
      %v4814 = vpop.f32.mrf.mxu0
      %v4815 = vadd.f32 0.0, %v4814
      %v4816 = vpop.f32.mrf.mxu0
      %v4817 = vadd.f32 0.0, %v4816
      %4818 = vmatmul.bf16.gmra.mxu0 %v4727
      %v4819 = vpop.f32.mrf.mxu0
      %v4820 = vadd.f32 0.0, %v4819
      %v4821 = vpop.f32.mrf.mxu0
      %v4822 = vadd.f32 0.0, %v4821
      %4823 = vmatmul.bf16.gmra.mxu0 %v4730
      %v4824 = vpop.f32.mrf.mxu0
      %v4825 = vadd.f32 0.0, %v4824
      %v4826 = vpop.f32.mrf.mxu0
      %v4827 = vadd.f32 0.0, %v4826
      %4828 = vmatmul.bf16.gmra.mxu0 %v4733
      %v4829 = vpop.f32.mrf.mxu0
      %v4830 = vadd.f32 0.0, %v4829
      %v4831 = vpop.f32.mrf.mxu0
      %v4832 = vadd.f32 0.0, %v4831
      %4833 = vdwg.mxu0
      %v4834 = vadd.f32 %v4582, %v4745
      %v4835 = vadd.f32 %v4583, %v4747
      %v4836 = vadd.f32 %v4584, %v4750
      %v4837 = vadd.f32 %v4585, %v4752
      %v4838 = vadd.f32 %v4586, %v4755
      %v4839 = vadd.f32 %v4587, %v4757
      %v4840 = vadd.f32 %v4588, %v4760
      %v4841 = vadd.f32 %v4589, %v4762
      %v4842 = vadd.f32 %v4590, %v4765
      %v4843 = vadd.f32 %v4591, %v4767
      %v4844 = vadd.f32 %v4592, %v4770
      %v4845 = vadd.f32 %v4593, %v4772
      %v4846 = vadd.f32 %v4594, %v4775
      %v4847 = vadd.f32 %v4595, %v4777
      %v4848 = vadd.f32 %v4596, %v4780
      %v4849 = vadd.f32 %v4597, %v4782
      %v4850 = vadd.f32 %v4598, %v4785
      %v4851 = vadd.f32 %v4599, %v4787
      %v4852 = vadd.f32 %v4600, %v4790
      %v4853 = vadd.f32 %v4601, %v4792
      %v4854 = vadd.f32 %v4602, %v4795
      %v4855 = vadd.f32 %v4603, %v4797
      %v4856 = vadd.f32 %v4604, %v4800
      %v4857 = vadd.f32 %v4605, %v4802
      %v4858 = vadd.f32 %v4606, %v4805
      %v4859 = vadd.f32 %v4607, %v4807
      %v4860 = vadd.f32 %v4608, %v4810
      %v4861 = vadd.f32 %v4609, %v4812
      %v4862 = vadd.f32 %v4610, %v4815
      %v4863 = vadd.f32 %v4611, %v4817
      %v4864 = vadd.f32 %v4612, %v4820
      %v4865 = vadd.f32 %v4613, %v4822
      %v4866 = vadd.f32 %v4614, %v4825
      %v4867 = vadd.f32 %v4615, %v4827
      %v4868 = vadd.f32 %v4616, %v4830
      %v4869 = vadd.f32 %v4617, %v4832
      %v4870 = vld [vmem:[#allocation2 + $0x14] sm:$0xff]
      %v4871 = vld [vmem:[#allocation2 + $0x1c] sm:$0xff]
      %v4872 = vld [vmem:[#allocation2 + $0x24] sm:$0xff]
      %v4873 = vld [vmem:[#allocation2 + $0x2c] sm:$0xff]
      %v4874 = vld [vmem:[#allocation2 + $0x34] sm:$0xff]
      %v4875 = vld [vmem:[#allocation2 + $0x3c] sm:$0xff]
      %v4876 = vld [vmem:[#allocation2 + $0x44] sm:$0xff]
      %v4877 = vld [vmem:[#allocation2 + $0x4c] sm:$0xff]
      %v4878 = vld [vmem:[#allocation2 + $0x54] sm:$0xff]
      %v4879 = vld [vmem:[#allocation2 + $0x5c] sm:$0xff]
      %v4880 = vld [vmem:[#allocation2 + $0x64] sm:$0xff]
      %v4881 = vld [vmem:[#allocation2 + $0x6c] sm:$0xff]
      %v4882 = vld [vmem:[#allocation2 + $0x74] sm:$0xff]
      %v4883 = vld [vmem:[#allocation2 + $0x7c] sm:$0xff]
      %v4884 = vld [vmem:[#allocation2 + $0x84] sm:$0xff]
      %v4885 = vld [vmem:[#allocation2 + $0x8c] sm:$0xff]
      %v4886 = vld [vmem:[#allocation2 + $0x94] sm:$0xff]
      %v4887 = vld [vmem:[#allocation2 + $0x9c] sm:$0xff]
      %v4888 = vld [vmem:[#allocation2 + $0xa4] sm:$0xff]
      %v4889 = vld [vmem:[#allocation2 + $0xac] sm:$0xff]
      %v4890 = vld [vmem:[#allocation2 + $0xb4] sm:$0xff]
      %v4891 = vld [vmem:[#allocation2 + $0xbc] sm:$0xff]
      %v4892 = vld [vmem:[#allocation2 + $0xc4] sm:$0xff]
      %v4893 = vld [vmem:[#allocation2 + $0xcc] sm:$0xff]
      %v4894 = vld [vmem:[#allocation2 + $0xd4] sm:$0xff]
      %v4895 = vld [vmem:[#allocation2 + $0xdc] sm:$0xff]
      %v4896 = vld [vmem:[#allocation2 + $0xe4] sm:$0xff]
      %v4897 = vld [vmem:[#allocation2 + $0xec] sm:$0xff]
      %v4898 = vld [vmem:[#allocation2 + $0xf4] sm:$0xff]
      %v4899 = vld [vmem:[#allocation2 + $0xfc] sm:$0xff]
      %v4900 = vld [vmem:[#allocation2 + $0x104] sm:$0xff]
      %v4901 = vld [vmem:[#allocation2 + $0x10c] sm:$0xff]
      %v4902 = vld [vmem:[#allocation2 + $0x114] sm:$0xff]
      %v4903 = vld [vmem:[#allocation2 + $0x11c] sm:$0xff]
      %v4904 = vld [vmem:[#allocation2 + $0x124] sm:$0xff]
      %v4905 = vld [vmem:[#allocation2 + $0x12c] sm:$0xff]
      %v4906 = vpack.c.bf16 %v4871, %v4870
      %v4907 = vpack.c.bf16 %v4873, %v4872
      %v4908 = vpack.c.bf16 %v4875, %v4874
      %v4909 = vpack.c.bf16 %v4877, %v4876
      %v4910 = vpack.c.bf16 %v4879, %v4878
      %v4911 = vpack.c.bf16 %v4881, %v4880
      %v4912 = vpack.c.bf16 %v4883, %v4882
      %v4913 = vpack.c.bf16 %v4885, %v4884
      %v4914 = vpack.c.bf16 %v4887, %v4886
      %v4915 = vpack.c.bf16 %v4889, %v4888
      %v4916 = vpack.c.bf16 %v4891, %v4890
      %v4917 = vpack.c.bf16 %v4893, %v4892
      %v4918 = vpack.c.bf16 %v4895, %v4894
      %v4919 = vpack.c.bf16 %v4897, %v4896
      %v4920 = vpack.c.bf16 %v4899, %v4898
      %v4921 = vpack.c.bf16 %v4901, %v4900
      %v4922 = vpack.c.bf16 %v4903, %v4902
      %v4923 = vpack.c.bf16 %v4905, %v4904
      %s4924 = scalar_lea.vmem %s2, 40
      %v4925 = vld [vmem:[%s4924] sm:$0xf]
      %v4926 = vld [vmem:[%s4924 + $0x4] sm:$0xf]
      %v4929 = vunpack.c.l.b16 %v4925
      %v4930 = vunpack.c.l.b16 %v4926
      %v4931 = vpack.c.b16 %v4930, %v4929
      %v4934 = vsel %vm570, %v4906, 0
      %v4937 = vsel %vm570, %v4907, 0
      %v4940 = vsel %vm570, %v4908, 0
      %v4943 = vsel %vm570, %v4909, 0
      %v4946 = vsel %vm570, %v4910, 0
      %v4949 = vsel %vm570, %v4911, 0
      %v4952 = vsel %vm570, %v4912, 0
      %v4955 = vsel %vm570, %v4913, 0
      %v4958 = vsel %vm570, %v4914, 0
      %v4961 = vsel %vm570, %v4915, 0
      %v4964 = vsel %vm570, %v4916, 0
      %v4967 = vsel %vm570, %v4917, 0
      %v4970 = vsel %vm570, %v4918, 0
      %v4973 = vsel %vm570, %v4919, 0
      %v4976 = vsel %vm570, %v4920, 0
      %v4979 = vsel %vm570, %v4921, 0
      %v4982 = vsel %vm570, %v4922, 0
      %v4985 = vsel %vm570, %v4923, 0
      %4987 = vmatpush.bf16.msra.mxu0 0
      %4988 = vmatpush.bf16.msra.mxu0 0
      %4989 = vmatpush.bf16.msra.mxu0 0
      %4990 = vmatpush.bf16.msra.mxu0 0
      %4991 = vmatpush.bf16.msra.mxu0 0
      %4992 = vmatpush.bf16.msra.mxu0 0
      %4993 = vmatpush.bf16.msra.mxu0 0
      %4994 = vmatpush.bf16.msra.mxu0 %v4931
      %4995 = vmatmul.bf16.gmra.mxu0 %v4934
      %v4996 = vpop.f32.mrf.mxu0
      %v4997 = vadd.f32 0.0, %v4996
      %v4998 = vpop.f32.mrf.mxu0
      %v4999 = vadd.f32 0.0, %v4998
      %5000 = vmatmul.bf16.gmra.mxu0 %v4937
      %v5001 = vpop.f32.mrf.mxu0
      %v5002 = vadd.f32 0.0, %v5001
      %v5003 = vpop.f32.mrf.mxu0
      %v5004 = vadd.f32 0.0, %v5003
      %5005 = vmatmul.bf16.gmra.mxu0 %v4940
      %v5006 = vpop.f32.mrf.mxu0
      %v5007 = vadd.f32 0.0, %v5006
      %v5008 = vpop.f32.mrf.mxu0
      %v5009 = vadd.f32 0.0, %v5008
      %5010 = vmatmul.bf16.gmra.mxu0 %v4943
      %v5011 = vpop.f32.mrf.mxu0
      %v5012 = vadd.f32 0.0, %v5011
      %v5013 = vpop.f32.mrf.mxu0
      %v5014 = vadd.f32 0.0, %v5013
      %5015 = vmatmul.bf16.gmra.mxu0 %v4946
      %v5016 = vpop.f32.mrf.mxu0
      %v5017 = vadd.f32 0.0, %v5016
      %v5018 = vpop.f32.mrf.mxu0
      %v5019 = vadd.f32 0.0, %v5018
      %5020 = vmatmul.bf16.gmra.mxu0 %v4949
      %v5021 = vpop.f32.mrf.mxu0
      %v5022 = vadd.f32 0.0, %v5021
      %v5023 = vpop.f32.mrf.mxu0
      %v5024 = vadd.f32 0.0, %v5023
      %5025 = vmatmul.bf16.gmra.mxu0 %v4952
      %v5026 = vpop.f32.mrf.mxu0
      %v5027 = vadd.f32 0.0, %v5026
      %v5028 = vpop.f32.mrf.mxu0
      %v5029 = vadd.f32 0.0, %v5028
      %5030 = vmatmul.bf16.gmra.mxu0 %v4955
      %v5031 = vpop.f32.mrf.mxu0
      %v5032 = vadd.f32 0.0, %v5031
      %v5033 = vpop.f32.mrf.mxu0
      %v5034 = vadd.f32 0.0, %v5033
      %5035 = vmatmul.bf16.gmra.mxu0 %v4958
      %v5036 = vpop.f32.mrf.mxu0
      %v5037 = vadd.f32 0.0, %v5036
      %v5038 = vpop.f32.mrf.mxu0
      %v5039 = vadd.f32 0.0, %v5038
      %5040 = vmatmul.bf16.gmra.mxu0 %v4961
      %v5041 = vpop.f32.mrf.mxu0
      %v5042 = vadd.f32 0.0, %v5041
      %v5043 = vpop.f32.mrf.mxu0
      %v5044 = vadd.f32 0.0, %v5043
      %5045 = vmatmul.bf16.gmra.mxu0 %v4964
      %v5046 = vpop.f32.mrf.mxu0
      %v5047 = vadd.f32 0.0, %v5046
      %v5048 = vpop.f32.mrf.mxu0
      %v5049 = vadd.f32 0.0, %v5048
      %5050 = vmatmul.bf16.gmra.mxu0 %v4967
      %v5051 = vpop.f32.mrf.mxu0
      %v5052 = vadd.f32 0.0, %v5051
      %v5053 = vpop.f32.mrf.mxu0
      %v5054 = vadd.f32 0.0, %v5053
      %5055 = vmatmul.bf16.gmra.mxu0 %v4970
      %v5056 = vpop.f32.mrf.mxu0
      %v5057 = vadd.f32 0.0, %v5056
      %v5058 = vpop.f32.mrf.mxu0
      %v5059 = vadd.f32 0.0, %v5058
      %5060 = vmatmul.bf16.gmra.mxu0 %v4973
      %v5061 = vpop.f32.mrf.mxu0
      %v5062 = vadd.f32 0.0, %v5061
      %v5063 = vpop.f32.mrf.mxu0
      %v5064 = vadd.f32 0.0, %v5063
      %5065 = vmatmul.bf16.gmra.mxu0 %v4976
      %v5066 = vpop.f32.mrf.mxu0
      %v5067 = vadd.f32 0.0, %v5066
      %v5068 = vpop.f32.mrf.mxu0
      %v5069 = vadd.f32 0.0, %v5068
      %5070 = vmatmul.bf16.gmra.mxu0 %v4979
      %v5071 = vpop.f32.mrf.mxu0
      %v5072 = vadd.f32 0.0, %v5071
      %v5073 = vpop.f32.mrf.mxu0
      %v5074 = vadd.f32 0.0, %v5073
      %5075 = vmatmul.bf16.gmra.mxu0 %v4982
      %v5076 = vpop.f32.mrf.mxu0
      %v5077 = vadd.f32 0.0, %v5076
      %v5078 = vpop.f32.mrf.mxu0
      %v5079 = vadd.f32 0.0, %v5078
      %5080 = vmatmul.bf16.gmra.mxu0 %v4985
      %v5081 = vpop.f32.mrf.mxu0
      %v5082 = vadd.f32 0.0, %v5081
      %v5083 = vpop.f32.mrf.mxu0
      %v5084 = vadd.f32 0.0, %v5083
      %5085 = vdwg.mxu0
      %v5086 = vadd.f32 %v4834, %v4997
      %v5087 = vadd.f32 %v4835, %v4999
      %v5088 = vadd.f32 %v4836, %v5002
      %v5089 = vadd.f32 %v4837, %v5004
      %v5090 = vadd.f32 %v4838, %v5007
      %v5091 = vadd.f32 %v4839, %v5009
      %v5092 = vadd.f32 %v4840, %v5012
      %v5093 = vadd.f32 %v4841, %v5014
      %v5094 = vadd.f32 %v4842, %v5017
      %v5095 = vadd.f32 %v4843, %v5019
      %v5096 = vadd.f32 %v4844, %v5022
      %v5097 = vadd.f32 %v4845, %v5024
      %v5098 = vadd.f32 %v4846, %v5027
      %v5099 = vadd.f32 %v4847, %v5029
      %v5100 = vadd.f32 %v4848, %v5032
      %v5101 = vadd.f32 %v4849, %v5034
      %v5102 = vadd.f32 %v4850, %v5037
      %v5103 = vadd.f32 %v4851, %v5039
      %v5104 = vadd.f32 %v4852, %v5042
      %v5105 = vadd.f32 %v4853, %v5044
      %v5106 = vadd.f32 %v4854, %v5047
      %v5107 = vadd.f32 %v4855, %v5049
      %v5108 = vadd.f32 %v4856, %v5052
      %v5109 = vadd.f32 %v4857, %v5054
      %v5110 = vadd.f32 %v4858, %v5057
      %v5111 = vadd.f32 %v4859, %v5059
      %v5112 = vadd.f32 %v4860, %v5062
      %v5113 = vadd.f32 %v4861, %v5064
      %v5114 = vadd.f32 %v4862, %v5067
      %v5115 = vadd.f32 %v4863, %v5069
      %v5116 = vadd.f32 %v4864, %v5072
      %v5117 = vadd.f32 %v4865, %v5074
      %v5118 = vadd.f32 %v4866, %v5077
      %v5119 = vadd.f32 %v4867, %v5079
      %v5120 = vadd.f32 %v4868, %v5082
      %v5121 = vadd.f32 %v4869, %v5084
      %v5122 = vld [vmem:[#allocation2 + $0x24] sm:$0xff]
      %v5123 = vld [vmem:[#allocation2 + $0x2c] sm:$0xff]
      %v5124 = vld [vmem:[#allocation2 + $0x34] sm:$0xff]
      %v5125 = vld [vmem:[#allocation2 + $0x3c] sm:$0xff]
      %v5126 = vld [vmem:[#allocation2 + $0x44] sm:$0xff]
      %v5127 = vld [vmem:[#allocation2 + $0x4c] sm:$0xff]
      %v5128 = vld [vmem:[#allocation2 + $0x54] sm:$0xff]
      %v5129 = vld [vmem:[#allocation2 + $0x5c] sm:$0xff]
      %v5130 = vld [vmem:[#allocation2 + $0x64] sm:$0xff]
      %v5131 = vld [vmem:[#allocation2 + $0x6c] sm:$0xff]
      %v5132 = vld [vmem:[#allocation2 + $0x74] sm:$0xff]
      %v5133 = vld [vmem:[#allocation2 + $0x7c] sm:$0xff]
      %v5134 = vld [vmem:[#allocation2 + $0x84] sm:$0xff]
      %v5135 = vld [vmem:[#allocation2 + $0x8c] sm:$0xff]
      %v5136 = vld [vmem:[#allocation2 + $0x94] sm:$0xff]
      %v5137 = vld [vmem:[#allocation2 + $0x9c] sm:$0xff]
      %v5138 = vld [vmem:[#allocation2 + $0xa4] sm:$0xff]
      %v5139 = vld [vmem:[#allocation2 + $0xac] sm:$0xff]
      %v5140 = vld [vmem:[#allocation2 + $0xb4] sm:$0xff]
      %v5141 = vld [vmem:[#allocation2 + $0xbc] sm:$0xff]
      %v5142 = vld [vmem:[#allocation2 + $0xc4] sm:$0xff]
      %v5143 = vld [vmem:[#allocation2 + $0xcc] sm:$0xff]
      %v5144 = vld [vmem:[#allocation2 + $0xd4] sm:$0xff]
      %v5145 = vld [vmem:[#allocation2 + $0xdc] sm:$0xff]
      %v5146 = vld [vmem:[#allocation2 + $0xe4] sm:$0xff]
      %v5147 = vld [vmem:[#allocation2 + $0xec] sm:$0xff]
      %v5148 = vld [vmem:[#allocation2 + $0xf4] sm:$0xff]
      %v5149 = vld [vmem:[#allocation2 + $0xfc] sm:$0xff]
      %v5150 = vld [vmem:[#allocation2 + $0x104] sm:$0xff]
      %v5151 = vld [vmem:[#allocation2 + $0x10c] sm:$0xff]
      %v5152 = vld [vmem:[#allocation2 + $0x114] sm:$0xff]
      %v5153 = vld [vmem:[#allocation2 + $0x11c] sm:$0xff]
      %v5154 = vld [vmem:[#allocation2 + $0x124] sm:$0xff]
      %v5155 = vld [vmem:[#allocation2 + $0x12c] sm:$0xff]
      %v5156 = vld [vmem:[#allocation2 + $0x134] sm:$0xff]
      %v5157 = vld [vmem:[#allocation2 + $0x13c] sm:$0xff]
      %v5158 = vpack.c.bf16 %v5123, %v5122
      %v5159 = vpack.c.bf16 %v5125, %v5124
      %v5160 = vpack.c.bf16 %v5127, %v5126
      %v5161 = vpack.c.bf16 %v5129, %v5128
      %v5162 = vpack.c.bf16 %v5131, %v5130
      %v5163 = vpack.c.bf16 %v5133, %v5132
      %v5164 = vpack.c.bf16 %v5135, %v5134
      %v5165 = vpack.c.bf16 %v5137, %v5136
      %v5166 = vpack.c.bf16 %v5139, %v5138
      %v5167 = vpack.c.bf16 %v5141, %v5140
      %v5168 = vpack.c.bf16 %v5143, %v5142
      %v5169 = vpack.c.bf16 %v5145, %v5144
      %v5170 = vpack.c.bf16 %v5147, %v5146
      %v5171 = vpack.c.bf16 %v5149, %v5148
      %v5172 = vpack.c.bf16 %v5151, %v5150
      %v5173 = vpack.c.bf16 %v5153, %v5152
      %v5174 = vpack.c.bf16 %v5155, %v5154
      %v5175 = vpack.c.bf16 %v5157, %v5156
      %s5176 = scalar_lea.vmem %s2, 48
      %v5177 = vld [vmem:[%s5176] sm:$0xf]
      %v5178 = vld [vmem:[%s5176 + $0x4] sm:$0xf]
      %v5181 = vunpack.c.l.b16 %v5177
      %v5182 = vunpack.c.l.b16 %v5178
      %v5183 = vpack.c.b16 %v5182, %v5181
      %v5186 = vsel %vm570, %v5158, 0
      %v5189 = vsel %vm570, %v5159, 0
      %v5192 = vsel %vm570, %v5160, 0
      %v5195 = vsel %vm570, %v5161, 0
      %v5198 = vsel %vm570, %v5162, 0
      %v5201 = vsel %vm570, %v5163, 0
      %v5204 = vsel %vm570, %v5164, 0
      %v5207 = vsel %vm570, %v5165, 0
      %v5210 = vsel %vm570, %v5166, 0
      %v5213 = vsel %vm570, %v5167, 0
      %v5216 = vsel %vm570, %v5168, 0
      %v5219 = vsel %vm570, %v5169, 0
      %v5222 = vsel %vm570, %v5170, 0
      %v5225 = vsel %vm570, %v5171, 0
      %v5228 = vsel %vm570, %v5172, 0
      %v5231 = vsel %vm570, %v5173, 0
      %v5234 = vsel %vm570, %v5174, 0
      %v5237 = vsel %vm570, %v5175, 0
      %5239 = vmatpush.bf16.msra.mxu0 0
      %5240 = vmatpush.bf16.msra.mxu0 0
      %5241 = vmatpush.bf16.msra.mxu0 0
      %5242 = vmatpush.bf16.msra.mxu0 0
      %5243 = vmatpush.bf16.msra.mxu0 0
      %5244 = vmatpush.bf16.msra.mxu0 0
      %5245 = vmatpush.bf16.msra.mxu0 0
      %5246 = vmatpush.bf16.msra.mxu0 %v5183
      %5247 = vmatmul.bf16.gmra.mxu0 %v5186
      %v5248 = vpop.f32.mrf.mxu0
      %v5249 = vadd.f32 0.0, %v5248
      %v5250 = vpop.f32.mrf.mxu0
      %v5251 = vadd.f32 0.0, %v5250
      %5252 = vmatmul.bf16.gmra.mxu0 %v5189
      %v5253 = vpop.f32.mrf.mxu0
      %v5254 = vadd.f32 0.0, %v5253
      %v5255 = vpop.f32.mrf.mxu0
      %v5256 = vadd.f32 0.0, %v5255
      %5257 = vmatmul.bf16.gmra.mxu0 %v5192
      %v5258 = vpop.f32.mrf.mxu0
      %v5259 = vadd.f32 0.0, %v5258
      %v5260 = vpop.f32.mrf.mxu0
      %v5261 = vadd.f32 0.0, %v5260
      %5262 = vmatmul.bf16.gmra.mxu0 %v5195
      %v5263 = vpop.f32.mrf.mxu0
      %v5264 = vadd.f32 0.0, %v5263
      %v5265 = vpop.f32.mrf.mxu0
      %v5266 = vadd.f32 0.0, %v5265
      %5267 = vmatmul.bf16.gmra.mxu0 %v5198
      %v5268 = vpop.f32.mrf.mxu0
      %v5269 = vadd.f32 0.0, %v5268
      %v5270 = vpop.f32.mrf.mxu0
      %v5271 = vadd.f32 0.0, %v5270
      %5272 = vmatmul.bf16.gmra.mxu0 %v5201
      %v5273 = vpop.f32.mrf.mxu0
      %v5274 = vadd.f32 0.0, %v5273
      %v5275 = vpop.f32.mrf.mxu0
      %v5276 = vadd.f32 0.0, %v5275
      %5277 = vmatmul.bf16.gmra.mxu0 %v5204
      %v5278 = vpop.f32.mrf.mxu0
      %v5279 = vadd.f32 0.0, %v5278
      %v5280 = vpop.f32.mrf.mxu0
      %v5281 = vadd.f32 0.0, %v5280
      %5282 = vmatmul.bf16.gmra.mxu0 %v5207
      %v5283 = vpop.f32.mrf.mxu0
      %v5284 = vadd.f32 0.0, %v5283
      %v5285 = vpop.f32.mrf.mxu0
      %v5286 = vadd.f32 0.0, %v5285
      %5287 = vmatmul.bf16.gmra.mxu0 %v5210
      %v5288 = vpop.f32.mrf.mxu0
      %v5289 = vadd.f32 0.0, %v5288
      %v5290 = vpop.f32.mrf.mxu0
      %v5291 = vadd.f32 0.0, %v5290
      %5292 = vmatmul.bf16.gmra.mxu0 %v5213
      %v5293 = vpop.f32.mrf.mxu0
      %v5294 = vadd.f32 0.0, %v5293
      %v5295 = vpop.f32.mrf.mxu0
      %v5296 = vadd.f32 0.0, %v5295
      %5297 = vmatmul.bf16.gmra.mxu0 %v5216
      %v5298 = vpop.f32.mrf.mxu0
      %v5299 = vadd.f32 0.0, %v5298
      %v5300 = vpop.f32.mrf.mxu0
      %v5301 = vadd.f32 0.0, %v5300
      %5302 = vmatmul.bf16.gmra.mxu0 %v5219
      %v5303 = vpop.f32.mrf.mxu0
      %v5304 = vadd.f32 0.0, %v5303
      %v5305 = vpop.f32.mrf.mxu0
      %v5306 = vadd.f32 0.0, %v5305
      %5307 = vmatmul.bf16.gmra.mxu0 %v5222
      %v5308 = vpop.f32.mrf.mxu0
      %v5309 = vadd.f32 0.0, %v5308
      %v5310 = vpop.f32.mrf.mxu0
      %v5311 = vadd.f32 0.0, %v5310
      %5312 = vmatmul.bf16.gmra.mxu0 %v5225
      %v5313 = vpop.f32.mrf.mxu0
      %v5314 = vadd.f32 0.0, %v5313
      %v5315 = vpop.f32.mrf.mxu0
      %v5316 = vadd.f32 0.0, %v5315
      %5317 = vmatmul.bf16.gmra.mxu0 %v5228
      %v5318 = vpop.f32.mrf.mxu0
      %v5319 = vadd.f32 0.0, %v5318
      %v5320 = vpop.f32.mrf.mxu0
      %v5321 = vadd.f32 0.0, %v5320
      %5322 = vmatmul.bf16.gmra.mxu0 %v5231
      %v5323 = vpop.f32.mrf.mxu0
      %v5324 = vadd.f32 0.0, %v5323
      %v5325 = vpop.f32.mrf.mxu0
      %v5326 = vadd.f32 0.0, %v5325
      %5327 = vmatmul.bf16.gmra.mxu0 %v5234
      %v5328 = vpop.f32.mrf.mxu0
      %v5329 = vadd.f32 0.0, %v5328
      %v5330 = vpop.f32.mrf.mxu0
      %v5331 = vadd.f32 0.0, %v5330
      %5332 = vmatmul.bf16.gmra.mxu0 %v5237
      %v5333 = vpop.f32.mrf.mxu0
      %v5334 = vadd.f32 0.0, %v5333
      %v5335 = vpop.f32.mrf.mxu0
      %v5336 = vadd.f32 0.0, %v5335
      %5337 = vdwg.mxu0
      %v5338 = vadd.f32 %v5086, %v5249
      %v5339 = vadd.f32 %v5087, %v5251
      %v5340 = vadd.f32 %v5088, %v5254
      %v5341 = vadd.f32 %v5089, %v5256
      %v5342 = vadd.f32 %v5090, %v5259
      %v5343 = vadd.f32 %v5091, %v5261
      %v5344 = vadd.f32 %v5092, %v5264
      %v5345 = vadd.f32 %v5093, %v5266
      %v5346 = vadd.f32 %v5094, %v5269
      %v5347 = vadd.f32 %v5095, %v5271
      %v5348 = vadd.f32 %v5096, %v5274
      %v5349 = vadd.f32 %v5097, %v5276
      %v5350 = vadd.f32 %v5098, %v5279
      %v5351 = vadd.f32 %v5099, %v5281
      %v5352 = vadd.f32 %v5100, %v5284
      %v5353 = vadd.f32 %v5101, %v5286
      %v5354 = vadd.f32 %v5102, %v5289
      %v5355 = vadd.f32 %v5103, %v5291
      %v5356 = vadd.f32 %v5104, %v5294
      %v5357 = vadd.f32 %v5105, %v5296
      %v5358 = vadd.f32 %v5106, %v5299
      %v5359 = vadd.f32 %v5107, %v5301
      %v5360 = vadd.f32 %v5108, %v5304
      %v5361 = vadd.f32 %v5109, %v5306
      %v5362 = vadd.f32 %v5110, %v5309
      %v5363 = vadd.f32 %v5111, %v5311
      %v5364 = vadd.f32 %v5112, %v5314
      %v5365 = vadd.f32 %v5113, %v5316
      %v5366 = vadd.f32 %v5114, %v5319
      %v5367 = vadd.f32 %v5115, %v5321
      %v5368 = vadd.f32 %v5116, %v5324
      %v5369 = vadd.f32 %v5117, %v5326
      %v5370 = vadd.f32 %v5118, %v5329
      %v5371 = vadd.f32 %v5119, %v5331
      %v5372 = vadd.f32 %v5120, %v5334
      %v5373 = vadd.f32 %v5121, %v5336
      %v5374 = vld [vmem:[#allocation2 + $0x25] sm:$0xff]
      %v5375 = vld [vmem:[#allocation2 + $0x2d] sm:$0xff]
      %v5376 = vld [vmem:[#allocation2 + $0x35] sm:$0xff]
      %v5377 = vld [vmem:[#allocation2 + $0x3d] sm:$0xff]
      %v5378 = vld [vmem:[#allocation2 + $0x45] sm:$0xff]
      %v5379 = vld [vmem:[#allocation2 + $0x4d] sm:$0xff]
      %v5380 = vld [vmem:[#allocation2 + $0x55] sm:$0xff]
      %v5381 = vld [vmem:[#allocation2 + $0x5d] sm:$0xff]
      %v5382 = vld [vmem:[#allocation2 + $0x65] sm:$0xff]
      %v5383 = vld [vmem:[#allocation2 + $0x6d] sm:$0xff]
      %v5384 = vld [vmem:[#allocation2 + $0x75] sm:$0xff]
      %v5385 = vld [vmem:[#allocation2 + $0x7d] sm:$0xff]
      %v5386 = vld [vmem:[#allocation2 + $0x85] sm:$0xff]
      %v5387 = vld [vmem:[#allocation2 + $0x8d] sm:$0xff]
      %v5388 = vld [vmem:[#allocation2 + $0x95] sm:$0xff]
      %v5389 = vld [vmem:[#allocation2 + $0x9d] sm:$0xff]
      %v5390 = vld [vmem:[#allocation2 + $0xa5] sm:$0xff]
      %v5391 = vld [vmem:[#allocation2 + $0xad] sm:$0xff]
      %v5392 = vld [vmem:[#allocation2 + $0xb5] sm:$0xff]
      %v5393 = vld [vmem:[#allocation2 + $0xbd] sm:$0xff]
      %v5394 = vld [vmem:[#allocation2 + $0xc5] sm:$0xff]
      %v5395 = vld [vmem:[#allocation2 + $0xcd] sm:$0xff]
      %v5396 = vld [vmem:[#allocation2 + $0xd5] sm:$0xff]
      %v5397 = vld [vmem:[#allocation2 + $0xdd] sm:$0xff]
      %v5398 = vld [vmem:[#allocation2 + $0xe5] sm:$0xff]
      %v5399 = vld [vmem:[#allocation2 + $0xed] sm:$0xff]
      %v5400 = vld [vmem:[#allocation2 + $0xf5] sm:$0xff]
      %v5401 = vld [vmem:[#allocation2 + $0xfd] sm:$0xff]
      %v5402 = vld [vmem:[#allocation2 + $0x105] sm:$0xff]
      %v5403 = vld [vmem:[#allocation2 + $0x10d] sm:$0xff]
      %v5404 = vld [vmem:[#allocation2 + $0x115] sm:$0xff]
      %v5405 = vld [vmem:[#allocation2 + $0x11d] sm:$0xff]
      %v5406 = vld [vmem:[#allocation2 + $0x125] sm:$0xff]
      %v5407 = vld [vmem:[#allocation2 + $0x12d] sm:$0xff]
      %v5408 = vld [vmem:[#allocation2 + $0x135] sm:$0xff]
      %v5409 = vld [vmem:[#allocation2 + $0x13d] sm:$0xff]
      %v5410 = vpack.c.bf16 %v5375, %v5374
      %v5411 = vpack.c.bf16 %v5377, %v5376
      %v5412 = vpack.c.bf16 %v5379, %v5378
      %v5413 = vpack.c.bf16 %v5381, %v5380
      %v5414 = vpack.c.bf16 %v5383, %v5382
      %v5415 = vpack.c.bf16 %v5385, %v5384
      %v5416 = vpack.c.bf16 %v5387, %v5386
      %v5417 = vpack.c.bf16 %v5389, %v5388
      %v5418 = vpack.c.bf16 %v5391, %v5390
      %v5419 = vpack.c.bf16 %v5393, %v5392
      %v5420 = vpack.c.bf16 %v5395, %v5394
      %v5421 = vpack.c.bf16 %v5397, %v5396
      %v5422 = vpack.c.bf16 %v5399, %v5398
      %v5423 = vpack.c.bf16 %v5401, %v5400
      %v5424 = vpack.c.bf16 %v5403, %v5402
      %v5425 = vpack.c.bf16 %v5405, %v5404
      %v5426 = vpack.c.bf16 %v5407, %v5406
      %v5427 = vpack.c.bf16 %v5409, %v5408
      %s5428 = scalar_lea.vmem %s2, 56
      %v5429 = vld [vmem:[%s5428] sm:$0xf]
      %v5430 = vld [vmem:[%s5428 + $0x4] sm:$0xf]
      %v5433 = vunpack.c.l.b16 %v5429
      %v5434 = vunpack.c.l.b16 %v5430
      %v5435 = vpack.c.b16 %v5434, %v5433
      %v5438 = vsel %vm570, %v5410, 0
      %v5441 = vsel %vm570, %v5411, 0
      %v5444 = vsel %vm570, %v5412, 0
      %v5447 = vsel %vm570, %v5413, 0
      %v5450 = vsel %vm570, %v5414, 0
      %v5453 = vsel %vm570, %v5415, 0
      %v5456 = vsel %vm570, %v5416, 0
      %v5459 = vsel %vm570, %v5417, 0
      %v5462 = vsel %vm570, %v5418, 0
      %v5465 = vsel %vm570, %v5419, 0
      %v5468 = vsel %vm570, %v5420, 0
      %v5471 = vsel %vm570, %v5421, 0
      %v5474 = vsel %vm570, %v5422, 0
      %v5477 = vsel %vm570, %v5423, 0
      %v5480 = vsel %vm570, %v5424, 0
      %v5483 = vsel %vm570, %v5425, 0
      %v5486 = vsel %vm570, %v5426, 0
      %v5489 = vsel %vm570, %v5427, 0
      %5491 = vmatpush.bf16.msra.mxu0 0
      %5492 = vmatpush.bf16.msra.mxu0 0
      %5493 = vmatpush.bf16.msra.mxu0 0
      %5494 = vmatpush.bf16.msra.mxu0 0
      %5495 = vmatpush.bf16.msra.mxu0 0
      %5496 = vmatpush.bf16.msra.mxu0 0
      %5497 = vmatpush.bf16.msra.mxu0 0
      %5498 = vmatpush.bf16.msra.mxu0 %v5435
      %5499 = vmatmul.bf16.gmra.mxu0 %v5438
      %v5500 = vpop.f32.mrf.mxu0
      %v5501 = vadd.f32 0.0, %v5500
      %v5502 = vpop.f32.mrf.mxu0
      %v5503 = vadd.f32 0.0, %v5502
      %5504 = vmatmul.bf16.gmra.mxu0 %v5441
      %v5505 = vpop.f32.mrf.mxu0
      %v5506 = vadd.f32 0.0, %v5505
      %v5507 = vpop.f32.mrf.mxu0
      %v5508 = vadd.f32 0.0, %v5507
      %5509 = vmatmul.bf16.gmra.mxu0 %v5444
      %v5510 = vpop.f32.mrf.mxu0
      %v5511 = vadd.f32 0.0, %v5510
      %v5512 = vpop.f32.mrf.mxu0
      %v5513 = vadd.f32 0.0, %v5512
      %5514 = vmatmul.bf16.gmra.mxu0 %v5447
      %v5515 = vpop.f32.mrf.mxu0
      %v5516 = vadd.f32 0.0, %v5515
      %v5517 = vpop.f32.mrf.mxu0
      %v5518 = vadd.f32 0.0, %v5517
      %5519 = vmatmul.bf16.gmra.mxu0 %v5450
      %v5520 = vpop.f32.mrf.mxu0
      %v5521 = vadd.f32 0.0, %v5520
      %v5522 = vpop.f32.mrf.mxu0
      %v5523 = vadd.f32 0.0, %v5522
      %5524 = vmatmul.bf16.gmra.mxu0 %v5453
      %v5525 = vpop.f32.mrf.mxu0
      %v5526 = vadd.f32 0.0, %v5525
      %v5527 = vpop.f32.mrf.mxu0
      %v5528 = vadd.f32 0.0, %v5527
      %5529 = vmatmul.bf16.gmra.mxu0 %v5456
      %v5530 = vpop.f32.mrf.mxu0
      %v5531 = vadd.f32 0.0, %v5530
      %v5532 = vpop.f32.mrf.mxu0
      %v5533 = vadd.f32 0.0, %v5532
      %5534 = vmatmul.bf16.gmra.mxu0 %v5459
      %v5535 = vpop.f32.mrf.mxu0
      %v5536 = vadd.f32 0.0, %v5535
      %v5537 = vpop.f32.mrf.mxu0
      %v5538 = vadd.f32 0.0, %v5537
      %5539 = vmatmul.bf16.gmra.mxu0 %v5462
      %v5540 = vpop.f32.mrf.mxu0
      %v5541 = vadd.f32 0.0, %v5540
      %v5542 = vpop.f32.mrf.mxu0
      %v5543 = vadd.f32 0.0, %v5542
      %5544 = vmatmul.bf16.gmra.mxu0 %v5465
      %v5545 = vpop.f32.mrf.mxu0
      %v5546 = vadd.f32 0.0, %v5545
      %v5547 = vpop.f32.mrf.mxu0
      %v5548 = vadd.f32 0.0, %v5547
      %5549 = vmatmul.bf16.gmra.mxu0 %v5468
      %v5550 = vpop.f32.mrf.mxu0
      %v5551 = vadd.f32 0.0, %v5550
      %v5552 = vpop.f32.mrf.mxu0
      %v5553 = vadd.f32 0.0, %v5552
      %5554 = vmatmul.bf16.gmra.mxu0 %v5471
      %v5555 = vpop.f32.mrf.mxu0
      %v5556 = vadd.f32 0.0, %v5555
      %v5557 = vpop.f32.mrf.mxu0
      %v5558 = vadd.f32 0.0, %v5557
      %5559 = vmatmul.bf16.gmra.mxu0 %v5474
      %v5560 = vpop.f32.mrf.mxu0
      %v5561 = vadd.f32 0.0, %v5560
      %v5562 = vpop.f32.mrf.mxu0
      %v5563 = vadd.f32 0.0, %v5562
      %5564 = vmatmul.bf16.gmra.mxu0 %v5477
      %v5565 = vpop.f32.mrf.mxu0
      %v5566 = vadd.f32 0.0, %v5565
      %v5567 = vpop.f32.mrf.mxu0
      %v5568 = vadd.f32 0.0, %v5567
      %5569 = vmatmul.bf16.gmra.mxu0 %v5480
      %v5570 = vpop.f32.mrf.mxu0
      %v5571 = vadd.f32 0.0, %v5570
      %v5572 = vpop.f32.mrf.mxu0
      %v5573 = vadd.f32 0.0, %v5572
      %5574 = vmatmul.bf16.gmra.mxu0 %v5483
      %v5575 = vpop.f32.mrf.mxu0
      %v5576 = vadd.f32 0.0, %v5575
      %v5577 = vpop.f32.mrf.mxu0
      %v5578 = vadd.f32 0.0, %v5577
      %5579 = vmatmul.bf16.gmra.mxu0 %v5486
      %v5580 = vpop.f32.mrf.mxu0
      %v5581 = vadd.f32 0.0, %v5580
      %v5582 = vpop.f32.mrf.mxu0
      %v5583 = vadd.f32 0.0, %v5582
      %5584 = vmatmul.bf16.gmra.mxu0 %v5489
      %v5585 = vpop.f32.mrf.mxu0
      %v5586 = vadd.f32 0.0, %v5585
      %v5587 = vpop.f32.mrf.mxu0
      %v5588 = vadd.f32 0.0, %v5587
      %5589 = vdwg.mxu0
      %v5590 = vadd.f32 %v5338, %v5501
      %v5591 = vadd.f32 %v5339, %v5503
      %v5592 = vadd.f32 %v5340, %v5506
      %v5593 = vadd.f32 %v5341, %v5508
      %v5594 = vadd.f32 %v5342, %v5511
      %v5595 = vadd.f32 %v5343, %v5513
      %v5596 = vadd.f32 %v5344, %v5516
      %v5597 = vadd.f32 %v5345, %v5518
      %v5598 = vadd.f32 %v5346, %v5521
      %v5599 = vadd.f32 %v5347, %v5523
      %v5600 = vadd.f32 %v5348, %v5526
      %v5601 = vadd.f32 %v5349, %v5528
      %v5602 = vadd.f32 %v5350, %v5531
      %v5603 = vadd.f32 %v5351, %v5533
      %v5604 = vadd.f32 %v5352, %v5536
      %v5605 = vadd.f32 %v5353, %v5538
      %v5606 = vadd.f32 %v5354, %v5541
      %v5607 = vadd.f32 %v5355, %v5543
      %v5608 = vadd.f32 %v5356, %v5546
      %v5609 = vadd.f32 %v5357, %v5548
      %v5610 = vadd.f32 %v5358, %v5551
      %v5611 = vadd.f32 %v5359, %v5553
      %v5612 = vadd.f32 %v5360, %v5556
      %v5613 = vadd.f32 %v5361, %v5558
      %v5614 = vadd.f32 %v5362, %v5561
      %v5615 = vadd.f32 %v5363, %v5563
      %v5616 = vadd.f32 %v5364, %v5566
      %v5617 = vadd.f32 %v5365, %v5568
      %v5618 = vadd.f32 %v5366, %v5571
      %v5619 = vadd.f32 %v5367, %v5573
      %v5620 = vadd.f32 %v5368, %v5576
      %v5621 = vadd.f32 %v5369, %v5578
      %v5622 = vadd.f32 %v5370, %v5581
      %v5623 = vadd.f32 %v5371, %v5583
      %v5624 = vadd.f32 %v5372, %v5586
      %v5625 = vadd.f32 %v5373, %v5588
      %v5626 = vld [vmem:[#allocation2 + $0x26] sm:$0xff]
      %v5627 = vld [vmem:[#allocation2 + $0x2e] sm:$0xff]
      %v5628 = vld [vmem:[#allocation2 + $0x36] sm:$0xff]
      %v5629 = vld [vmem:[#allocation2 + $0x3e] sm:$0xff]
      %v5630 = vld [vmem:[#allocation2 + $0x46] sm:$0xff]
      %v5631 = vld [vmem:[#allocation2 + $0x4e] sm:$0xff]
      %v5632 = vld [vmem:[#allocation2 + $0x56] sm:$0xff]
      %v5633 = vld [vmem:[#allocation2 + $0x5e] sm:$0xff]
      %v5634 = vld [vmem:[#allocation2 + $0x66] sm:$0xff]
      %v5635 = vld [vmem:[#allocation2 + $0x6e] sm:$0xff]
      %v5636 = vld [vmem:[#allocation2 + $0x76] sm:$0xff]
      %v5637 = vld [vmem:[#allocation2 + $0x7e] sm:$0xff]
      %v5638 = vld [vmem:[#allocation2 + $0x86] sm:$0xff]
      %v5639 = vld [vmem:[#allocation2 + $0x8e] sm:$0xff]
      %v5640 = vld [vmem:[#allocation2 + $0x96] sm:$0xff]
      %v5641 = vld [vmem:[#allocation2 + $0x9e] sm:$0xff]
      %v5642 = vld [vmem:[#allocation2 + $0xa6] sm:$0xff]
      %v5643 = vld [vmem:[#allocation2 + $0xae] sm:$0xff]
      %v5644 = vld [vmem:[#allocation2 + $0xb6] sm:$0xff]
      %v5645 = vld [vmem:[#allocation2 + $0xbe] sm:$0xff]
      %v5646 = vld [vmem:[#allocation2 + $0xc6] sm:$0xff]
      %v5647 = vld [vmem:[#allocation2 + $0xce] sm:$0xff]
      %v5648 = vld [vmem:[#allocation2 + $0xd6] sm:$0xff]
      %v5649 = vld [vmem:[#allocation2 + $0xde] sm:$0xff]
      %v5650 = vld [vmem:[#allocation2 + $0xe6] sm:$0xff]
      %v5651 = vld [vmem:[#allocation2 + $0xee] sm:$0xff]
      %v5652 = vld [vmem:[#allocation2 + $0xf6] sm:$0xff]
      %v5653 = vld [vmem:[#allocation2 + $0xfe] sm:$0xff]
      %v5654 = vld [vmem:[#allocation2 + $0x106] sm:$0xff]
      %v5655 = vld [vmem:[#allocation2 + $0x10e] sm:$0xff]
      %v5656 = vld [vmem:[#allocation2 + $0x116] sm:$0xff]
      %v5657 = vld [vmem:[#allocation2 + $0x11e] sm:$0xff]
      %v5658 = vld [vmem:[#allocation2 + $0x126] sm:$0xff]
      %v5659 = vld [vmem:[#allocation2 + $0x12e] sm:$0xff]
      %v5660 = vld [vmem:[#allocation2 + $0x136] sm:$0xff]
      %v5661 = vld [vmem:[#allocation2 + $0x13e] sm:$0xff]
      %v5662 = vpack.c.bf16 %v5627, %v5626
      %v5663 = vpack.c.bf16 %v5629, %v5628
      %v5664 = vpack.c.bf16 %v5631, %v5630
      %v5665 = vpack.c.bf16 %v5633, %v5632
      %v5666 = vpack.c.bf16 %v5635, %v5634
      %v5667 = vpack.c.bf16 %v5637, %v5636
      %v5668 = vpack.c.bf16 %v5639, %v5638
      %v5669 = vpack.c.bf16 %v5641, %v5640
      %v5670 = vpack.c.bf16 %v5643, %v5642
      %v5671 = vpack.c.bf16 %v5645, %v5644
      %v5672 = vpack.c.bf16 %v5647, %v5646
      %v5673 = vpack.c.bf16 %v5649, %v5648
      %v5674 = vpack.c.bf16 %v5651, %v5650
      %v5675 = vpack.c.bf16 %v5653, %v5652
      %v5676 = vpack.c.bf16 %v5655, %v5654
      %v5677 = vpack.c.bf16 %v5657, %v5656
      %v5678 = vpack.c.bf16 %v5659, %v5658
      %v5679 = vpack.c.bf16 %v5661, %v5660
      %s5680 = scalar_lea.vmem %s2, 64
      %v5681 = vld [vmem:[%s5680] sm:$0xf]
      %v5682 = vld [vmem:[%s5680 + $0x4] sm:$0xf]
      %v5685 = vunpack.c.l.b16 %v5681
      %v5686 = vunpack.c.l.b16 %v5682
      %v5687 = vpack.c.b16 %v5686, %v5685
      %v5690 = vsel %vm570, %v5662, 0
      %v5693 = vsel %vm570, %v5663, 0
      %v5696 = vsel %vm570, %v5664, 0
      %v5699 = vsel %vm570, %v5665, 0
      %v5702 = vsel %vm570, %v5666, 0
      %v5705 = vsel %vm570, %v5667, 0
      %v5708 = vsel %vm570, %v5668, 0
      %v5711 = vsel %vm570, %v5669, 0
      %v5714 = vsel %vm570, %v5670, 0
      %v5717 = vsel %vm570, %v5671, 0
      %v5720 = vsel %vm570, %v5672, 0
      %v5723 = vsel %vm570, %v5673, 0
      %v5726 = vsel %vm570, %v5674, 0
      %v5729 = vsel %vm570, %v5675, 0
      %v5732 = vsel %vm570, %v5676, 0
      %v5735 = vsel %vm570, %v5677, 0
      %v5738 = vsel %vm570, %v5678, 0
      %v5741 = vsel %vm570, %v5679, 0
      %5743 = vmatpush.bf16.msra.mxu0 0
      %5744 = vmatpush.bf16.msra.mxu0 0
      %5745 = vmatpush.bf16.msra.mxu0 0
      %5746 = vmatpush.bf16.msra.mxu0 0
      %5747 = vmatpush.bf16.msra.mxu0 0
      %5748 = vmatpush.bf16.msra.mxu0 0
      %5749 = vmatpush.bf16.msra.mxu0 0
      %5750 = vmatpush.bf16.msra.mxu0 %v5687
      %5751 = vmatmul.bf16.gmra.mxu0 %v5690
      %v5752 = vpop.f32.mrf.mxu0
      %v5753 = vadd.f32 0.0, %v5752
      %v5754 = vpop.f32.mrf.mxu0
      %v5755 = vadd.f32 0.0, %v5754
      %5756 = vmatmul.bf16.gmra.mxu0 %v5693
      %v5757 = vpop.f32.mrf.mxu0
      %v5758 = vadd.f32 0.0, %v5757
      %v5759 = vpop.f32.mrf.mxu0
      %v5760 = vadd.f32 0.0, %v5759
      %5761 = vmatmul.bf16.gmra.mxu0 %v5696
      %v5762 = vpop.f32.mrf.mxu0
      %v5763 = vadd.f32 0.0, %v5762
      %v5764 = vpop.f32.mrf.mxu0
      %v5765 = vadd.f32 0.0, %v5764
      %5766 = vmatmul.bf16.gmra.mxu0 %v5699
      %v5767 = vpop.f32.mrf.mxu0
      %v5768 = vadd.f32 0.0, %v5767
      %v5769 = vpop.f32.mrf.mxu0
      %v5770 = vadd.f32 0.0, %v5769
      %5771 = vmatmul.bf16.gmra.mxu0 %v5702
      %v5772 = vpop.f32.mrf.mxu0
      %v5773 = vadd.f32 0.0, %v5772
      %v5774 = vpop.f32.mrf.mxu0
      %v5775 = vadd.f32 0.0, %v5774
      %5776 = vmatmul.bf16.gmra.mxu0 %v5705
      %v5777 = vpop.f32.mrf.mxu0
      %v5778 = vadd.f32 0.0, %v5777
      %v5779 = vpop.f32.mrf.mxu0
      %v5780 = vadd.f32 0.0, %v5779
      %5781 = vmatmul.bf16.gmra.mxu0 %v5708
      %v5782 = vpop.f32.mrf.mxu0
      %v5783 = vadd.f32 0.0, %v5782
      %v5784 = vpop.f32.mrf.mxu0
      %v5785 = vadd.f32 0.0, %v5784
      %5786 = vmatmul.bf16.gmra.mxu0 %v5711
      %v5787 = vpop.f32.mrf.mxu0
      %v5788 = vadd.f32 0.0, %v5787
      %v5789 = vpop.f32.mrf.mxu0
      %v5790 = vadd.f32 0.0, %v5789
      %5791 = vmatmul.bf16.gmra.mxu0 %v5714
      %v5792 = vpop.f32.mrf.mxu0
      %v5793 = vadd.f32 0.0, %v5792
      %v5794 = vpop.f32.mrf.mxu0
      %v5795 = vadd.f32 0.0, %v5794
      %5796 = vmatmul.bf16.gmra.mxu0 %v5717
      %v5797 = vpop.f32.mrf.mxu0
      %v5798 = vadd.f32 0.0, %v5797
      %v5799 = vpop.f32.mrf.mxu0
      %v5800 = vadd.f32 0.0, %v5799
      %5801 = vmatmul.bf16.gmra.mxu0 %v5720
      %v5802 = vpop.f32.mrf.mxu0
      %v5803 = vadd.f32 0.0, %v5802
      %v5804 = vpop.f32.mrf.mxu0
      %v5805 = vadd.f32 0.0, %v5804
      %5806 = vmatmul.bf16.gmra.mxu0 %v5723
      %v5807 = vpop.f32.mrf.mxu0
      %v5808 = vadd.f32 0.0, %v5807
      %v5809 = vpop.f32.mrf.mxu0
      %v5810 = vadd.f32 0.0, %v5809
      %5811 = vmatmul.bf16.gmra.mxu0 %v5726
      %v5812 = vpop.f32.mrf.mxu0
      %v5813 = vadd.f32 0.0, %v5812
      %v5814 = vpop.f32.mrf.mxu0
      %v5815 = vadd.f32 0.0, %v5814
      %5816 = vmatmul.bf16.gmra.mxu0 %v5729
      %v5817 = vpop.f32.mrf.mxu0
      %v5818 = vadd.f32 0.0, %v5817
      %v5819 = vpop.f32.mrf.mxu0
      %v5820 = vadd.f32 0.0, %v5819
      %5821 = vmatmul.bf16.gmra.mxu0 %v5732
      %v5822 = vpop.f32.mrf.mxu0
      %v5823 = vadd.f32 0.0, %v5822
      %v5824 = vpop.f32.mrf.mxu0
      %v5825 = vadd.f32 0.0, %v5824
      %5826 = vmatmul.bf16.gmra.mxu0 %v5735
      %v5827 = vpop.f32.mrf.mxu0
      %v5828 = vadd.f32 0.0, %v5827
      %v5829 = vpop.f32.mrf.mxu0
      %v5830 = vadd.f32 0.0, %v5829
      %5831 = vmatmul.bf16.gmra.mxu0 %v5738
      %v5832 = vpop.f32.mrf.mxu0
      %v5833 = vadd.f32 0.0, %v5832
      %v5834 = vpop.f32.mrf.mxu0
      %v5835 = vadd.f32 0.0, %v5834
      %5836 = vmatmul.bf16.gmra.mxu0 %v5741
      %v5837 = vpop.f32.mrf.mxu0
      %v5838 = vadd.f32 0.0, %v5837
      %v5839 = vpop.f32.mrf.mxu0
      %v5840 = vadd.f32 0.0, %v5839
      %5841 = vdwg.mxu0
      %v5842 = vadd.f32 %v5590, %v5753
      %v5843 = vadd.f32 %v5591, %v5755
      %v5844 = vadd.f32 %v5592, %v5758
      %v5845 = vadd.f32 %v5593, %v5760
      %v5846 = vadd.f32 %v5594, %v5763
      %v5847 = vadd.f32 %v5595, %v5765
      %v5848 = vadd.f32 %v5596, %v5768
      %v5849 = vadd.f32 %v5597, %v5770
      %v5850 = vadd.f32 %v5598, %v5773
      %v5851 = vadd.f32 %v5599, %v5775
      %v5852 = vadd.f32 %v5600, %v5778
      %v5853 = vadd.f32 %v5601, %v5780
      %v5854 = vadd.f32 %v5602, %v5783
      %v5855 = vadd.f32 %v5603, %v5785
      %v5856 = vadd.f32 %v5604, %v5788
      %v5857 = vadd.f32 %v5605, %v5790
      %v5858 = vadd.f32 %v5606, %v5793
      %v5859 = vadd.f32 %v5607, %v5795
      %v5860 = vadd.f32 %v5608, %v5798
      %v5861 = vadd.f32 %v5609, %v5800
      %v5862 = vadd.f32 %v5610, %v5803
      %v5863 = vadd.f32 %v5611, %v5805
      %v5864 = vadd.f32 %v5612, %v5808
      %v5865 = vadd.f32 %v5613, %v5810
      %v5866 = vadd.f32 %v5614, %v5813
      %v5867 = vadd.f32 %v5615, %v5815
      %v5868 = vadd.f32 %v5616, %v5818
      %v5869 = vadd.f32 %v5617, %v5820
      %v5870 = vadd.f32 %v5618, %v5823
      %v5871 = vadd.f32 %v5619, %v5825
      %v5872 = vadd.f32 %v5620, %v5828
      %v5873 = vadd.f32 %v5621, %v5830
      %v5874 = vadd.f32 %v5622, %v5833
      %v5875 = vadd.f32 %v5623, %v5835
      %v5876 = vadd.f32 %v5624, %v5838
      %v5877 = vadd.f32 %v5625, %v5840
      %v5878 = vld [vmem:[%s4] sm:$0x1]
      %v5880 = vperm.slane %v5878, 0
      %v5882 = vadd.f32 %v5842, %v5880
      %v5883 = vadd.f32 %v5843, %v5880
      %v5884 = vadd.f32 %v5844, %v5880
      %v5885 = vadd.f32 %v5845, %v5880
      %v5886 = vadd.f32 %v5846, %v5880
      %v5887 = vadd.f32 %v5847, %v5880
      %v5888 = vadd.f32 %v5848, %v5880
      %v5889 = vadd.f32 %v5849, %v5880
      %v5890 = vadd.f32 %v5850, %v5880
      %v5891 = vadd.f32 %v5851, %v5880
      %v5892 = vadd.f32 %v5852, %v5880
      %v5893 = vadd.f32 %v5853, %v5880
      %v5894 = vadd.f32 %v5854, %v5880
      %v5895 = vadd.f32 %v5855, %v5880
      %v5896 = vadd.f32 %v5856, %v5880
      %v5897 = vadd.f32 %v5857, %v5880
      %v5898 = vadd.f32 %v5858, %v5880
      %v5899 = vadd.f32 %v5859, %v5880
      %v5900 = vadd.f32 %v5860, %v5880
      %v5901 = vadd.f32 %v5861, %v5880
      %v5902 = vadd.f32 %v5862, %v5880
      %v5903 = vadd.f32 %v5863, %v5880
      %v5904 = vadd.f32 %v5864, %v5880
      %v5905 = vadd.f32 %v5865, %v5880
      %v5906 = vadd.f32 %v5866, %v5880
      %v5907 = vadd.f32 %v5867, %v5880
      %v5908 = vadd.f32 %v5868, %v5880
      %v5909 = vadd.f32 %v5869, %v5880
      %v5910 = vadd.f32 %v5870, %v5880
      %v5911 = vadd.f32 %v5871, %v5880
      %v5912 = vadd.f32 %v5872, %v5880
      %v5913 = vadd.f32 %v5873, %v5880
      %v5914 = vadd.f32 %v5874, %v5880
      %v5915 = vadd.f32 %v5875, %v5880
      %v5916 = vadd.f32 %v5876, %v5880
      %v5917 = vadd.f32 %v5877, %v5880
      %5954 = vrot.lane.b32.xlu0 %v2651, 112
      %v5955 = vpop.permute.xlu0 %5954
      %5956 = vrot.lane.b32.xlu0 %v2652, 112
      %v5957 = vpop.permute.xlu0 %5956
      %5958 = vrot.lane.b32.xlu0 %v2653, 112
      %v5959 = vpop.permute.xlu0 %5958
      %5960 = vrot.lane.b32.xlu0 %v2654, 112
      %v5961 = vpop.permute.xlu0 %5960
      %5962 = vrot.lane.b32.xlu0 %v2655, 112
      %v5963 = vpop.permute.xlu0 %5962
      %5964 = vrot.lane.b32.xlu0 %v2656, 112
      %v5965 = vpop.permute.xlu0 %5964
      %5966 = vrot.lane.b32.xlu0 %v2657, 112
      %v5967 = vpop.permute.xlu0 %5966
      %5968 = vrot.lane.b32.xlu0 %v2658, 112
      %v5969 = vpop.permute.xlu0 %5968
      %5970 = vrot.lane.b32.xlu0 %v2659, 112
      %v5971 = vpop.permute.xlu0 %5970
      %5972 = vrot.lane.b32.xlu0 %v2660, 112
      %v5973 = vpop.permute.xlu0 %5972
      %5974 = vrot.lane.b32.xlu0 %v2661, 112
      %v5975 = vpop.permute.xlu0 %5974
      %5976 = vrot.lane.b32.xlu0 %v2662, 112
      %v5977 = vpop.permute.xlu0 %5976
      %5978 = vrot.lane.b32.xlu0 %v2663, 112
      %v5979 = vpop.permute.xlu0 %5978
      %5980 = vrot.lane.b32.xlu0 %v2664, 112
      %v5981 = vpop.permute.xlu0 %5980
      %5982 = vrot.lane.b32.xlu0 %v2665, 112
      %v5983 = vpop.permute.xlu0 %5982
      %5984 = vrot.lane.b32.xlu0 %v2666, 112
      %v5985 = vpop.permute.xlu0 %5984
      %5986 = vrot.lane.b32.xlu0 %v2667, 112
      %v5987 = vpop.permute.xlu0 %5986
      %5988 = vrot.lane.b32.xlu0 %v2668, 112
      %v5989 = vpop.permute.xlu0 %5988
      %5990 = vrot.lane.b32.xlu0 %v2669, 112
      %v5991 = vpop.permute.xlu0 %5990
      %5992 = vrot.lane.b32.xlu0 %v2670, 112
      %v5993 = vpop.permute.xlu0 %5992
      %5994 = vrot.lane.b32.xlu0 %v2671, 112
      %v5995 = vpop.permute.xlu0 %5994
      %5996 = vrot.lane.b32.xlu0 %v2672, 112
      %v5997 = vpop.permute.xlu0 %5996
      %5998 = vrot.lane.b32.xlu0 %v2673, 112
      %v5999 = vpop.permute.xlu0 %5998
      %6000 = vrot.lane.b32.xlu0 %v2674, 112
      %v6001 = vpop.permute.xlu0 %6000
      %6002 = vrot.lane.b32.xlu0 %v2675, 112
      %v6003 = vpop.permute.xlu0 %6002
      %6004 = vrot.lane.b32.xlu0 %v2676, 112
      %v6005 = vpop.permute.xlu0 %6004
      %6006 = vrot.lane.b32.xlu0 %v2677, 112
      %v6007 = vpop.permute.xlu0 %6006
      %6008 = vrot.lane.b32.xlu0 %v2678, 112
      %v6009 = vpop.permute.xlu0 %6008
      %6010 = vrot.lane.b32.xlu0 %v2679, 112
      %v6011 = vpop.permute.xlu0 %6010
      %6012 = vrot.lane.b32.xlu0 %v2680, 112
      %v6013 = vpop.permute.xlu0 %6012
      %6014 = vrot.lane.b32.xlu0 %v2681, 112
      %v6015 = vpop.permute.xlu0 %6014
      %6016 = vrot.lane.b32.xlu0 %v2682, 112
      %v6017 = vpop.permute.xlu0 %6016
      %6018 = vrot.lane.b32.xlu0 %v2683, 112
      %v6019 = vpop.permute.xlu0 %6018
      %6020 = vrot.lane.b32.xlu0 %v2684, 112
      %v6021 = vpop.permute.xlu0 %6020
      %6022 = vrot.lane.b32.xlu0 %v2685, 112
      %v6023 = vpop.permute.xlu0 %6022
      %6024 = vrot.lane.b32.xlu0 %v2686, 112
      %v6025 = vpop.permute.xlu0 %6024
      %v6062 = vadd.f32 %v5882, %v5955
      %v6063 = vadd.f32 %v5883, %v5957
      %v6064 = vadd.f32 %v5884, %v5959
      %v6065 = vadd.f32 %v5885, %v5961
      %v6066 = vadd.f32 %v5886, %v5963
      %v6067 = vadd.f32 %v5887, %v5965
      %v6068 = vadd.f32 %v5888, %v5967
      %v6069 = vadd.f32 %v5889, %v5969
      %v6070 = vadd.f32 %v5890, %v5971
      %v6071 = vadd.f32 %v5891, %v5973
      %v6072 = vadd.f32 %v5892, %v5975
      %v6073 = vadd.f32 %v5893, %v5977
      %v6074 = vadd.f32 %v5894, %v5979
      %v6075 = vadd.f32 %v5895, %v5981
      %v6076 = vadd.f32 %v5896, %v5983
      %v6077 = vadd.f32 %v5897, %v5985
      %v6078 = vadd.f32 %v5898, %v5987
      %v6079 = vadd.f32 %v5899, %v5989
      %v6080 = vadd.f32 %v5900, %v5991
      %v6081 = vadd.f32 %v5901, %v5993
      %v6082 = vadd.f32 %v5902, %v5995
      %v6083 = vadd.f32 %v5903, %v5997
      %v6084 = vadd.f32 %v5904, %v5999
      %v6085 = vadd.f32 %v5905, %v6001
      %v6086 = vadd.f32 %v5906, %v6003
      %v6087 = vadd.f32 %v5907, %v6005
      %v6088 = vadd.f32 %v5908, %v6007
      %v6089 = vadd.f32 %v5909, %v6009
      %v6090 = vadd.f32 %v5910, %v6011
      %v6091 = vadd.f32 %v5911, %v6013
      %v6092 = vadd.f32 %v5912, %v6015
      %v6093 = vadd.f32 %v5913, %v6017
      %v6094 = vadd.f32 %v5914, %v6019
      %v6095 = vadd.f32 %v5915, %v6021
      %v6096 = vadd.f32 %v5916, %v6023
      %v6097 = vadd.f32 %v5917, %v6025
      %v6098 = vld [vmem:[%s8] sm:$0xff]
      %v6099 = vld [vmem:[%s8 + $0x8] sm:$0xff]
      %v6100 = vld [vmem:[%s8 + $0x10] sm:$0xff]
      %v6101 = vld [vmem:[%s8 + $0x18] sm:$0xff]
      %v6102 = vld [vmem:[%s9] sm:$0x1]
      %v6103 = vld [vmem:[%s10] sm:$0x1]
      %v6104 = vmul.f32 %v6062, %v2694
      %v6105 = vmul.f32 %v6063, %v2699
      %v6106 = vmul.f32 %v6064, %v2704
      %v6107 = vmul.f32 %v6065, %v2709
      %v6108 = vmul.f32 %v6066, %v2714
      %v6109 = vmul.f32 %v6067, %v2719
      %v6110 = vmul.f32 %v6068, %v2724
      %v6111 = vmul.f32 %v6069, %v2729
      %v6112 = vmul.f32 %v6070, %v2734
      %v6113 = vmul.f32 %v6071, %v2739
      %v6114 = vmul.f32 %v6072, %v2744
      %v6115 = vmul.f32 %v6073, %v2749
      %v6116 = vmul.f32 %v6074, %v2754
      %v6117 = vmul.f32 %v6075, %v2759
      %v6118 = vmul.f32 %v6076, %v2764
      %v6119 = vmul.f32 %v6077, %v2769
      %v6120 = vmul.f32 %v6078, %v2774
      %v6121 = vmul.f32 %v6079, %v2779
      %v6122 = vmul.f32 %v6080, %v2784
      %v6123 = vmul.f32 %v6081, %v2789
      %v6124 = vmul.f32 %v6082, %v2794
      %v6125 = vmul.f32 %v6083, %v2799
      %v6126 = vmul.f32 %v6084, %v2804
      %v6127 = vmul.f32 %v6085, %v2809
      %v6128 = vmul.f32 %v6086, %v2814
      %v6129 = vmul.f32 %v6087, %v2819
      %v6130 = vmul.f32 %v6088, %v2824
      %v6131 = vmul.f32 %v6089, %v2829
      %v6132 = vmul.f32 %v6090, %v2834
      %v6133 = vmul.f32 %v6091, %v2839
      %v6134 = vmul.f32 %v6092, %v2844
      %v6135 = vmul.f32 %v6093, %v2849
      %v6136 = vmul.f32 %v6094, %v2854
      %v6137 = vmul.f32 %v6095, %v2859
      %v6138 = vmul.f32 %v6096, %v2864
      %v6139 = vmul.f32 %v6097, %v2869
      %vm6140 = vcmask 261120
      %v6141 = vsel %vm6140, %v6104, 0.0
      %v6142 = vsel %vm6140, %v6105, 0.0
      %v6143 = vadd.f32 %v6141, %v6142
      %v6144 = vsel %vm6140, %v6106, 0.0
      %v6145 = vadd.f32 %v6143, %v6144
      %v6146 = vsel %vm6140, %v6107, 0.0
      %v6147 = vadd.f32 %v6145, %v6146
      %v6148 = vsel %vm6140, %v6108, 0.0
      %v6149 = vadd.f32 %v6147, %v6148
      %v6150 = vsel %vm6140, %v6109, 0.0
      %v6151 = vadd.f32 %v6149, %v6150
      %v6152 = vsel %vm6140, %v6110, 0.0
      %v6153 = vadd.f32 %v6151, %v6152
      %v6154 = vsel %vm6140, %v6111, 0.0
      %v6155 = vadd.f32 %v6153, %v6154
      %v6156 = vsel %vm6140, %v6112, 0.0
      %v6157 = vadd.f32 %v6155, %v6156
      %v6158 = vsel %vm6140, %v6113, 0.0
      %v6159 = vadd.f32 %v6157, %v6158
      %v6160 = vsel %vm6140, %v6114, 0.0
      %v6161 = vadd.f32 %v6159, %v6160
      %v6162 = vsel %vm6140, %v6115, 0.0
      %v6163 = vadd.f32 %v6161, %v6162
      %v6164 = vsel %vm6140, %v6116, 0.0
      %v6165 = vadd.f32 %v6163, %v6164
      %v6166 = vsel %vm6140, %v6117, 0.0
      %v6167 = vadd.f32 %v6165, %v6166
      %v6168 = vsel %vm6140, %v6118, 0.0
      %v6169 = vadd.f32 %v6167, %v6168
      %v6170 = vsel %vm6140, %v6119, 0.0
      %v6171 = vadd.f32 %v6169, %v6170
      %v6172 = vsel %vm6140, %v6120, 0.0
      %v6173 = vadd.f32 %v6171, %v6172
      %v6174 = vsel %vm6140, %v6121, 0.0
      %v6175 = vadd.f32 %v6173, %v6174
      %v6176 = vsel %vm6140, %v6122, 0.0
      %v6177 = vadd.f32 %v6175, %v6176
      %v6178 = vsel %vm6140, %v6123, 0.0
      %v6179 = vadd.f32 %v6177, %v6178
      %v6180 = vsel %vm6140, %v6124, 0.0
      %v6181 = vadd.f32 %v6179, %v6180
      %v6182 = vsel %vm6140, %v6125, 0.0
      %v6183 = vadd.f32 %v6181, %v6182
      %v6184 = vsel %vm6140, %v6126, 0.0
      %v6185 = vadd.f32 %v6183, %v6184
      %v6186 = vsel %vm6140, %v6127, 0.0
      %v6187 = vadd.f32 %v6185, %v6186
      %v6188 = vsel %vm6140, %v6128, 0.0
      %v6189 = vadd.f32 %v6187, %v6188
      %v6190 = vsel %vm6140, %v6129, 0.0
      %v6191 = vadd.f32 %v6189, %v6190
      %v6192 = vsel %vm6140, %v6130, 0.0
      %v6193 = vadd.f32 %v6191, %v6192
      %v6194 = vsel %vm6140, %v6131, 0.0
      %v6195 = vadd.f32 %v6193, %v6194
      %v6196 = vsel %vm6140, %v6132, 0.0
      %v6197 = vadd.f32 %v6195, %v6196
      %v6198 = vsel %vm6140, %v6133, 0.0
      %v6199 = vadd.f32 %v6197, %v6198
      %v6200 = vsel %vm6140, %v6134, 0.0
      %v6201 = vadd.f32 %v6199, %v6200
      %v6202 = vsel %vm6140, %v6135, 0.0
      %v6203 = vadd.f32 %v6201, %v6202
      %v6204 = vsel %vm6140, %v6136, 0.0
      %v6205 = vadd.f32 %v6203, %v6204
      %v6206 = vsel %vm6140, %v6137, 0.0
      %v6207 = vadd.f32 %v6205, %v6206
      %v6208 = vsel %vm6140, %v6138, 0.0
      %v6209 = vadd.f32 %v6207, %v6208
      %v6210 = vsel %vm6140, %v6139, 0.0
      %v6211 = vadd.f32 %v6209, %v6210
      %v6212 = vrot.slane %v6211, 4
      %v6213 = vadd.f32 %v6211, %v6212
      %v6214 = vrot.slane %v6213, 2
      %v6215 = vadd.f32 %v6213, %v6214
      %v6216 = vrot.slane %v6215, 1
      %v6217 = vadd.f32 %v6215, %v6216
      %v6219 = vsel %vm6140, %v6217, 0
      %6221 = vmatpush.msra.mxu0 0.0
      %6222 = vmatpush.msra.mxu0 0.0
      %6223 = vmatpush.msra.mxu0 0.0
      %6224 = vmatpush.msra.mxu0 0.0
      %6225 = vmatpush.msra.mxu0 0.0
      %6226 = vmatpush.msra.mxu0 0.0
      %6227 = vmatpush.msra.mxu0 0.0
      %6228 = vmatpush.msra.mxu0 0.0
      %6229 = vmatpush.msra.mxu0 0.0
      %6230 = vmatpush.msra.mxu0 0.0
      %6231 = vmatpush.msra.mxu0 0.0
      %6232 = vmatpush.msra.mxu0 0.0
      %6233 = vmatpush.msra.mxu0 %v6101
      %6234 = vmatpush.msra.mxu0 %v6100
      %6235 = vmatpush.msra.mxu0 %v6099
      %6236 = vmatpush.msra.mxu0 %v6098
      %6237 = vmatmul.f32.gmra.mxu0 %v6219
      %v6238 = vpop.f32.mrf.mxu0
      %v6239 = vadd.f32 0.0, %v6238
      %6240 = vdwg.mxu0
      %v6241 = vrcp.pop 512.0
      %v6242 = vmul.f32 512.0, %v6241
      %v6243 = vsub.f32 1.0, %v6242
      %v6244 = vmul.f32 %v6241, %v6243
      %v6245 = vadd.f32 %v6241, %v6244
      %vm6246 = vweird.f32 %v6241
      %v6247 = vsel %vm6246, %v6241, %v6245
      %v6248 = vmul.f32 %v6239, %v6247
      %v6249 = vperm.slane %v6248, 0
      %v6250 = vsub.f32 %v6062, %v6249
      %v6251 = vsub.f32 %v6063, %v6249
      %v6252 = vsub.f32 %v6064, %v6249
      %v6253 = vsub.f32 %v6065, %v6249
      %v6254 = vsub.f32 %v6066, %v6249
      %v6255 = vsub.f32 %v6067, %v6249
      %v6256 = vsub.f32 %v6068, %v6249
      %v6257 = vsub.f32 %v6069, %v6249
      %v6258 = vsub.f32 %v6070, %v6249
      %v6259 = vsub.f32 %v6071, %v6249
      %v6260 = vsub.f32 %v6072, %v6249
      %v6261 = vsub.f32 %v6073, %v6249
      %v6262 = vsub.f32 %v6074, %v6249
      %v6263 = vsub.f32 %v6075, %v6249
      %v6264 = vsub.f32 %v6076, %v6249
      %v6265 = vsub.f32 %v6077, %v6249
      %v6266 = vsub.f32 %v6078, %v6249
      %v6267 = vsub.f32 %v6079, %v6249
      %v6268 = vsub.f32 %v6080, %v6249
      %v6269 = vsub.f32 %v6081, %v6249
      %v6270 = vsub.f32 %v6082, %v6249
      %v6271 = vsub.f32 %v6083, %v6249
      %v6272 = vsub.f32 %v6084, %v6249
      %v6273 = vsub.f32 %v6085, %v6249
      %v6274 = vsub.f32 %v6086, %v6249
      %v6275 = vsub.f32 %v6087, %v6249
      %v6276 = vsub.f32 %v6088, %v6249
      %v6277 = vsub.f32 %v6089, %v6249
      %v6278 = vsub.f32 %v6090, %v6249
      %v6279 = vsub.f32 %v6091, %v6249
      %v6280 = vsub.f32 %v6092, %v6249
      %v6281 = vsub.f32 %v6093, %v6249
      %v6282 = vsub.f32 %v6094, %v6249
      %v6283 = vsub.f32 %v6095, %v6249
      %v6284 = vsub.f32 %v6096, %v6249
      %v6285 = vsub.f32 %v6097, %v6249
      %v6286 = vmul.f32 %v6250, %v6250
      %v6287 = vmul.f32 %v6251, %v6251
      %v6288 = vmul.f32 %v6252, %v6252
      %v6289 = vmul.f32 %v6253, %v6253
      %v6290 = vmul.f32 %v6254, %v6254
      %v6291 = vmul.f32 %v6255, %v6255
      %v6292 = vmul.f32 %v6256, %v6256
      %v6293 = vmul.f32 %v6257, %v6257
      %v6294 = vmul.f32 %v6258, %v6258
      %v6295 = vmul.f32 %v6259, %v6259
      %v6296 = vmul.f32 %v6260, %v6260
      %v6297 = vmul.f32 %v6261, %v6261
      %v6298 = vmul.f32 %v6262, %v6262
      %v6299 = vmul.f32 %v6263, %v6263
      %v6300 = vmul.f32 %v6264, %v6264
      %v6301 = vmul.f32 %v6265, %v6265
      %v6302 = vmul.f32 %v6266, %v6266
      %v6303 = vmul.f32 %v6267, %v6267
      %v6304 = vmul.f32 %v6268, %v6268
      %v6305 = vmul.f32 %v6269, %v6269
      %v6306 = vmul.f32 %v6270, %v6270
      %v6307 = vmul.f32 %v6271, %v6271
      %v6308 = vmul.f32 %v6272, %v6272
      %v6309 = vmul.f32 %v6273, %v6273
      %v6310 = vmul.f32 %v6274, %v6274
      %v6311 = vmul.f32 %v6275, %v6275
      %v6312 = vmul.f32 %v6276, %v6276
      %v6313 = vmul.f32 %v6277, %v6277
      %v6314 = vmul.f32 %v6278, %v6278
      %v6315 = vmul.f32 %v6279, %v6279
      %v6316 = vmul.f32 %v6280, %v6280
      %v6317 = vmul.f32 %v6281, %v6281
      %v6318 = vmul.f32 %v6282, %v6282
      %v6319 = vmul.f32 %v6283, %v6283
      %v6320 = vmul.f32 %v6284, %v6284
      %v6321 = vmul.f32 %v6285, %v6285
      %v6322 = vmul.f32 %v2694, %v6286
      %v6323 = vmul.f32 %v2699, %v6287
      %v6324 = vmul.f32 %v2704, %v6288
      %v6325 = vmul.f32 %v2709, %v6289
      %v6326 = vmul.f32 %v2714, %v6290
      %v6327 = vmul.f32 %v2719, %v6291
      %v6328 = vmul.f32 %v2724, %v6292
      %v6329 = vmul.f32 %v2729, %v6293
      %v6330 = vmul.f32 %v2734, %v6294
      %v6331 = vmul.f32 %v2739, %v6295
      %v6332 = vmul.f32 %v2744, %v6296
      %v6333 = vmul.f32 %v2749, %v6297
      %v6334 = vmul.f32 %v2754, %v6298
      %v6335 = vmul.f32 %v2759, %v6299
      %v6336 = vmul.f32 %v2764, %v6300
      %v6337 = vmul.f32 %v2769, %v6301
      %v6338 = vmul.f32 %v2774, %v6302
      %v6339 = vmul.f32 %v2779, %v6303
      %v6340 = vmul.f32 %v2784, %v6304
      %v6341 = vmul.f32 %v2789, %v6305
      %v6342 = vmul.f32 %v2794, %v6306
      %v6343 = vmul.f32 %v2799, %v6307
      %v6344 = vmul.f32 %v2804, %v6308
      %v6345 = vmul.f32 %v2809, %v6309
      %v6346 = vmul.f32 %v2814, %v6310
      %v6347 = vmul.f32 %v2819, %v6311
      %v6348 = vmul.f32 %v2824, %v6312
      %v6349 = vmul.f32 %v2829, %v6313
      %v6350 = vmul.f32 %v2834, %v6314
      %v6351 = vmul.f32 %v2839, %v6315
      %v6352 = vmul.f32 %v2844, %v6316
      %v6353 = vmul.f32 %v2849, %v6317
      %v6354 = vmul.f32 %v2854, %v6318
      %v6355 = vmul.f32 %v2859, %v6319
      %v6356 = vmul.f32 %v2864, %v6320
      %v6357 = vmul.f32 %v2869, %v6321
      %v6358 = vsel %vm6140, %v6322, 0.0
      %v6359 = vsel %vm6140, %v6323, 0.0
      %v6360 = vadd.f32 %v6358, %v6359
      %v6361 = vsel %vm6140, %v6324, 0.0
      %v6362 = vadd.f32 %v6360, %v6361
      %v6363 = vsel %vm6140, %v6325, 0.0
      %v6364 = vadd.f32 %v6362, %v6363
      %v6365 = vsel %vm6140, %v6326, 0.0
      %v6366 = vadd.f32 %v6364, %v6365
      %v6367 = vsel %vm6140, %v6327, 0.0
      %v6368 = vadd.f32 %v6366, %v6367
      %v6369 = vsel %vm6140, %v6328, 0.0
      %v6370 = vadd.f32 %v6368, %v6369
      %v6371 = vsel %vm6140, %v6329, 0.0
      %v6372 = vadd.f32 %v6370, %v6371
      %v6373 = vsel %vm6140, %v6330, 0.0
      %v6374 = vadd.f32 %v6372, %v6373
      %v6375 = vsel %vm6140, %v6331, 0.0
      %v6376 = vadd.f32 %v6374, %v6375
      %v6377 = vsel %vm6140, %v6332, 0.0
      %v6378 = vadd.f32 %v6376, %v6377
      %v6379 = vsel %vm6140, %v6333, 0.0
      %v6380 = vadd.f32 %v6378, %v6379
      %v6381 = vsel %vm6140, %v6334, 0.0
      %v6382 = vadd.f32 %v6380, %v6381
      %v6383 = vsel %vm6140, %v6335, 0.0
      %v6384 = vadd.f32 %v6382, %v6383
      %v6385 = vsel %vm6140, %v6336, 0.0
      %v6386 = vadd.f32 %v6384, %v6385
      %v6387 = vsel %vm6140, %v6337, 0.0
      %v6388 = vadd.f32 %v6386, %v6387
      %v6389 = vsel %vm6140, %v6338, 0.0
      %v6390 = vadd.f32 %v6388, %v6389
      %v6391 = vsel %vm6140, %v6339, 0.0
      %v6392 = vadd.f32 %v6390, %v6391
      %v6393 = vsel %vm6140, %v6340, 0.0
      %v6394 = vadd.f32 %v6392, %v6393
      %v6395 = vsel %vm6140, %v6341, 0.0
      %v6396 = vadd.f32 %v6394, %v6395
      %v6397 = vsel %vm6140, %v6342, 0.0
      %v6398 = vadd.f32 %v6396, %v6397
      %v6399 = vsel %vm6140, %v6343, 0.0
      %v6400 = vadd.f32 %v6398, %v6399
      %v6401 = vsel %vm6140, %v6344, 0.0
      %v6402 = vadd.f32 %v6400, %v6401
      %v6403 = vsel %vm6140, %v6345, 0.0
      %v6404 = vadd.f32 %v6402, %v6403
      %v6405 = vsel %vm6140, %v6346, 0.0
      %v6406 = vadd.f32 %v6404, %v6405
      %v6407 = vsel %vm6140, %v6347, 0.0
      %v6408 = vadd.f32 %v6406, %v6407
      %v6409 = vsel %vm6140, %v6348, 0.0
      %v6410 = vadd.f32 %v6408, %v6409
      %v6411 = vsel %vm6140, %v6349, 0.0
      %v6412 = vadd.f32 %v6410, %v6411
      %v6413 = vsel %vm6140, %v6350, 0.0
      %v6414 = vadd.f32 %v6412, %v6413
      %v6415 = vsel %vm6140, %v6351, 0.0
      %v6416 = vadd.f32 %v6414, %v6415
      %v6417 = vsel %vm6140, %v6352, 0.0
      %v6418 = vadd.f32 %v6416, %v6417
      %v6419 = vsel %vm6140, %v6353, 0.0
      %v6420 = vadd.f32 %v6418, %v6419
      %v6421 = vsel %vm6140, %v6354, 0.0
      %v6422 = vadd.f32 %v6420, %v6421
      %v6423 = vsel %vm6140, %v6355, 0.0
      %v6424 = vadd.f32 %v6422, %v6423
      %v6425 = vsel %vm6140, %v6356, 0.0
      %v6426 = vadd.f32 %v6424, %v6425
      %v6427 = vsel %vm6140, %v6357, 0.0
      %v6428 = vadd.f32 %v6426, %v6427
      %v6429 = vrot.slane %v6428, 4
      %v6430 = vadd.f32 %v6428, %v6429
      %v6431 = vrot.slane %v6430, 2
      %v6432 = vadd.f32 %v6430, %v6431
      %v6433 = vrot.slane %v6432, 1
      %v6434 = vadd.f32 %v6432, %v6433
      %v6436 = vsel %vm6140, %v6434, 0
      %6438 = vmatpush.msra.mxu0 0.0
      %6439 = vmatpush.msra.mxu0 0.0
      %6440 = vmatpush.msra.mxu0 0.0
      %6441 = vmatpush.msra.mxu0 0.0
      %6442 = vmatpush.msra.mxu0 0.0
      %6443 = vmatpush.msra.mxu0 0.0
      %6444 = vmatpush.msra.mxu0 0.0
      %6445 = vmatpush.msra.mxu0 0.0
      %6446 = vmatpush.msra.mxu0 0.0
      %6447 = vmatpush.msra.mxu0 0.0
      %6448 = vmatpush.msra.mxu0 0.0
      %6449 = vmatpush.msra.mxu0 0.0
      %6450 = vmatpush.msra.mxu0 %v6101
      %6451 = vmatpush.msra.mxu0 %v6100
      %6452 = vmatpush.msra.mxu0 %v6099
      %6453 = vmatpush.msra.mxu0 %v6098
      %6454 = vmatmul.f32.gmra.mxu0 %v6436
      %v6455 = vpop.f32.mrf.mxu0
      %v6456 = vadd.f32 0.0, %v6455
      %6457 = vdwg.mxu0
      %v6458 = vmul.f32 %v6456, %v6247
      %v6459 = vadd.f32 %v6458, 1e-05
      %v6460 = vrsqrt.pop %v6459
      %v6461 = vmul.f32 %v6460, %v6459
      %v6462 = vmul.f32 %v6461, %v6460
      %v6463 = vmul.f32 0.5, %v6462
      %v6464 = vsub.f32 1.5, %v6463
      %v6465 = vmul.f32 %v6460, %v6464
      %vm6466 = vweird.f32 %v6459
      %vm6467 = vweird.f32 %v6460
      %vm6468 = vmor %vm6466, %vm6467
      %v6469 = vsel %vm6468, %v6460, %v6465
      %v6470 = vperm.slane %v6469, 0
      %v6471 = vmul.f32 %v6250, %v6470
      %v6472 = vmul.f32 %v6251, %v6470
      %v6473 = vmul.f32 %v6252, %v6470
      %v6474 = vmul.f32 %v6253, %v6470
      %v6475 = vmul.f32 %v6254, %v6470
      %v6476 = vmul.f32 %v6255, %v6470
      %v6477 = vmul.f32 %v6256, %v6470
      %v6478 = vmul.f32 %v6257, %v6470
      %v6479 = vmul.f32 %v6258, %v6470
      %v6480 = vmul.f32 %v6259, %v6470
      %v6481 = vmul.f32 %v6260, %v6470
      %v6482 = vmul.f32 %v6261, %v6470
      %v6483 = vmul.f32 %v6262, %v6470
      %v6484 = vmul.f32 %v6263, %v6470
      %v6485 = vmul.f32 %v6264, %v6470
      %v6486 = vmul.f32 %v6265, %v6470
      %v6487 = vmul.f32 %v6266, %v6470
      %v6488 = vmul.f32 %v6267, %v6470
      %v6489 = vmul.f32 %v6268, %v6470
      %v6490 = vmul.f32 %v6269, %v6470
      %v6491 = vmul.f32 %v6270, %v6470
      %v6492 = vmul.f32 %v6271, %v6470
      %v6493 = vmul.f32 %v6272, %v6470
      %v6494 = vmul.f32 %v6273, %v6470
      %v6495 = vmul.f32 %v6274, %v6470
      %v6496 = vmul.f32 %v6275, %v6470
      %v6497 = vmul.f32 %v6276, %v6470
      %v6498 = vmul.f32 %v6277, %v6470
      %v6499 = vmul.f32 %v6278, %v6470
      %v6500 = vmul.f32 %v6279, %v6470
      %v6501 = vmul.f32 %v6280, %v6470
      %v6502 = vmul.f32 %v6281, %v6470
      %v6503 = vmul.f32 %v6282, %v6470
      %v6504 = vmul.f32 %v6283, %v6470
      %v6505 = vmul.f32 %v6284, %v6470
      %v6506 = vmul.f32 %v6285, %v6470
      %v6508 = vperm.slane %v6102, 0
      %v6510 = vmul.f32 %v6471, %v6508
      %v6511 = vmul.f32 %v6472, %v6508
      %v6512 = vmul.f32 %v6473, %v6508
      %v6513 = vmul.f32 %v6474, %v6508
      %v6514 = vmul.f32 %v6475, %v6508
      %v6515 = vmul.f32 %v6476, %v6508
      %v6516 = vmul.f32 %v6477, %v6508
      %v6517 = vmul.f32 %v6478, %v6508
      %v6518 = vmul.f32 %v6479, %v6508
      %v6519 = vmul.f32 %v6480, %v6508
      %v6520 = vmul.f32 %v6481, %v6508
      %v6521 = vmul.f32 %v6482, %v6508
      %v6522 = vmul.f32 %v6483, %v6508
      %v6523 = vmul.f32 %v6484, %v6508
      %v6524 = vmul.f32 %v6485, %v6508
      %v6525 = vmul.f32 %v6486, %v6508
      %v6526 = vmul.f32 %v6487, %v6508
      %v6527 = vmul.f32 %v6488, %v6508
      %v6528 = vmul.f32 %v6489, %v6508
      %v6529 = vmul.f32 %v6490, %v6508
      %v6530 = vmul.f32 %v6491, %v6508
      %v6531 = vmul.f32 %v6492, %v6508
      %v6532 = vmul.f32 %v6493, %v6508
      %v6533 = vmul.f32 %v6494, %v6508
      %v6534 = vmul.f32 %v6495, %v6508
      %v6535 = vmul.f32 %v6496, %v6508
      %v6536 = vmul.f32 %v6497, %v6508
      %v6537 = vmul.f32 %v6498, %v6508
      %v6538 = vmul.f32 %v6499, %v6508
      %v6539 = vmul.f32 %v6500, %v6508
      %v6540 = vmul.f32 %v6501, %v6508
      %v6541 = vmul.f32 %v6502, %v6508
      %v6542 = vmul.f32 %v6503, %v6508
      %v6543 = vmul.f32 %v6504, %v6508
      %v6544 = vmul.f32 %v6505, %v6508
      %v6545 = vmul.f32 %v6506, %v6508
      %v6547 = vperm.slane %v6103, 0
      %v6549 = vadd.f32 %v6510, %v6547
      %v6550 = vadd.f32 %v6511, %v6547
      %v6551 = vadd.f32 %v6512, %v6547
      %v6552 = vadd.f32 %v6513, %v6547
      %v6553 = vadd.f32 %v6514, %v6547
      %v6554 = vadd.f32 %v6515, %v6547
      %v6555 = vadd.f32 %v6516, %v6547
      %v6556 = vadd.f32 %v6517, %v6547
      %v6557 = vadd.f32 %v6518, %v6547
      %v6558 = vadd.f32 %v6519, %v6547
      %v6559 = vadd.f32 %v6520, %v6547
      %v6560 = vadd.f32 %v6521, %v6547
      %v6561 = vadd.f32 %v6522, %v6547
      %v6562 = vadd.f32 %v6523, %v6547
      %v6563 = vadd.f32 %v6524, %v6547
      %v6564 = vadd.f32 %v6525, %v6547
      %v6565 = vadd.f32 %v6526, %v6547
      %v6566 = vadd.f32 %v6527, %v6547
      %v6567 = vadd.f32 %v6528, %v6547
      %v6568 = vadd.f32 %v6529, %v6547
      %v6569 = vadd.f32 %v6530, %v6547
      %v6570 = vadd.f32 %v6531, %v6547
      %v6571 = vadd.f32 %v6532, %v6547
      %v6572 = vadd.f32 %v6533, %v6547
      %v6573 = vadd.f32 %v6534, %v6547
      %v6574 = vadd.f32 %v6535, %v6547
      %v6575 = vadd.f32 %v6536, %v6547
      %v6576 = vadd.f32 %v6537, %v6547
      %v6577 = vadd.f32 %v6538, %v6547
      %v6578 = vadd.f32 %v6539, %v6547
      %v6579 = vadd.f32 %v6540, %v6547
      %v6580 = vadd.f32 %v6541, %v6547
      %v6581 = vadd.f32 %v6542, %v6547
      %v6582 = vadd.f32 %v6543, %v6547
      %v6583 = vadd.f32 %v6544, %v6547
      %v6584 = vadd.f32 %v6545, %v6547
      %vm6585 = vcmp.gt.f32.partialorder %v6549, 0.0
      %vm6586 = vcmp.gt.f32.partialorder %v6550, 0.0
      %vm6587 = vcmp.gt.f32.partialorder %v6551, 0.0
      %vm6588 = vcmp.gt.f32.partialorder %v6552, 0.0
      %vm6589 = vcmp.gt.f32.partialorder %v6553, 0.0
      %vm6590 = vcmp.gt.f32.partialorder %v6554, 0.0
      %vm6591 = vcmp.gt.f32.partialorder %v6555, 0.0
      %vm6592 = vcmp.gt.f32.partialorder %v6556, 0.0
      %vm6593 = vcmp.gt.f32.partialorder %v6557, 0.0
      %vm6594 = vcmp.gt.f32.partialorder %v6558, 0.0
      %vm6595 = vcmp.gt.f32.partialorder %v6559, 0.0
      %vm6596 = vcmp.gt.f32.partialorder %v6560, 0.0
      %vm6597 = vcmp.gt.f32.partialorder %v6561, 0.0
      %vm6598 = vcmp.gt.f32.partialorder %v6562, 0.0
      %vm6599 = vcmp.gt.f32.partialorder %v6563, 0.0
      %vm6600 = vcmp.gt.f32.partialorder %v6564, 0.0
      %vm6601 = vcmp.gt.f32.partialorder %v6565, 0.0
      %vm6602 = vcmp.gt.f32.partialorder %v6566, 0.0
      %vm6603 = vcmp.gt.f32.partialorder %v6567, 0.0
      %vm6604 = vcmp.gt.f32.partialorder %v6568, 0.0
      %vm6605 = vcmp.gt.f32.partialorder %v6569, 0.0
      %vm6606 = vcmp.gt.f32.partialorder %v6570, 0.0
      %vm6607 = vcmp.gt.f32.partialorder %v6571, 0.0
      %vm6608 = vcmp.gt.f32.partialorder %v6572, 0.0
      %vm6609 = vcmp.gt.f32.partialorder %v6573, 0.0
      %vm6610 = vcmp.gt.f32.partialorder %v6574, 0.0
      %vm6611 = vcmp.gt.f32.partialorder %v6575, 0.0
      %vm6612 = vcmp.gt.f32.partialorder %v6576, 0.0
      %vm6613 = vcmp.gt.f32.partialorder %v6577, 0.0
      %vm6614 = vcmp.gt.f32.partialorder %v6578, 0.0
      %vm6615 = vcmp.gt.f32.partialorder %v6579, 0.0
      %vm6616 = vcmp.gt.f32.partialorder %v6580, 0.0
      %vm6617 = vcmp.gt.f32.partialorder %v6581, 0.0
      %vm6618 = vcmp.gt.f32.partialorder %v6582, 0.0
      %vm6619 = vcmp.gt.f32.partialorder %v6583, 0.0
      %vm6620 = vcmp.gt.f32.partialorder %v6584, 0.0
      %v6621 = vmin.f32 %v6549, 0.0
      %v6622 = vmin.f32 %v6550, 0.0
      %v6623 = vmin.f32 %v6551, 0.0
      %v6624 = vmin.f32 %v6552, 0.0
      %v6625 = vmin.f32 %v6553, 0.0
      %v6626 = vmin.f32 %v6554, 0.0
      %v6627 = vmin.f32 %v6555, 0.0
      %v6628 = vmin.f32 %v6556, 0.0
      %v6629 = vmin.f32 %v6557, 0.0
      %v6630 = vmin.f32 %v6558, 0.0
      %v6631 = vmin.f32 %v6559, 0.0
      %v6632 = vmin.f32 %v6560, 0.0
      %v6633 = vmin.f32 %v6561, 0.0
      %v6634 = vmin.f32 %v6562, 0.0
      %v6635 = vmin.f32 %v6563, 0.0
      %v6636 = vmin.f32 %v6564, 0.0
      %v6637 = vmin.f32 %v6565, 0.0
      %v6638 = vmin.f32 %v6566, 0.0
      %v6639 = vmin.f32 %v6567, 0.0
      %v6640 = vmin.f32 %v6568, 0.0
      %v6641 = vmin.f32 %v6569, 0.0
      %v6642 = vmin.f32 %v6570, 0.0
      %v6643 = vmin.f32 %v6571, 0.0
      %v6644 = vmin.f32 %v6572, 0.0
      %v6645 = vmin.f32 %v6573, 0.0
      %v6646 = vmin.f32 %v6574, 0.0
      %v6647 = vmin.f32 %v6575, 0.0
      %v6648 = vmin.f32 %v6576, 0.0
      %v6649 = vmin.f32 %v6577, 0.0
      %v6650 = vmin.f32 %v6578, 0.0
      %v6651 = vmin.f32 %v6579, 0.0
      %v6652 = vmin.f32 %v6580, 0.0
      %v6653 = vmin.f32 %v6581, 0.0
      %v6654 = vmin.f32 %v6582, 0.0
      %v6655 = vmin.f32 %v6583, 0.0
      %v6656 = vmin.f32 %v6584, 0.0
      %v6657 = vmul.f32 %v6621, 1.442695
      %v6658 = vpow.pop %v6657
      %v6659 = vmul.f32 %v6622, 1.442695
      %v6660 = vpow.pop %v6659
      %v6661 = vmul.f32 %v6623, 1.442695
      %v6662 = vpow.pop %v6661
      %v6663 = vmul.f32 %v6624, 1.442695
      %v6664 = vpow.pop %v6663
      %v6665 = vmul.f32 %v6625, 1.442695
      %v6666 = vpow.pop %v6665
      %v6667 = vmul.f32 %v6626, 1.442695
      %v6668 = vpow.pop %v6667
      %v6669 = vmul.f32 %v6627, 1.442695
      %v6670 = vpow.pop %v6669
      %v6671 = vmul.f32 %v6628, 1.442695
      %v6672 = vpow.pop %v6671
      %v6673 = vmul.f32 %v6629, 1.442695
      %v6674 = vpow.pop %v6673
      %v6675 = vmul.f32 %v6630, 1.442695
      %v6676 = vpow.pop %v6675
      %v6677 = vmul.f32 %v6631, 1.442695
      %v6678 = vpow.pop %v6677
      %v6679 = vmul.f32 %v6632, 1.442695
      %v6680 = vpow.pop %v6679
      %v6681 = vmul.f32 %v6633, 1.442695
      %v6682 = vpow.pop %v6681
      %v6683 = vmul.f32 %v6634, 1.442695
      %v6684 = vpow.pop %v6683
      %v6685 = vmul.f32 %v6635, 1.442695
      %v6686 = vpow.pop %v6685
      %v6687 = vmul.f32 %v6636, 1.442695
      %v6688 = vpow.pop %v6687
      %v6689 = vmul.f32 %v6637, 1.442695
      %v6690 = vpow.pop %v6689
      %v6691 = vmul.f32 %v6638, 1.442695
      %v6692 = vpow.pop %v6691
      %v6693 = vmul.f32 %v6639, 1.442695
      %v6694 = vpow.pop %v6693
      %v6695 = vmul.f32 %v6640, 1.442695
      %v6696 = vpow.pop %v6695
      %v6697 = vmul.f32 %v6641, 1.442695
      %v6698 = vpow.pop %v6697
      %v6699 = vmul.f32 %v6642, 1.442695
      %v6700 = vpow.pop %v6699
      %v6701 = vmul.f32 %v6643, 1.442695
      %v6702 = vpow.pop %v6701
      %v6703 = vmul.f32 %v6644, 1.442695
      %v6704 = vpow.pop %v6703
      %v6705 = vmul.f32 %v6645, 1.442695
      %v6706 = vpow.pop %v6705
      %v6707 = vmul.f32 %v6646, 1.442695
      %v6708 = vpow.pop %v6707
      %v6709 = vmul.f32 %v6647, 1.442695
      %v6710 = vpow.pop %v6709
      %v6711 = vmul.f32 %v6648, 1.442695
      %v6712 = vpow.pop %v6711
      %v6713 = vmul.f32 %v6649, 1.442695
      %v6714 = vpow.pop %v6713
      %v6715 = vmul.f32 %v6650, 1.442695
      %v6716 = vpow.pop %v6715
      %v6717 = vmul.f32 %v6651, 1.442695
      %v6718 = vpow.pop %v6717
      %v6719 = vmul.f32 %v6652, 1.442695
      %v6720 = vpow.pop %v6719
      %v6721 = vmul.f32 %v6653, 1.442695
      %v6722 = vpow.pop %v6721
      %v6723 = vmul.f32 %v6654, 1.442695
      %v6724 = vpow.pop %v6723
      %v6725 = vmul.f32 %v6655, 1.442695
      %v6726 = vpow.pop %v6725
      %v6727 = vmul.f32 %v6656, 1.442695
      %v6728 = vpow.pop %v6727
      %v6729 = vsub.f32 %v6658, 1.0
      %v6730 = vsub.f32 %v6660, 1.0
      %v6731 = vsub.f32 %v6662, 1.0
      %v6732 = vsub.f32 %v6664, 1.0
      %v6733 = vsub.f32 %v6666, 1.0
      %v6734 = vsub.f32 %v6668, 1.0
      %v6735 = vsub.f32 %v6670, 1.0
      %v6736 = vsub.f32 %v6672, 1.0
      %v6737 = vsub.f32 %v6674, 1.0
      %v6738 = vsub.f32 %v6676, 1.0
      %v6739 = vsub.f32 %v6678, 1.0
      %v6740 = vsub.f32 %v6680, 1.0
      %v6741 = vsub.f32 %v6682, 1.0
      %v6742 = vsub.f32 %v6684, 1.0
      %v6743 = vsub.f32 %v6686, 1.0
      %v6744 = vsub.f32 %v6688, 1.0
      %v6745 = vsub.f32 %v6690, 1.0
      %v6746 = vsub.f32 %v6692, 1.0
      %v6747 = vsub.f32 %v6694, 1.0
      %v6748 = vsub.f32 %v6696, 1.0
      %v6749 = vsub.f32 %v6698, 1.0
      %v6750 = vsub.f32 %v6700, 1.0
      %v6751 = vsub.f32 %v6702, 1.0
      %v6752 = vsub.f32 %v6704, 1.0
      %v6753 = vsub.f32 %v6706, 1.0
      %v6754 = vsub.f32 %v6708, 1.0
      %v6755 = vsub.f32 %v6710, 1.0
      %v6756 = vsub.f32 %v6712, 1.0
      %v6757 = vsub.f32 %v6714, 1.0
      %v6758 = vsub.f32 %v6716, 1.0
      %v6759 = vsub.f32 %v6718, 1.0
      %v6760 = vsub.f32 %v6720, 1.0
      %v6761 = vsub.f32 %v6722, 1.0
      %v6762 = vsub.f32 %v6724, 1.0
      %v6763 = vsub.f32 %v6726, 1.0
      %v6764 = vsub.f32 %v6728, 1.0
      %v6765 = vsel %vm6585, %v6549, %v6729
      %v6766 = vsel %vm6586, %v6550, %v6730
      %v6767 = vsel %vm6587, %v6551, %v6731
      %v6768 = vsel %vm6588, %v6552, %v6732
      %v6769 = vsel %vm6589, %v6553, %v6733
      %v6770 = vsel %vm6590, %v6554, %v6734
      %v6771 = vsel %vm6591, %v6555, %v6735
      %v6772 = vsel %vm6592, %v6556, %v6736
      %v6773 = vsel %vm6593, %v6557, %v6737
      %v6774 = vsel %vm6594, %v6558, %v6738
      %v6775 = vsel %vm6595, %v6559, %v6739
      %v6776 = vsel %vm6596, %v6560, %v6740
      %v6777 = vsel %vm6597, %v6561, %v6741
      %v6778 = vsel %vm6598, %v6562, %v6742
      %v6779 = vsel %vm6599, %v6563, %v6743
      %v6780 = vsel %vm6600, %v6564, %v6744
      %v6781 = vsel %vm6601, %v6565, %v6745
      %v6782 = vsel %vm6602, %v6566, %v6746
      %v6783 = vsel %vm6603, %v6567, %v6747
      %v6784 = vsel %vm6604, %v6568, %v6748
      %v6785 = vsel %vm6605, %v6569, %v6749
      %v6786 = vsel %vm6606, %v6570, %v6750
      %v6787 = vsel %vm6607, %v6571, %v6751
      %v6788 = vsel %vm6608, %v6572, %v6752
      %v6789 = vsel %vm6609, %v6573, %v6753
      %v6790 = vsel %vm6610, %v6574, %v6754
      %v6791 = vsel %vm6611, %v6575, %v6755
      %v6792 = vsel %vm6612, %v6576, %v6756
      %v6793 = vsel %vm6613, %v6577, %v6757
      %v6794 = vsel %vm6614, %v6578, %v6758
      %v6795 = vsel %vm6615, %v6579, %v6759
      %v6796 = vsel %vm6616, %v6580, %v6760
      %v6797 = vsel %vm6617, %v6581, %v6761
      %v6798 = vsel %vm6618, %v6582, %v6762
      %v6799 = vsel %vm6619, %v6583, %v6763
      %v6800 = vsel %vm6620, %v6584, %v6764
      %6801 = vst.msk [vmem:[%s413] sm:$0xff] %vm6140, %v6765
      %6802 = vst.msk [vmem:[%s413 + $0x8] sm:$0xff] %vm6140, %v6766
      %6803 = vst.msk [vmem:[%s413 + $0x10] sm:$0xff] %vm6140, %v6767
      %6804 = vst.msk [vmem:[%s413 + $0x18] sm:$0xff] %vm6140, %v6768
      %6805 = vst.msk [vmem:[%s413 + $0x20] sm:$0xff] %vm6140, %v6769
      %6806 = vst.msk [vmem:[%s413 + $0x28] sm:$0xff] %vm6140, %v6770
      %6807 = vst.msk [vmem:[%s413 + $0x30] sm:$0xff] %vm6140, %v6771
      %6808 = vst.msk [vmem:[%s413 + $0x38] sm:$0xff] %vm6140, %v6772
      %6809 = vst.msk [vmem:[%s413 + $0x40] sm:$0xff] %vm6140, %v6773
      %6810 = vst.msk [vmem:[%s413 + $0x48] sm:$0xff] %vm6140, %v6774
      %6811 = vst.msk [vmem:[%s413 + $0x50] sm:$0xff] %vm6140, %v6775
      %6812 = vst.msk [vmem:[%s413 + $0x58] sm:$0xff] %vm6140, %v6776
      %6813 = vst.msk [vmem:[%s413 + $0x60] sm:$0xff] %vm6140, %v6777
      %6814 = vst.msk [vmem:[%s413 + $0x68] sm:$0xff] %vm6140, %v6778
      %6815 = vst.msk [vmem:[%s413 + $0x70] sm:$0xff] %vm6140, %v6779
      %6816 = vst.msk [vmem:[%s413 + $0x78] sm:$0xff] %vm6140, %v6780
      %6817 = vst.msk [vmem:[%s413 + $0x80] sm:$0xff] %vm6140, %v6781
      %6818 = vst.msk [vmem:[%s413 + $0x88] sm:$0xff] %vm6140, %v6782
      %6819 = vst.msk [vmem:[%s413 + $0x90] sm:$0xff] %vm6140, %v6783
      %6820 = vst.msk [vmem:[%s413 + $0x98] sm:$0xff] %vm6140, %v6784
      %6821 = vst.msk [vmem:[%s413 + $0xa0] sm:$0xff] %vm6140, %v6785
      %6822 = vst.msk [vmem:[%s413 + $0xa8] sm:$0xff] %vm6140, %v6786
      %6823 = vst.msk [vmem:[%s413 + $0xb0] sm:$0xff] %vm6140, %v6787
      %6824 = vst.msk [vmem:[%s413 + $0xb8] sm:$0xff] %vm6140, %v6788
      %6825 = vst.msk [vmem:[%s413 + $0xc0] sm:$0xff] %vm6140, %v6789
      %6826 = vst.msk [vmem:[%s413 + $0xc8] sm:$0xff] %vm6140, %v6790
      %6827 = vst.msk [vmem:[%s413 + $0xd0] sm:$0xff] %vm6140, %v6791
      %6828 = vst.msk [vmem:[%s413 + $0xd8] sm:$0xff] %vm6140, %v6792
      %6829 = vst.msk [vmem:[%s413 + $0xe0] sm:$0xff] %vm6140, %v6793
      %6830 = vst.msk [vmem:[%s413 + $0xe8] sm:$0xff] %vm6140, %v6794
      %6831 = vst.msk [vmem:[%s413 + $0xf0] sm:$0xff] %vm6140, %v6795
      %6832 = vst.msk [vmem:[%s413 + $0xf8] sm:$0xff] %vm6140, %v6796
      %6833 = vst.msk [vmem:[%s413 + $0x100] sm:$0xff] %vm6140, %v6797
      %6834 = vst.msk [vmem:[%s413 + $0x108] sm:$0xff] %vm6140, %v6798
      %6835 = vst.msk [vmem:[%s413 + $0x110] sm:$0xff] %vm6140, %v6799
      %6836 = vst.msk [vmem:[%s413 + $0x118] sm:$0xff] %vm6140, %v6800
      %p6837 = scmp.lt.s32.totalorder %s23, 1
      %s6838 = scalar_select %p6837, %s23, 1
      %s6839 = smul.addr %s6838, 36
      %s6840 = smul.addr %s6839, 8
      %s6841 = scalar_lea.vmem %s12, %s6840
      // Predicated region
      $region69: #{tpu_custom_call.1} parent=67 // pred_check
        %p6842 = pneg %p298
      $region70: #{tpu_custom_call.1} parent=67 // pred_check_branch
        %6844 = sbr.rel (%p6842) target = $region72
      $region71: #{tpu_custom_call.1} parent=67 // pred_region
        _
      $region72: #{tpu_custom_call.1} parent=67 // pred_fallthru
        _
    $region68: #{tpu_custom_call.1} parent=5 // pred_fallthru
      _
    %p6845 = scmp.le.s32.totalorder 2, %s18
    // Predicated region
    $region73: #{tpu_custom_call.1} parent=5 // pred_check
      %p6846 = pneg %p6845
    $region74: #{tpu_custom_call.1} parent=5 // pred_check_branch
      %6848 = sbr.rel (%p6846) target = $region76
    $region75: #{tpu_custom_call.1} parent=5 // pred_region
      %s6849 = ssub.s32 %s18, 2
      // Predicated region
      $region77: #{tpu_custom_call.1} parent=75 // pred_check
        %p6850 = pneg %p304
      $region78: #{tpu_custom_call.1} parent=75 // pred_check_branch
        %6852 = sbr.rel (%p6850) target = $region80
      $region79: #{tpu_custom_call.1} parent=75 // pred_region
        %p6853 = scmp.lt.s32.totalorder %s24, 1
        %s6854 = scalar_select %p6853, %s24, 1
        %s6855 = smul.addr %s6854, 36
        %s6856 = smul.addr %s6855, 8
        %s6857 = scalar_lea.vmem %s12, %s6856
      $region80: #{tpu_custom_call.1} parent=75 // pred_fallthru
        _
    $region76: #{tpu_custom_call.1} parent=5 // pred_fallthru
      _
  $region6: #{tpu_custom_call.1} parent=0 // loop_footer
    %s22 = sadd.s32 1, %s18
  $region7: #{tpu_custom_call.1} parent=0 // loop_footer_branch
    %17 = sbr.rel target = $region3
  $region8: #{tpu_custom_call.1} parent=0 // loop_exit
    _

</llo_original>
